<compile_context>
chip_gen: v6e
topology: v6e:2x2x1
jax: 0.10.0
libtpu: 0.0.40
codegen_flags: <defaults>
</compile_context>

<pallas_src>
import functools

import jax
import jax.numpy as jnp
from jax.experimental import pallas as pl
from jax.experimental.pallas import tpu as pltpu

BN_EPS = 1e-5
H = 1024      # width of hidden layers 0..2
H3 = 128      # width of hidden layer 3
OUT_W = 128   # lane-dense padded output width (>= output_size)


def _bn_relu_train(h, gamma, beta):
    """Training-mode BatchNorm1d + ReLU (biased batch var, centered two-pass)."""
    mean = jnp.mean(h, axis=0, keepdims=True)            # [1, F]  (XLU reduce)
    c = h - mean
    var = jnp.mean(c * c, axis=0, keepdims=True)         # biased var, as torch train
    scale = gamma * jax.lax.rsqrt(var + BN_EPS)          # EUP rsqrt
    return jnp.maximum(c * scale + beta, 0.0)            # FMA + max per element


def mi_meta_kernel(x_ref, w0_ref, w12_ref, w34_ref, bnb_ref, out_ref):
    # b0..b3 omitted: constant per-feature bias is removed exactly by the
    # train-mode BN mean subtraction; only the final bias b4 (bnb row 8) is kept.
    x = x_ref[...].astype(jnp.bfloat16)                                   # (B, in)

    h = jnp.dot(x, w0_ref[...], preferred_element_type=jnp.float32)      # (B, 1024)
    h = _bn_relu_train(h, bnb_ref[0:1, :], bnb_ref[1:2, :])

    h = jnp.dot(h.astype(jnp.bfloat16), w12_ref[:, 0:H],
                preferred_element_type=jnp.float32)
    h = _bn_relu_train(h, bnb_ref[2:3, :], bnb_ref[3:4, :])

    h = jnp.dot(h.astype(jnp.bfloat16), w12_ref[:, H:2 * H],
                preferred_element_type=jnp.float32)
    h = _bn_relu_train(h, bnb_ref[4:5, :], bnb_ref[5:6, :])

    h = jnp.dot(h.astype(jnp.bfloat16), w34_ref[0:H, :],
                preferred_element_type=jnp.float32)                        # (B, 128)
    h = _bn_relu_train(h, bnb_ref[6:7, 0:H3], bnb_ref[7:8, 0:H3])

    logits = (jnp.dot(h.astype(jnp.bfloat16), w34_ref[H:H + H3, :],
                      preferred_element_type=jnp.float32)
              + bnb_ref[8:9, 0:OUT_W])                                     # (B, 128)
    # sigmoid: exp on the EUP; approx reciprocal keeps the divide off the VALU.
    out_ref[...] = pl.reciprocal(1.0 + jnp.exp(-logits), approx=True)


def init_params(key, input_size, output_size):
    """Deterministic synthetic parameters. Weights stored [F_in, F_out] (x @ W)."""
    dims = [(input_size, H), (H, H), (H, H), (H, H3), (H3, output_size)]
    keys = jax.random.split(key, len(dims) + 1)
    ws = []
    for i, (fi, fo) in enumerate(dims):
        bound = 1.0 / float(fi) ** 0.5
        ws.append(jax.random.uniform(keys[i], (fi, fo), jnp.float32, -bound, bound))
    bound4 = 1.0 / float(dims[-1][0]) ** 0.5
    b4 = jax.random.uniform(keys[-1], (1, output_size), jnp.float32, -bound4, bound4)
    # BatchNorm affine params (gamma=1, beta=0, as PyTorch init), shaped [1, F].
    bn_dims = [H, H, H, H3]
    bn = [(jnp.ones((1, d), jnp.float32), jnp.zeros((1, d), jnp.float32)) for d in bn_dims]
    return tuple(ws) + (b4,), bn


def pack_params(params, bn, output_size):
    """One-time prep (hoisted out of the per-call path): bf16 cast, pad, pack."""
    w0, w1, w2, w3, w4, b4 = params
    (g0, be0), (g1, be1), (g2, be2), (g3, be3) = bn
    assert output_size <= OUT_W
    o_pad = OUT_W - output_size

    w0_p = w0.astype(jnp.bfloat16)                                    # (in, 1024)
    w12 = jnp.concatenate([w1, w2], axis=1).astype(jnp.bfloat16)      # (1024, 2048)
    w4_p = jnp.pad(w4, ((0, 0), (0, o_pad)))                          # (128, 128)
    w34 = jnp.concatenate([w3, w4_p], axis=0).astype(jnp.bfloat16)    # (1152, 128)

    def row(v):
        v = jnp.reshape(v, (1, -1)).astype(jnp.float32)
        return jnp.pad(v, ((0, 0), (0, H - v.shape[1])))

    bnb = jnp.concatenate(
        [row(g0), row(be0), row(g1), row(be1), row(g2), row(be2),
         row(g3), row(be3), row(jnp.pad(b4, ((0, 0), (0, o_pad))))],
        axis=0)                                                       # (9, 1024) f32
    return w0_p, w12, w34, bnb


@functools.partial(jax.jit, static_argnames=("output_size",))
def mi_meta_classifier_large(x, packed, *, output_size):
    w0_p, w12, w34, bnb = packed
    B = x.shape[0]
    vmem = pl.BlockSpec(memory_space=pltpu.MemorySpace.VMEM)
    out = pl.pallas_call(
        mi_meta_kernel,
        out_shape=jax.ShapeDtypeStruct((B, OUT_W), jnp.float32),
        in_specs=[vmem] * 5,
        out_specs=vmem,
        compiler_params=pltpu.CompilerParams(vmem_limit_bytes=16 << 20),
    )(x, w0_p, w12, w34, bnb)
    return out[:, :output_size]


def reference_forward(x, params, bn):
    """Pure-JAX f32 reference mirroring the module's train-mode forward."""
    w0, w1, w2, w3, w4, b4 = params

    def bnr(h, g, b):
        mean = jnp.mean(h, axis=0, keepdims=True)
        var = jnp.mean((h - mean) ** 2, axis=0, keepdims=True)
        return jnp.maximum((h - mean) * (g / jnp.sqrt(var + BN_EPS)) + b, 0.0)

    h = bnr(x @ w0, *bn[0])
    h = bnr(h @ w1, *bn[1])
    h = bnr(h @ w2, *bn[2])
    h = bnr(h @ w3, *bn[3])
    return jax.nn.sigmoid(h @ w4 + b4)


if __name__ == "__main__":
    input_size = 32
    output_size = 2
    batch = 8

    key = jax.random.PRNGKey(0)
    kx, kp = jax.random.split(key)
    x = jax.random.normal(kx, (batch, input_size), jnp.float32)
    params, bn = init_params(kp, input_size, output_size)

    # One-time parameter packing (not on the per-inference-call path).
    packed = pack_params(params, bn, output_size)

    out = mi_meta_classifier_large(x, packed, output_size=output_size)
    jax.block_until_ready(out)
    assert out.shape == (batch, output_size)

    ref = reference_forward(x, params, bn)
    assert jnp.allclose(out, ref, atol=5e-2), (out, ref)
    print("KERNEL_OK")
</pallas_src>

<mosaic_0001>
module attributes {stable_mosaic.version = 11 : i64} {
  func.func @mi_meta_kernel(%arg0: memref<8x32xf32, #tpu.memory_space<vmem>>, %arg1: memref<32x1024xbf16, #tpu.memory_space<vmem>>, %arg2: memref<1024x2048xbf16, #tpu.memory_space<vmem>>, %arg3: memref<1152x128xbf16, #tpu.memory_space<vmem>>, %arg4: memref<9x1024xf32, #tpu.memory_space<vmem>>, %arg5: memref<8x128xf32, #tpu.memory_space<vmem>>) attributes {dimension_semantics = [], scalar_prefetch = 0 : i64, scratch_operands = 0 : i64, tpu.core_type = #tpu.core_type<tc>} {
    %c0 = arith.constant 0 : index
    %c0_0 = arith.constant 0 : index
    %0 = vector.load %arg0[%c0, %c0_0] : memref<8x32xf32, #tpu.memory_space<vmem>>, vector<8x32xf32>
    %1 = arith.truncf %0 : vector<8x32xf32> to vector<8x32xbf16>
    %c0_1 = arith.constant 0 : index
    %c0_2 = arith.constant 0 : index
    %2 = vector.load %arg1[%c0_1, %c0_2] : memref<32x1024xbf16, #tpu.memory_space<vmem>>, vector<32x1024xbf16>
    %cst = arith.constant dense<0.000000e+00> : vector<8x1024xf32>
    %3 = tpu.matmul %1, %2, %cst {dimension_numbers = #tpu.dot_dimension_numbers<[1], [0], [0], [1], [0, 0, 1, 1], [], []>} : vector<8x32xbf16>, vector<32x1024xbf16>, vector<8x1024xf32> -> vector<8x1024xf32>
    %c0_3 = arith.constant 0 : index
    %c0_4 = arith.constant 0 : index
    %4 = vector.load %arg4[%c0_3, %c0_4] : memref<9x1024xf32, #tpu.memory_space<vmem>>, vector<1x1024xf32>
    %c1 = arith.constant 1 : index
    %c0_5 = arith.constant 0 : index
    %5 = vector.load %arg4[%c1, %c0_5] : memref<9x1024xf32, #tpu.memory_space<vmem>>, vector<1x1024xf32>
    %cst_6 = arith.constant dense<0.000000e+00> : vector<1024xf32>
    %6 = vector.multi_reduction <add>, %3, %cst_6 [0] : vector<8x1024xf32> to vector<1024xf32>
    %7 = vector.shape_cast %6 : vector<1024xf32> to vector<1x1024xf32>
    %cst_7 = arith.constant 8.000000e+00 : f32
    %8 = vector.broadcast %cst_7 : f32 to vector<1x1024xf32>
    %9 = arith.divf %7, %8 : vector<1x1024xf32>
    %10 = vector.broadcast %9 : vector<1x1024xf32> to vector<8x1024xf32>
    %11 = arith.subf %3, %10 : vector<8x1024xf32>
    %12 = arith.mulf %11, %11 : vector<8x1024xf32>
    %cst_8 = arith.constant dense<0.000000e+00> : vector<1024xf32>
    %13 = vector.multi_reduction <add>, %12, %cst_8 [0] : vector<8x1024xf32> to vector<1024xf32>
    %14 = vector.shape_cast %13 : vector<1024xf32> to vector<1x1024xf32>
    %cst_9 = arith.constant 8.000000e+00 : f32
    %15 = vector.broadcast %cst_9 : f32 to vector<1x1024xf32>
    %16 = arith.divf %14, %15 : vector<1x1024xf32>
    %cst_10 = arith.constant 9.99999974E-6 : f32
    %17 = vector.broadcast %cst_10 : f32 to vector<1x1024xf32>
    %18 = arith.addf %16, %17 : vector<1x1024xf32>
    %19 = math.rsqrt %18 : vector<1x1024xf32>
    %20 = arith.mulf %4, %19 : vector<1x1024xf32>
    %21 = vector.broadcast %20 : vector<1x1024xf32> to vector<8x1024xf32>
    %22 = arith.mulf %11, %21 : vector<8x1024xf32>
    %23 = vector.broadcast %5 : vector<1x1024xf32> to vector<8x1024xf32>
    %24 = arith.addf %22, %23 : vector<8x1024xf32>
    %cst_11 = arith.constant 0.000000e+00 : f32
    %25 = vector.broadcast %cst_11 : f32 to vector<8x1024xf32>
    %26 = arith.maximumf %24, %25 : vector<8x1024xf32>
    %27 = arith.truncf %26 : vector<8x1024xf32> to vector<8x1024xbf16>
    %c0_12 = arith.constant 0 : index
    %c0_13 = arith.constant 0 : index
    %28 = vector.load %arg2[%c0_12, %c0_13] : memref<1024x2048xbf16, #tpu.memory_space<vmem>>, vector<1024x1024xbf16>
    %cst_14 = arith.constant dense<0.000000e+00> : vector<8x1024xf32>
    %29 = tpu.matmul %27, %28, %cst_14 {dimension_numbers = #tpu.dot_dimension_numbers<[1], [0], [0], [1], [0, 0, 1, 1], [], []>} : vector<8x1024xbf16>, vector<1024x1024xbf16>, vector<8x1024xf32> -> vector<8x1024xf32>
    %c2 = arith.constant 2 : index
    %c0_15 = arith.constant 0 : index
    %30 = vector.load %arg4[%c2, %c0_15] : memref<9x1024xf32, #tpu.memory_space<vmem>>, vector<1x1024xf32>
    %c3 = arith.constant 3 : index
    %c0_16 = arith.constant 0 : index
    %31 = vector.load %arg4[%c3, %c0_16] : memref<9x1024xf32, #tpu.memory_space<vmem>>, vector<1x1024xf32>
    %cst_17 = arith.constant dense<0.000000e+00> : vector<1024xf32>
    %32 = vector.multi_reduction <add>, %29, %cst_17 [0] : vector<8x1024xf32> to vector<1024xf32>
    %33 = vector.shape_cast %32 : vector<1024xf32> to vector<1x1024xf32>
    %cst_18 = arith.constant 8.000000e+00 : f32
    %34 = vector.broadcast %cst_18 : f32 to vector<1x1024xf32>
    %35 = arith.divf %33, %34 : vector<1x1024xf32>
    %36 = vector.broadcast %35 : vector<1x1024xf32> to vector<8x1024xf32>
    %37 = arith.subf %29, %36 : vector<8x1024xf32>
    %38 = arith.mulf %37, %37 : vector<8x1024xf32>
    %cst_19 = arith.constant dense<0.000000e+00> : vector<1024xf32>
    %39 = vector.multi_reduction <add>, %38, %cst_19 [0] : vector<8x1024xf32> to vector<1024xf32>
    %40 = vector.shape_cast %39 : vector<1024xf32> to vector<1x1024xf32>
    %cst_20 = arith.constant 8.000000e+00 : f32
    %41 = vector.broadcast %cst_20 : f32 to vector<1x1024xf32>
    %42 = arith.divf %40, %41 : vector<1x1024xf32>
    %cst_21 = arith.constant 9.99999974E-6 : f32
    %43 = vector.broadcast %cst_21 : f32 to vector<1x1024xf32>
    %44 = arith.addf %42, %43 : vector<1x1024xf32>
    %45 = math.rsqrt %44 : vector<1x1024xf32>
    %46 = arith.mulf %30, %45 : vector<1x1024xf32>
    %47 = vector.broadcast %46 : vector<1x1024xf32> to vector<8x1024xf32>
    %48 = arith.mulf %37, %47 : vector<8x1024xf32>
    %49 = vector.broadcast %31 : vector<1x1024xf32> to vector<8x1024xf32>
    %50 = arith.addf %48, %49 : vector<8x1024xf32>
    %cst_22 = arith.constant 0.000000e+00 : f32
    %51 = vector.broadcast %cst_22 : f32 to vector<8x1024xf32>
    %52 = arith.maximumf %50, %51 : vector<8x1024xf32>
    %53 = arith.truncf %52 : vector<8x1024xf32> to vector<8x1024xbf16>
    %c0_23 = arith.constant 0 : index
    %c1024 = arith.constant 1024 : index
    %54 = vector.load %arg2[%c0_23, %c1024] : memref<1024x2048xbf16, #tpu.memory_space<vmem>>, vector<1024x1024xbf16>
    %cst_24 = arith.constant dense<0.000000e+00> : vector<8x1024xf32>
    %55 = tpu.matmul %53, %54, %cst_24 {dimension_numbers = #tpu.dot_dimension_numbers<[1], [0], [0], [1], [0, 0, 1, 1], [], []>} : vector<8x1024xbf16>, vector<1024x1024xbf16>, vector<8x1024xf32> -> vector<8x1024xf32>
    %c4 = arith.constant 4 : index
    %c0_25 = arith.constant 0 : index
    %56 = vector.load %arg4[%c4, %c0_25] : memref<9x1024xf32, #tpu.memory_space<vmem>>, vector<1x1024xf32>
    %c5 = arith.constant 5 : index
    %c0_26 = arith.constant 0 : index
    %57 = vector.load %arg4[%c5, %c0_26] : memref<9x1024xf32, #tpu.memory_space<vmem>>, vector<1x1024xf32>
    %cst_27 = arith.constant dense<0.000000e+00> : vector<1024xf32>
    %58 = vector.multi_reduction <add>, %55, %cst_27 [0] : vector<8x1024xf32> to vector<1024xf32>
    %59 = vector.shape_cast %58 : vector<1024xf32> to vector<1x1024xf32>
    %cst_28 = arith.constant 8.000000e+00 : f32
    %60 = vector.broadcast %cst_28 : f32 to vector<1x1024xf32>
    %61 = arith.divf %59, %60 : vector<1x1024xf32>
    %62 = vector.broadcast %61 : vector<1x1024xf32> to vector<8x1024xf32>
    %63 = arith.subf %55, %62 : vector<8x1024xf32>
    %64 = arith.mulf %63, %63 : vector<8x1024xf32>
    %cst_29 = arith.constant dense<0.000000e+00> : vector<1024xf32>
    %65 = vector.multi_reduction <add>, %64, %cst_29 [0] : vector<8x1024xf32> to vector<1024xf32>
    %66 = vector.shape_cast %65 : vector<1024xf32> to vector<1x1024xf32>
    %cst_30 = arith.constant 8.000000e+00 : f32
    %67 = vector.broadcast %cst_30 : f32 to vector<1x1024xf32>
    %68 = arith.divf %66, %67 : vector<1x1024xf32>
    %cst_31 = arith.constant 9.99999974E-6 : f32
    %69 = vector.broadcast %cst_31 : f32 to vector<1x1024xf32>
    %70 = arith.addf %68, %69 : vector<1x1024xf32>
    %71 = math.rsqrt %70 : vector<1x1024xf32>
    %72 = arith.mulf %56, %71 : vector<1x1024xf32>
    %73 = vector.broadcast %72 : vector<1x1024xf32> to vector<8x1024xf32>
    %74 = arith.mulf %63, %73 : vector<8x1024xf32>
    %75 = vector.broadcast %57 : vector<1x1024xf32> to vector<8x1024xf32>
    %76 = arith.addf %74, %75 : vector<8x1024xf32>
    %cst_32 = arith.constant 0.000000e+00 : f32
    %77 = vector.broadcast %cst_32 : f32 to vector<8x1024xf32>
    %78 = arith.maximumf %76, %77 : vector<8x1024xf32>
    %79 = arith.truncf %78 : vector<8x1024xf32> to vector<8x1024xbf16>
    %c0_33 = arith.constant 0 : index
    %c0_34 = arith.constant 0 : index
    %80 = vector.load %arg3[%c0_33, %c0_34] : memref<1152x128xbf16, #tpu.memory_space<vmem>>, vector<1024x128xbf16>
    %cst_35 = arith.constant dense<0.000000e+00> : vector<8x128xf32>
    %81 = tpu.matmul %79, %80, %cst_35 {dimension_numbers = #tpu.dot_dimension_numbers<[1], [0], [0], [1], [0, 0, 1, 1], [], []>} : vector<8x1024xbf16>, vector<1024x128xbf16>, vector<8x128xf32> -> vector<8x128xf32>
    %c6 = arith.constant 6 : index
    %c0_36 = arith.constant 0 : index
    %82 = vector.load %arg4[%c6, %c0_36] : memref<9x1024xf32, #tpu.memory_space<vmem>>, vector<1x128xf32>
    %c7 = arith.constant 7 : index
    %c0_37 = arith.constant 0 : index
    %83 = vector.load %arg4[%c7, %c0_37] : memref<9x1024xf32, #tpu.memory_space<vmem>>, vector<1x128xf32>
    %cst_38 = arith.constant dense<0.000000e+00> : vector<128xf32>
    %84 = vector.multi_reduction <add>, %81, %cst_38 [0] : vector<8x128xf32> to vector<128xf32>
    %85 = vector.shape_cast %84 : vector<128xf32> to vector<1x128xf32>
    %cst_39 = arith.constant 8.000000e+00 : f32
    %86 = vector.broadcast %cst_39 : f32 to vector<1x128xf32>
    %87 = arith.divf %85, %86 : vector<1x128xf32>
    %88 = vector.broadcast %87 : vector<1x128xf32> to vector<8x128xf32>
    %89 = arith.subf %81, %88 : vector<8x128xf32>
    %90 = arith.mulf %89, %89 : vector<8x128xf32>
    %cst_40 = arith.constant dense<0.000000e+00> : vector<128xf32>
    %91 = vector.multi_reduction <add>, %90, %cst_40 [0] : vector<8x128xf32> to vector<128xf32>
    %92 = vector.shape_cast %91 : vector<128xf32> to vector<1x128xf32>
    %cst_41 = arith.constant 8.000000e+00 : f32
    %93 = vector.broadcast %cst_41 : f32 to vector<1x128xf32>
    %94 = arith.divf %92, %93 : vector<1x128xf32>
    %cst_42 = arith.constant 9.99999974E-6 : f32
    %95 = vector.broadcast %cst_42 : f32 to vector<1x128xf32>
    %96 = arith.addf %94, %95 : vector<1x128xf32>
    %97 = math.rsqrt %96 : vector<1x128xf32>
    %98 = arith.mulf %82, %97 : vector<1x128xf32>
    %99 = vector.broadcast %98 : vector<1x128xf32> to vector<8x128xf32>
    %100 = arith.mulf %89, %99 : vector<8x128xf32>
    %101 = vector.broadcast %83 : vector<1x128xf32> to vector<8x128xf32>
    %102 = arith.addf %100, %101 : vector<8x128xf32>
    %cst_43 = arith.constant 0.000000e+00 : f32
    %103 = vector.broadcast %cst_43 : f32 to vector<8x128xf32>
    %104 = arith.maximumf %102, %103 : vector<8x128xf32>
    %105 = arith.truncf %104 : vector<8x128xf32> to vector<8x128xbf16>
    %c1024_44 = arith.constant 1024 : index
    %c0_45 = arith.constant 0 : index
    %106 = vector.load %arg3[%c1024_44, %c0_45] : memref<1152x128xbf16, #tpu.memory_space<vmem>>, vector<128x128xbf16>
    %cst_46 = arith.constant dense<0.000000e+00> : vector<8x128xf32>
    %107 = tpu.matmul %105, %106, %cst_46 {dimension_numbers = #tpu.dot_dimension_numbers<[1], [0], [0], [1], [0, 0, 1, 1], [], []>} : vector<8x128xbf16>, vector<128x128xbf16>, vector<8x128xf32> -> vector<8x128xf32>
    %c8 = arith.constant 8 : index
    %c0_47 = arith.constant 0 : index
    %108 = vector.load %arg4[%c8, %c0_47] : memref<9x1024xf32, #tpu.memory_space<vmem>>, vector<1x128xf32>
    %109 = vector.broadcast %108 : vector<1x128xf32> to vector<8x128xf32>
    %110 = arith.addf %107, %109 : vector<8x128xf32>
    %cst_48 = arith.constant 0.000000e+00 : f32
    %111 = vector.broadcast %cst_48 : f32 to vector<8x128xf32>
    %112 = arith.subf %111, %110 : vector<8x128xf32>
    %113 = math.exp %112 : vector<8x128xf32>
    %cst_49 = arith.constant 1.000000e+00 : f32
    %114 = vector.broadcast %cst_49 : f32 to vector<8x128xf32>
    %115 = arith.addf %114, %113 : vector<8x128xf32>
    %116 = tpu.reciprocal %115 {approx = true} : vector<8x128xf32> -> vector<8x128xf32>
    %c0_50 = arith.constant 0 : index
    %c0_51 = arith.constant 0 : index
    %117 = vector.load %arg5[%c0_50, %c0_51] : memref<8x128xf32, #tpu.memory_space<vmem>>, vector<8x128xf32>
    tpu.vector_store %arg5[%c0_50, %c0_51], %116 {strides = array<i32>} : memref<8x128xf32, #tpu.memory_space<vmem>>, vector<8x128xf32>,
    return
  }
}

</mosaic_0001>

<llo_original>
// kernel: mi_meta_classifier_large.1
$region0: #{mi_meta_classifier_large.1}
  #allocation0 [shape = 'u32[]', space=smem, size = 0x4, offset = 0x4, fixed_abs, tag = 'smem constant byte address 0x4 - core index']
  #allocation1 [shape = 'u32[144,128]{1,0:T(1,128)}', space=vmem, size = 0x12000, scoped, tag = 'internal scratch']
  %s0 = inlined_call_operand.hbm [shape: f32[8,32], index: 0, kind: input, shape index: {}]
  %s1 = inlined_call_operand.hbm [shape: bf16[32,1024], index: 1, kind: input, shape index: {}]
  %s2 = inlined_call_operand.hbm [shape: bf16[1024,2048], index: 2, kind: input, shape index: {}]
  %s3 = inlined_call_operand.hbm [shape: bf16[1152,128], index: 3, kind: input, shape index: {}]
  %s4 = inlined_call_operand.hbm [shape: f32[9,1024], index: 4, kind: input, shape index: {}]
  %s5 = inlined_call_operand.vmem [shape: f32[8,128], index: 5, kind: output, shape index: {}]
  %s6 = sld [smem:[#allocation0]]
  $region50: #{mi_meta_classifier_large.1} parent=0
    _
  %s8 = ssub.s32 1, %s6
  %s9 = scalar_select 0, %s8, %s6
  $region1: #{mi_meta_classifier_large.1} parent=0
    #allocation2 [shape = 'u8[4096]{0}', space=vmem, size = 0x1000, scoped, tag = 'input window, operand 0, single buffered']
    #allocation3 [shape = 's32[1]{0}', space=sflag, size = 0x4, scoped, tag = 'scoped memory for mi_meta_classifier_large.1']
    #allocation4 [shape = 'u8[65536]{0}', space=vmem, size = 0x10000, scoped, tag = 'input window, operand 1, single buffered']
    #allocation5 [shape = 's32[1]{0}', space=sflag, size = 0x4, scoped, tag = 'scoped memory for mi_meta_classifier_large.1']
    #allocation6 [shape = 'u8[4194304]{0}', space=vmem, size = 0x400000, scoped, tag = 'input window, operand 2, single buffered']
    #allocation7 [shape = 'u8[294912]{0}', space=vmem, size = 0x48000, scoped, tag = 'input window, operand 3, single buffered']
    #allocation8 [shape = 's32[1]{0}', space=sflag, size = 0x4, scoped, tag = 'scoped memory for mi_meta_classifier_large.1']
    #allocation9 [shape = 'u8[65536]{0}', space=vmem, size = 0x10000, scoped, tag = 'input window, operand 4, single buffered']
    %10 = vsyncpa [#allocation3], 0
    %11 = vsyncpa [#allocation5], 0
    %12 = vsyncpa [#allocation8], 0
    // Predicated region
    $region2: #{mi_meta_classifier_large.1} parent=1 // pred_check
      _
    $region3: #{mi_meta_classifier_large.1} parent=1 // pred_check_branch
      %14 = sbr.rel (0) target = $region5
    $region4: #{mi_meta_classifier_large.1} parent=1 // pred_region
      %s16 = ssub.s32 128, 128
      %17 = vsyncadd [#allocation3], %s16
      %s19 = sshll.u32 [#allocation2], 4
      %s20 = int_to_ptr.vmem [resolvable:$true] %s19
      %22 = dma.hbm_to_vmem [thread:$0]  %s0, 128, %s20, [#allocation3]
    $region5: #{mi_meta_classifier_large.1} parent=1 // pred_fallthru
      _
    // Predicated region
    $region6: #{mi_meta_classifier_large.1} parent=1 // pred_check
      _
    $region7: #{mi_meta_classifier_large.1} parent=1 // pred_check_branch
      %24 = sbr.rel (0) target = $region9
    $region8: #{mi_meta_classifier_large.1} parent=1 // pred_region
      %s26 = ssub.s32 2048, 2048
      %27 = vsyncadd [#allocation5], %s26
      %s28 = sshll.u32 [#allocation4], 4
      %s29 = int_to_ptr.vmem [resolvable:$true] %s28
      %34 = dma.hbm_to_vmem [thread:$0]  %s1, 2048, %s29, [#allocation5], 512, 512, 32
    $region9: #{mi_meta_classifier_large.1} parent=1 // pred_fallthru
      _
    // Predicated region
    $region10: #{mi_meta_classifier_large.1} parent=1 // pred_check
      _
    $region11: #{mi_meta_classifier_large.1} parent=1 // pred_check_branch
      %36 = sbr.rel (0) target = $region13
    $region12: #{mi_meta_classifier_large.1} parent=1 // pred_region
      %s38 = ssub.s32 131072, 131072
      %39 = vsyncadd [#allocation5], %s38
      %s40 = sshll.u32 [#allocation6], 4
      %s41 = int_to_ptr.vmem [resolvable:$true] %s40
      %46 = dma.hbm_to_vmem [thread:$0]  %s2, 131072, %s41, [#allocation5], 1024, 1024, 64
    $region13: #{mi_meta_classifier_large.1} parent=1 // pred_fallthru
      _
    // Predicated region
    $region14: #{mi_meta_classifier_large.1} parent=1 // pred_check
      _
    $region15: #{mi_meta_classifier_large.1} parent=1 // pred_check_branch
      %48 = sbr.rel (0) target = $region17
    $region16: #{mi_meta_classifier_large.1} parent=1 // pred_region
      %s50 = ssub.s32 9216, 9216
      %51 = vsyncadd [#allocation8], %s50
      %s52 = sshll.u32 [#allocation7], 4
      %s53 = int_to_ptr.vmem [resolvable:$true] %s52
      %58 = dma.hbm_to_vmem [thread:$0]  %s3, 9216, %s53, [#allocation8], 64, 64, 4
    $region17: #{mi_meta_classifier_large.1} parent=1 // pred_fallthru
      _
    // Predicated region
    $region18: #{mi_meta_classifier_large.1} parent=1 // pred_check
      _
    $region19: #{mi_meta_classifier_large.1} parent=1 // pred_check_branch
      %60 = sbr.rel (0) target = $region21
    $region20: #{mi_meta_classifier_large.1} parent=1 // pred_region
      %s62 = ssub.s32 2048, 2048
      %63 = vsyncadd [#allocation8], %s62
      %s64 = sshll.u32 [#allocation9], 4
      %s65 = int_to_ptr.vmem [resolvable:$true] %s64
      %70 = dma.hbm_to_vmem [thread:$0]  %s4, 2048, %s65, [#allocation8], 1024, 1024, 64
    $region21: #{mi_meta_classifier_large.1} parent=1 // pred_fallthru
      _
    // Predicated region
    $region22: #{mi_meta_classifier_large.1} parent=1 // pred_check
      _
    $region23: #{mi_meta_classifier_large.1} parent=1 // pred_check_branch
      %72 = sbr.rel (0) target = $region25
    $region24: #{mi_meta_classifier_large.1} parent=1 // pred_region
      %73 = dma.done [#allocation3], 128
    $region25: #{mi_meta_classifier_large.1} parent=1 // pred_fallthru
      _
    // Predicated region
    $region26: #{mi_meta_classifier_large.1} parent=1 // pred_check
      _
    $region27: #{mi_meta_classifier_large.1} parent=1 // pred_check_branch
      %75 = sbr.rel (0) target = $region29
    $region28: #{mi_meta_classifier_large.1} parent=1 // pred_region
      %76 = dma.done [#allocation5], 2048
    $region29: #{mi_meta_classifier_large.1} parent=1 // pred_fallthru
      _
    // Predicated region
    $region30: #{mi_meta_classifier_large.1} parent=1 // pred_check
      _
    $region31: #{mi_meta_classifier_large.1} parent=1 // pred_check_branch
      %78 = sbr.rel (0) target = $region33
    $region32: #{mi_meta_classifier_large.1} parent=1 // pred_region
      %79 = dma.done [#allocation5], 131072
    $region33: #{mi_meta_classifier_large.1} parent=1 // pred_fallthru
      _
    // Predicated region
    $region34: #{mi_meta_classifier_large.1} parent=1 // pred_check
      _
    $region35: #{mi_meta_classifier_large.1} parent=1 // pred_check_branch
      %81 = sbr.rel (0) target = $region37
    $region36: #{mi_meta_classifier_large.1} parent=1 // pred_region
      %82 = dma.done [#allocation8], 9216
    $region37: #{mi_meta_classifier_large.1} parent=1 // pred_fallthru
      _
    // Predicated region
    $region38: #{mi_meta_classifier_large.1} parent=1 // pred_check
      _
    $region39: #{mi_meta_classifier_large.1} parent=1 // pred_check_branch
      %84 = sbr.rel (0) target = $region41
    $region40: #{mi_meta_classifier_large.1} parent=1 // pred_region
      %85 = dma.done [#allocation8], 2048
    $region41: #{mi_meta_classifier_large.1} parent=1 // pred_fallthru
      _
    %v87 = vld [vmem:[#allocation2] sm:$0xff]
    %v88 = vpack.c.bf16 %v87, %v87
    %v89 = vld [vmem:[#allocation4] sm:$0xff]
    %v90 = vld [vmem:[#allocation4 + $0x8] sm:$0xff]
    %v91 = vld [vmem:[#allocation4 + $0x10] sm:$0xff]
    %v92 = vld [vmem:[#allocation4 + $0x18] sm:$0xff]
    %v93 = vld [vmem:[#allocation4 + $0x20] sm:$0xff]
    %v94 = vld [vmem:[#allocation4 + $0x28] sm:$0xff]
    %v95 = vld [vmem:[#allocation4 + $0x30] sm:$0xff]
    %v96 = vld [vmem:[#allocation4 + $0x38] sm:$0xff]
    %v97 = vld [vmem:[#allocation4 + $0x40] sm:$0xff]
    %v98 = vld [vmem:[#allocation4 + $0x48] sm:$0xff]
    %v99 = vld [vmem:[#allocation4 + $0x50] sm:$0xff]
    %v100 = vld [vmem:[#allocation4 + $0x58] sm:$0xff]
    %v101 = vld [vmem:[#allocation4 + $0x60] sm:$0xff]
    %v102 = vld [vmem:[#allocation4 + $0x68] sm:$0xff]
    %v103 = vld [vmem:[#allocation4 + $0x70] sm:$0xff]
    %v104 = vld [vmem:[#allocation4 + $0x78] sm:$0xff]
    %v121 = vunpack.c.l.b16 %v89
    %v122 = vunpack.c.h.b16 %v89
    %v123 = vunpack.c.l.b16 %v90
    %v124 = vunpack.c.h.b16 %v90
    %v125 = vunpack.c.l.b16 %v91
    %v126 = vunpack.c.h.b16 %v91
    %v127 = vunpack.c.l.b16 %v92
    %v128 = vunpack.c.h.b16 %v92
    %v129 = vunpack.c.l.b16 %v93
    %v130 = vunpack.c.h.b16 %v93
    %v131 = vunpack.c.l.b16 %v94
    %v132 = vunpack.c.h.b16 %v94
    %v133 = vunpack.c.l.b16 %v95
    %v134 = vunpack.c.h.b16 %v95
    %v135 = vunpack.c.l.b16 %v96
    %v136 = vunpack.c.h.b16 %v96
    %v137 = vunpack.c.l.b16 %v97
    %v138 = vunpack.c.h.b16 %v97
    %v139 = vunpack.c.l.b16 %v98
    %v140 = vunpack.c.h.b16 %v98
    %v141 = vunpack.c.l.b16 %v99
    %v142 = vunpack.c.h.b16 %v99
    %v143 = vunpack.c.l.b16 %v100
    %v144 = vunpack.c.h.b16 %v100
    %v145 = vunpack.c.l.b16 %v101
    %v146 = vunpack.c.h.b16 %v101
    %v147 = vunpack.c.l.b16 %v102
    %v148 = vunpack.c.h.b16 %v102
    %v149 = vunpack.c.l.b16 %v103
    %v150 = vunpack.c.h.b16 %v103
    %v151 = vunpack.c.l.b16 %v104
    %v152 = vunpack.c.h.b16 %v104
    %v153 = vpack.c.b16 %v129, %v121
    %v154 = vpack.c.b16 %v130, %v122
    %v155 = vpack.c.b16 %v131, %v123
    %v156 = vpack.c.b16 %v132, %v124
    %v157 = vpack.c.b16 %v133, %v125
    %v158 = vpack.c.b16 %v134, %v126
    %v159 = vpack.c.b16 %v135, %v127
    %v160 = vpack.c.b16 %v136, %v128
    %v161 = vpack.c.b16 %v145, %v137
    %v162 = vpack.c.b16 %v146, %v138
    %v163 = vpack.c.b16 %v147, %v139
    %v164 = vpack.c.b16 %v148, %v140
    %v165 = vpack.c.b16 %v149, %v141
    %v166 = vpack.c.b16 %v150, %v142
    %v167 = vpack.c.b16 %v151, %v143
    %v168 = vpack.c.b16 %v152, %v144
    %vm185 = vcmask 261120
    %v187 = vsel %vm185, %v88, 0
    %189 = vmatprep.subr.bf16.mxu0 0
    %190 = vmatpush1.bf16.msra.mxu0 0
    %191 = vmatprep.subr.bf16.mxu0 0
    %192 = vmatpush1.bf16.msra.mxu0 0
    %193 = vmatprep.subr.bf16.mxu0 0
    %194 = vmatpush1.bf16.msra.mxu0 0
    %195 = vmatprep.subr.bf16.mxu0 0
    %196 = vmatpush1.bf16.msra.mxu0 0
    %197 = vmatprep.subr.bf16.mxu0 0
    %198 = vmatpush1.bf16.msra.mxu0 0
    %199 = vmatprep.subr.bf16.mxu0 0
    %200 = vmatpush1.bf16.msra.mxu0 0
    %201 = vmatprep.subr.bf16.mxu0 %v162
    %202 = vmatpush1.bf16.msra.mxu0 %v161
    %203 = vmatprep.subr.bf16.mxu0 %v154
    %204 = vmatpush1.bf16.msra.mxu0 %v153
    %205 = vmatprep.subr.bf16.mxu0 0
    %206 = vmatpush2.bf16.msra.mxu0 0
    %207 = vmatprep.subr.bf16.mxu0 0
    %208 = vmatpush2.bf16.msra.mxu0 0
    %209 = vmatprep.subr.bf16.mxu0 0
    %210 = vmatpush2.bf16.msra.mxu0 0
    %211 = vmatprep.subr.bf16.mxu0 0
    %212 = vmatpush2.bf16.msra.mxu0 0
    %213 = vmatprep.subr.bf16.mxu0 0
    %214 = vmatpush2.bf16.msra.mxu0 0
    %215 = vmatprep.subr.bf16.mxu0 0
    %216 = vmatpush2.bf16.msra.mxu0 0
    %217 = vmatprep.subr.bf16.mxu0 0
    %218 = vmatpush2.bf16.msra.mxu0 0
    %219 = vmatprep.subr.bf16.mxu0 0
    %220 = vmatpush2.bf16.msra.mxu0 0
    %221 = vmatprep.mubr.bf16.mxu0 0
    %222 = vmatmul.mubr.bf16.gmra.mxu0 %v187
    %v223 = vpop.f32.mrf.mxu0
    %v224 = vadd.f32 0.0, %v223
    %v225 = vpop.f32.mrf.mxu0
    %v226 = vadd.f32 0.0, %v225
    %v227 = vpop.f32.mrf.mxu0
    %v228 = vpop.f32.mrf.mxu0
    %229 = vdwg.mxu0
    %230 = vmatprep.subr.bf16.mxu0 0
    %231 = vmatpush1.bf16.msra.mxu0 0
    %232 = vmatprep.subr.bf16.mxu0 0
    %233 = vmatpush1.bf16.msra.mxu0 0
    %234 = vmatprep.subr.bf16.mxu0 0
    %235 = vmatpush1.bf16.msra.mxu0 0
    %236 = vmatprep.subr.bf16.mxu0 0
    %237 = vmatpush1.bf16.msra.mxu0 0
    %238 = vmatprep.subr.bf16.mxu0 0
    %239 = vmatpush1.bf16.msra.mxu0 0
    %240 = vmatprep.subr.bf16.mxu0 0
    %241 = vmatpush1.bf16.msra.mxu0 0
    %242 = vmatprep.subr.bf16.mxu0 %v164
    %243 = vmatpush1.bf16.msra.mxu0 %v163
    %244 = vmatprep.subr.bf16.mxu0 %v156
    %245 = vmatpush1.bf16.msra.mxu0 %v155
    %246 = vmatprep.subr.bf16.mxu0 0
    %247 = vmatpush2.bf16.msra.mxu0 0
    %248 = vmatprep.subr.bf16.mxu0 0
    %249 = vmatpush2.bf16.msra.mxu0 0
    %250 = vmatprep.subr.bf16.mxu0 0
    %251 = vmatpush2.bf16.msra.mxu0 0
    %252 = vmatprep.subr.bf16.mxu0 0
    %253 = vmatpush2.bf16.msra.mxu0 0
    %254 = vmatprep.subr.bf16.mxu0 0
    %255 = vmatpush2.bf16.msra.mxu0 0
    %256 = vmatprep.subr.bf16.mxu0 0
    %257 = vmatpush2.bf16.msra.mxu0 0
    %258 = vmatprep.subr.bf16.mxu0 0
    %259 = vmatpush2.bf16.msra.mxu0 0
    %260 = vmatprep.subr.bf16.mxu0 0
    %261 = vmatpush2.bf16.msra.mxu0 0
    %262 = vmatprep.mubr.bf16.mxu0 0
    %263 = vmatmul.mubr.bf16.gmra.mxu0 %v187
    %v264 = vpop.f32.mrf.mxu0
    %v265 = vadd.f32 0.0, %v264
    %v266 = vpop.f32.mrf.mxu0
    %v267 = vadd.f32 0.0, %v266
    %v268 = vpop.f32.mrf.mxu0
    %v269 = vpop.f32.mrf.mxu0
    %270 = vdwg.mxu0
    %271 = vmatprep.subr.bf16.mxu0 0
    %272 = vmatpush1.bf16.msra.mxu0 0
    %273 = vmatprep.subr.bf16.mxu0 0
    %274 = vmatpush1.bf16.msra.mxu0 0
    %275 = vmatprep.subr.bf16.mxu0 0
    %276 = vmatpush1.bf16.msra.mxu0 0
    %277 = vmatprep.subr.bf16.mxu0 0
    %278 = vmatpush1.bf16.msra.mxu0 0
    %279 = vmatprep.subr.bf16.mxu0 0
    %280 = vmatpush1.bf16.msra.mxu0 0
    %281 = vmatprep.subr.bf16.mxu0 0
    %282 = vmatpush1.bf16.msra.mxu0 0
    %283 = vmatprep.subr.bf16.mxu0 %v166
    %284 = vmatpush1.bf16.msra.mxu0 %v165
    %285 = vmatprep.subr.bf16.mxu0 %v158
    %286 = vmatpush1.bf16.msra.mxu0 %v157
    %287 = vmatprep.subr.bf16.mxu0 0
    %288 = vmatpush2.bf16.msra.mxu0 0
    %289 = vmatprep.subr.bf16.mxu0 0
    %290 = vmatpush2.bf16.msra.mxu0 0
    %291 = vmatprep.subr.bf16.mxu0 0
    %292 = vmatpush2.bf16.msra.mxu0 0
    %293 = vmatprep.subr.bf16.mxu0 0
    %294 = vmatpush2.bf16.msra.mxu0 0
    %295 = vmatprep.subr.bf16.mxu0 0
    %296 = vmatpush2.bf16.msra.mxu0 0
    %297 = vmatprep.subr.bf16.mxu0 0
    %298 = vmatpush2.bf16.msra.mxu0 0
    %299 = vmatprep.subr.bf16.mxu0 0
    %300 = vmatpush2.bf16.msra.mxu0 0
    %301 = vmatprep.subr.bf16.mxu0 0
    %302 = vmatpush2.bf16.msra.mxu0 0
    %303 = vmatprep.mubr.bf16.mxu0 0
    %304 = vmatmul.mubr.bf16.gmra.mxu0 %v187
    %v305 = vpop.f32.mrf.mxu0
    %v306 = vadd.f32 0.0, %v305
    %v307 = vpop.f32.mrf.mxu0
    %v308 = vadd.f32 0.0, %v307
    %v309 = vpop.f32.mrf.mxu0
    %v310 = vpop.f32.mrf.mxu0
    %311 = vdwg.mxu0
    %312 = vmatprep.subr.bf16.mxu0 0
    %313 = vmatpush1.bf16.msra.mxu0 0
    %314 = vmatprep.subr.bf16.mxu0 0
    %315 = vmatpush1.bf16.msra.mxu0 0
    %316 = vmatprep.subr.bf16.mxu0 0
    %317 = vmatpush1.bf16.msra.mxu0 0
    %318 = vmatprep.subr.bf16.mxu0 0
    %319 = vmatpush1.bf16.msra.mxu0 0
    %320 = vmatprep.subr.bf16.mxu0 0
    %321 = vmatpush1.bf16.msra.mxu0 0
    %322 = vmatprep.subr.bf16.mxu0 0
    %323 = vmatpush1.bf16.msra.mxu0 0
    %324 = vmatprep.subr.bf16.mxu0 %v168
    %325 = vmatpush1.bf16.msra.mxu0 %v167
    %326 = vmatprep.subr.bf16.mxu0 %v160
    %327 = vmatpush1.bf16.msra.mxu0 %v159
    %328 = vmatprep.subr.bf16.mxu0 0
    %329 = vmatpush2.bf16.msra.mxu0 0
    %330 = vmatprep.subr.bf16.mxu0 0
    %331 = vmatpush2.bf16.msra.mxu0 0
    %332 = vmatprep.subr.bf16.mxu0 0
    %333 = vmatpush2.bf16.msra.mxu0 0
    %334 = vmatprep.subr.bf16.mxu0 0
    %335 = vmatpush2.bf16.msra.mxu0 0
    %336 = vmatprep.subr.bf16.mxu0 0
    %337 = vmatpush2.bf16.msra.mxu0 0
    %338 = vmatprep.subr.bf16.mxu0 0
    %339 = vmatpush2.bf16.msra.mxu0 0
    %340 = vmatprep.subr.bf16.mxu0 0
    %341 = vmatpush2.bf16.msra.mxu0 0
    %342 = vmatprep.subr.bf16.mxu0 0
    %343 = vmatpush2.bf16.msra.mxu0 0
    %344 = vmatprep.mubr.bf16.mxu0 0
    %345 = vmatmul.mubr.bf16.gmra.mxu0 %v187
    %v346 = vpop.f32.mrf.mxu0
    %v347 = vadd.f32 0.0, %v346
    %v348 = vpop.f32.mrf.mxu0
    %v349 = vadd.f32 0.0, %v348
    %v350 = vpop.f32.mrf.mxu0
    %v351 = vpop.f32.mrf.mxu0
    %352 = vdwg.mxu0
    %v353 = vld [vmem:[#allocation9] ss:$8 sm:$0xf]
    %v354 = vld [vmem:[#allocation9] ss:$8 sm:$0xf0]
    %v355 = vor.u32 %v353, %v354
    %s356 = scalar_lea.vmem [#allocation9], 1
    %v357 = vld [vmem:[%s356] ss:$8 sm:$0xf]
    %v358 = vld [vmem:[%s356] ss:$8 sm:$0xf0]
    %v359 = vor.u32 %v357, %v358
    %v360 = vrot.slane %v224, 4
    %v361 = vadd.f32 %v224, %v360
    %v362 = vrot.slane %v361, 2
    %v363 = vadd.f32 %v361, %v362
    %v364 = vrot.slane %v363, 1
    %v365 = vadd.f32 %v363, %v364
    %v366 = vrot.slane %v226, 4
    %v367 = vadd.f32 %v226, %v366
    %v368 = vrot.slane %v367, 2
    %v369 = vadd.f32 %v367, %v368
    %v370 = vrot.slane %v369, 1
    %v371 = vadd.f32 %v369, %v370
    %v372 = vrot.slane %v265, 4
    %v373 = vadd.f32 %v265, %v372
    %v374 = vrot.slane %v373, 2
    %v375 = vadd.f32 %v373, %v374
    %v376 = vrot.slane %v375, 1
    %v377 = vadd.f32 %v375, %v376
    %v378 = vrot.slane %v267, 4
    %v379 = vadd.f32 %v267, %v378
    %v380 = vrot.slane %v379, 2
    %v381 = vadd.f32 %v379, %v380
    %v382 = vrot.slane %v381, 1
    %v383 = vadd.f32 %v381, %v382
    %v384 = vrot.slane %v306, 4
    %v385 = vadd.f32 %v306, %v384
    %v386 = vrot.slane %v385, 2
    %v387 = vadd.f32 %v385, %v386
    %v388 = vrot.slane %v387, 1
    %v389 = vadd.f32 %v387, %v388
    %v390 = vrot.slane %v308, 4
    %v391 = vadd.f32 %v308, %v390
    %v392 = vrot.slane %v391, 2
    %v393 = vadd.f32 %v391, %v392
    %v394 = vrot.slane %v393, 1
    %v395 = vadd.f32 %v393, %v394
    %v396 = vrot.slane %v347, 4
    %v397 = vadd.f32 %v347, %v396
    %v398 = vrot.slane %v397, 2
    %v399 = vadd.f32 %v397, %v398
    %v400 = vrot.slane %v399, 1
    %v401 = vadd.f32 %v399, %v400
    %v402 = vrot.slane %v349, 4
    %v403 = vadd.f32 %v349, %v402
    %v404 = vrot.slane %v403, 2
    %v405 = vadd.f32 %v403, %v404
    %v406 = vrot.slane %v405, 1
    %v407 = vadd.f32 %v405, %v406
    %v408 = vrcp.pop 8.0
    %v409 = vmul.f32 %v365, %v408
    %v410 = vmul.f32 %v371, %v408
    %v411 = vmul.f32 %v377, %v408
    %v412 = vmul.f32 %v383, %v408
    %v413 = vmul.f32 %v389, %v408
    %v414 = vmul.f32 %v395, %v408
    %v415 = vmul.f32 %v401, %v408
    %v416 = vmul.f32 %v407, %v408
    %v417 = vsub.f32 %v224, %v409
    %v418 = vsub.f32 %v226, %v410
    %v419 = vsub.f32 %v265, %v411
    %v420 = vsub.f32 %v267, %v412
    %v421 = vsub.f32 %v306, %v413
    %v422 = vsub.f32 %v308, %v414
    %v423 = vsub.f32 %v347, %v415
    %v424 = vsub.f32 %v349, %v416
    %v425 = vmul.f32 %v417, %v417
    %v426 = vmul.f32 %v418, %v418
    %v427 = vmul.f32 %v419, %v419
    %v428 = vmul.f32 %v420, %v420
    %v429 = vmul.f32 %v421, %v421
    %v430 = vmul.f32 %v422, %v422
    %v431 = vmul.f32 %v423, %v423
    %v432 = vmul.f32 %v424, %v424
    %v433 = vrot.slane %v425, 4
    %v434 = vadd.f32 %v425, %v433
    %v435 = vrot.slane %v434, 2
    %v436 = vadd.f32 %v434, %v435
    %v437 = vrot.slane %v436, 1
    %v438 = vadd.f32 %v436, %v437
    %v439 = vrot.slane %v426, 4
    %v440 = vadd.f32 %v426, %v439
    %v441 = vrot.slane %v440, 2
    %v442 = vadd.f32 %v440, %v441
    %v443 = vrot.slane %v442, 1
    %v444 = vadd.f32 %v442, %v443
    %v445 = vrot.slane %v427, 4
    %v446 = vadd.f32 %v427, %v445
    %v447 = vrot.slane %v446, 2
    %v448 = vadd.f32 %v446, %v447
    %v449 = vrot.slane %v448, 1
    %v450 = vadd.f32 %v448, %v449
    %v451 = vrot.slane %v428, 4
    %v452 = vadd.f32 %v428, %v451
    %v453 = vrot.slane %v452, 2
    %v454 = vadd.f32 %v452, %v453
    %v455 = vrot.slane %v454, 1
    %v456 = vadd.f32 %v454, %v455
    %v457 = vrot.slane %v429, 4
    %v458 = vadd.f32 %v429, %v457
    %v459 = vrot.slane %v458, 2
    %v460 = vadd.f32 %v458, %v459
    %v461 = vrot.slane %v460, 1
    %v462 = vadd.f32 %v460, %v461
    %v463 = vrot.slane %v430, 4
    %v464 = vadd.f32 %v430, %v463
    %v465 = vrot.slane %v464, 2
    %v466 = vadd.f32 %v464, %v465
    %v467 = vrot.slane %v466, 1
    %v468 = vadd.f32 %v466, %v467
    %v469 = vrot.slane %v431, 4
    %v470 = vadd.f32 %v431, %v469
    %v471 = vrot.slane %v470, 2
    %v472 = vadd.f32 %v470, %v471
    %v473 = vrot.slane %v472, 1
    %v474 = vadd.f32 %v472, %v473
    %v475 = vrot.slane %v432, 4
    %v476 = vadd.f32 %v432, %v475
    %v477 = vrot.slane %v476, 2
    %v478 = vadd.f32 %v476, %v477
    %v479 = vrot.slane %v478, 1
    %v480 = vadd.f32 %v478, %v479
    %v481 = vmul.f32 %v438, %v408
    %v482 = vmul.f32 %v444, %v408
    %v483 = vmul.f32 %v450, %v408
    %v484 = vmul.f32 %v456, %v408
    %v485 = vmul.f32 %v462, %v408
    %v486 = vmul.f32 %v468, %v408
    %v487 = vmul.f32 %v474, %v408
    %v488 = vmul.f32 %v480, %v408
    %v489 = vadd.f32 %v481, 1e-05
    %v490 = vadd.f32 %v482, 1e-05
    %v491 = vadd.f32 %v483, 1e-05
    %v492 = vadd.f32 %v484, 1e-05
    %v493 = vadd.f32 %v485, 1e-05
    %v494 = vadd.f32 %v486, 1e-05
    %v495 = vadd.f32 %v487, 1e-05
    %v496 = vadd.f32 %v488, 1e-05
    %v497 = vrsqrt.pop %v489
    %v498 = vrsqrt.pop %v490
    %v499 = vrsqrt.pop %v491
    %v500 = vrsqrt.pop %v492
    %v501 = vrsqrt.pop %v493
    %v502 = vrsqrt.pop %v494
    %v503 = vrsqrt.pop %v495
    %v504 = vrsqrt.pop %v496
    %v513 = vcombine.low %v497, %v498
    %v514 = vcombine.low %v499, %v500
    %v515 = vcombine.low %v501, %v502
    %v516 = vcombine.low %v503, %v504
    %v518 = vunpack.c.l.s4 1966171168
    %v519 = vunpack.c.0.s8 %v518
    %v520 = vlaneseq
    %v521 = vshrl.u32 %v520, 7
    %v522 = vsub.s32 %v519, %v521
    %v523 = vrot.slane %v513, %v522
    %v525 = vunpack.c.l.s4 1966171168
    %v526 = vunpack.c.0.s8 %v525
    %v527 = vlaneseq
    %v528 = vshrl.u32 %v527, 7
    %v529 = vsub.s32 %v526, %v528
    %v530 = vrot.slane %v514, %v529
    %v532 = vunpack.c.l.s4 1966171168
    %v533 = vunpack.c.0.s8 %v532
    %v534 = vlaneseq
    %v535 = vshrl.u32 %v534, 7
    %v536 = vsub.s32 %v533, %v535
    %v537 = vrot.slane %v515, %v536
    %v539 = vunpack.c.l.s4 1966171168
    %v540 = vunpack.c.0.s8 %v539
    %v541 = vlaneseq
    %v542 = vshrl.u32 %v541, 7
    %v543 = vsub.s32 %v540, %v542
    %v544 = vrot.slane %v516, %v543
    %v545 = vcombine.low %v523, %v530
    %v546 = vcombine.low %v537, %v544
    %v548 = vunpack.c.l.s4 1966171168
    %v549 = vunpack.c.0.s8 %v548
    %v550 = vlaneseq
    %v551 = vshrl.u32 %v550, 7
    %v552 = vsub.s32 %v549, %v551
    %v553 = vrot.slane %v545, %v552
    %v555 = vunpack.c.l.s4 1966171168
    %v556 = vunpack.c.0.s8 %v555
    %v557 = vlaneseq
    %v558 = vshrl.u32 %v557, 7
    %v559 = vsub.s32 %v556, %v558
    %v560 = vrot.slane %v546, %v559
    %v561 = vcombine.low %v553, %v560
    %v563 = vmul.f32 %v355, %v561
    %v565 = vlaneseq
    %v566 = vshrl.u32 %v565, 7
    %v567 = vsub.s32 0, %v566
    %v568 = vrot.slane %v563, %v567
    %v569 = vlaneseq
    %v570 = vshrl.u32 %v569, 7
    %v571 = vsub.s32 1, %v570
    %v572 = vrot.slane %v563, %v571
    %v573 = vlaneseq
    %v574 = vshrl.u32 %v573, 7
    %v575 = vsub.s32 2, %v574
    %v576 = vrot.slane %v563, %v575
    %v577 = vlaneseq
    %v578 = vshrl.u32 %v577, 7
    %v579 = vsub.s32 3, %v578
    %v580 = vrot.slane %v563, %v579
    %v581 = vlaneseq
    %v582 = vshrl.u32 %v581, 7
    %v583 = vsub.s32 4, %v582
    %v584 = vrot.slane %v563, %v583
    %v585 = vlaneseq
    %v586 = vshrl.u32 %v585, 7
    %v587 = vsub.s32 5, %v586
    %v588 = vrot.slane %v563, %v587
    %v589 = vlaneseq
    %v590 = vshrl.u32 %v589, 7
    %v591 = vsub.s32 6, %v590
    %v592 = vrot.slane %v563, %v591
    %v593 = vlaneseq
    %v594 = vshrl.u32 %v593, 7
    %v595 = vsub.s32 7, %v594
    %v596 = vrot.slane %v563, %v595
    %v605 = vmul.f32 %v417, %v568
    %v606 = vmul.f32 %v418, %v572
    %v607 = vmul.f32 %v419, %v576
    %v608 = vmul.f32 %v420, %v580
    %v609 = vmul.f32 %v421, %v584
    %v610 = vmul.f32 %v422, %v588
    %v611 = vmul.f32 %v423, %v592
    %v612 = vmul.f32 %v424, %v596
    %v614 = vlaneseq
    %v615 = vshrl.u32 %v614, 7
    %v616 = vsub.s32 0, %v615
    %v617 = vrot.slane %v359, %v616
    %v618 = vlaneseq
    %v619 = vshrl.u32 %v618, 7
    %v620 = vsub.s32 1, %v619
    %v621 = vrot.slane %v359, %v620
    %v622 = vlaneseq
    %v623 = vshrl.u32 %v622, 7
    %v624 = vsub.s32 2, %v623
    %v625 = vrot.slane %v359, %v624
    %v626 = vlaneseq
    %v627 = vshrl.u32 %v626, 7
    %v628 = vsub.s32 3, %v627
    %v629 = vrot.slane %v359, %v628
    %v630 = vlaneseq
    %v631 = vshrl.u32 %v630, 7
    %v632 = vsub.s32 4, %v631
    %v633 = vrot.slane %v359, %v632
    %v634 = vlaneseq
    %v635 = vshrl.u32 %v634, 7
    %v636 = vsub.s32 5, %v635
    %v637 = vrot.slane %v359, %v636
    %v638 = vlaneseq
    %v639 = vshrl.u32 %v638, 7
    %v640 = vsub.s32 6, %v639
    %v641 = vrot.slane %v359, %v640
    %v642 = vlaneseq
    %v643 = vshrl.u32 %v642, 7
    %v644 = vsub.s32 7, %v643
    %v645 = vrot.slane %v359, %v644
    %v654 = vadd.f32 %v605, %v617
    %v655 = vadd.f32 %v606, %v621
    %v656 = vadd.f32 %v607, %v625
    %v657 = vadd.f32 %v608, %v629
    %v658 = vadd.f32 %v609, %v633
    %v659 = vadd.f32 %v610, %v637
    %v660 = vadd.f32 %v611, %v641
    %v661 = vadd.f32 %v612, %v645
    %v662 = vmax.f32 %v654, 0.0
    %v663 = vmax.f32 %v655, 0.0
    %v664 = vmax.f32 %v656, 0.0
    %v665 = vmax.f32 %v657, 0.0
    %v666 = vmax.f32 %v658, 0.0
    %v667 = vmax.f32 %v659, 0.0
    %v668 = vmax.f32 %v660, 0.0
    %v669 = vmax.f32 %v661, 0.0
    %v670 = vpack.c.bf16 %v662, %v662
    %v671 = vpack.c.bf16 %v663, %v663
    %v672 = vpack.c.bf16 %v664, %v664
    %v673 = vpack.c.bf16 %v665, %v665
    %v674 = vpack.c.bf16 %v666, %v666
    %v675 = vpack.c.bf16 %v667, %v667
    %v676 = vpack.c.bf16 %v668, %v668
    %v677 = vpack.c.bf16 %v669, %v669
    %v678 = vld [vmem:[#allocation6] sm:$0xff]
    %v679 = vld [vmem:[#allocation6 + $0x8] sm:$0xff]
    %v680 = vld [vmem:[#allocation6 + $0x10] sm:$0xff]
    %v681 = vld [vmem:[#allocation6 + $0x18] sm:$0xff]
    %v682 = vld [vmem:[#allocation6 + $0x40] sm:$0xff]
    %v683 = vld [vmem:[#allocation6 + $0x48] sm:$0xff]
    %v684 = vld [vmem:[#allocation6 + $0x50] sm:$0xff]
    %v685 = vld [vmem:[#allocation6 + $0x58] sm:$0xff]
    %v686 = vld [vmem:[#allocation6 + $0x80] sm:$0xff]
    %v687 = vld [vmem:[#allocation6 + $0x88] sm:$0xff]
    %v688 = vld [vmem:[#allocation6 + $0x90] sm:$0xff]
    %v689 = vld [vmem:[#allocation6 + $0x98] sm:$0xff]
    %v690 = vld [vmem:[#allocation6 + $0xc0] sm:$0xff]
    %v691 = vld [vmem:[#allocation6 + $0xc8] sm:$0xff]
    %v692 = vld [vmem:[#allocation6 + $0xd0] sm:$0xff]
    %v693 = vld [vmem:[#allocation6 + $0xd8] sm:$0xff]
    %v694 = vld [vmem:[#allocation6 + $0x100] sm:$0xff]
    %v695 = vld [vmem:[#allocation6 + $0x108] sm:$0xff]
    %v696 = vld [vmem:[#allocation6 + $0x110] sm:$0xff]
    %v697 = vld [vmem:[#allocation6 + $0x118] sm:$0xff]
    %v698 = vld [vmem:[#allocation6 + $0x140] sm:$0xff]
    %v699 = vld [vmem:[#allocation6 + $0x148] sm:$0xff]
    %v700 = vld [vmem:[#allocation6 + $0x150] sm:$0xff]
    %v701 = vld [vmem:[#allocation6 + $0x158] sm:$0xff]
    %v702 = vld [vmem:[#allocation6 + $0x180] sm:$0xff]
    %v703 = vld [vmem:[#allocation6 + $0x188] sm:$0xff]
    %v704 = vld [vmem:[#allocation6 + $0x190] sm:$0xff]
    %v705 = vld [vmem:[#allocation6 + $0x198] sm:$0xff]
    %v706 = vld [vmem:[#allocation6 + $0x1c0] sm:$0xff]
    %v707 = vld [vmem:[#allocation6 + $0x1c8] sm:$0xff]
    %v708 = vld [vmem:[#allocation6 + $0x1d0] sm:$0xff]
    %v709 = vld [vmem:[#allocation6 + $0x1d8] sm:$0xff]
    %v710 = vld [vmem:[#allocation6 + $0x200] sm:$0xff]
    %v711 = vld [vmem:[#allocation6 + $0x208] sm:$0xff]
    %v712 = vld [vmem:[#allocation6 + $0x210] sm:$0xff]
    %v713 = vld [vmem:[#allocation6 + $0x218] sm:$0xff]
    %v714 = vld [vmem:[#allocation6 + $0x240] sm:$0xff]
    %v715 = vld [vmem:[#allocation6 + $0x248] sm:$0xff]
    %v716 = vld [vmem:[#allocation6 + $0x250] sm:$0xff]
    %v717 = vld [vmem:[#allocation6 + $0x258] sm:$0xff]
    %v718 = vld [vmem:[#allocation6 + $0x280] sm:$0xff]
    %v719 = vld [vmem:[#allocation6 + $0x288] sm:$0xff]
    %v720 = vld [vmem:[#allocation6 + $0x290] sm:$0xff]
    %v721 = vld [vmem:[#allocation6 + $0x298] sm:$0xff]
    %v722 = vld [vmem:[#allocation6 + $0x2c0] sm:$0xff]
    %v723 = vld [vmem:[#allocation6 + $0x2c8] sm:$0xff]
    %v724 = vld [vmem:[#allocation6 + $0x2d0] sm:$0xff]
    %v725 = vld [vmem:[#allocation6 + $0x2d8] sm:$0xff]
    %v726 = vld [vmem:[#allocation6 + $0x300] sm:$0xff]
    %v727 = vld [vmem:[#allocation6 + $0x308] sm:$0xff]
    %v728 = vld [vmem:[#allocation6 + $0x310] sm:$0xff]
    %v729 = vld [vmem:[#allocation6 + $0x318] sm:$0xff]
    %v730 = vld [vmem:[#allocation6 + $0x340] sm:$0xff]
    %v731 = vld [vmem:[#allocation6 + $0x348] sm:$0xff]
    %v732 = vld [vmem:[#allocation6 + $0x350] sm:$0xff]
    %v733 = vld [vmem:[#allocation6 + $0x358] sm:$0xff]
    %v734 = vld [vmem:[#allocation6 + $0x380] sm:$0xff]
    %v735 = vld [vmem:[#allocation6 + $0x388] sm:$0xff]
    %v736 = vld [vmem:[#allocation6 + $0x390] sm:$0xff]
    %v737 = vld [vmem:[#allocation6 + $0x398] sm:$0xff]
    %v738 = vld [vmem:[#allocation6 + $0x3c0] sm:$0xff]
    %v739 = vld [vmem:[#allocation6 + $0x3c8] sm:$0xff]
    %v740 = vld [vmem:[#allocation6 + $0x3d0] sm:$0xff]
    %v741 = vld [vmem:[#allocation6 + $0x3d8] sm:$0xff]
    %v742 = vld [vmem:[#allocation6 + $0x400] sm:$0xff]
    %v743 = vld [vmem:[#allocation6 + $0x408] sm:$0xff]
    %v744 = vld [vmem:[#allocation6 + $0x410] sm:$0xff]
    %v745 = vld [vmem:[#allocation6 + $0x418] sm:$0xff]
    %v746 = vld [vmem:[#allocation6 + $0x440] sm:$0xff]
    %v747 = vld [vmem:[#allocation6 + $0x448] sm:$0xff]
    %v748 = vld [vmem:[#allocation6 + $0x450] sm:$0xff]
    %v749 = vld [vmem:[#allocation6 + $0x458] sm:$0xff]
    %v750 = vld [vmem:[#allocation6 + $0x480] sm:$0xff]
    %v751 = vld [vmem:[#allocation6 + $0x488] sm:$0xff]
    %v752 = vld [vmem:[#allocation6 + $0x490] sm:$0xff]
    %v753 = vld [vmem:[#allocation6 + $0x498] sm:$0xff]
    %v754 = vld [vmem:[#allocation6 + $0x4c0] sm:$0xff]
    %v755 = vld [vmem:[#allocation6 + $0x4c8] sm:$0xff]
    %v756 = vld [vmem:[#allocation6 + $0x4d0] sm:$0xff]
    %v757 = vld [vmem:[#allocation6 + $0x4d8] sm:$0xff]
    %v758 = vld [vmem:[#allocation6 + $0x500] sm:$0xff]
    %v759 = vld [vmem:[#allocation6 + $0x508] sm:$0xff]
    %v760 = vld [vmem:[#allocation6 + $0x510] sm:$0xff]
    %v761 = vld [vmem:[#allocation6 + $0x518] sm:$0xff]
    %v762 = vld [vmem:[#allocation6 + $0x540] sm:$0xff]
    %v763 = vld [vmem:[#allocation6 + $0x548] sm:$0xff]
    %v764 = vld [vmem:[#allocation6 + $0x550] sm:$0xff]
    %v765 = vld [vmem:[#allocation6 + $0x558] sm:$0xff]
    %v766 = vld [vmem:[#allocation6 + $0x580] sm:$0xff]
    %v767 = vld [vmem:[#allocation6 + $0x588] sm:$0xff]
    %v768 = vld [vmem:[#allocation6 + $0x590] sm:$0xff]
    %v769 = vld [vmem:[#allocation6 + $0x598] sm:$0xff]
    %v770 = vld [vmem:[#allocation6 + $0x5c0] sm:$0xff]
    %v771 = vld [vmem:[#allocation6 + $0x5c8] sm:$0xff]
    %v772 = vld [vmem:[#allocation6 + $0x5d0] sm:$0xff]
    %v773 = vld [vmem:[#allocation6 + $0x5d8] sm:$0xff]
    %v774 = vld [vmem:[#allocation6 + $0x600] sm:$0xff]
    %v775 = vld [vmem:[#allocation6 + $0x608] sm:$0xff]
    %v776 = vld [vmem:[#allocation6 + $0x610] sm:$0xff]
    %v777 = vld [vmem:[#allocation6 + $0x618] sm:$0xff]
    %v778 = vld [vmem:[#allocation6 + $0x640] sm:$0xff]
    %v779 = vld [vmem:[#allocation6 + $0x648] sm:$0xff]
    %v780 = vld [vmem:[#allocation6 + $0x650] sm:$0xff]
    %v781 = vld [vmem:[#allocation6 + $0x658] sm:$0xff]
    %v782 = vld [vmem:[#allocation6 + $0x680] sm:$0xff]
    %v783 = vld [vmem:[#allocation6 + $0x688] sm:$0xff]
    %v784 = vld [vmem:[#allocation6 + $0x690] sm:$0xff]
    %v785 = vld [vmem:[#allocation6 + $0x698] sm:$0xff]
    %v786 = vld [vmem:[#allocation6 + $0x6c0] sm:$0xff]
    %v787 = vld [vmem:[#allocation6 + $0x6c8] sm:$0xff]
    %v788 = vld [vmem:[#allocation6 + $0x6d0] sm:$0xff]
    %v789 = vld [vmem:[#allocation6 + $0x6d8] sm:$0xff]
    %v790 = vld [vmem:[#allocation6 + $0x700] sm:$0xff]
    %v791 = vld [vmem:[#allocation6 + $0x708] sm:$0xff]
    %v792 = vld [vmem:[#allocation6 + $0x710] sm:$0xff]
    %v793 = vld [vmem:[#allocation6 + $0x718] sm:$0xff]
    %v794 = vld [vmem:[#allocation6 + $0x740] sm:$0xff]
    %v795 = vld [vmem:[#allocation6 + $0x748] sm:$0xff]
    %v796 = vld [vmem:[#allocation6 + $0x750] sm:$0xff]
    %v797 = vld [vmem:[#allocation6 + $0x758] sm:$0xff]
    %v798 = vld [vmem:[#allocation6 + $0x780] sm:$0xff]
    %v799 = vld [vmem:[#allocation6 + $0x788] sm:$0xff]
    %v800 = vld [vmem:[#allocation6 + $0x790] sm:$0xff]
    %v801 = vld [vmem:[#allocation6 + $0x798] sm:$0xff]
    %v802 = vld [vmem:[#allocation6 + $0x7c0] sm:$0xff]
    %v803 = vld [vmem:[#allocation6 + $0x7c8] sm:$0xff]
    %v804 = vld [vmem:[#allocation6 + $0x7d0] sm:$0xff]
    %v805 = vld [vmem:[#allocation6 + $0x7d8] sm:$0xff]
    %v806 = vld [vmem:[#allocation6 + $0x800] sm:$0xff]
    %v807 = vld [vmem:[#allocation6 + $0x808] sm:$0xff]
    %v808 = vld [vmem:[#allocation6 + $0x810] sm:$0xff]
    %v809 = vld [vmem:[#allocation6 + $0x818] sm:$0xff]
    %v810 = vld [vmem:[#allocation6 + $0x840] sm:$0xff]
    %v811 = vld [vmem:[#allocation6 + $0x848] sm:$0xff]
    %v812 = vld [vmem:[#allocation6 + $0x850] sm:$0xff]
    %v813 = vld [vmem:[#allocation6 + $0x858] sm:$0xff]
    %v814 = vld [vmem:[#allocation6 + $0x880] sm:$0xff]
    %v815 = vld [vmem:[#allocation6 + $0x888] sm:$0xff]
    %v816 = vld [vmem:[#allocation6 + $0x890] sm:$0xff]
    %v817 = vld [vmem:[#allocation6 + $0x898] sm:$0xff]
    %v818 = vld [vmem:[#allocation6 + $0x8c0] sm:$0xff]
    %v819 = vld [vmem:[#allocation6 + $0x8c8] sm:$0xff]
    %v820 = vld [vmem:[#allocation6 + $0x8d0] sm:$0xff]
    %v821 = vld [vmem:[#allocation6 + $0x8d8] sm:$0xff]
    %v822 = vld [vmem:[#allocation6 + $0x900] sm:$0xff]
    %v823 = vld [vmem:[#allocation6 + $0x908] sm:$0xff]
    %v824 = vld [vmem:[#allocation6 + $0x910] sm:$0xff]
    %v825 = vld [vmem:[#allocation6 + $0x918] sm:$0xff]
    %v826 = vld [vmem:[#allocation6 + $0x940] sm:$0xff]
    %v827 = vld [vmem:[#allocation6 + $0x948] sm:$0xff]
    %v828 = vld [vmem:[#allocation6 + $0x950] sm:$0xff]
    %v829 = vld [vmem:[#allocation6 + $0x958] sm:$0xff]
    %v830 = vld [vmem:[#allocation6 + $0x980] sm:$0xff]
    %v831 = vld [vmem:[#allocation6 + $0x988] sm:$0xff]
    %v832 = vld [vmem:[#allocation6 + $0x990] sm:$0xff]
    %v833 = vld [vmem:[#allocation6 + $0x998] sm:$0xff]
    %v834 = vld [vmem:[#allocation6 + $0x9c0] sm:$0xff]
    %v835 = vld [vmem:[#allocation6 + $0x9c8] sm:$0xff]
    %v836 = vld [vmem:[#allocation6 + $0x9d0] sm:$0xff]
    %v837 = vld [vmem:[#allocation6 + $0x9d8] sm:$0xff]
    %v838 = vld [vmem:[#allocation6 + $0xa00] sm:$0xff]
    %v839 = vld [vmem:[#allocation6 + $0xa08] sm:$0xff]
    %v840 = vld [vmem:[#allocation6 + $0xa10] sm:$0xff]
    %v841 = vld [vmem:[#allocation6 + $0xa18] sm:$0xff]
    %v842 = vld [vmem:[#allocation6 + $0xa40] sm:$0xff]
    %v843 = vld [vmem:[#allocation6 + $0xa48] sm:$0xff]
    %v844 = vld [vmem:[#allocation6 + $0xa50] sm:$0xff]
    %v845 = vld [vmem:[#allocation6 + $0xa58] sm:$0xff]
    %v846 = vld [vmem:[#allocation6 + $0xa80] sm:$0xff]
    %v847 = vld [vmem:[#allocation6 + $0xa88] sm:$0xff]
    %v848 = vld [vmem:[#allocation6 + $0xa90] sm:$0xff]
    %v849 = vld [vmem:[#allocation6 + $0xa98] sm:$0xff]
    %v850 = vld [vmem:[#allocation6 + $0xac0] sm:$0xff]
    %v851 = vld [vmem:[#allocation6 + $0xac8] sm:$0xff]
    %v852 = vld [vmem:[#allocation6 + $0xad0] sm:$0xff]
    %v853 = vld [vmem:[#allocation6 + $0xad8] sm:$0xff]
    %v854 = vld [vmem:[#allocation6 + $0xb00] sm:$0xff]
    %v855 = vld [vmem:[#allocation6 + $0xb08] sm:$0xff]
    %v856 = vld [vmem:[#allocation6 + $0xb10] sm:$0xff]
    %v857 = vld [vmem:[#allocation6 + $0xb18] sm:$0xff]
    %v858 = vld [vmem:[#allocation6 + $0xb40] sm:$0xff]
    %v859 = vld [vmem:[#allocation6 + $0xb48] sm:$0xff]
    %v860 = vld [vmem:[#allocation6 + $0xb50] sm:$0xff]
    %v861 = vld [vmem:[#allocation6 + $0xb58] sm:$0xff]
    %v862 = vld [vmem:[#allocation6 + $0xb80] sm:$0xff]
    %v863 = vld [vmem:[#allocation6 + $0xb88] sm:$0xff]
    %v864 = vld [vmem:[#allocation6 + $0xb90] sm:$0xff]
    %v865 = vld [vmem:[#allocation6 + $0xb98] sm:$0xff]
    %v866 = vld [vmem:[#allocation6 + $0xbc0] sm:$0xff]
    %v867 = vld [vmem:[#allocation6 + $0xbc8] sm:$0xff]
    %v868 = vld [vmem:[#allocation6 + $0xbd0] sm:$0xff]
    %v869 = vld [vmem:[#allocation6 + $0xbd8] sm:$0xff]
    %v870 = vld [vmem:[#allocation6 + $0xc00] sm:$0xff]
    %v871 = vld [vmem:[#allocation6 + $0xc08] sm:$0xff]
    %v872 = vld [vmem:[#allocation6 + $0xc10] sm:$0xff]
    %v873 = vld [vmem:[#allocation6 + $0xc18] sm:$0xff]
    %v874 = vld [vmem:[#allocation6 + $0xc40] sm:$0xff]
    %v875 = vld [vmem:[#allocation6 + $0xc48] sm:$0xff]
    %v876 = vld [vmem:[#allocation6 + $0xc50] sm:$0xff]
    %v877 = vld [vmem:[#allocation6 + $0xc58] sm:$0xff]
    %v878 = vld [vmem:[#allocation6 + $0xc80] sm:$0xff]
    %v879 = vld [vmem:[#allocation6 + $0xc88] sm:$0xff]
    %v880 = vld [vmem:[#allocation6 + $0xc90] sm:$0xff]
    %v881 = vld [vmem:[#allocation6 + $0xc98] sm:$0xff]
    %v882 = vld [vmem:[#allocation6 + $0xcc0] sm:$0xff]
    %v883 = vld [vmem:[#allocation6 + $0xcc8] sm:$0xff]
    %v884 = vld [vmem:[#allocation6 + $0xcd0] sm:$0xff]
    %v885 = vld [vmem:[#allocation6 + $0xcd8] sm:$0xff]
    %v886 = vld [vmem:[#allocation6 + $0xd00] sm:$0xff]
    %v887 = vld [vmem:[#allocation6 + $0xd08] sm:$0xff]
    %v888 = vld [vmem:[#allocation6 + $0xd10] sm:$0xff]
    %v889 = vld [vmem:[#allocation6 + $0xd18] sm:$0xff]
    %v890 = vld [vmem:[#allocation6 + $0xd40] sm:$0xff]
    %v891 = vld [vmem:[#allocation6 + $0xd48] sm:$0xff]
    %v892 = vld [vmem:[#allocation6 + $0xd50] sm:$0xff]
    %v893 = vld [vmem:[#allocation6 + $0xd58] sm:$0xff]
    %v894 = vld [vmem:[#allocation6 + $0xd80] sm:$0xff]
    %v895 = vld [vmem:[#allocation6 + $0xd88] sm:$0xff]
    %v896 = vld [vmem:[#allocation6 + $0xd90] sm:$0xff]
    %v897 = vld [vmem:[#allocation6 + $0xd98] sm:$0xff]
    %v898 = vld [vmem:[#allocation6 + $0xdc0] sm:$0xff]
    %v899 = vld [vmem:[#allocation6 + $0xdc8] sm:$0xff]
    %v900 = vld [vmem:[#allocation6 + $0xdd0] sm:$0xff]
    %v901 = vld [vmem:[#allocation6 + $0xdd8] sm:$0xff]
    %v902 = vld [vmem:[#allocation6 + $0xe00] sm:$0xff]
    %v903 = vld [vmem:[#allocation6 + $0xe08] sm:$0xff]
    %v904 = vld [vmem:[#allocation6 + $0xe10] sm:$0xff]
    %v905 = vld [vmem:[#allocation6 + $0xe18] sm:$0xff]
    %v906 = vld [vmem:[#allocation6 + $0xe40] sm:$0xff]
    %v907 = vld [vmem:[#allocation6 + $0xe48] sm:$0xff]
    %v908 = vld [vmem:[#allocation6 + $0xe50] sm:$0xff]
    %v909 = vld [vmem:[#allocation6 + $0xe58] sm:$0xff]
    %v910 = vld [vmem:[#allocation6 + $0xe80] sm:$0xff]
    %v911 = vld [vmem:[#allocation6 + $0xe88] sm:$0xff]
    %v912 = vld [vmem:[#allocation6 + $0xe90] sm:$0xff]
    %v913 = vld [vmem:[#allocation6 + $0xe98] sm:$0xff]
    %v914 = vld [vmem:[#allocation6 + $0xec0] sm:$0xff]
    %v915 = vld [vmem:[#allocation6 + $0xec8] sm:$0xff]
    %v916 = vld [vmem:[#allocation6 + $0xed0] sm:$0xff]
    %v917 = vld [vmem:[#allocation6 + $0xed8] sm:$0xff]
    %v918 = vld [vmem:[#allocation6 + $0xf00] sm:$0xff]
    %v919 = vld [vmem:[#allocation6 + $0xf08] sm:$0xff]
    %v920 = vld [vmem:[#allocation6 + $0xf10] sm:$0xff]
    %v921 = vld [vmem:[#allocation6 + $0xf18] sm:$0xff]
    %v922 = vld [vmem:[#allocation6 + $0xf40] sm:$0xff]
    %v923 = vld [vmem:[#allocation6 + $0xf48] sm:$0xff]
    %v924 = vld [vmem:[#allocation6 + $0xf50] sm:$0xff]
    %v925 = vld [vmem:[#allocation6 + $0xf58] sm:$0xff]
    %v926 = vld [vmem:[#allocation6 + $0xf80] sm:$0xff]
    %v927 = vld [vmem:[#allocation6 + $0xf88] sm:$0xff]
    %v928 = vld [vmem:[#allocation6 + $0xf90] sm:$0xff]
    %v929 = vld [vmem:[#allocation6 + $0xf98] sm:$0xff]
    %v930 = vld [vmem:[#allocation6 + $0xfc0] sm:$0xff]
    %v931 = vld [vmem:[#allocation6 + $0xfc8] sm:$0xff]
    %v932 = vld [vmem:[#allocation6 + $0xfd0] sm:$0xff]
    %v933 = vld [vmem:[#allocation6 + $0xfd8] sm:$0xff]
    %v934 = vld [vmem:[#allocation6 + $0x1000] sm:$0xff]
    %v935 = vld [vmem:[#allocation6 + $0x1008] sm:$0xff]
    %v936 = vld [vmem:[#allocation6 + $0x1010] sm:$0xff]
    %v937 = vld [vmem:[#allocation6 + $0x1018] sm:$0xff]
    %v938 = vld [vmem:[#allocation6 + $0x1040] sm:$0xff]
    %v939 = vld [vmem:[#allocation6 + $0x1048] sm:$0xff]
    %v940 = vld [vmem:[#allocation6 + $0x1050] sm:$0xff]
    %v941 = vld [vmem:[#allocation6 + $0x1058] sm:$0xff]
    %v942 = vld [vmem:[#allocation6 + $0x1080] sm:$0xff]
    %v943 = vld [vmem:[#allocation6 + $0x1088] sm:$0xff]
    %v944 = vld [vmem:[#allocation6 + $0x1090] sm:$0xff]
    %v945 = vld [vmem:[#allocation6 + $0x1098] sm:$0xff]
    %v946 = vld [vmem:[#allocation6 + $0x10c0] sm:$0xff]
    %v947 = vld [vmem:[#allocation6 + $0x10c8] sm:$0xff]
    %v948 = vld [vmem:[#allocation6 + $0x10d0] sm:$0xff]
    %v949 = vld [vmem:[#allocation6 + $0x10d8] sm:$0xff]
    %v950 = vld [vmem:[#allocation6 + $0x1100] sm:$0xff]
    %v951 = vld [vmem:[#allocation6 + $0x1108] sm:$0xff]
    %v952 = vld [vmem:[#allocation6 + $0x1110] sm:$0xff]
    %v953 = vld [vmem:[#allocation6 + $0x1118] sm:$0xff]
    %v954 = vld [vmem:[#allocation6 + $0x1140] sm:$0xff]
    %v955 = vld [vmem:[#allocation6 + $0x1148] sm:$0xff]
    %v956 = vld [vmem:[#allocation6 + $0x1150] sm:$0xff]
    %v957 = vld [vmem:[#allocation6 + $0x1158] sm:$0xff]
    %v958 = vld [vmem:[#allocation6 + $0x1180] sm:$0xff]
    %v959 = vld [vmem:[#allocation6 + $0x1188] sm:$0xff]
    %v960 = vld [vmem:[#allocation6 + $0x1190] sm:$0xff]
    %v961 = vld [vmem:[#allocation6 + $0x1198] sm:$0xff]
    %v962 = vld [vmem:[#allocation6 + $0x11c0] sm:$0xff]
    %v963 = vld [vmem:[#allocation6 + $0x11c8] sm:$0xff]
    %v964 = vld [vmem:[#allocation6 + $0x11d0] sm:$0xff]
    %v965 = vld [vmem:[#allocation6 + $0x11d8] sm:$0xff]
    %v966 = vld [vmem:[#allocation6 + $0x1200] sm:$0xff]
    %v967 = vld [vmem:[#allocation6 + $0x1208] sm:$0xff]
    %v968 = vld [vmem:[#allocation6 + $0x1210] sm:$0xff]
    %v969 = vld [vmem:[#allocation6 + $0x1218] sm:$0xff]
    %v970 = vld [vmem:[#allocation6 + $0x1240] sm:$0xff]
    %v971 = vld [vmem:[#allocation6 + $0x1248] sm:$0xff]
    %v972 = vld [vmem:[#allocation6 + $0x1250] sm:$0xff]
    %v973 = vld [vmem:[#allocation6 + $0x1258] sm:$0xff]
    %v974 = vld [vmem:[#allocation6 + $0x1280] sm:$0xff]
    %v975 = vld [vmem:[#allocation6 + $0x1288] sm:$0xff]
    %v976 = vld [vmem:[#allocation6 + $0x1290] sm:$0xff]
    %v977 = vld [vmem:[#allocation6 + $0x1298] sm:$0xff]
    %v978 = vld [vmem:[#allocation6 + $0x12c0] sm:$0xff]
    %v979 = vld [vmem:[#allocation6 + $0x12c8] sm:$0xff]
    %v980 = vld [vmem:[#allocation6 + $0x12d0] sm:$0xff]
    %v981 = vld [vmem:[#allocation6 + $0x12d8] sm:$0xff]
    %v982 = vld [vmem:[#allocation6 + $0x1300] sm:$0xff]
    %v983 = vld [vmem:[#allocation6 + $0x1308] sm:$0xff]
    %v984 = vld [vmem:[#allocation6 + $0x1310] sm:$0xff]
    %v985 = vld [vmem:[#allocation6 + $0x1318] sm:$0xff]
    %v986 = vld [vmem:[#allocation6 + $0x1340] sm:$0xff]
    %v987 = vld [vmem:[#allocation6 + $0x1348] sm:$0xff]
    %v988 = vld [vmem:[#allocation6 + $0x1350] sm:$0xff]
    %v989 = vld [vmem:[#allocation6 + $0x1358] sm:$0xff]
    %v990 = vld [vmem:[#allocation6 + $0x1380] sm:$0xff]
    %v991 = vld [vmem:[#allocation6 + $0x1388] sm:$0xff]
    %v992 = vld [vmem:[#allocation6 + $0x1390] sm:$0xff]
    %v993 = vld [vmem:[#allocation6 + $0x1398] sm:$0xff]
    %v994 = vld [vmem:[#allocation6 + $0x13c0] sm:$0xff]
    %v995 = vld [vmem:[#allocation6 + $0x13c8] sm:$0xff]
    %v996 = vld [vmem:[#allocation6 + $0x13d0] sm:$0xff]
    %v997 = vld [vmem:[#allocation6 + $0x13d8] sm:$0xff]
    %v998 = vld [vmem:[#allocation6 + $0x1400] sm:$0xff]
    %v999 = vld [vmem:[#allocation6 + $0x1408] sm:$0xff]
    %v1000 = vld [vmem:[#allocation6 + $0x1410] sm:$0xff]
    %v1001 = vld [vmem:[#allocation6 + $0x1418] sm:$0xff]
    %v1002 = vld [vmem:[#allocation6 + $0x1440] sm:$0xff]
    %v1003 = vld [vmem:[#allocation6 + $0x1448] sm:$0xff]
    %v1004 = vld [vmem:[#allocation6 + $0x1450] sm:$0xff]
    %v1005 = vld [vmem:[#allocation6 + $0x1458] sm:$0xff]
    %v1006 = vld [vmem:[#allocation6 + $0x1480] sm:$0xff]
    %v1007 = vld [vmem:[#allocation6 + $0x1488] sm:$0xff]
    %v1008 = vld [vmem:[#allocation6 + $0x1490] sm:$0xff]
    %v1009 = vld [vmem:[#allocation6 + $0x1498] sm:$0xff]
    %v1010 = vld [vmem:[#allocation6 + $0x14c0] sm:$0xff]
    %v1011 = vld [vmem:[#allocation6 + $0x14c8] sm:$0xff]
    %v1012 = vld [vmem:[#allocation6 + $0x14d0] sm:$0xff]
    %v1013 = vld [vmem:[#allocation6 + $0x14d8] sm:$0xff]
    %v1014 = vld [vmem:[#allocation6 + $0x1500] sm:$0xff]
    %v1015 = vld [vmem:[#allocation6 + $0x1508] sm:$0xff]
    %v1016 = vld [vmem:[#allocation6 + $0x1510] sm:$0xff]
    %v1017 = vld [vmem:[#allocation6 + $0x1518] sm:$0xff]
    %v1018 = vld [vmem:[#allocation6 + $0x1540] sm:$0xff]
    %v1019 = vld [vmem:[#allocation6 + $0x1548] sm:$0xff]
    %v1020 = vld [vmem:[#allocation6 + $0x1550] sm:$0xff]
    %v1021 = vld [vmem:[#allocation6 + $0x1558] sm:$0xff]
    %v1022 = vld [vmem:[#allocation6 + $0x1580] sm:$0xff]
    %v1023 = vld [vmem:[#allocation6 + $0x1588] sm:$0xff]
    %v1024 = vld [vmem:[#allocation6 + $0x1590] sm:$0xff]
    %v1025 = vld [vmem:[#allocation6 + $0x1598] sm:$0xff]
    %v1026 = vld [vmem:[#allocation6 + $0x15c0] sm:$0xff]
    %v1027 = vld [vmem:[#allocation6 + $0x15c8] sm:$0xff]
    %v1028 = vld [vmem:[#allocation6 + $0x15d0] sm:$0xff]
    %v1029 = vld [vmem:[#allocation6 + $0x15d8] sm:$0xff]
    %v1030 = vld [vmem:[#allocation6 + $0x1600] sm:$0xff]
    %v1031 = vld [vmem:[#allocation6 + $0x1608] sm:$0xff]
    %v1032 = vld [vmem:[#allocation6 + $0x1610] sm:$0xff]
    %v1033 = vld [vmem:[#allocation6 + $0x1618] sm:$0xff]
    %v1034 = vld [vmem:[#allocation6 + $0x1640] sm:$0xff]
    %v1035 = vld [vmem:[#allocation6 + $0x1648] sm:$0xff]
    %v1036 = vld [vmem:[#allocation6 + $0x1650] sm:$0xff]
    %v1037 = vld [vmem:[#allocation6 + $0x1658] sm:$0xff]
    %v1038 = vld [vmem:[#allocation6 + $0x1680] sm:$0xff]
    %v1039 = vld [vmem:[#allocation6 + $0x1688] sm:$0xff]
    %v1040 = vld [vmem:[#allocation6 + $0x1690] sm:$0xff]
    %v1041 = vld [vmem:[#allocation6 + $0x1698] sm:$0xff]
    %v1042 = vld [vmem:[#allocation6 + $0x16c0] sm:$0xff]
    %v1043 = vld [vmem:[#allocation6 + $0x16c8] sm:$0xff]
    %v1044 = vld [vmem:[#allocation6 + $0x16d0] sm:$0xff]
    %v1045 = vld [vmem:[#allocation6 + $0x16d8] sm:$0xff]
    %v1046 = vld [vmem:[#allocation6 + $0x1700] sm:$0xff]
    %v1047 = vld [vmem:[#allocation6 + $0x1708] sm:$0xff]
    %v1048 = vld [vmem:[#allocation6 + $0x1710] sm:$0xff]
    %v1049 = vld [vmem:[#allocation6 + $0x1718] sm:$0xff]
    %v1050 = vld [vmem:[#allocation6 + $0x1740] sm:$0xff]
    %v1051 = vld [vmem:[#allocation6 + $0x1748] sm:$0xff]
    %v1052 = vld [vmem:[#allocation6 + $0x1750] sm:$0xff]
    %v1053 = vld [vmem:[#allocation6 + $0x1758] sm:$0xff]
    %v1054 = vld [vmem:[#allocation6 + $0x1780] sm:$0xff]
    %v1055 = vld [vmem:[#allocation6 + $0x1788] sm:$0xff]
    %v1056 = vld [vmem:[#allocation6 + $0x1790] sm:$0xff]
    %v1057 = vld [vmem:[#allocation6 + $0x1798] sm:$0xff]
    %v1058 = vld [vmem:[#allocation6 + $0x17c0] sm:$0xff]
    %v1059 = vld [vmem:[#allocation6 + $0x17c8] sm:$0xff]
    %v1060 = vld [vmem:[#allocation6 + $0x17d0] sm:$0xff]
    %v1061 = vld [vmem:[#allocation6 + $0x17d8] sm:$0xff]
    %v1062 = vld [vmem:[#allocation6 + $0x1800] sm:$0xff]
    %v1063 = vld [vmem:[#allocation6 + $0x1808] sm:$0xff]
    %v1064 = vld [vmem:[#allocation6 + $0x1810] sm:$0xff]
    %v1065 = vld [vmem:[#allocation6 + $0x1818] sm:$0xff]
    %v1066 = vld [vmem:[#allocation6 + $0x1840] sm:$0xff]
    %v1067 = vld [vmem:[#allocation6 + $0x1848] sm:$0xff]
    %v1068 = vld [vmem:[#allocation6 + $0x1850] sm:$0xff]
    %v1069 = vld [vmem:[#allocation6 + $0x1858] sm:$0xff]
    %v1070 = vld [vmem:[#allocation6 + $0x1880] sm:$0xff]
    %v1071 = vld [vmem:[#allocation6 + $0x1888] sm:$0xff]
    %v1072 = vld [vmem:[#allocation6 + $0x1890] sm:$0xff]
    %v1073 = vld [vmem:[#allocation6 + $0x1898] sm:$0xff]
    %v1074 = vld [vmem:[#allocation6 + $0x18c0] sm:$0xff]
    %v1075 = vld [vmem:[#allocation6 + $0x18c8] sm:$0xff]
    %v1076 = vld [vmem:[#allocation6 + $0x18d0] sm:$0xff]
    %v1077 = vld [vmem:[#allocation6 + $0x18d8] sm:$0xff]
    %v1078 = vld [vmem:[#allocation6 + $0x1900] sm:$0xff]
    %v1079 = vld [vmem:[#allocation6 + $0x1908] sm:$0xff]
    %v1080 = vld [vmem:[#allocation6 + $0x1910] sm:$0xff]
    %v1081 = vld [vmem:[#allocation6 + $0x1918] sm:$0xff]
    %v1082 = vld [vmem:[#allocation6 + $0x1940] sm:$0xff]
    %v1083 = vld [vmem:[#allocation6 + $0x1948] sm:$0xff]
    %v1084 = vld [vmem:[#allocation6 + $0x1950] sm:$0xff]
    %v1085 = vld [vmem:[#allocation6 + $0x1958] sm:$0xff]
    %v1086 = vld [vmem:[#allocation6 + $0x1980] sm:$0xff]
    %v1087 = vld [vmem:[#allocation6 + $0x1988] sm:$0xff]
    %v1088 = vld [vmem:[#allocation6 + $0x1990] sm:$0xff]
    %v1089 = vld [vmem:[#allocation6 + $0x1998] sm:$0xff]
    %v1090 = vld [vmem:[#allocation6 + $0x19c0] sm:$0xff]
    %v1091 = vld [vmem:[#allocation6 + $0x19c8] sm:$0xff]
    %v1092 = vld [vmem:[#allocation6 + $0x19d0] sm:$0xff]
    %v1093 = vld [vmem:[#allocation6 + $0x19d8] sm:$0xff]
    %v1094 = vld [vmem:[#allocation6 + $0x1a00] sm:$0xff]
    %v1095 = vld [vmem:[#allocation6 + $0x1a08] sm:$0xff]
    %v1096 = vld [vmem:[#allocation6 + $0x1a10] sm:$0xff]
    %v1097 = vld [vmem:[#allocation6 + $0x1a18] sm:$0xff]
    %v1098 = vld [vmem:[#allocation6 + $0x1a40] sm:$0xff]
    %v1099 = vld [vmem:[#allocation6 + $0x1a48] sm:$0xff]
    %v1100 = vld [vmem:[#allocation6 + $0x1a50] sm:$0xff]
    %v1101 = vld [vmem:[#allocation6 + $0x1a58] sm:$0xff]
    %v1102 = vld [vmem:[#allocation6 + $0x1a80] sm:$0xff]
    %v1103 = vld [vmem:[#allocation6 + $0x1a88] sm:$0xff]
    %v1104 = vld [vmem:[#allocation6 + $0x1a90] sm:$0xff]
    %v1105 = vld [vmem:[#allocation6 + $0x1a98] sm:$0xff]
    %v1106 = vld [vmem:[#allocation6 + $0x1ac0] sm:$0xff]
    %v1107 = vld [vmem:[#allocation6 + $0x1ac8] sm:$0xff]
    %v1108 = vld [vmem:[#allocation6 + $0x1ad0] sm:$0xff]
    %v1109 = vld [vmem:[#allocation6 + $0x1ad8] sm:$0xff]
    %v1110 = vld [vmem:[#allocation6 + $0x1b00] sm:$0xff]
    %v1111 = vld [vmem:[#allocation6 + $0x1b08] sm:$0xff]
    %v1112 = vld [vmem:[#allocation6 + $0x1b10] sm:$0xff]
    %v1113 = vld [vmem:[#allocation6 + $0x1b18] sm:$0xff]
    %v1114 = vld [vmem:[#allocation6 + $0x1b40] sm:$0xff]
    %v1115 = vld [vmem:[#allocation6 + $0x1b48] sm:$0xff]
    %v1116 = vld [vmem:[#allocation6 + $0x1b50] sm:$0xff]
    %v1117 = vld [vmem:[#allocation6 + $0x1b58] sm:$0xff]
    %v1118 = vld [vmem:[#allocation6 + $0x1b80] sm:$0xff]
    %v1119 = vld [vmem:[#allocation6 + $0x1b88] sm:$0xff]
    %v1120 = vld [vmem:[#allocation6 + $0x1b90] sm:$0xff]
    %v1121 = vld [vmem:[#allocation6 + $0x1b98] sm:$0xff]
    %v1122 = vld [vmem:[#allocation6 + $0x1bc0] sm:$0xff]
    %v1123 = vld [vmem:[#allocation6 + $0x1bc8] sm:$0xff]
    %v1124 = vld [vmem:[#allocation6 + $0x1bd0] sm:$0xff]
    %v1125 = vld [vmem:[#allocation6 + $0x1bd8] sm:$0xff]
    %v1126 = vld [vmem:[#allocation6 + $0x1c00] sm:$0xff]
    %v1127 = vld [vmem:[#allocation6 + $0x1c08] sm:$0xff]
    %v1128 = vld [vmem:[#allocation6 + $0x1c10] sm:$0xff]
    %v1129 = vld [vmem:[#allocation6 + $0x1c18] sm:$0xff]
    %v1130 = vld [vmem:[#allocation6 + $0x1c40] sm:$0xff]
    %v1131 = vld [vmem:[#allocation6 + $0x1c48] sm:$0xff]
    %v1132 = vld [vmem:[#allocation6 + $0x1c50] sm:$0xff]
    %v1133 = vld [vmem:[#allocation6 + $0x1c58] sm:$0xff]
    %v1134 = vld [vmem:[#allocation6 + $0x1c80] sm:$0xff]
    %v1135 = vld [vmem:[#allocation6 + $0x1c88] sm:$0xff]
    %v1136 = vld [vmem:[#allocation6 + $0x1c90] sm:$0xff]
    %v1137 = vld [vmem:[#allocation6 + $0x1c98] sm:$0xff]
    %v1138 = vld [vmem:[#allocation6 + $0x1cc0] sm:$0xff]
    %v1139 = vld [vmem:[#allocation6 + $0x1cc8] sm:$0xff]
    %v1140 = vld [vmem:[#allocation6 + $0x1cd0] sm:$0xff]
    %v1141 = vld [vmem:[#allocation6 + $0x1cd8] sm:$0xff]
    %v1142 = vld [vmem:[#allocation6 + $0x1d00] sm:$0xff]
    %v1143 = vld [vmem:[#allocation6 + $0x1d08] sm:$0xff]
    %v1144 = vld [vmem:[#allocation6 + $0x1d10] sm:$0xff]
    %v1145 = vld [vmem:[#allocation6 + $0x1d18] sm:$0xff]
    %v1146 = vld [vmem:[#allocation6 + $0x1d40] sm:$0xff]
    %v1147 = vld [vmem:[#allocation6 + $0x1d48] sm:$0xff]
    %v1148 = vld [vmem:[#allocation6 + $0x1d50] sm:$0xff]
    %v1149 = vld [vmem:[#allocation6 + $0x1d58] sm:$0xff]
    %v1150 = vld [vmem:[#allocation6 + $0x1d80] sm:$0xff]
    %v1151 = vld [vmem:[#allocation6 + $0x1d88] sm:$0xff]
    %v1152 = vld [vmem:[#allocation6 + $0x1d90] sm:$0xff]
    %v1153 = vld [vmem:[#allocation6 + $0x1d98] sm:$0xff]
    %v1154 = vld [vmem:[#allocation6 + $0x1dc0] sm:$0xff]
    %v1155 = vld [vmem:[#allocation6 + $0x1dc8] sm:$0xff]
    %v1156 = vld [vmem:[#allocation6 + $0x1dd0] sm:$0xff]
    %v1157 = vld [vmem:[#allocation6 + $0x1dd8] sm:$0xff]
    %v1158 = vld [vmem:[#allocation6 + $0x1e00] sm:$0xff]
    %v1159 = vld [vmem:[#allocation6 + $0x1e08] sm:$0xff]
    %v1160 = vld [vmem:[#allocation6 + $0x1e10] sm:$0xff]
    %v1161 = vld [vmem:[#allocation6 + $0x1e18] sm:$0xff]
    %v1162 = vld [vmem:[#allocation6 + $0x1e40] sm:$0xff]
    %v1163 = vld [vmem:[#allocation6 + $0x1e48] sm:$0xff]
    %v1164 = vld [vmem:[#allocation6 + $0x1e50] sm:$0xff]
    %v1165 = vld [vmem:[#allocation6 + $0x1e58] sm:$0xff]
    %v1166 = vld [vmem:[#allocation6 + $0x1e80] sm:$0xff]
    %v1167 = vld [vmem:[#allocation6 + $0x1e88] sm:$0xff]
    %v1168 = vld [vmem:[#allocation6 + $0x1e90] sm:$0xff]
    %v1169 = vld [vmem:[#allocation6 + $0x1e98] sm:$0xff]
    %v1170 = vld [vmem:[#allocation6 + $0x1ec0] sm:$0xff]
    %v1171 = vld [vmem:[#allocation6 + $0x1ec8] sm:$0xff]
    %v1172 = vld [vmem:[#allocation6 + $0x1ed0] sm:$0xff]
    %v1173 = vld [vmem:[#allocation6 + $0x1ed8] sm:$0xff]
    %v1174 = vld [vmem:[#allocation6 + $0x1f00] sm:$0xff]
    %v1175 = vld [vmem:[#allocation6 + $0x1f08] sm:$0xff]
    %v1176 = vld [vmem:[#allocation6 + $0x1f10] sm:$0xff]
    %v1177 = vld [vmem:[#allocation6 + $0x1f18] sm:$0xff]
    %v1178 = vld [vmem:[#allocation6 + $0x1f40] sm:$0xff]
    %v1179 = vld [vmem:[#allocation6 + $0x1f48] sm:$0xff]
    %v1180 = vld [vmem:[#allocation6 + $0x1f50] sm:$0xff]
    %v1181 = vld [vmem:[#allocation6 + $0x1f58] sm:$0xff]
    %v1182 = vld [vmem:[#allocation6 + $0x1f80] sm:$0xff]
    %v1183 = vld [vmem:[#allocation6 + $0x1f88] sm:$0xff]
    %v1184 = vld [vmem:[#allocation6 + $0x1f90] sm:$0xff]
    %v1185 = vld [vmem:[#allocation6 + $0x1f98] sm:$0xff]
    %v1186 = vld [vmem:[#allocation6 + $0x1fc0] sm:$0xff]
    %v1187 = vld [vmem:[#allocation6 + $0x1fc8] sm:$0xff]
    %v1188 = vld [vmem:[#allocation6 + $0x1fd0] sm:$0xff]
    %v1189 = vld [vmem:[#allocation6 + $0x1fd8] sm:$0xff]
    %v1702 = vunpack.c.l.b16 %v678
    %v1703 = vunpack.c.h.b16 %v678
    %v1704 = vunpack.c.l.b16 %v679
    %v1705 = vunpack.c.h.b16 %v679
    %v1706 = vunpack.c.l.b16 %v680
    %v1707 = vunpack.c.h.b16 %v680
    %v1708 = vunpack.c.l.b16 %v681
    %v1709 = vunpack.c.h.b16 %v681
    %v1710 = vunpack.c.l.b16 %v682
    %v1711 = vunpack.c.h.b16 %v682
    %v1712 = vunpack.c.l.b16 %v683
    %v1713 = vunpack.c.h.b16 %v683
    %v1714 = vunpack.c.l.b16 %v684
    %v1715 = vunpack.c.h.b16 %v684
    %v1716 = vunpack.c.l.b16 %v685
    %v1717 = vunpack.c.h.b16 %v685
    %v1718 = vunpack.c.l.b16 %v686
    %v1719 = vunpack.c.h.b16 %v686
    %v1720 = vunpack.c.l.b16 %v687
    %v1721 = vunpack.c.h.b16 %v687
    %v1722 = vunpack.c.l.b16 %v688
    %v1723 = vunpack.c.h.b16 %v688
    %v1724 = vunpack.c.l.b16 %v689
    %v1725 = vunpack.c.h.b16 %v689
    %v1726 = vunpack.c.l.b16 %v690
    %v1727 = vunpack.c.h.b16 %v690
    %v1728 = vunpack.c.l.b16 %v691
    %v1729 = vunpack.c.h.b16 %v691
    %v1730 = vunpack.c.l.b16 %v692
    %v1731 = vunpack.c.h.b16 %v692
    %v1732 = vunpack.c.l.b16 %v693
    %v1733 = vunpack.c.h.b16 %v693
    %v1734 = vunpack.c.l.b16 %v694
    %v1735 = vunpack.c.h.b16 %v694
    %v1736 = vunpack.c.l.b16 %v695
    %v1737 = vunpack.c.h.b16 %v695
    %v1738 = vunpack.c.l.b16 %v696
    %v1739 = vunpack.c.h.b16 %v696
    %v1740 = vunpack.c.l.b16 %v697
    %v1741 = vunpack.c.h.b16 %v697
    %v1742 = vunpack.c.l.b16 %v698
    %v1743 = vunpack.c.h.b16 %v698
    %v1744 = vunpack.c.l.b16 %v699
    %v1745 = vunpack.c.h.b16 %v699
    %v1746 = vunpack.c.l.b16 %v700
    %v1747 = vunpack.c.h.b16 %v700
    %v1748 = vunpack.c.l.b16 %v701
    %v1749 = vunpack.c.h.b16 %v701
    %v1750 = vunpack.c.l.b16 %v702
    %v1751 = vunpack.c.h.b16 %v702
    %v1752 = vunpack.c.l.b16 %v703
    %v1753 = vunpack.c.h.b16 %v703
    %v1754 = vunpack.c.l.b16 %v704
    %v1755 = vunpack.c.h.b16 %v704
    %v1756 = vunpack.c.l.b16 %v705
    %v1757 = vunpack.c.h.b16 %v705
    %v1758 = vunpack.c.l.b16 %v706
    %v1759 = vunpack.c.h.b16 %v706
    %v1760 = vunpack.c.l.b16 %v707
    %v1761 = vunpack.c.h.b16 %v707
    %v1762 = vunpack.c.l.b16 %v708
    %v1763 = vunpack.c.h.b16 %v708
    %v1764 = vunpack.c.l.b16 %v709
    %v1765 = vunpack.c.h.b16 %v709
    %v1766 = vunpack.c.l.b16 %v710
    %v1767 = vunpack.c.h.b16 %v710
    %v1768 = vunpack.c.l.b16 %v711
    %v1769 = vunpack.c.h.b16 %v711
    %v1770 = vunpack.c.l.b16 %v712
    %v1771 = vunpack.c.h.b16 %v712
    %v1772 = vunpack.c.l.b16 %v713
    %v1773 = vunpack.c.h.b16 %v713
    %v1774 = vunpack.c.l.b16 %v714
    %v1775 = vunpack.c.h.b16 %v714
    %v1776 = vunpack.c.l.b16 %v715
    %v1777 = vunpack.c.h.b16 %v715
    %v1778 = vunpack.c.l.b16 %v716
    %v1779 = vunpack.c.h.b16 %v716
    %v1780 = vunpack.c.l.b16 %v717
    %v1781 = vunpack.c.h.b16 %v717
    %v1782 = vunpack.c.l.b16 %v718
    %v1783 = vunpack.c.h.b16 %v718
    %v1784 = vunpack.c.l.b16 %v719
    %v1785 = vunpack.c.h.b16 %v719
    %v1786 = vunpack.c.l.b16 %v720
    %v1787 = vunpack.c.h.b16 %v720
    %v1788 = vunpack.c.l.b16 %v721
    %v1789 = vunpack.c.h.b16 %v721
    %v1790 = vunpack.c.l.b16 %v722
    %v1791 = vunpack.c.h.b16 %v722
    %v1792 = vunpack.c.l.b16 %v723
    %v1793 = vunpack.c.h.b16 %v723
    %v1794 = vunpack.c.l.b16 %v724
    %v1795 = vunpack.c.h.b16 %v724
    %v1796 = vunpack.c.l.b16 %v725
    %v1797 = vunpack.c.h.b16 %v725
    %v1798 = vunpack.c.l.b16 %v726
    %v1799 = vunpack.c.h.b16 %v726
    %v1800 = vunpack.c.l.b16 %v727
    %v1801 = vunpack.c.h.b16 %v727
    %v1802 = vunpack.c.l.b16 %v728
    %v1803 = vunpack.c.h.b16 %v728
    %v1804 = vunpack.c.l.b16 %v729
    %v1805 = vunpack.c.h.b16 %v729
    %v1806 = vunpack.c.l.b16 %v730
    %v1807 = vunpack.c.h.b16 %v730
    %v1808 = vunpack.c.l.b16 %v731
    %v1809 = vunpack.c.h.b16 %v731
    %v1810 = vunpack.c.l.b16 %v732
    %v1811 = vunpack.c.h.b16 %v732
    %v1812 = vunpack.c.l.b16 %v733
    %v1813 = vunpack.c.h.b16 %v733
    %v1814 = vunpack.c.l.b16 %v734
    %v1815 = vunpack.c.h.b16 %v734
    %v1816 = vunpack.c.l.b16 %v735
    %v1817 = vunpack.c.h.b16 %v735
    %v1818 = vunpack.c.l.b16 %v736
    %v1819 = vunpack.c.h.b16 %v736
    %v1820 = vunpack.c.l.b16 %v737
    %v1821 = vunpack.c.h.b16 %v737
    %v1822 = vunpack.c.l.b16 %v738
    %v1823 = vunpack.c.h.b16 %v738
    %v1824 = vunpack.c.l.b16 %v739
    %v1825 = vunpack.c.h.b16 %v739
    %v1826 = vunpack.c.l.b16 %v740
    %v1827 = vunpack.c.h.b16 %v740
    %v1828 = vunpack.c.l.b16 %v741
    %v1829 = vunpack.c.h.b16 %v741
    %v1830 = vunpack.c.l.b16 %v742
    %v1831 = vunpack.c.h.b16 %v742
    %v1832 = vunpack.c.l.b16 %v743
    %v1833 = vunpack.c.h.b16 %v743
    %v1834 = vunpack.c.l.b16 %v744
    %v1835 = vunpack.c.h.b16 %v744
    %v1836 = vunpack.c.l.b16 %v745
    %v1837 = vunpack.c.h.b16 %v745
    %v1838 = vunpack.c.l.b16 %v746
    %v1839 = vunpack.c.h.b16 %v746
    %v1840 = vunpack.c.l.b16 %v747
    %v1841 = vunpack.c.h.b16 %v747
    %v1842 = vunpack.c.l.b16 %v748
    %v1843 = vunpack.c.h.b16 %v748
    %v1844 = vunpack.c.l.b16 %v749
    %v1845 = vunpack.c.h.b16 %v749
    %v1846 = vunpack.c.l.b16 %v750
    %v1847 = vunpack.c.h.b16 %v750
    %v1848 = vunpack.c.l.b16 %v751
    %v1849 = vunpack.c.h.b16 %v751
    %v1850 = vunpack.c.l.b16 %v752
    %v1851 = vunpack.c.h.b16 %v752
    %v1852 = vunpack.c.l.b16 %v753
    %v1853 = vunpack.c.h.b16 %v753
    %v1854 = vunpack.c.l.b16 %v754
    %v1855 = vunpack.c.h.b16 %v754
    %v1856 = vunpack.c.l.b16 %v755
    %v1857 = vunpack.c.h.b16 %v755
    %v1858 = vunpack.c.l.b16 %v756
    %v1859 = vunpack.c.h.b16 %v756
    %v1860 = vunpack.c.l.b16 %v757
    %v1861 = vunpack.c.h.b16 %v757
    %v1862 = vunpack.c.l.b16 %v758
    %v1863 = vunpack.c.h.b16 %v758
    %v1864 = vunpack.c.l.b16 %v759
    %v1865 = vunpack.c.h.b16 %v759
    %v1866 = vunpack.c.l.b16 %v760
    %v1867 = vunpack.c.h.b16 %v760
    %v1868 = vunpack.c.l.b16 %v761
    %v1869 = vunpack.c.h.b16 %v761
    %v1870 = vunpack.c.l.b16 %v762
    %v1871 = vunpack.c.h.b16 %v762
    %v1872 = vunpack.c.l.b16 %v763
    %v1873 = vunpack.c.h.b16 %v763
    %v1874 = vunpack.c.l.b16 %v764
    %v1875 = vunpack.c.h.b16 %v764
    %v1876 = vunpack.c.l.b16 %v765
    %v1877 = vunpack.c.h.b16 %v765
    %v1878 = vunpack.c.l.b16 %v766
    %v1879 = vunpack.c.h.b16 %v766
    %v1880 = vunpack.c.l.b16 %v767
    %v1881 = vunpack.c.h.b16 %v767
    %v1882 = vunpack.c.l.b16 %v768
    %v1883 = vunpack.c.h.b16 %v768
    %v1884 = vunpack.c.l.b16 %v769
    %v1885 = vunpack.c.h.b16 %v769
    %v1886 = vunpack.c.l.b16 %v770
    %v1887 = vunpack.c.h.b16 %v770
    %v1888 = vunpack.c.l.b16 %v771
    %v1889 = vunpack.c.h.b16 %v771
    %v1890 = vunpack.c.l.b16 %v772
    %v1891 = vunpack.c.h.b16 %v772
    %v1892 = vunpack.c.l.b16 %v773
    %v1893 = vunpack.c.h.b16 %v773
    %v1894 = vunpack.c.l.b16 %v774
    %v1895 = vunpack.c.h.b16 %v774
    %v1896 = vunpack.c.l.b16 %v775
    %v1897 = vunpack.c.h.b16 %v775
    %v1898 = vunpack.c.l.b16 %v776
    %v1899 = vunpack.c.h.b16 %v776
    %v1900 = vunpack.c.l.b16 %v777
    %v1901 = vunpack.c.h.b16 %v777
    %v1902 = vunpack.c.l.b16 %v778
    %v1903 = vunpack.c.h.b16 %v778
    %v1904 = vunpack.c.l.b16 %v779
    %v1905 = vunpack.c.h.b16 %v779
    %v1906 = vunpack.c.l.b16 %v780
    %v1907 = vunpack.c.h.b16 %v780
    %v1908 = vunpack.c.l.b16 %v781
    %v1909 = vunpack.c.h.b16 %v781
    %v1910 = vunpack.c.l.b16 %v782
    %v1911 = vunpack.c.h.b16 %v782
    %v1912 = vunpack.c.l.b16 %v783
    %v1913 = vunpack.c.h.b16 %v783
    %v1914 = vunpack.c.l.b16 %v784
    %v1915 = vunpack.c.h.b16 %v784
    %v1916 = vunpack.c.l.b16 %v785
    %v1917 = vunpack.c.h.b16 %v785
    %v1918 = vunpack.c.l.b16 %v786
    %v1919 = vunpack.c.h.b16 %v786
    %v1920 = vunpack.c.l.b16 %v787
    %v1921 = vunpack.c.h.b16 %v787
    %v1922 = vunpack.c.l.b16 %v788
    %v1923 = vunpack.c.h.b16 %v788
    %v1924 = vunpack.c.l.b16 %v789
    %v1925 = vunpack.c.h.b16 %v789
    %v1926 = vunpack.c.l.b16 %v790
    %v1927 = vunpack.c.h.b16 %v790
    %v1928 = vunpack.c.l.b16 %v791
    %v1929 = vunpack.c.h.b16 %v791
    %v1930 = vunpack.c.l.b16 %v792
    %v1931 = vunpack.c.h.b16 %v792
    %v1932 = vunpack.c.l.b16 %v793
    %v1933 = vunpack.c.h.b16 %v793
    %v1934 = vunpack.c.l.b16 %v794
    %v1935 = vunpack.c.h.b16 %v794
    %v1936 = vunpack.c.l.b16 %v795
    %v1937 = vunpack.c.h.b16 %v795
    %v1938 = vunpack.c.l.b16 %v796
    %v1939 = vunpack.c.h.b16 %v796
    %v1940 = vunpack.c.l.b16 %v797
    %v1941 = vunpack.c.h.b16 %v797
    %v1942 = vunpack.c.l.b16 %v798
    %v1943 = vunpack.c.h.b16 %v798
    %v1944 = vunpack.c.l.b16 %v799
    %v1945 = vunpack.c.h.b16 %v799
    %v1946 = vunpack.c.l.b16 %v800
    %v1947 = vunpack.c.h.b16 %v800
    %v1948 = vunpack.c.l.b16 %v801
    %v1949 = vunpack.c.h.b16 %v801
    %v1950 = vunpack.c.l.b16 %v802
    %v1951 = vunpack.c.h.b16 %v802
    %v1952 = vunpack.c.l.b16 %v803
    %v1953 = vunpack.c.h.b16 %v803
    %v1954 = vunpack.c.l.b16 %v804
    %v1955 = vunpack.c.h.b16 %v804
    %v1956 = vunpack.c.l.b16 %v805
    %v1957 = vunpack.c.h.b16 %v805
    %v1958 = vunpack.c.l.b16 %v806
    %v1959 = vunpack.c.h.b16 %v806
    %v1960 = vunpack.c.l.b16 %v807
    %v1961 = vunpack.c.h.b16 %v807
    %v1962 = vunpack.c.l.b16 %v808
    %v1963 = vunpack.c.h.b16 %v808
    %v1964 = vunpack.c.l.b16 %v809
    %v1965 = vunpack.c.h.b16 %v809
    %v1966 = vunpack.c.l.b16 %v810
    %v1967 = vunpack.c.h.b16 %v810
    %v1968 = vunpack.c.l.b16 %v811
    %v1969 = vunpack.c.h.b16 %v811
    %v1970 = vunpack.c.l.b16 %v812
    %v1971 = vunpack.c.h.b16 %v812
    %v1972 = vunpack.c.l.b16 %v813
    %v1973 = vunpack.c.h.b16 %v813
    %v1974 = vunpack.c.l.b16 %v814
    %v1975 = vunpack.c.h.b16 %v814
    %v1976 = vunpack.c.l.b16 %v815
    %v1977 = vunpack.c.h.b16 %v815
    %v1978 = vunpack.c.l.b16 %v816
    %v1979 = vunpack.c.h.b16 %v816
    %v1980 = vunpack.c.l.b16 %v817
    %v1981 = vunpack.c.h.b16 %v817
    %v1982 = vunpack.c.l.b16 %v818
    %v1983 = vunpack.c.h.b16 %v818
    %v1984 = vunpack.c.l.b16 %v819
    %v1985 = vunpack.c.h.b16 %v819
    %v1986 = vunpack.c.l.b16 %v820
    %v1987 = vunpack.c.h.b16 %v820
    %v1988 = vunpack.c.l.b16 %v821
    %v1989 = vunpack.c.h.b16 %v821
    %v1990 = vunpack.c.l.b16 %v822
    %v1991 = vunpack.c.h.b16 %v822
    %v1992 = vunpack.c.l.b16 %v823
    %v1993 = vunpack.c.h.b16 %v823
    %v1994 = vunpack.c.l.b16 %v824
    %v1995 = vunpack.c.h.b16 %v824
    %v1996 = vunpack.c.l.b16 %v825
    %v1997 = vunpack.c.h.b16 %v825
    %v1998 = vunpack.c.l.b16 %v826
    %v1999 = vunpack.c.h.b16 %v826
    %v2000 = vunpack.c.l.b16 %v827
    %v2001 = vunpack.c.h.b16 %v827
    %v2002 = vunpack.c.l.b16 %v828
    %v2003 = vunpack.c.h.b16 %v828
    %v2004 = vunpack.c.l.b16 %v829
    %v2005 = vunpack.c.h.b16 %v829
    %v2006 = vunpack.c.l.b16 %v830
    %v2007 = vunpack.c.h.b16 %v830
    %v2008 = vunpack.c.l.b16 %v831
    %v2009 = vunpack.c.h.b16 %v831
    %v2010 = vunpack.c.l.b16 %v832
    %v2011 = vunpack.c.h.b16 %v832
    %v2012 = vunpack.c.l.b16 %v833
    %v2013 = vunpack.c.h.b16 %v833
    %v2014 = vunpack.c.l.b16 %v834
    %v2015 = vunpack.c.h.b16 %v834
    %v2016 = vunpack.c.l.b16 %v835
    %v2017 = vunpack.c.h.b16 %v835
    %v2018 = vunpack.c.l.b16 %v836
    %v2019 = vunpack.c.h.b16 %v836
    %v2020 = vunpack.c.l.b16 %v837
    %v2021 = vunpack.c.h.b16 %v837
    %v2022 = vunpack.c.l.b16 %v838
    %v2023 = vunpack.c.h.b16 %v838
    %v2024 = vunpack.c.l.b16 %v839
    %v2025 = vunpack.c.h.b16 %v839
    %v2026 = vunpack.c.l.b16 %v840
    %v2027 = vunpack.c.h.b16 %v840
    %v2028 = vunpack.c.l.b16 %v841
    %v2029 = vunpack.c.h.b16 %v841
    %v2030 = vunpack.c.l.b16 %v842
    %v2031 = vunpack.c.h.b16 %v842
    %v2032 = vunpack.c.l.b16 %v843
    %v2033 = vunpack.c.h.b16 %v843
    %v2034 = vunpack.c.l.b16 %v844
    %v2035 = vunpack.c.h.b16 %v844
    %v2036 = vunpack.c.l.b16 %v845
    %v2037 = vunpack.c.h.b16 %v845
    %v2038 = vunpack.c.l.b16 %v846
    %v2039 = vunpack.c.h.b16 %v846
    %v2040 = vunpack.c.l.b16 %v847
    %v2041 = vunpack.c.h.b16 %v847
    %v2042 = vunpack.c.l.b16 %v848
    %v2043 = vunpack.c.h.b16 %v848
    %v2044 = vunpack.c.l.b16 %v849
    %v2045 = vunpack.c.h.b16 %v849
    %v2046 = vunpack.c.l.b16 %v850
    %v2047 = vunpack.c.h.b16 %v850
    %v2048 = vunpack.c.l.b16 %v851
    %v2049 = vunpack.c.h.b16 %v851
    %v2050 = vunpack.c.l.b16 %v852
    %v2051 = vunpack.c.h.b16 %v852
    %v2052 = vunpack.c.l.b16 %v853
    %v2053 = vunpack.c.h.b16 %v853
    %v2054 = vunpack.c.l.b16 %v854
    %v2055 = vunpack.c.h.b16 %v854
    %v2056 = vunpack.c.l.b16 %v855
    %v2057 = vunpack.c.h.b16 %v855
    %v2058 = vunpack.c.l.b16 %v856
    %v2059 = vunpack.c.h.b16 %v856
    %v2060 = vunpack.c.l.b16 %v857
    %v2061 = vunpack.c.h.b16 %v857
    %v2062 = vunpack.c.l.b16 %v858
    %v2063 = vunpack.c.h.b16 %v858
    %v2064 = vunpack.c.l.b16 %v859
    %v2065 = vunpack.c.h.b16 %v859
    %v2066 = vunpack.c.l.b16 %v860
    %v2067 = vunpack.c.h.b16 %v860
    %v2068 = vunpack.c.l.b16 %v861
    %v2069 = vunpack.c.h.b16 %v861
    %v2070 = vunpack.c.l.b16 %v862
    %v2071 = vunpack.c.h.b16 %v862
    %v2072 = vunpack.c.l.b16 %v863
    %v2073 = vunpack.c.h.b16 %v863
    %v2074 = vunpack.c.l.b16 %v864
    %v2075 = vunpack.c.h.b16 %v864
    %v2076 = vunpack.c.l.b16 %v865
    %v2077 = vunpack.c.h.b16 %v865
    %v2078 = vunpack.c.l.b16 %v866
    %v2079 = vunpack.c.h.b16 %v866
    %v2080 = vunpack.c.l.b16 %v867
    %v2081 = vunpack.c.h.b16 %v867
    %v2082 = vunpack.c.l.b16 %v868
    %v2083 = vunpack.c.h.b16 %v868
    %v2084 = vunpack.c.l.b16 %v869
    %v2085 = vunpack.c.h.b16 %v869
    %v2086 = vunpack.c.l.b16 %v870
    %v2087 = vunpack.c.h.b16 %v870
    %v2088 = vunpack.c.l.b16 %v871
    %v2089 = vunpack.c.h.b16 %v871
    %v2090 = vunpack.c.l.b16 %v872
    %v2091 = vunpack.c.h.b16 %v872
    %v2092 = vunpack.c.l.b16 %v873
    %v2093 = vunpack.c.h.b16 %v873
    %v2094 = vunpack.c.l.b16 %v874
    %v2095 = vunpack.c.h.b16 %v874
    %v2096 = vunpack.c.l.b16 %v875
    %v2097 = vunpack.c.h.b16 %v875
    %v2098 = vunpack.c.l.b16 %v876
    %v2099 = vunpack.c.h.b16 %v876
    %v2100 = vunpack.c.l.b16 %v877
    %v2101 = vunpack.c.h.b16 %v877
    %v2102 = vunpack.c.l.b16 %v878
    %v2103 = vunpack.c.h.b16 %v878
    %v2104 = vunpack.c.l.b16 %v879
    %v2105 = vunpack.c.h.b16 %v879
    %v2106 = vunpack.c.l.b16 %v880
    %v2107 = vunpack.c.h.b16 %v880
    %v2108 = vunpack.c.l.b16 %v881
    %v2109 = vunpack.c.h.b16 %v881
    %v2110 = vunpack.c.l.b16 %v882
    %v2111 = vunpack.c.h.b16 %v882
    %v2112 = vunpack.c.l.b16 %v883
    %v2113 = vunpack.c.h.b16 %v883
    %v2114 = vunpack.c.l.b16 %v884
    %v2115 = vunpack.c.h.b16 %v884
    %v2116 = vunpack.c.l.b16 %v885
    %v2117 = vunpack.c.h.b16 %v885
    %v2118 = vunpack.c.l.b16 %v886
    %v2119 = vunpack.c.h.b16 %v886
    %v2120 = vunpack.c.l.b16 %v887
    %v2121 = vunpack.c.h.b16 %v887
    %v2122 = vunpack.c.l.b16 %v888
    %v2123 = vunpack.c.h.b16 %v888
    %v2124 = vunpack.c.l.b16 %v889
    %v2125 = vunpack.c.h.b16 %v889
    %v2126 = vunpack.c.l.b16 %v890
    %v2127 = vunpack.c.h.b16 %v890
    %v2128 = vunpack.c.l.b16 %v891
    %v2129 = vunpack.c.h.b16 %v891
    %v2130 = vunpack.c.l.b16 %v892
    %v2131 = vunpack.c.h.b16 %v892
    %v2132 = vunpack.c.l.b16 %v893
    %v2133 = vunpack.c.h.b16 %v893
    %v2134 = vunpack.c.l.b16 %v894
    %v2135 = vunpack.c.h.b16 %v894
    %v2136 = vunpack.c.l.b16 %v895
    %v2137 = vunpack.c.h.b16 %v895
    %v2138 = vunpack.c.l.b16 %v896
    %v2139 = vunpack.c.h.b16 %v896
    %v2140 = vunpack.c.l.b16 %v897
    %v2141 = vunpack.c.h.b16 %v897
    %v2142 = vunpack.c.l.b16 %v898
    %v2143 = vunpack.c.h.b16 %v898
    %v2144 = vunpack.c.l.b16 %v899
    %v2145 = vunpack.c.h.b16 %v899
    %v2146 = vunpack.c.l.b16 %v900
    %v2147 = vunpack.c.h.b16 %v900
    %v2148 = vunpack.c.l.b16 %v901
    %v2149 = vunpack.c.h.b16 %v901
    %v2150 = vunpack.c.l.b16 %v902
    %v2151 = vunpack.c.h.b16 %v902
    %v2152 = vunpack.c.l.b16 %v903
    %v2153 = vunpack.c.h.b16 %v903
    %v2154 = vunpack.c.l.b16 %v904
    %v2155 = vunpack.c.h.b16 %v904
    %v2156 = vunpack.c.l.b16 %v905
    %v2157 = vunpack.c.h.b16 %v905
    %v2158 = vunpack.c.l.b16 %v906
    %v2159 = vunpack.c.h.b16 %v906
    %v2160 = vunpack.c.l.b16 %v907
    %v2161 = vunpack.c.h.b16 %v907
    %v2162 = vunpack.c.l.b16 %v908
    %v2163 = vunpack.c.h.b16 %v908
    %v2164 = vunpack.c.l.b16 %v909
    %v2165 = vunpack.c.h.b16 %v909
    %v2166 = vunpack.c.l.b16 %v910
    %v2167 = vunpack.c.h.b16 %v910
    %v2168 = vunpack.c.l.b16 %v911
    %v2169 = vunpack.c.h.b16 %v911
    %v2170 = vunpack.c.l.b16 %v912
    %v2171 = vunpack.c.h.b16 %v912
    %v2172 = vunpack.c.l.b16 %v913
    %v2173 = vunpack.c.h.b16 %v913
    %v2174 = vunpack.c.l.b16 %v914
    %v2175 = vunpack.c.h.b16 %v914
    %v2176 = vunpack.c.l.b16 %v915
    %v2177 = vunpack.c.h.b16 %v915
    %v2178 = vunpack.c.l.b16 %v916
    %v2179 = vunpack.c.h.b16 %v916
    %v2180 = vunpack.c.l.b16 %v917
    %v2181 = vunpack.c.h.b16 %v917
    %v2182 = vunpack.c.l.b16 %v918
    %v2183 = vunpack.c.h.b16 %v918
    %v2184 = vunpack.c.l.b16 %v919
    %v2185 = vunpack.c.h.b16 %v919
    %v2186 = vunpack.c.l.b16 %v920
    %v2187 = vunpack.c.h.b16 %v920
    %v2188 = vunpack.c.l.b16 %v921
    %v2189 = vunpack.c.h.b16 %v921
    %v2190 = vunpack.c.l.b16 %v922
    %v2191 = vunpack.c.h.b16 %v922
    %v2192 = vunpack.c.l.b16 %v923
    %v2193 = vunpack.c.h.b16 %v923
    %v2194 = vunpack.c.l.b16 %v924
    %v2195 = vunpack.c.h.b16 %v924
    %v2196 = vunpack.c.l.b16 %v925
    %v2197 = vunpack.c.h.b16 %v925
    %v2198 = vunpack.c.l.b16 %v926
    %v2199 = vunpack.c.h.b16 %v926
    %v2200 = vunpack.c.l.b16 %v927
    %v2201 = vunpack.c.h.b16 %v927
    %v2202 = vunpack.c.l.b16 %v928
    %v2203 = vunpack.c.h.b16 %v928
    %v2204 = vunpack.c.l.b16 %v929
    %v2205 = vunpack.c.h.b16 %v929
    %v2206 = vunpack.c.l.b16 %v930
    %v2207 = vunpack.c.h.b16 %v930
    %v2208 = vunpack.c.l.b16 %v931
    %v2209 = vunpack.c.h.b16 %v931
    %v2210 = vunpack.c.l.b16 %v932
    %v2211 = vunpack.c.h.b16 %v932
    %v2212 = vunpack.c.l.b16 %v933
    %v2213 = vunpack.c.h.b16 %v933
    %v2214 = vunpack.c.l.b16 %v934
    %v2215 = vunpack.c.h.b16 %v934
    %v2216 = vunpack.c.l.b16 %v935
    %v2217 = vunpack.c.h.b16 %v935
    %v2218 = vunpack.c.l.b16 %v936
    %v2219 = vunpack.c.h.b16 %v936
    %v2220 = vunpack.c.l.b16 %v937
    %v2221 = vunpack.c.h.b16 %v937
    %v2222 = vunpack.c.l.b16 %v938
    %v2223 = vunpack.c.h.b16 %v938
    %v2224 = vunpack.c.l.b16 %v939
    %v2225 = vunpack.c.h.b16 %v939
    %v2226 = vunpack.c.l.b16 %v940
    %v2227 = vunpack.c.h.b16 %v940
    %v2228 = vunpack.c.l.b16 %v941
    %v2229 = vunpack.c.h.b16 %v941
    %v2230 = vunpack.c.l.b16 %v942
    %v2231 = vunpack.c.h.b16 %v942
    %v2232 = vunpack.c.l.b16 %v943
    %v2233 = vunpack.c.h.b16 %v943
    %v2234 = vunpack.c.l.b16 %v944
    %v2235 = vunpack.c.h.b16 %v944
    %v2236 = vunpack.c.l.b16 %v945
    %v2237 = vunpack.c.h.b16 %v945
    %v2238 = vunpack.c.l.b16 %v946
    %v2239 = vunpack.c.h.b16 %v946
    %v2240 = vunpack.c.l.b16 %v947
    %v2241 = vunpack.c.h.b16 %v947
    %v2242 = vunpack.c.l.b16 %v948
    %v2243 = vunpack.c.h.b16 %v948
    %v2244 = vunpack.c.l.b16 %v949
    %v2245 = vunpack.c.h.b16 %v949
    %v2246 = vunpack.c.l.b16 %v950
    %v2247 = vunpack.c.h.b16 %v950
    %v2248 = vunpack.c.l.b16 %v951
    %v2249 = vunpack.c.h.b16 %v951
    %v2250 = vunpack.c.l.b16 %v952
    %v2251 = vunpack.c.h.b16 %v952
    %v2252 = vunpack.c.l.b16 %v953
    %v2253 = vunpack.c.h.b16 %v953
    %v2254 = vunpack.c.l.b16 %v954
    %v2255 = vunpack.c.h.b16 %v954
    %v2256 = vunpack.c.l.b16 %v955
    %v2257 = vunpack.c.h.b16 %v955
    %v2258 = vunpack.c.l.b16 %v956
    %v2259 = vunpack.c.h.b16 %v956
    %v2260 = vunpack.c.l.b16 %v957
    %v2261 = vunpack.c.h.b16 %v957
    %v2262 = vunpack.c.l.b16 %v958
    %v2263 = vunpack.c.h.b16 %v958
    %v2264 = vunpack.c.l.b16 %v959
    %v2265 = vunpack.c.h.b16 %v959
    %v2266 = vunpack.c.l.b16 %v960
    %v2267 = vunpack.c.h.b16 %v960
    %v2268 = vunpack.c.l.b16 %v961
    %v2269 = vunpack.c.h.b16 %v961
    %v2270 = vunpack.c.l.b16 %v962
    %v2271 = vunpack.c.h.b16 %v962
    %v2272 = vunpack.c.l.b16 %v963
    %v2273 = vunpack.c.h.b16 %v963
    %v2274 = vunpack.c.l.b16 %v964
    %v2275 = vunpack.c.h.b16 %v964
    %v2276 = vunpack.c.l.b16 %v965
    %v2277 = vunpack.c.h.b16 %v965
    %v2278 = vunpack.c.l.b16 %v966
    %v2279 = vunpack.c.h.b16 %v966
    %v2280 = vunpack.c.l.b16 %v967
    %v2281 = vunpack.c.h.b16 %v967
    %v2282 = vunpack.c.l.b16 %v968
    %v2283 = vunpack.c.h.b16 %v968
    %v2284 = vunpack.c.l.b16 %v969
    %v2285 = vunpack.c.h.b16 %v969
    %v2286 = vunpack.c.l.b16 %v970
    %v2287 = vunpack.c.h.b16 %v970
    %v2288 = vunpack.c.l.b16 %v971
    %v2289 = vunpack.c.h.b16 %v971
    %v2290 = vunpack.c.l.b16 %v972
    %v2291 = vunpack.c.h.b16 %v972
    %v2292 = vunpack.c.l.b16 %v973
    %v2293 = vunpack.c.h.b16 %v973
    %v2294 = vunpack.c.l.b16 %v974
    %v2295 = vunpack.c.h.b16 %v974
    %v2296 = vunpack.c.l.b16 %v975
    %v2297 = vunpack.c.h.b16 %v975
    %v2298 = vunpack.c.l.b16 %v976
    %v2299 = vunpack.c.h.b16 %v976
    %v2300 = vunpack.c.l.b16 %v977
    %v2301 = vunpack.c.h.b16 %v977
    %v2302 = vunpack.c.l.b16 %v978
    %v2303 = vunpack.c.h.b16 %v978
    %v2304 = vunpack.c.l.b16 %v979
    %v2305 = vunpack.c.h.b16 %v979
    %v2306 = vunpack.c.l.b16 %v980
    %v2307 = vunpack.c.h.b16 %v980
    %v2308 = vunpack.c.l.b16 %v981
    %v2309 = vunpack.c.h.b16 %v981
    %v2310 = vunpack.c.l.b16 %v982
    %v2311 = vunpack.c.h.b16 %v982
    %v2312 = vunpack.c.l.b16 %v983
    %v2313 = vunpack.c.h.b16 %v983
    %v2314 = vunpack.c.l.b16 %v984
    %v2315 = vunpack.c.h.b16 %v984
    %v2316 = vunpack.c.l.b16 %v985
    %v2317 = vunpack.c.h.b16 %v985
    %v2318 = vunpack.c.l.b16 %v986
    %v2319 = vunpack.c.h.b16 %v986
    %v2320 = vunpack.c.l.b16 %v987
    %v2321 = vunpack.c.h.b16 %v987
    %v2322 = vunpack.c.l.b16 %v988
    %v2323 = vunpack.c.h.b16 %v988
    %v2324 = vunpack.c.l.b16 %v989
    %v2325 = vunpack.c.h.b16 %v989
    %v2326 = vunpack.c.l.b16 %v990
    %v2327 = vunpack.c.h.b16 %v990
    %v2328 = vunpack.c.l.b16 %v991
    %v2329 = vunpack.c.h.b16 %v991
    %v2330 = vunpack.c.l.b16 %v992
    %v2331 = vunpack.c.h.b16 %v992
    %v2332 = vunpack.c.l.b16 %v993
    %v2333 = vunpack.c.h.b16 %v993
    %v2334 = vunpack.c.l.b16 %v994
    %v2335 = vunpack.c.h.b16 %v994
    %v2336 = vunpack.c.l.b16 %v995
    %v2337 = vunpack.c.h.b16 %v995
    %v2338 = vunpack.c.l.b16 %v996
    %v2339 = vunpack.c.h.b16 %v996
    %v2340 = vunpack.c.l.b16 %v997
    %v2341 = vunpack.c.h.b16 %v997
    %v2342 = vunpack.c.l.b16 %v998
    %v2343 = vunpack.c.h.b16 %v998
    %v2344 = vunpack.c.l.b16 %v999
    %v2345 = vunpack.c.h.b16 %v999
    %v2346 = vunpack.c.l.b16 %v1000
    %v2347 = vunpack.c.h.b16 %v1000
    %v2348 = vunpack.c.l.b16 %v1001
    %v2349 = vunpack.c.h.b16 %v1001
    %v2350 = vunpack.c.l.b16 %v1002
    %v2351 = vunpack.c.h.b16 %v1002
    %v2352 = vunpack.c.l.b16 %v1003
    %v2353 = vunpack.c.h.b16 %v1003
    %v2354 = vunpack.c.l.b16 %v1004
    %v2355 = vunpack.c.h.b16 %v1004
    %v2356 = vunpack.c.l.b16 %v1005
    %v2357 = vunpack.c.h.b16 %v1005
    %v2358 = vunpack.c.l.b16 %v1006
    %v2359 = vunpack.c.h.b16 %v1006
    %v2360 = vunpack.c.l.b16 %v1007
    %v2361 = vunpack.c.h.b16 %v1007
    %v2362 = vunpack.c.l.b16 %v1008
    %v2363 = vunpack.c.h.b16 %v1008
    %v2364 = vunpack.c.l.b16 %v1009
    %v2365 = vunpack.c.h.b16 %v1009
    %v2366 = vunpack.c.l.b16 %v1010
    %v2367 = vunpack.c.h.b16 %v1010
    %v2368 = vunpack.c.l.b16 %v1011
    %v2369 = vunpack.c.h.b16 %v1011
    %v2370 = vunpack.c.l.b16 %v1012
    %v2371 = vunpack.c.h.b16 %v1012
    %v2372 = vunpack.c.l.b16 %v1013
    %v2373 = vunpack.c.h.b16 %v1013
    %v2374 = vunpack.c.l.b16 %v1014
    %v2375 = vunpack.c.h.b16 %v1014
    %v2376 = vunpack.c.l.b16 %v1015
    %v2377 = vunpack.c.h.b16 %v1015
    %v2378 = vunpack.c.l.b16 %v1016
    %v2379 = vunpack.c.h.b16 %v1016
    %v2380 = vunpack.c.l.b16 %v1017
    %v2381 = vunpack.c.h.b16 %v1017
    %v2382 = vunpack.c.l.b16 %v1018
    %v2383 = vunpack.c.h.b16 %v1018
    %v2384 = vunpack.c.l.b16 %v1019
    %v2385 = vunpack.c.h.b16 %v1019
    %v2386 = vunpack.c.l.b16 %v1020
    %v2387 = vunpack.c.h.b16 %v1020
    %v2388 = vunpack.c.l.b16 %v1021
    %v2389 = vunpack.c.h.b16 %v1021
    %v2390 = vunpack.c.l.b16 %v1022
    %v2391 = vunpack.c.h.b16 %v1022
    %v2392 = vunpack.c.l.b16 %v1023
    %v2393 = vunpack.c.h.b16 %v1023
    %v2394 = vunpack.c.l.b16 %v1024
    %v2395 = vunpack.c.h.b16 %v1024
    %v2396 = vunpack.c.l.b16 %v1025
    %v2397 = vunpack.c.h.b16 %v1025
    %v2398 = vunpack.c.l.b16 %v1026
    %v2399 = vunpack.c.h.b16 %v1026
    %v2400 = vunpack.c.l.b16 %v1027
    %v2401 = vunpack.c.h.b16 %v1027
    %v2402 = vunpack.c.l.b16 %v1028
    %v2403 = vunpack.c.h.b16 %v1028
    %v2404 = vunpack.c.l.b16 %v1029
    %v2405 = vunpack.c.h.b16 %v1029
    %v2406 = vunpack.c.l.b16 %v1030
    %v2407 = vunpack.c.h.b16 %v1030
    %v2408 = vunpack.c.l.b16 %v1031
    %v2409 = vunpack.c.h.b16 %v1031
    %v2410 = vunpack.c.l.b16 %v1032
    %v2411 = vunpack.c.h.b16 %v1032
    %v2412 = vunpack.c.l.b16 %v1033
    %v2413 = vunpack.c.h.b16 %v1033
    %v2414 = vunpack.c.l.b16 %v1034
    %v2415 = vunpack.c.h.b16 %v1034
    %v2416 = vunpack.c.l.b16 %v1035
    %v2417 = vunpack.c.h.b16 %v1035
    %v2418 = vunpack.c.l.b16 %v1036
    %v2419 = vunpack.c.h.b16 %v1036
    %v2420 = vunpack.c.l.b16 %v1037
    %v2421 = vunpack.c.h.b16 %v1037
    %v2422 = vunpack.c.l.b16 %v1038
    %v2423 = vunpack.c.h.b16 %v1038
    %v2424 = vunpack.c.l.b16 %v1039
    %v2425 = vunpack.c.h.b16 %v1039
    %v2426 = vunpack.c.l.b16 %v1040
    %v2427 = vunpack.c.h.b16 %v1040
    %v2428 = vunpack.c.l.b16 %v1041
    %v2429 = vunpack.c.h.b16 %v1041
    %v2430 = vunpack.c.l.b16 %v1042
    %v2431 = vunpack.c.h.b16 %v1042
    %v2432 = vunpack.c.l.b16 %v1043
    %v2433 = vunpack.c.h.b16 %v1043
    %v2434 = vunpack.c.l.b16 %v1044
    %v2435 = vunpack.c.h.b16 %v1044
    %v2436 = vunpack.c.l.b16 %v1045
    %v2437 = vunpack.c.h.b16 %v1045
    %v2438 = vunpack.c.l.b16 %v1046
    %v2439 = vunpack.c.h.b16 %v1046
    %v2440 = vunpack.c.l.b16 %v1047
    %v2441 = vunpack.c.h.b16 %v1047
    %v2442 = vunpack.c.l.b16 %v1048
    %v2443 = vunpack.c.h.b16 %v1048
    %v2444 = vunpack.c.l.b16 %v1049
    %v2445 = vunpack.c.h.b16 %v1049
    %v2446 = vunpack.c.l.b16 %v1050
    %v2447 = vunpack.c.h.b16 %v1050
    %v2448 = vunpack.c.l.b16 %v1051
    %v2449 = vunpack.c.h.b16 %v1051
    %v2450 = vunpack.c.l.b16 %v1052
    %v2451 = vunpack.c.h.b16 %v1052
    %v2452 = vunpack.c.l.b16 %v1053
    %v2453 = vunpack.c.h.b16 %v1053
    %v2454 = vunpack.c.l.b16 %v1054
    %v2455 = vunpack.c.h.b16 %v1054
    %v2456 = vunpack.c.l.b16 %v1055
    %v2457 = vunpack.c.h.b16 %v1055
    %v2458 = vunpack.c.l.b16 %v1056
    %v2459 = vunpack.c.h.b16 %v1056
    %v2460 = vunpack.c.l.b16 %v1057
    %v2461 = vunpack.c.h.b16 %v1057
    %v2462 = vunpack.c.l.b16 %v1058
    %v2463 = vunpack.c.h.b16 %v1058
    %v2464 = vunpack.c.l.b16 %v1059
    %v2465 = vunpack.c.h.b16 %v1059
    %v2466 = vunpack.c.l.b16 %v1060
    %v2467 = vunpack.c.h.b16 %v1060
    %v2468 = vunpack.c.l.b16 %v1061
    %v2469 = vunpack.c.h.b16 %v1061
    %v2470 = vunpack.c.l.b16 %v1062
    %v2471 = vunpack.c.h.b16 %v1062
    %v2472 = vunpack.c.l.b16 %v1063
    %v2473 = vunpack.c.h.b16 %v1063
    %v2474 = vunpack.c.l.b16 %v1064
    %v2475 = vunpack.c.h.b16 %v1064
    %v2476 = vunpack.c.l.b16 %v1065
    %v2477 = vunpack.c.h.b16 %v1065
    %v2478 = vunpack.c.l.b16 %v1066
    %v2479 = vunpack.c.h.b16 %v1066
    %v2480 = vunpack.c.l.b16 %v1067
    %v2481 = vunpack.c.h.b16 %v1067
    %v2482 = vunpack.c.l.b16 %v1068
    %v2483 = vunpack.c.h.b16 %v1068
    %v2484 = vunpack.c.l.b16 %v1069
    %v2485 = vunpack.c.h.b16 %v1069
    %v2486 = vunpack.c.l.b16 %v1070
    %v2487 = vunpack.c.h.b16 %v1070
    %v2488 = vunpack.c.l.b16 %v1071
    %v2489 = vunpack.c.h.b16 %v1071
    %v2490 = vunpack.c.l.b16 %v1072
    %v2491 = vunpack.c.h.b16 %v1072
    %v2492 = vunpack.c.l.b16 %v1073
    %v2493 = vunpack.c.h.b16 %v1073
    %v2494 = vunpack.c.l.b16 %v1074
    %v2495 = vunpack.c.h.b16 %v1074
    %v2496 = vunpack.c.l.b16 %v1075
    %v2497 = vunpack.c.h.b16 %v1075
    %v2498 = vunpack.c.l.b16 %v1076
    %v2499 = vunpack.c.h.b16 %v1076
    %v2500 = vunpack.c.l.b16 %v1077
    %v2501 = vunpack.c.h.b16 %v1077
    %v2502 = vunpack.c.l.b16 %v1078
    %v2503 = vunpack.c.h.b16 %v1078
    %v2504 = vunpack.c.l.b16 %v1079
    %v2505 = vunpack.c.h.b16 %v1079
    %v2506 = vunpack.c.l.b16 %v1080
    %v2507 = vunpack.c.h.b16 %v1080
    %v2508 = vunpack.c.l.b16 %v1081
    %v2509 = vunpack.c.h.b16 %v1081
    %v2510 = vunpack.c.l.b16 %v1082
    %v2511 = vunpack.c.h.b16 %v1082
    %v2512 = vunpack.c.l.b16 %v1083
    %v2513 = vunpack.c.h.b16 %v1083
    %v2514 = vunpack.c.l.b16 %v1084
    %v2515 = vunpack.c.h.b16 %v1084
    %v2516 = vunpack.c.l.b16 %v1085
    %v2517 = vunpack.c.h.b16 %v1085
    %v2518 = vunpack.c.l.b16 %v1086
    %v2519 = vunpack.c.h.b16 %v1086
    %v2520 = vunpack.c.l.b16 %v1087
    %v2521 = vunpack.c.h.b16 %v1087
    %v2522 = vunpack.c.l.b16 %v1088
    %v2523 = vunpack.c.h.b16 %v1088
    %v2524 = vunpack.c.l.b16 %v1089
    %v2525 = vunpack.c.h.b16 %v1089
    %v2526 = vunpack.c.l.b16 %v1090
    %v2527 = vunpack.c.h.b16 %v1090
    %v2528 = vunpack.c.l.b16 %v1091
    %v2529 = vunpack.c.h.b16 %v1091
    %v2530 = vunpack.c.l.b16 %v1092
    %v2531 = vunpack.c.h.b16 %v1092
    %v2532 = vunpack.c.l.b16 %v1093
    %v2533 = vunpack.c.h.b16 %v1093
    %v2534 = vunpack.c.l.b16 %v1094
    %v2535 = vunpack.c.h.b16 %v1094
    %v2536 = vunpack.c.l.b16 %v1095
    %v2537 = vunpack.c.h.b16 %v1095
    %v2538 = vunpack.c.l.b16 %v1096
    %v2539 = vunpack.c.h.b16 %v1096
    %v2540 = vunpack.c.l.b16 %v1097
    %v2541 = vunpack.c.h.b16 %v1097
    %v2542 = vunpack.c.l.b16 %v1098
    %v2543 = vunpack.c.h.b16 %v1098
    %v2544 = vunpack.c.l.b16 %v1099
    %v2545 = vunpack.c.h.b16 %v1099
    %v2546 = vunpack.c.l.b16 %v1100
    %v2547 = vunpack.c.h.b16 %v1100
    %v2548 = vunpack.c.l.b16 %v1101
    %v2549 = vunpack.c.h.b16 %v1101
    %v2550 = vunpack.c.l.b16 %v1102
    %v2551 = vunpack.c.h.b16 %v1102
    %v2552 = vunpack.c.l.b16 %v1103
    %v2553 = vunpack.c.h.b16 %v1103
    %v2554 = vunpack.c.l.b16 %v1104
    %v2555 = vunpack.c.h.b16 %v1104
    %v2556 = vunpack.c.l.b16 %v1105
    %v2557 = vunpack.c.h.b16 %v1105
    %v2558 = vunpack.c.l.b16 %v1106
    %v2559 = vunpack.c.h.b16 %v1106
    %v2560 = vunpack.c.l.b16 %v1107
    %v2561 = vunpack.c.h.b16 %v1107
    %v2562 = vunpack.c.l.b16 %v1108
    %v2563 = vunpack.c.h.b16 %v1108
    %v2564 = vunpack.c.l.b16 %v1109
    %v2565 = vunpack.c.h.b16 %v1109
    %v2566 = vunpack.c.l.b16 %v1110
    %v2567 = vunpack.c.h.b16 %v1110
    %v2568 = vunpack.c.l.b16 %v1111
    %v2569 = vunpack.c.h.b16 %v1111
    %v2570 = vunpack.c.l.b16 %v1112
    %v2571 = vunpack.c.h.b16 %v1112
    %v2572 = vunpack.c.l.b16 %v1113
    %v2573 = vunpack.c.h.b16 %v1113
    %v2574 = vunpack.c.l.b16 %v1114
    %v2575 = vunpack.c.h.b16 %v1114
    %v2576 = vunpack.c.l.b16 %v1115
    %v2577 = vunpack.c.h.b16 %v1115
    %v2578 = vunpack.c.l.b16 %v1116
    %v2579 = vunpack.c.h.b16 %v1116
    %v2580 = vunpack.c.l.b16 %v1117
    %v2581 = vunpack.c.h.b16 %v1117
    %v2582 = vunpack.c.l.b16 %v1118
    %v2583 = vunpack.c.h.b16 %v1118
    %v2584 = vunpack.c.l.b16 %v1119
    %v2585 = vunpack.c.h.b16 %v1119
    %v2586 = vunpack.c.l.b16 %v1120
    %v2587 = vunpack.c.h.b16 %v1120
    %v2588 = vunpack.c.l.b16 %v1121
    %v2589 = vunpack.c.h.b16 %v1121
    %v2590 = vunpack.c.l.b16 %v1122
    %v2591 = vunpack.c.h.b16 %v1122
    %v2592 = vunpack.c.l.b16 %v1123
    %v2593 = vunpack.c.h.b16 %v1123
    %v2594 = vunpack.c.l.b16 %v1124
    %v2595 = vunpack.c.h.b16 %v1124
    %v2596 = vunpack.c.l.b16 %v1125
    %v2597 = vunpack.c.h.b16 %v1125
    %v2598 = vunpack.c.l.b16 %v1126
    %v2599 = vunpack.c.h.b16 %v1126
    %v2600 = vunpack.c.l.b16 %v1127
    %v2601 = vunpack.c.h.b16 %v1127
    %v2602 = vunpack.c.l.b16 %v1128
    %v2603 = vunpack.c.h.b16 %v1128
    %v2604 = vunpack.c.l.b16 %v1129
    %v2605 = vunpack.c.h.b16 %v1129
    %v2606 = vunpack.c.l.b16 %v1130
    %v2607 = vunpack.c.h.b16 %v1130
    %v2608 = vunpack.c.l.b16 %v1131
    %v2609 = vunpack.c.h.b16 %v1131
    %v2610 = vunpack.c.l.b16 %v1132
    %v2611 = vunpack.c.h.b16 %v1132
    %v2612 = vunpack.c.l.b16 %v1133
    %v2613 = vunpack.c.h.b16 %v1133
    %v2614 = vunpack.c.l.b16 %v1134
    %v2615 = vunpack.c.h.b16 %v1134
    %v2616 = vunpack.c.l.b16 %v1135
    %v2617 = vunpack.c.h.b16 %v1135
    %v2618 = vunpack.c.l.b16 %v1136
    %v2619 = vunpack.c.h.b16 %v1136
    %v2620 = vunpack.c.l.b16 %v1137
    %v2621 = vunpack.c.h.b16 %v1137
    %v2622 = vunpack.c.l.b16 %v1138
    %v2623 = vunpack.c.h.b16 %v1138
    %v2624 = vunpack.c.l.b16 %v1139
    %v2625 = vunpack.c.h.b16 %v1139
    %v2626 = vunpack.c.l.b16 %v1140
    %v2627 = vunpack.c.h.b16 %v1140
    %v2628 = vunpack.c.l.b16 %v1141
    %v2629 = vunpack.c.h.b16 %v1141
    %v2630 = vunpack.c.l.b16 %v1142
    %v2631 = vunpack.c.h.b16 %v1142
    %v2632 = vunpack.c.l.b16 %v1143
    %v2633 = vunpack.c.h.b16 %v1143
    %v2634 = vunpack.c.l.b16 %v1144
    %v2635 = vunpack.c.h.b16 %v1144
    %v2636 = vunpack.c.l.b16 %v1145
    %v2637 = vunpack.c.h.b16 %v1145
    %v2638 = vunpack.c.l.b16 %v1146
    %v2639 = vunpack.c.h.b16 %v1146
    %v2640 = vunpack.c.l.b16 %v1147
    %v2641 = vunpack.c.h.b16 %v1147
    %v2642 = vunpack.c.l.b16 %v1148
    %v2643 = vunpack.c.h.b16 %v1148
    %v2644 = vunpack.c.l.b16 %v1149
    %v2645 = vunpack.c.h.b16 %v1149
    %v2646 = vunpack.c.l.b16 %v1150
    %v2647 = vunpack.c.h.b16 %v1150
    %v2648 = vunpack.c.l.b16 %v1151
    %v2649 = vunpack.c.h.b16 %v1151
    %v2650 = vunpack.c.l.b16 %v1152
    %v2651 = vunpack.c.h.b16 %v1152
    %v2652 = vunpack.c.l.b16 %v1153
    %v2653 = vunpack.c.h.b16 %v1153
    %v2654 = vunpack.c.l.b16 %v1154
    %v2655 = vunpack.c.h.b16 %v1154
    %v2656 = vunpack.c.l.b16 %v1155
    %v2657 = vunpack.c.h.b16 %v1155
    %v2658 = vunpack.c.l.b16 %v1156
    %v2659 = vunpack.c.h.b16 %v1156
    %v2660 = vunpack.c.l.b16 %v1157
    %v2661 = vunpack.c.h.b16 %v1157
    %v2662 = vunpack.c.l.b16 %v1158
    %v2663 = vunpack.c.h.b16 %v1158
    %v2664 = vunpack.c.l.b16 %v1159
    %v2665 = vunpack.c.h.b16 %v1159
    %v2666 = vunpack.c.l.b16 %v1160
    %v2667 = vunpack.c.h.b16 %v1160
    %v2668 = vunpack.c.l.b16 %v1161
    %v2669 = vunpack.c.h.b16 %v1161
    %v2670 = vunpack.c.l.b16 %v1162
    %v2671 = vunpack.c.h.b16 %v1162
    %v2672 = vunpack.c.l.b16 %v1163
    %v2673 = vunpack.c.h.b16 %v1163
    %v2674 = vunpack.c.l.b16 %v1164
    %v2675 = vunpack.c.h.b16 %v1164
    %v2676 = vunpack.c.l.b16 %v1165
    %v2677 = vunpack.c.h.b16 %v1165
    %v2678 = vunpack.c.l.b16 %v1166
    %v2679 = vunpack.c.h.b16 %v1166
    %v2680 = vunpack.c.l.b16 %v1167
    %v2681 = vunpack.c.h.b16 %v1167
    %v2682 = vunpack.c.l.b16 %v1168
    %v2683 = vunpack.c.h.b16 %v1168
    %v2684 = vunpack.c.l.b16 %v1169
    %v2685 = vunpack.c.h.b16 %v1169
    %v2686 = vunpack.c.l.b16 %v1170
    %v2687 = vunpack.c.h.b16 %v1170
    %v2688 = vunpack.c.l.b16 %v1171
    %v2689 = vunpack.c.h.b16 %v1171
    %v2690 = vunpack.c.l.b16 %v1172
    %v2691 = vunpack.c.h.b16 %v1172
    %v2692 = vunpack.c.l.b16 %v1173
    %v2693 = vunpack.c.h.b16 %v1173
    %v2694 = vunpack.c.l.b16 %v1174
    %v2695 = vunpack.c.h.b16 %v1174
    %v2696 = vunpack.c.l.b16 %v1175
    %v2697 = vunpack.c.h.b16 %v1175
    %v2698 = vunpack.c.l.b16 %v1176
    %v2699 = vunpack.c.h.b16 %v1176
    %v2700 = vunpack.c.l.b16 %v1177
    %v2701 = vunpack.c.h.b16 %v1177
    %v2702 = vunpack.c.l.b16 %v1178
    %v2703 = vunpack.c.h.b16 %v1178
    %v2704 = vunpack.c.l.b16 %v1179
    %v2705 = vunpack.c.h.b16 %v1179
    %v2706 = vunpack.c.l.b16 %v1180
    %v2707 = vunpack.c.h.b16 %v1180
    %v2708 = vunpack.c.l.b16 %v1181
    %v2709 = vunpack.c.h.b16 %v1181
    %v2710 = vunpack.c.l.b16 %v1182
    %v2711 = vunpack.c.h.b16 %v1182
    %v2712 = vunpack.c.l.b16 %v1183
    %v2713 = vunpack.c.h.b16 %v1183
    %v2714 = vunpack.c.l.b16 %v1184
    %v2715 = vunpack.c.h.b16 %v1184
    %v2716 = vunpack.c.l.b16 %v1185
    %v2717 = vunpack.c.h.b16 %v1185
    %v2718 = vunpack.c.l.b16 %v1186
    %v2719 = vunpack.c.h.b16 %v1186
    %v2720 = vunpack.c.l.b16 %v1187
    %v2721 = vunpack.c.h.b16 %v1187
    %v2722 = vunpack.c.l.b16 %v1188
    %v2723 = vunpack.c.h.b16 %v1188
    %v2724 = vunpack.c.l.b16 %v1189
    %v2725 = vunpack.c.h.b16 %v1189
    %v2726 = vpack.c.b16 %v1710, %v1702
    %v2727 = vpack.c.b16 %v1711, %v1703
    %v2728 = vpack.c.b16 %v1712, %v1704
    %v2729 = vpack.c.b16 %v1713, %v1705
    %v2730 = vpack.c.b16 %v1714, %v1706
    %v2731 = vpack.c.b16 %v1715, %v1707
    %v2732 = vpack.c.b16 %v1716, %v1708
    %v2733 = vpack.c.b16 %v1717, %v1709
    %v2734 = vpack.c.b16 %v1726, %v1718
    %v2735 = vpack.c.b16 %v1727, %v1719
    %v2736 = vpack.c.b16 %v1728, %v1720
    %v2737 = vpack.c.b16 %v1729, %v1721
    %v2738 = vpack.c.b16 %v1730, %v1722
    %v2739 = vpack.c.b16 %v1731, %v1723
    %v2740 = vpack.c.b16 %v1732, %v1724
    %v2741 = vpack.c.b16 %v1733, %v1725
    %v2742 = vpack.c.b16 %v1742, %v1734
    %v2743 = vpack.c.b16 %v1743, %v1735
    %v2744 = vpack.c.b16 %v1744, %v1736
    %v2745 = vpack.c.b16 %v1745, %v1737
    %v2746 = vpack.c.b16 %v1746, %v1738
    %v2747 = vpack.c.b16 %v1747, %v1739
    %v2748 = vpack.c.b16 %v1748, %v1740
    %v2749 = vpack.c.b16 %v1749, %v1741
    %v2750 = vpack.c.b16 %v1758, %v1750
    %v2751 = vpack.c.b16 %v1759, %v1751
    %v2752 = vpack.c.b16 %v1760, %v1752
    %v2753 = vpack.c.b16 %v1761, %v1753
    %v2754 = vpack.c.b16 %v1762, %v1754
    %v2755 = vpack.c.b16 %v1763, %v1755
    %v2756 = vpack.c.b16 %v1764, %v1756
    %v2757 = vpack.c.b16 %v1765, %v1757
    %v2758 = vpack.c.b16 %v1774, %v1766
    %v2759 = vpack.c.b16 %v1775, %v1767
    %v2760 = vpack.c.b16 %v1776, %v1768
    %v2761 = vpack.c.b16 %v1777, %v1769
    %v2762 = vpack.c.b16 %v1778, %v1770
    %v2763 = vpack.c.b16 %v1779, %v1771
    %v2764 = vpack.c.b16 %v1780, %v1772
    %v2765 = vpack.c.b16 %v1781, %v1773
    %v2766 = vpack.c.b16 %v1790, %v1782
    %v2767 = vpack.c.b16 %v1791, %v1783
    %v2768 = vpack.c.b16 %v1792, %v1784
    %v2769 = vpack.c.b16 %v1793, %v1785
    %v2770 = vpack.c.b16 %v1794, %v1786
    %v2771 = vpack.c.b16 %v1795, %v1787
    %v2772 = vpack.c.b16 %v1796, %v1788
    %v2773 = vpack.c.b16 %v1797, %v1789
    %v2774 = vpack.c.b16 %v1806, %v1798
    %v2775 = vpack.c.b16 %v1807, %v1799
    %v2776 = vpack.c.b16 %v1808, %v1800
    %v2777 = vpack.c.b16 %v1809, %v1801
    %v2778 = vpack.c.b16 %v1810, %v1802
    %v2779 = vpack.c.b16 %v1811, %v1803
    %v2780 = vpack.c.b16 %v1812, %v1804
    %v2781 = vpack.c.b16 %v1813, %v1805
    %v2782 = vpack.c.b16 %v1822, %v1814
    %v2783 = vpack.c.b16 %v1823, %v1815
    %v2784 = vpack.c.b16 %v1824, %v1816
    %v2785 = vpack.c.b16 %v1825, %v1817
    %v2786 = vpack.c.b16 %v1826, %v1818
    %v2787 = vpack.c.b16 %v1827, %v1819
    %v2788 = vpack.c.b16 %v1828, %v1820
    %v2789 = vpack.c.b16 %v1829, %v1821
    %v2790 = vpack.c.b16 %v1838, %v1830
    %v2791 = vpack.c.b16 %v1839, %v1831
    %v2792 = vpack.c.b16 %v1840, %v1832
    %v2793 = vpack.c.b16 %v1841, %v1833
    %v2794 = vpack.c.b16 %v1842, %v1834
    %v2795 = vpack.c.b16 %v1843, %v1835
    %v2796 = vpack.c.b16 %v1844, %v1836
    %v2797 = vpack.c.b16 %v1845, %v1837
    %v2798 = vpack.c.b16 %v1854, %v1846
    %v2799 = vpack.c.b16 %v1855, %v1847
    %v2800 = vpack.c.b16 %v1856, %v1848
    %v2801 = vpack.c.b16 %v1857, %v1849
    %v2802 = vpack.c.b16 %v1858, %v1850
    %v2803 = vpack.c.b16 %v1859, %v1851
    %v2804 = vpack.c.b16 %v1860, %v1852
    %v2805 = vpack.c.b16 %v1861, %v1853
    %v2806 = vpack.c.b16 %v1870, %v1862
    %v2807 = vpack.c.b16 %v1871, %v1863
    %v2808 = vpack.c.b16 %v1872, %v1864
    %v2809 = vpack.c.b16 %v1873, %v1865
    %v2810 = vpack.c.b16 %v1874, %v1866
    %v2811 = vpack.c.b16 %v1875, %v1867
    %v2812 = vpack.c.b16 %v1876, %v1868
    %v2813 = vpack.c.b16 %v1877, %v1869
    %v2814 = vpack.c.b16 %v1886, %v1878
    %v2815 = vpack.c.b16 %v1887, %v1879
    %v2816 = vpack.c.b16 %v1888, %v1880
    %v2817 = vpack.c.b16 %v1889, %v1881
    %v2818 = vpack.c.b16 %v1890, %v1882
    %v2819 = vpack.c.b16 %v1891, %v1883
    %v2820 = vpack.c.b16 %v1892, %v1884
    %v2821 = vpack.c.b16 %v1893, %v1885
    %v2822 = vpack.c.b16 %v1902, %v1894
    %v2823 = vpack.c.b16 %v1903, %v1895
    %v2824 = vpack.c.b16 %v1904, %v1896
    %v2825 = vpack.c.b16 %v1905, %v1897
    %v2826 = vpack.c.b16 %v1906, %v1898
    %v2827 = vpack.c.b16 %v1907, %v1899
    %v2828 = vpack.c.b16 %v1908, %v1900
    %v2829 = vpack.c.b16 %v1909, %v1901
    %v2830 = vpack.c.b16 %v1918, %v1910
    %v2831 = vpack.c.b16 %v1919, %v1911
    %v2832 = vpack.c.b16 %v1920, %v1912
    %v2833 = vpack.c.b16 %v1921, %v1913
    %v2834 = vpack.c.b16 %v1922, %v1914
    %v2835 = vpack.c.b16 %v1923, %v1915
    %v2836 = vpack.c.b16 %v1924, %v1916
    %v2837 = vpack.c.b16 %v1925, %v1917
    %v2838 = vpack.c.b16 %v1934, %v1926
    %v2839 = vpack.c.b16 %v1935, %v1927
    %v2840 = vpack.c.b16 %v1936, %v1928
    %v2841 = vpack.c.b16 %v1937, %v1929
    %v2842 = vpack.c.b16 %v1938, %v1930
    %v2843 = vpack.c.b16 %v1939, %v1931
    %v2844 = vpack.c.b16 %v1940, %v1932
    %v2845 = vpack.c.b16 %v1941, %v1933
    %v2846 = vpack.c.b16 %v1950, %v1942
    %v2847 = vpack.c.b16 %v1951, %v1943
    %v2848 = vpack.c.b16 %v1952, %v1944
    %v2849 = vpack.c.b16 %v1953, %v1945
    %v2850 = vpack.c.b16 %v1954, %v1946
    %v2851 = vpack.c.b16 %v1955, %v1947
    %v2852 = vpack.c.b16 %v1956, %v1948
    %v2853 = vpack.c.b16 %v1957, %v1949
    %v2854 = vpack.c.b16 %v1966, %v1958
    %v2855 = vpack.c.b16 %v1967, %v1959
    %v2856 = vpack.c.b16 %v1968, %v1960
    %v2857 = vpack.c.b16 %v1969, %v1961
    %v2858 = vpack.c.b16 %v1970, %v1962
    %v2859 = vpack.c.b16 %v1971, %v1963
    %v2860 = vpack.c.b16 %v1972, %v1964
    %v2861 = vpack.c.b16 %v1973, %v1965
    %v2862 = vpack.c.b16 %v1982, %v1974
    %v2863 = vpack.c.b16 %v1983, %v1975
    %v2864 = vpack.c.b16 %v1984, %v1976
    %v2865 = vpack.c.b16 %v1985, %v1977
    %v2866 = vpack.c.b16 %v1986, %v1978
    %v2867 = vpack.c.b16 %v1987, %v1979
    %v2868 = vpack.c.b16 %v1988, %v1980
    %v2869 = vpack.c.b16 %v1989, %v1981
    %v2870 = vpack.c.b16 %v1998, %v1990
    %v2871 = vpack.c.b16 %v1999, %v1991
    %v2872 = vpack.c.b16 %v2000, %v1992
    %v2873 = vpack.c.b16 %v2001, %v1993
    %v2874 = vpack.c.b16 %v2002, %v1994
    %v2875 = vpack.c.b16 %v2003, %v1995
    %v2876 = vpack.c.b16 %v2004, %v1996
    %v2877 = vpack.c.b16 %v2005, %v1997
    %v2878 = vpack.c.b16 %v2014, %v2006
    %v2879 = vpack.c.b16 %v2015, %v2007
    %v2880 = vpack.c.b16 %v2016, %v2008
    %v2881 = vpack.c.b16 %v2017, %v2009
    %v2882 = vpack.c.b16 %v2018, %v2010
    %v2883 = vpack.c.b16 %v2019, %v2011
    %v2884 = vpack.c.b16 %v2020, %v2012
    %v2885 = vpack.c.b16 %v2021, %v2013
    %v2886 = vpack.c.b16 %v2030, %v2022
    %v2887 = vpack.c.b16 %v2031, %v2023
    %v2888 = vpack.c.b16 %v2032, %v2024
    %v2889 = vpack.c.b16 %v2033, %v2025
    %v2890 = vpack.c.b16 %v2034, %v2026
    %v2891 = vpack.c.b16 %v2035, %v2027
    %v2892 = vpack.c.b16 %v2036, %v2028
    %v2893 = vpack.c.b16 %v2037, %v2029
    %v2894 = vpack.c.b16 %v2046, %v2038
    %v2895 = vpack.c.b16 %v2047, %v2039
    %v2896 = vpack.c.b16 %v2048, %v2040
    %v2897 = vpack.c.b16 %v2049, %v2041
    %v2898 = vpack.c.b16 %v2050, %v2042
    %v2899 = vpack.c.b16 %v2051, %v2043
    %v2900 = vpack.c.b16 %v2052, %v2044
    %v2901 = vpack.c.b16 %v2053, %v2045
    %v2902 = vpack.c.b16 %v2062, %v2054
    %v2903 = vpack.c.b16 %v2063, %v2055
    %v2904 = vpack.c.b16 %v2064, %v2056
    %v2905 = vpack.c.b16 %v2065, %v2057
    %v2906 = vpack.c.b16 %v2066, %v2058
    %v2907 = vpack.c.b16 %v2067, %v2059
    %v2908 = vpack.c.b16 %v2068, %v2060
    %v2909 = vpack.c.b16 %v2069, %v2061
    %v2910 = vpack.c.b16 %v2078, %v2070
    %v2911 = vpack.c.b16 %v2079, %v2071
    %v2912 = vpack.c.b16 %v2080, %v2072
    %v2913 = vpack.c.b16 %v2081, %v2073
    %v2914 = vpack.c.b16 %v2082, %v2074
    %v2915 = vpack.c.b16 %v2083, %v2075
    %v2916 = vpack.c.b16 %v2084, %v2076
    %v2917 = vpack.c.b16 %v2085, %v2077
    %v2918 = vpack.c.b16 %v2094, %v2086
    %v2919 = vpack.c.b16 %v2095, %v2087
    %v2920 = vpack.c.b16 %v2096, %v2088
    %v2921 = vpack.c.b16 %v2097, %v2089
    %v2922 = vpack.c.b16 %v2098, %v2090
    %v2923 = vpack.c.b16 %v2099, %v2091
    %v2924 = vpack.c.b16 %v2100, %v2092
    %v2925 = vpack.c.b16 %v2101, %v2093
    %v2926 = vpack.c.b16 %v2110, %v2102
    %v2927 = vpack.c.b16 %v2111, %v2103
    %v2928 = vpack.c.b16 %v2112, %v2104
    %v2929 = vpack.c.b16 %v2113, %v2105
    %v2930 = vpack.c.b16 %v2114, %v2106
    %v2931 = vpack.c.b16 %v2115, %v2107
    %v2932 = vpack.c.b16 %v2116, %v2108
    %v2933 = vpack.c.b16 %v2117, %v2109
    %v2934 = vpack.c.b16 %v2126, %v2118
    %v2935 = vpack.c.b16 %v2127, %v2119
    %v2936 = vpack.c.b16 %v2128, %v2120
    %v2937 = vpack.c.b16 %v2129, %v2121
    %v2938 = vpack.c.b16 %v2130, %v2122
    %v2939 = vpack.c.b16 %v2131, %v2123
    %v2940 = vpack.c.b16 %v2132, %v2124
    %v2941 = vpack.c.b16 %v2133, %v2125
    %v2942 = vpack.c.b16 %v2142, %v2134
    %v2943 = vpack.c.b16 %v2143, %v2135
    %v2944 = vpack.c.b16 %v2144, %v2136
    %v2945 = vpack.c.b16 %v2145, %v2137
    %v2946 = vpack.c.b16 %v2146, %v2138
    %v2947 = vpack.c.b16 %v2147, %v2139
    %v2948 = vpack.c.b16 %v2148, %v2140
    %v2949 = vpack.c.b16 %v2149, %v2141
    %v2950 = vpack.c.b16 %v2158, %v2150
    %v2951 = vpack.c.b16 %v2159, %v2151
    %v2952 = vpack.c.b16 %v2160, %v2152
    %v2953 = vpack.c.b16 %v2161, %v2153
    %v2954 = vpack.c.b16 %v2162, %v2154
    %v2955 = vpack.c.b16 %v2163, %v2155
    %v2956 = vpack.c.b16 %v2164, %v2156
    %v2957 = vpack.c.b16 %v2165, %v2157
    %v2958 = vpack.c.b16 %v2174, %v2166
    %v2959 = vpack.c.b16 %v2175, %v2167
    %v2960 = vpack.c.b16 %v2176, %v2168
    %v2961 = vpack.c.b16 %v2177, %v2169
    %v2962 = vpack.c.b16 %v2178, %v2170
    %v2963 = vpack.c.b16 %v2179, %v2171
    %v2964 = vpack.c.b16 %v2180, %v2172
    %v2965 = vpack.c.b16 %v2181, %v2173
    %v2966 = vpack.c.b16 %v2190, %v2182
    %v2967 = vpack.c.b16 %v2191, %v2183
    %v2968 = vpack.c.b16 %v2192, %v2184
    %v2969 = vpack.c.b16 %v2193, %v2185
    %v2970 = vpack.c.b16 %v2194, %v2186
    %v2971 = vpack.c.b16 %v2195, %v2187
    %v2972 = vpack.c.b16 %v2196, %v2188
    %v2973 = vpack.c.b16 %v2197, %v2189
    %v2974 = vpack.c.b16 %v2206, %v2198
    %v2975 = vpack.c.b16 %v2207, %v2199
    %v2976 = vpack.c.b16 %v2208, %v2200
    %v2977 = vpack.c.b16 %v2209, %v2201
    %v2978 = vpack.c.b16 %v2210, %v2202
    %v2979 = vpack.c.b16 %v2211, %v2203
    %v2980 = vpack.c.b16 %v2212, %v2204
    %v2981 = vpack.c.b16 %v2213, %v2205
    %v2982 = vpack.c.b16 %v2222, %v2214
    %v2983 = vpack.c.b16 %v2223, %v2215
    %v2984 = vpack.c.b16 %v2224, %v2216
    %v2985 = vpack.c.b16 %v2225, %v2217
    %v2986 = vpack.c.b16 %v2226, %v2218
    %v2987 = vpack.c.b16 %v2227, %v2219
    %v2988 = vpack.c.b16 %v2228, %v2220
    %v2989 = vpack.c.b16 %v2229, %v2221
    %v2990 = vpack.c.b16 %v2238, %v2230
    %v2991 = vpack.c.b16 %v2239, %v2231
    %v2992 = vpack.c.b16 %v2240, %v2232
    %v2993 = vpack.c.b16 %v2241, %v2233
    %v2994 = vpack.c.b16 %v2242, %v2234
    %v2995 = vpack.c.b16 %v2243, %v2235
    %v2996 = vpack.c.b16 %v2244, %v2236
    %v2997 = vpack.c.b16 %v2245, %v2237
    %v2998 = vpack.c.b16 %v2254, %v2246
    %v2999 = vpack.c.b16 %v2255, %v2247
    %v3000 = vpack.c.b16 %v2256, %v2248
    %v3001 = vpack.c.b16 %v2257, %v2249
    %v3002 = vpack.c.b16 %v2258, %v2250
    %v3003 = vpack.c.b16 %v2259, %v2251
    %v3004 = vpack.c.b16 %v2260, %v2252
    %v3005 = vpack.c.b16 %v2261, %v2253
    %v3006 = vpack.c.b16 %v2270, %v2262
    %v3007 = vpack.c.b16 %v2271, %v2263
    %v3008 = vpack.c.b16 %v2272, %v2264
    %v3009 = vpack.c.b16 %v2273, %v2265
    %v3010 = vpack.c.b16 %v2274, %v2266
    %v3011 = vpack.c.b16 %v2275, %v2267
    %v3012 = vpack.c.b16 %v2276, %v2268
    %v3013 = vpack.c.b16 %v2277, %v2269
    %v3014 = vpack.c.b16 %v2286, %v2278
    %v3015 = vpack.c.b16 %v2287, %v2279
    %v3016 = vpack.c.b16 %v2288, %v2280
    %v3017 = vpack.c.b16 %v2289, %v2281
    %v3018 = vpack.c.b16 %v2290, %v2282
    %v3019 = vpack.c.b16 %v2291, %v2283
    %v3020 = vpack.c.b16 %v2292, %v2284
    %v3021 = vpack.c.b16 %v2293, %v2285
    %v3022 = vpack.c.b16 %v2302, %v2294
    %v3023 = vpack.c.b16 %v2303, %v2295
    %v3024 = vpack.c.b16 %v2304, %v2296
    %v3025 = vpack.c.b16 %v2305, %v2297
    %v3026 = vpack.c.b16 %v2306, %v2298
    %v3027 = vpack.c.b16 %v2307, %v2299
    %v3028 = vpack.c.b16 %v2308, %v2300
    %v3029 = vpack.c.b16 %v2309, %v2301
    %v3030 = vpack.c.b16 %v2318, %v2310
    %v3031 = vpack.c.b16 %v2319, %v2311
    %v3032 = vpack.c.b16 %v2320, %v2312
    %v3033 = vpack.c.b16 %v2321, %v2313
    %v3034 = vpack.c.b16 %v2322, %v2314
    %v3035 = vpack.c.b16 %v2323, %v2315
    %v3036 = vpack.c.b16 %v2324, %v2316
    %v3037 = vpack.c.b16 %v2325, %v2317
    %v3038 = vpack.c.b16 %v2334, %v2326
    %v3039 = vpack.c.b16 %v2335, %v2327
    %v3040 = vpack.c.b16 %v2336, %v2328
    %v3041 = vpack.c.b16 %v2337, %v2329
    %v3042 = vpack.c.b16 %v2338, %v2330
    %v3043 = vpack.c.b16 %v2339, %v2331
    %v3044 = vpack.c.b16 %v2340, %v2332
    %v3045 = vpack.c.b16 %v2341, %v2333
    %v3046 = vpack.c.b16 %v2350, %v2342
    %v3047 = vpack.c.b16 %v2351, %v2343
    %v3048 = vpack.c.b16 %v2352, %v2344
    %v3049 = vpack.c.b16 %v2353, %v2345
    %v3050 = vpack.c.b16 %v2354, %v2346
    %v3051 = vpack.c.b16 %v2355, %v2347
    %v3052 = vpack.c.b16 %v2356, %v2348
    %v3053 = vpack.c.b16 %v2357, %v2349
    %v3054 = vpack.c.b16 %v2366, %v2358
    %v3055 = vpack.c.b16 %v2367, %v2359
    %v3056 = vpack.c.b16 %v2368, %v2360
    %v3057 = vpack.c.b16 %v2369, %v2361
    %v3058 = vpack.c.b16 %v2370, %v2362
    %v3059 = vpack.c.b16 %v2371, %v2363
    %v3060 = vpack.c.b16 %v2372, %v2364
    %v3061 = vpack.c.b16 %v2373, %v2365
    %v3062 = vpack.c.b16 %v2382, %v2374
    %v3063 = vpack.c.b16 %v2383, %v2375
    %v3064 = vpack.c.b16 %v2384, %v2376
    %v3065 = vpack.c.b16 %v2385, %v2377
    %v3066 = vpack.c.b16 %v2386, %v2378
    %v3067 = vpack.c.b16 %v2387, %v2379
    %v3068 = vpack.c.b16 %v2388, %v2380
    %v3069 = vpack.c.b16 %v2389, %v2381
    %v3070 = vpack.c.b16 %v2398, %v2390
    %v3071 = vpack.c.b16 %v2399, %v2391
    %v3072 = vpack.c.b16 %v2400, %v2392
    %v3073 = vpack.c.b16 %v2401, %v2393
    %v3074 = vpack.c.b16 %v2402, %v2394
    %v3075 = vpack.c.b16 %v2403, %v2395
    %v3076 = vpack.c.b16 %v2404, %v2396
    %v3077 = vpack.c.b16 %v2405, %v2397
    %v3078 = vpack.c.b16 %v2414, %v2406
    %v3079 = vpack.c.b16 %v2415, %v2407
    %v3080 = vpack.c.b16 %v2416, %v2408
    %v3081 = vpack.c.b16 %v2417, %v2409
    %v3082 = vpack.c.b16 %v2418, %v2410
    %v3083 = vpack.c.b16 %v2419, %v2411
    %v3084 = vpack.c.b16 %v2420, %v2412
    %v3085 = vpack.c.b16 %v2421, %v2413
    %v3086 = vpack.c.b16 %v2430, %v2422
    %v3087 = vpack.c.b16 %v2431, %v2423
    %v3088 = vpack.c.b16 %v2432, %v2424
    %v3089 = vpack.c.b16 %v2433, %v2425
    %v3090 = vpack.c.b16 %v2434, %v2426
    %v3091 = vpack.c.b16 %v2435, %v2427
    %v3092 = vpack.c.b16 %v2436, %v2428
    %v3093 = vpack.c.b16 %v2437, %v2429
    %v3094 = vpack.c.b16 %v2446, %v2438
    %v3095 = vpack.c.b16 %v2447, %v2439
    %v3096 = vpack.c.b16 %v2448, %v2440
    %v3097 = vpack.c.b16 %v2449, %v2441
    %v3098 = vpack.c.b16 %v2450, %v2442
    %v3099 = vpack.c.b16 %v2451, %v2443
    %v3100 = vpack.c.b16 %v2452, %v2444
    %v3101 = vpack.c.b16 %v2453, %v2445
    %v3102 = vpack.c.b16 %v2462, %v2454
    %v3103 = vpack.c.b16 %v2463, %v2455
    %v3104 = vpack.c.b16 %v2464, %v2456
    %v3105 = vpack.c.b16 %v2465, %v2457
    %v3106 = vpack.c.b16 %v2466, %v2458
    %v3107 = vpack.c.b16 %v2467, %v2459
    %v3108 = vpack.c.b16 %v2468, %v2460
    %v3109 = vpack.c.b16 %v2469, %v2461
    %v3110 = vpack.c.b16 %v2478, %v2470
    %v3111 = vpack.c.b16 %v2479, %v2471
    %v3112 = vpack.c.b16 %v2480, %v2472
    %v3113 = vpack.c.b16 %v2481, %v2473
    %v3114 = vpack.c.b16 %v2482, %v2474
    %v3115 = vpack.c.b16 %v2483, %v2475
    %v3116 = vpack.c.b16 %v2484, %v2476
    %v3117 = vpack.c.b16 %v2485, %v2477
    %v3118 = vpack.c.b16 %v2494, %v2486
    %v3119 = vpack.c.b16 %v2495, %v2487
    %v3120 = vpack.c.b16 %v2496, %v2488
    %v3121 = vpack.c.b16 %v2497, %v2489
    %v3122 = vpack.c.b16 %v2498, %v2490
    %v3123 = vpack.c.b16 %v2499, %v2491
    %v3124 = vpack.c.b16 %v2500, %v2492
    %v3125 = vpack.c.b16 %v2501, %v2493
    %v3126 = vpack.c.b16 %v2510, %v2502
    %v3127 = vpack.c.b16 %v2511, %v2503
    %v3128 = vpack.c.b16 %v2512, %v2504
    %v3129 = vpack.c.b16 %v2513, %v2505
    %v3130 = vpack.c.b16 %v2514, %v2506
    %v3131 = vpack.c.b16 %v2515, %v2507
    %v3132 = vpack.c.b16 %v2516, %v2508
    %v3133 = vpack.c.b16 %v2517, %v2509
    %v3134 = vpack.c.b16 %v2526, %v2518
    %v3135 = vpack.c.b16 %v2527, %v2519
    %v3136 = vpack.c.b16 %v2528, %v2520
    %v3137 = vpack.c.b16 %v2529, %v2521
    %v3138 = vpack.c.b16 %v2530, %v2522
    %v3139 = vpack.c.b16 %v2531, %v2523
    %v3140 = vpack.c.b16 %v2532, %v2524
    %v3141 = vpack.c.b16 %v2533, %v2525
    %v3142 = vpack.c.b16 %v2542, %v2534
    %v3143 = vpack.c.b16 %v2543, %v2535
    %v3144 = vpack.c.b16 %v2544, %v2536
    %v3145 = vpack.c.b16 %v2545, %v2537
    %v3146 = vpack.c.b16 %v2546, %v2538
    %v3147 = vpack.c.b16 %v2547, %v2539
    %v3148 = vpack.c.b16 %v2548, %v2540
    %v3149 = vpack.c.b16 %v2549, %v2541
    %v3150 = vpack.c.b16 %v2558, %v2550
    %v3151 = vpack.c.b16 %v2559, %v2551
    %v3152 = vpack.c.b16 %v2560, %v2552
    %v3153 = vpack.c.b16 %v2561, %v2553
    %v3154 = vpack.c.b16 %v2562, %v2554
    %v3155 = vpack.c.b16 %v2563, %v2555
    %v3156 = vpack.c.b16 %v2564, %v2556
    %v3157 = vpack.c.b16 %v2565, %v2557
    %v3158 = vpack.c.b16 %v2574, %v2566
    %v3159 = vpack.c.b16 %v2575, %v2567
    %v3160 = vpack.c.b16 %v2576, %v2568
    %v3161 = vpack.c.b16 %v2577, %v2569
    %v3162 = vpack.c.b16 %v2578, %v2570
    %v3163 = vpack.c.b16 %v2579, %v2571
    %v3164 = vpack.c.b16 %v2580, %v2572
    %v3165 = vpack.c.b16 %v2581, %v2573
    %v3166 = vpack.c.b16 %v2590, %v2582
    %v3167 = vpack.c.b16 %v2591, %v2583
    %v3168 = vpack.c.b16 %v2592, %v2584
    %v3169 = vpack.c.b16 %v2593, %v2585
    %v3170 = vpack.c.b16 %v2594, %v2586
    %v3171 = vpack.c.b16 %v2595, %v2587
    %v3172 = vpack.c.b16 %v2596, %v2588
    %v3173 = vpack.c.b16 %v2597, %v2589
    %v3174 = vpack.c.b16 %v2606, %v2598
    %v3175 = vpack.c.b16 %v2607, %v2599
    %v3176 = vpack.c.b16 %v2608, %v2600
    %v3177 = vpack.c.b16 %v2609, %v2601
    %v3178 = vpack.c.b16 %v2610, %v2602
    %v3179 = vpack.c.b16 %v2611, %v2603
    %v3180 = vpack.c.b16 %v2612, %v2604
    %v3181 = vpack.c.b16 %v2613, %v2605
    %v3182 = vpack.c.b16 %v2622, %v2614
    %v3183 = vpack.c.b16 %v2623, %v2615
    %v3184 = vpack.c.b16 %v2624, %v2616
    %v3185 = vpack.c.b16 %v2625, %v2617
    %v3186 = vpack.c.b16 %v2626, %v2618
    %v3187 = vpack.c.b16 %v2627, %v2619
    %v3188 = vpack.c.b16 %v2628, %v2620
    %v3189 = vpack.c.b16 %v2629, %v2621
    %v3190 = vpack.c.b16 %v2638, %v2630
    %v3191 = vpack.c.b16 %v2639, %v2631
    %v3192 = vpack.c.b16 %v2640, %v2632
    %v3193 = vpack.c.b16 %v2641, %v2633
    %v3194 = vpack.c.b16 %v2642, %v2634
    %v3195 = vpack.c.b16 %v2643, %v2635
    %v3196 = vpack.c.b16 %v2644, %v2636
    %v3197 = vpack.c.b16 %v2645, %v2637
    %v3198 = vpack.c.b16 %v2654, %v2646
    %v3199 = vpack.c.b16 %v2655, %v2647
    %v3200 = vpack.c.b16 %v2656, %v2648
    %v3201 = vpack.c.b16 %v2657, %v2649
    %v3202 = vpack.c.b16 %v2658, %v2650
    %v3203 = vpack.c.b16 %v2659, %v2651
    %v3204 = vpack.c.b16 %v2660, %v2652
    %v3205 = vpack.c.b16 %v2661, %v2653
    %v3206 = vpack.c.b16 %v2670, %v2662
    %v3207 = vpack.c.b16 %v2671, %v2663
    %v3208 = vpack.c.b16 %v2672, %v2664
    %v3209 = vpack.c.b16 %v2673, %v2665
    %v3210 = vpack.c.b16 %v2674, %v2666
    %v3211 = vpack.c.b16 %v2675, %v2667
    %v3212 = vpack.c.b16 %v2676, %v2668
    %v3213 = vpack.c.b16 %v2677, %v2669
    %v3214 = vpack.c.b16 %v2686, %v2678
    %v3215 = vpack.c.b16 %v2687, %v2679
    %v3216 = vpack.c.b16 %v2688, %v2680
    %v3217 = vpack.c.b16 %v2689, %v2681
    %v3218 = vpack.c.b16 %v2690, %v2682
    %v3219 = vpack.c.b16 %v2691, %v2683
    %v3220 = vpack.c.b16 %v2692, %v2684
    %v3221 = vpack.c.b16 %v2693, %v2685
    %v3222 = vpack.c.b16 %v2702, %v2694
    %v3223 = vpack.c.b16 %v2703, %v2695
    %v3224 = vpack.c.b16 %v2704, %v2696
    %v3225 = vpack.c.b16 %v2705, %v2697
    %v3226 = vpack.c.b16 %v2706, %v2698
    %v3227 = vpack.c.b16 %v2707, %v2699
    %v3228 = vpack.c.b16 %v2708, %v2700
    %v3229 = vpack.c.b16 %v2709, %v2701
    %v3230 = vpack.c.b16 %v2718, %v2710
    %v3231 = vpack.c.b16 %v2719, %v2711
    %v3232 = vpack.c.b16 %v2720, %v2712
    %v3233 = vpack.c.b16 %v2721, %v2713
    %v3234 = vpack.c.b16 %v2722, %v2714
    %v3235 = vpack.c.b16 %v2723, %v2715
    %v3236 = vpack.c.b16 %v2724, %v2716
    %v3237 = vpack.c.b16 %v2725, %v2717
    %3750 = vmatprep.subr.bf16.mxu0 %v2783
    %3751 = vmatpush1.bf16.msra.mxu0 %v2782
    %3752 = vmatprep.subr.bf16.mxu0 %v2775
    %3753 = vmatpush1.bf16.msra.mxu0 %v2774
    %3754 = vmatprep.subr.bf16.mxu0 %v2767
    %3755 = vmatpush1.bf16.msra.mxu0 %v2766
    %3756 = vmatprep.subr.bf16.mxu0 %v2759
    %3757 = vmatpush1.bf16.msra.mxu0 %v2758
    %3758 = vmatprep.subr.bf16.mxu0 %v2751
    %3759 = vmatpush1.bf16.msra.mxu0 %v2750
    %3760 = vmatprep.subr.bf16.mxu0 %v2743
    %3761 = vmatpush1.bf16.msra.mxu0 %v2742
    %3762 = vmatprep.subr.bf16.mxu0 %v2735
    %3763 = vmatpush1.bf16.msra.mxu0 %v2734
    %3764 = vmatprep.subr.bf16.mxu0 %v2727
    %3765 = vmatpush1.bf16.msra.mxu0 %v2726
    %3766 = vmatprep.subr.bf16.mxu0 %v2847
    %3767 = vmatpush2.bf16.msra.mxu0 %v2846
    %3768 = vmatprep.subr.bf16.mxu0 %v2839
    %3769 = vmatpush2.bf16.msra.mxu0 %v2838
    %3770 = vmatprep.subr.bf16.mxu0 %v2831
    %3771 = vmatpush2.bf16.msra.mxu0 %v2830
    %3772 = vmatprep.subr.bf16.mxu0 %v2823
    %3773 = vmatpush2.bf16.msra.mxu0 %v2822
    %3774 = vmatprep.subr.bf16.mxu0 %v2815
    %3775 = vmatpush2.bf16.msra.mxu0 %v2814
    %3776 = vmatprep.subr.bf16.mxu0 %v2807
    %3777 = vmatpush2.bf16.msra.mxu0 %v2806
    %3778 = vmatprep.subr.bf16.mxu0 %v2799
    %3779 = vmatpush2.bf16.msra.mxu0 %v2798
    %3780 = vmatprep.subr.bf16.mxu0 %v2791
    %3781 = vmatpush2.bf16.msra.mxu0 %v2790
    %3782 = vmatprep.mubr.bf16.mxu0 %v671
    %3783 = vmatmul.mubr.bf16.gmra.mxu0 %v670
    %v3784 = vpop.f32.mrf.mxu0
    %v3785 = vadd.f32 0.0, %v3784
    %v3786 = vpop.f32.mrf.mxu0
    %v3787 = vadd.f32 0.0, %v3786
    %v3788 = vpop.f32.mrf.mxu0
    %v3789 = vpop.f32.mrf.mxu0
    %3790 = vdwg.mxu0
    %3791 = vmatprep.subr.bf16.mxu0 %v2911
    %3792 = vmatpush1.bf16.msra.mxu0 %v2910
    %3793 = vmatprep.subr.bf16.mxu0 %v2903
    %3794 = vmatpush1.bf16.msra.mxu0 %v2902
    %3795 = vmatprep.subr.bf16.mxu0 %v2895
    %3796 = vmatpush1.bf16.msra.mxu0 %v2894
    %3797 = vmatprep.subr.bf16.mxu0 %v2887
    %3798 = vmatpush1.bf16.msra.mxu0 %v2886
    %3799 = vmatprep.subr.bf16.mxu0 %v2879
    %3800 = vmatpush1.bf16.msra.mxu0 %v2878
    %3801 = vmatprep.subr.bf16.mxu0 %v2871
    %3802 = vmatpush1.bf16.msra.mxu0 %v2870
    %3803 = vmatprep.subr.bf16.mxu0 %v2863
    %3804 = vmatpush1.bf16.msra.mxu0 %v2862
    %3805 = vmatprep.subr.bf16.mxu0 %v2855
    %3806 = vmatpush1.bf16.msra.mxu0 %v2854
    %3807 = vmatprep.subr.bf16.mxu0 %v2975
    %3808 = vmatpush2.bf16.msra.mxu0 %v2974
    %3809 = vmatprep.subr.bf16.mxu0 %v2967
    %3810 = vmatpush2.bf16.msra.mxu0 %v2966
    %3811 = vmatprep.subr.bf16.mxu0 %v2959
    %3812 = vmatpush2.bf16.msra.mxu0 %v2958
    %3813 = vmatprep.subr.bf16.mxu0 %v2951
    %3814 = vmatpush2.bf16.msra.mxu0 %v2950
    %3815 = vmatprep.subr.bf16.mxu0 %v2943
    %3816 = vmatpush2.bf16.msra.mxu0 %v2942
    %3817 = vmatprep.subr.bf16.mxu0 %v2935
    %3818 = vmatpush2.bf16.msra.mxu0 %v2934
    %3819 = vmatprep.subr.bf16.mxu0 %v2927
    %3820 = vmatpush2.bf16.msra.mxu0 %v2926
    %3821 = vmatprep.subr.bf16.mxu0 %v2919
    %3822 = vmatpush2.bf16.msra.mxu0 %v2918
    %3823 = vmatprep.mubr.bf16.mxu0 %v673
    %3824 = vmatmul.mubr.bf16.gmra.mxu0 %v672
    %v3825 = vpop.f32.mrf.mxu0
    %v3826 = vadd.f32 %v3785, %v3825
    %v3827 = vpop.f32.mrf.mxu0
    %v3828 = vadd.f32 %v3787, %v3827
    %v3829 = vpop.f32.mrf.mxu0
    %v3830 = vpop.f32.mrf.mxu0
    %3831 = vdwg.mxu0
    %3832 = vmatprep.subr.bf16.mxu0 %v3039
    %3833 = vmatpush1.bf16.msra.mxu0 %v3038
    %3834 = vmatprep.subr.bf16.mxu0 %v3031
    %3835 = vmatpush1.bf16.msra.mxu0 %v3030
    %3836 = vmatprep.subr.bf16.mxu0 %v3023
    %3837 = vmatpush1.bf16.msra.mxu0 %v3022
    %3838 = vmatprep.subr.bf16.mxu0 %v3015
    %3839 = vmatpush1.bf16.msra.mxu0 %v3014
    %3840 = vmatprep.subr.bf16.mxu0 %v3007
    %3841 = vmatpush1.bf16.msra.mxu0 %v3006
    %3842 = vmatprep.subr.bf16.mxu0 %v2999
    %3843 = vmatpush1.bf16.msra.mxu0 %v2998
    %3844 = vmatprep.subr.bf16.mxu0 %v2991
    %3845 = vmatpush1.bf16.msra.mxu0 %v2990
    %3846 = vmatprep.subr.bf16.mxu0 %v2983
    %3847 = vmatpush1.bf16.msra.mxu0 %v2982
    %3848 = vmatprep.subr.bf16.mxu0 %v3103
    %3849 = vmatpush2.bf16.msra.mxu0 %v3102
    %3850 = vmatprep.subr.bf16.mxu0 %v3095
    %3851 = vmatpush2.bf16.msra.mxu0 %v3094
    %3852 = vmatprep.subr.bf16.mxu0 %v3087
    %3853 = vmatpush2.bf16.msra.mxu0 %v3086
    %3854 = vmatprep.subr.bf16.mxu0 %v3079
    %3855 = vmatpush2.bf16.msra.mxu0 %v3078
    %3856 = vmatprep.subr.bf16.mxu0 %v3071
    %3857 = vmatpush2.bf16.msra.mxu0 %v3070
    %3858 = vmatprep.subr.bf16.mxu0 %v3063
    %3859 = vmatpush2.bf16.msra.mxu0 %v3062
    %3860 = vmatprep.subr.bf16.mxu0 %v3055
    %3861 = vmatpush2.bf16.msra.mxu0 %v3054
    %3862 = vmatprep.subr.bf16.mxu0 %v3047
    %3863 = vmatpush2.bf16.msra.mxu0 %v3046
    %3864 = vmatprep.mubr.bf16.mxu0 %v675
    %3865 = vmatmul.mubr.bf16.gmra.mxu0 %v674
    %v3866 = vpop.f32.mrf.mxu0
    %v3867 = vadd.f32 %v3826, %v3866
    %v3868 = vpop.f32.mrf.mxu0
    %v3869 = vadd.f32 %v3828, %v3868
    %v3870 = vpop.f32.mrf.mxu0
    %v3871 = vpop.f32.mrf.mxu0
    %3872 = vdwg.mxu0
    %3873 = vmatprep.subr.bf16.mxu0 %v3167
    %3874 = vmatpush1.bf16.msra.mxu0 %v3166
    %3875 = vmatprep.subr.bf16.mxu0 %v3159
    %3876 = vmatpush1.bf16.msra.mxu0 %v3158
    %3877 = vmatprep.subr.bf16.mxu0 %v3151
    %3878 = vmatpush1.bf16.msra.mxu0 %v3150
    %3879 = vmatprep.subr.bf16.mxu0 %v3143
    %3880 = vmatpush1.bf16.msra.mxu0 %v3142
    %3881 = vmatprep.subr.bf16.mxu0 %v3135
    %3882 = vmatpush1.bf16.msra.mxu0 %v3134
    %3883 = vmatprep.subr.bf16.mxu0 %v3127
    %3884 = vmatpush1.bf16.msra.mxu0 %v3126
    %3885 = vmatprep.subr.bf16.mxu0 %v3119
    %3886 = vmatpush1.bf16.msra.mxu0 %v3118
    %3887 = vmatprep.subr.bf16.mxu0 %v3111
    %3888 = vmatpush1.bf16.msra.mxu0 %v3110
    %3889 = vmatprep.subr.bf16.mxu0 %v3231
    %3890 = vmatpush2.bf16.msra.mxu0 %v3230
    %3891 = vmatprep.subr.bf16.mxu0 %v3223
    %3892 = vmatpush2.bf16.msra.mxu0 %v3222
    %3893 = vmatprep.subr.bf16.mxu0 %v3215
    %3894 = vmatpush2.bf16.msra.mxu0 %v3214
    %3895 = vmatprep.subr.bf16.mxu0 %v3207
    %3896 = vmatpush2.bf16.msra.mxu0 %v3206
    %3897 = vmatprep.subr.bf16.mxu0 %v3199
    %3898 = vmatpush2.bf16.msra.mxu0 %v3198
    %3899 = vmatprep.subr.bf16.mxu0 %v3191
    %3900 = vmatpush2.bf16.msra.mxu0 %v3190
    %3901 = vmatprep.subr.bf16.mxu0 %v3183
    %3902 = vmatpush2.bf16.msra.mxu0 %v3182
    %3903 = vmatprep.subr.bf16.mxu0 %v3175
    %3904 = vmatpush2.bf16.msra.mxu0 %v3174
    %3905 = vmatprep.mubr.bf16.mxu0 %v677
    %3906 = vmatmul.mubr.bf16.gmra.mxu0 %v676
    %v3907 = vpop.f32.mrf.mxu0
    %v3908 = vadd.f32 %v3867, %v3907
    %v3909 = vpop.f32.mrf.mxu0
    %v3910 = vadd.f32 %v3869, %v3909
    %v3911 = vpop.f32.mrf.mxu0
    %v3912 = vpop.f32.mrf.mxu0
    %3913 = vdwg.mxu0
    %3914 = vmatprep.subr.bf16.mxu0 %v2785
    %3915 = vmatpush1.bf16.msra.mxu0 %v2784
    %3916 = vmatprep.subr.bf16.mxu0 %v2777
    %3917 = vmatpush1.bf16.msra.mxu0 %v2776
    %3918 = vmatprep.subr.bf16.mxu0 %v2769
    %3919 = vmatpush1.bf16.msra.mxu0 %v2768
    %3920 = vmatprep.subr.bf16.mxu0 %v2761
    %3921 = vmatpush1.bf16.msra.mxu0 %v2760
    %3922 = vmatprep.subr.bf16.mxu0 %v2753
    %3923 = vmatpush1.bf16.msra.mxu0 %v2752
    %3924 = vmatprep.subr.bf16.mxu0 %v2745
    %3925 = vmatpush1.bf16.msra.mxu0 %v2744
    %3926 = vmatprep.subr.bf16.mxu0 %v2737
    %3927 = vmatpush1.bf16.msra.mxu0 %v2736
    %3928 = vmatprep.subr.bf16.mxu0 %v2729
    %3929 = vmatpush1.bf16.msra.mxu0 %v2728
    %3930 = vmatprep.subr.bf16.mxu0 %v2849
    %3931 = vmatpush2.bf16.msra.mxu0 %v2848
    %3932 = vmatprep.subr.bf16.mxu0 %v2841
    %3933 = vmatpush2.bf16.msra.mxu0 %v2840
    %3934 = vmatprep.subr.bf16.mxu0 %v2833
    %3935 = vmatpush2.bf16.msra.mxu0 %v2832
    %3936 = vmatprep.subr.bf16.mxu0 %v2825
    %3937 = vmatpush2.bf16.msra.mxu0 %v2824
    %3938 = vmatprep.subr.bf16.mxu0 %v2817
    %3939 = vmatpush2.bf16.msra.mxu0 %v2816
    %3940 = vmatprep.subr.bf16.mxu0 %v2809
    %3941 = vmatpush2.bf16.msra.mxu0 %v2808
    %3942 = vmatprep.subr.bf16.mxu0 %v2801
    %3943 = vmatpush2.bf16.msra.mxu0 %v2800
    %3944 = vmatprep.subr.bf16.mxu0 %v2793
    %3945 = vmatpush2.bf16.msra.mxu0 %v2792
    %3946 = vmatprep.mubr.bf16.mxu0 %v671
    %3947 = vmatmul.mubr.bf16.gmra.mxu0 %v670
    %v3948 = vpop.f32.mrf.mxu0
    %v3949 = vadd.f32 0.0, %v3948
    %v3950 = vpop.f32.mrf.mxu0
    %v3951 = vadd.f32 0.0, %v3950
    %v3952 = vpop.f32.mrf.mxu0
    %v3953 = vpop.f32.mrf.mxu0
    %3954 = vdwg.mxu0
    %3955 = vmatprep.subr.bf16.mxu0 %v2913
    %3956 = vmatpush1.bf16.msra.mxu0 %v2912
    %3957 = vmatprep.subr.bf16.mxu0 %v2905
    %3958 = vmatpush1.bf16.msra.mxu0 %v2904
    %3959 = vmatprep.subr.bf16.mxu0 %v2897
    %3960 = vmatpush1.bf16.msra.mxu0 %v2896
    %3961 = vmatprep.subr.bf16.mxu0 %v2889
    %3962 = vmatpush1.bf16.msra.mxu0 %v2888
    %3963 = vmatprep.subr.bf16.mxu0 %v2881
    %3964 = vmatpush1.bf16.msra.mxu0 %v2880
    %3965 = vmatprep.subr.bf16.mxu0 %v2873
    %3966 = vmatpush1.bf16.msra.mxu0 %v2872
    %3967 = vmatprep.subr.bf16.mxu0 %v2865
    %3968 = vmatpush1.bf16.msra.mxu0 %v2864
    %3969 = vmatprep.subr.bf16.mxu0 %v2857
    %3970 = vmatpush1.bf16.msra.mxu0 %v2856
    %3971 = vmatprep.subr.bf16.mxu0 %v2977
    %3972 = vmatpush2.bf16.msra.mxu0 %v2976
    %3973 = vmatprep.subr.bf16.mxu0 %v2969
    %3974 = vmatpush2.bf16.msra.mxu0 %v2968
    %3975 = vmatprep.subr.bf16.mxu0 %v2961
    %3976 = vmatpush2.bf16.msra.mxu0 %v2960
    %3977 = vmatprep.subr.bf16.mxu0 %v2953
    %3978 = vmatpush2.bf16.msra.mxu0 %v2952
    %3979 = vmatprep.subr.bf16.mxu0 %v2945
    %3980 = vmatpush2.bf16.msra.mxu0 %v2944
    %3981 = vmatprep.subr.bf16.mxu0 %v2937
    %3982 = vmatpush2.bf16.msra.mxu0 %v2936
    %3983 = vmatprep.subr.bf16.mxu0 %v2929
    %3984 = vmatpush2.bf16.msra.mxu0 %v2928
    %3985 = vmatprep.subr.bf16.mxu0 %v2921
    %3986 = vmatpush2.bf16.msra.mxu0 %v2920
    %3987 = vmatprep.mubr.bf16.mxu0 %v673
    %3988 = vmatmul.mubr.bf16.gmra.mxu0 %v672
    %v3989 = vpop.f32.mrf.mxu0
    %v3990 = vadd.f32 %v3949, %v3989
    %v3991 = vpop.f32.mrf.mxu0
    %v3992 = vadd.f32 %v3951, %v3991
    %v3993 = vpop.f32.mrf.mxu0
    %v3994 = vpop.f32.mrf.mxu0
    %3995 = vdwg.mxu0
    %3996 = vmatprep.subr.bf16.mxu0 %v3041
    %3997 = vmatpush1.bf16.msra.mxu0 %v3040
    %3998 = vmatprep.subr.bf16.mxu0 %v3033
    %3999 = vmatpush1.bf16.msra.mxu0 %v3032
    %4000 = vmatprep.subr.bf16.mxu0 %v3025
    %4001 = vmatpush1.bf16.msra.mxu0 %v3024
    %4002 = vmatprep.subr.bf16.mxu0 %v3017
    %4003 = vmatpush1.bf16.msra.mxu0 %v3016
    %4004 = vmatprep.subr.bf16.mxu0 %v3009
    %4005 = vmatpush1.bf16.msra.mxu0 %v3008
    %4006 = vmatprep.subr.bf16.mxu0 %v3001
    %4007 = vmatpush1.bf16.msra.mxu0 %v3000
    %4008 = vmatprep.subr.bf16.mxu0 %v2993
    %4009 = vmatpush1.bf16.msra.mxu0 %v2992
    %4010 = vmatprep.subr.bf16.mxu0 %v2985
    %4011 = vmatpush1.bf16.msra.mxu0 %v2984
    %4012 = vmatprep.subr.bf16.mxu0 %v3105
    %4013 = vmatpush2.bf16.msra.mxu0 %v3104
    %4014 = vmatprep.subr.bf16.mxu0 %v3097
    %4015 = vmatpush2.bf16.msra.mxu0 %v3096
    %4016 = vmatprep.subr.bf16.mxu0 %v3089
    %4017 = vmatpush2.bf16.msra.mxu0 %v3088
    %4018 = vmatprep.subr.bf16.mxu0 %v3081
    %4019 = vmatpush2.bf16.msra.mxu0 %v3080
    %4020 = vmatprep.subr.bf16.mxu0 %v3073
    %4021 = vmatpush2.bf16.msra.mxu0 %v3072
    %4022 = vmatprep.subr.bf16.mxu0 %v3065
    %4023 = vmatpush2.bf16.msra.mxu0 %v3064
    %4024 = vmatprep.subr.bf16.mxu0 %v3057
    %4025 = vmatpush2.bf16.msra.mxu0 %v3056
    %4026 = vmatprep.subr.bf16.mxu0 %v3049
    %4027 = vmatpush2.bf16.msra.mxu0 %v3048
    %4028 = vmatprep.mubr.bf16.mxu0 %v675
    %4029 = vmatmul.mubr.bf16.gmra.mxu0 %v674
    %v4030 = vpop.f32.mrf.mxu0
    %v4031 = vadd.f32 %v3990, %v4030
    %v4032 = vpop.f32.mrf.mxu0
    %v4033 = vadd.f32 %v3992, %v4032
    %v4034 = vpop.f32.mrf.mxu0
    %v4035 = vpop.f32.mrf.mxu0
    %4036 = vdwg.mxu0
    %4037 = vmatprep.subr.bf16.mxu0 %v3169
    %4038 = vmatpush1.bf16.msra.mxu0 %v3168
    %4039 = vmatprep.subr.bf16.mxu0 %v3161
    %4040 = vmatpush1.bf16.msra.mxu0 %v3160
    %4041 = vmatprep.subr.bf16.mxu0 %v3153
    %4042 = vmatpush1.bf16.msra.mxu0 %v3152
    %4043 = vmatprep.subr.bf16.mxu0 %v3145
    %4044 = vmatpush1.bf16.msra.mxu0 %v3144
    %4045 = vmatprep.subr.bf16.mxu0 %v3137
    %4046 = vmatpush1.bf16.msra.mxu0 %v3136
    %4047 = vmatprep.subr.bf16.mxu0 %v3129
    %4048 = vmatpush1.bf16.msra.mxu0 %v3128
    %4049 = vmatprep.subr.bf16.mxu0 %v3121
    %4050 = vmatpush1.bf16.msra.mxu0 %v3120
    %4051 = vmatprep.subr.bf16.mxu0 %v3113
    %4052 = vmatpush1.bf16.msra.mxu0 %v3112
    %4053 = vmatprep.subr.bf16.mxu0 %v3233
    %4054 = vmatpush2.bf16.msra.mxu0 %v3232
    %4055 = vmatprep.subr.bf16.mxu0 %v3225
    %4056 = vmatpush2.bf16.msra.mxu0 %v3224
    %4057 = vmatprep.subr.bf16.mxu0 %v3217
    %4058 = vmatpush2.bf16.msra.mxu0 %v3216
    %4059 = vmatprep.subr.bf16.mxu0 %v3209
    %4060 = vmatpush2.bf16.msra.mxu0 %v3208
    %4061 = vmatprep.subr.bf16.mxu0 %v3201
    %4062 = vmatpush2.bf16.msra.mxu0 %v3200
    %4063 = vmatprep.subr.bf16.mxu0 %v3193
    %4064 = vmatpush2.bf16.msra.mxu0 %v3192
    %4065 = vmatprep.subr.bf16.mxu0 %v3185
    %4066 = vmatpush2.bf16.msra.mxu0 %v3184
    %4067 = vmatprep.subr.bf16.mxu0 %v3177
    %4068 = vmatpush2.bf16.msra.mxu0 %v3176
    %4069 = vmatprep.mubr.bf16.mxu0 %v677
    %4070 = vmatmul.mubr.bf16.gmra.mxu0 %v676
    %v4071 = vpop.f32.mrf.mxu0
    %v4072 = vadd.f32 %v4031, %v4071
    %v4073 = vpop.f32.mrf.mxu0
    %v4074 = vadd.f32 %v4033, %v4073
    %v4075 = vpop.f32.mrf.mxu0
    %v4076 = vpop.f32.mrf.mxu0
    %4077 = vdwg.mxu0
    %4078 = vmatprep.subr.bf16.mxu0 %v2787
    %4079 = vmatpush1.bf16.msra.mxu0 %v2786
    %4080 = vmatprep.subr.bf16.mxu0 %v2779
    %4081 = vmatpush1.bf16.msra.mxu0 %v2778
    %4082 = vmatprep.subr.bf16.mxu0 %v2771
    %4083 = vmatpush1.bf16.msra.mxu0 %v2770
    %4084 = vmatprep.subr.bf16.mxu0 %v2763
    %4085 = vmatpush1.bf16.msra.mxu0 %v2762
    %4086 = vmatprep.subr.bf16.mxu0 %v2755
    %4087 = vmatpush1.bf16.msra.mxu0 %v2754
    %4088 = vmatprep.subr.bf16.mxu0 %v2747
    %4089 = vmatpush1.bf16.msra.mxu0 %v2746
    %4090 = vmatprep.subr.bf16.mxu0 %v2739
    %4091 = vmatpush1.bf16.msra.mxu0 %v2738
    %4092 = vmatprep.subr.bf16.mxu0 %v2731
    %4093 = vmatpush1.bf16.msra.mxu0 %v2730
    %4094 = vmatprep.subr.bf16.mxu0 %v2851
    %4095 = vmatpush2.bf16.msra.mxu0 %v2850
    %4096 = vmatprep.subr.bf16.mxu0 %v2843
    %4097 = vmatpush2.bf16.msra.mxu0 %v2842
    %4098 = vmatprep.subr.bf16.mxu0 %v2835
    %4099 = vmatpush2.bf16.msra.mxu0 %v2834
    %4100 = vmatprep.subr.bf16.mxu0 %v2827
    %4101 = vmatpush2.bf16.msra.mxu0 %v2826
    %4102 = vmatprep.subr.bf16.mxu0 %v2819
    %4103 = vmatpush2.bf16.msra.mxu0 %v2818
    %4104 = vmatprep.subr.bf16.mxu0 %v2811
    %4105 = vmatpush2.bf16.msra.mxu0 %v2810
    %4106 = vmatprep.subr.bf16.mxu0 %v2803
    %4107 = vmatpush2.bf16.msra.mxu0 %v2802
    %4108 = vmatprep.subr.bf16.mxu0 %v2795
    %4109 = vmatpush2.bf16.msra.mxu0 %v2794
    %4110 = vmatprep.mubr.bf16.mxu0 %v671
    %4111 = vmatmul.mubr.bf16.gmra.mxu0 %v670
    %v4112 = vpop.f32.mrf.mxu0
    %v4113 = vadd.f32 0.0, %v4112
    %v4114 = vpop.f32.mrf.mxu0
    %v4115 = vadd.f32 0.0, %v4114
    %v4116 = vpop.f32.mrf.mxu0
    %v4117 = vpop.f32.mrf.mxu0
    %4118 = vdwg.mxu0
    %4119 = vmatprep.subr.bf16.mxu0 %v2915
    %4120 = vmatpush1.bf16.msra.mxu0 %v2914
    %4121 = vmatprep.subr.bf16.mxu0 %v2907
    %4122 = vmatpush1.bf16.msra.mxu0 %v2906
    %4123 = vmatprep.subr.bf16.mxu0 %v2899
    %4124 = vmatpush1.bf16.msra.mxu0 %v2898
    %4125 = vmatprep.subr.bf16.mxu0 %v2891
    %4126 = vmatpush1.bf16.msra.mxu0 %v2890
    %4127 = vmatprep.subr.bf16.mxu0 %v2883
    %4128 = vmatpush1.bf16.msra.mxu0 %v2882
    %4129 = vmatprep.subr.bf16.mxu0 %v2875
    %4130 = vmatpush1.bf16.msra.mxu0 %v2874
    %4131 = vmatprep.subr.bf16.mxu0 %v2867
    %4132 = vmatpush1.bf16.msra.mxu0 %v2866
    %4133 = vmatprep.subr.bf16.mxu0 %v2859
    %4134 = vmatpush1.bf16.msra.mxu0 %v2858
    %4135 = vmatprep.subr.bf16.mxu0 %v2979
    %4136 = vmatpush2.bf16.msra.mxu0 %v2978
    %4137 = vmatprep.subr.bf16.mxu0 %v2971
    %4138 = vmatpush2.bf16.msra.mxu0 %v2970
    %4139 = vmatprep.subr.bf16.mxu0 %v2963
    %4140 = vmatpush2.bf16.msra.mxu0 %v2962
    %4141 = vmatprep.subr.bf16.mxu0 %v2955
    %4142 = vmatpush2.bf16.msra.mxu0 %v2954
    %4143 = vmatprep.subr.bf16.mxu0 %v2947
    %4144 = vmatpush2.bf16.msra.mxu0 %v2946
    %4145 = vmatprep.subr.bf16.mxu0 %v2939
    %4146 = vmatpush2.bf16.msra.mxu0 %v2938
    %4147 = vmatprep.subr.bf16.mxu0 %v2931
    %4148 = vmatpush2.bf16.msra.mxu0 %v2930
    %4149 = vmatprep.subr.bf16.mxu0 %v2923
    %4150 = vmatpush2.bf16.msra.mxu0 %v2922
    %4151 = vmatprep.mubr.bf16.mxu0 %v673
    %4152 = vmatmul.mubr.bf16.gmra.mxu0 %v672
    %v4153 = vpop.f32.mrf.mxu0
    %v4154 = vadd.f32 %v4113, %v4153
    %v4155 = vpop.f32.mrf.mxu0
    %v4156 = vadd.f32 %v4115, %v4155
    %v4157 = vpop.f32.mrf.mxu0
    %v4158 = vpop.f32.mrf.mxu0
    %4159 = vdwg.mxu0
    %4160 = vmatprep.subr.bf16.mxu0 %v3043
    %4161 = vmatpush1.bf16.msra.mxu0 %v3042
    %4162 = vmatprep.subr.bf16.mxu0 %v3035
    %4163 = vmatpush1.bf16.msra.mxu0 %v3034
    %4164 = vmatprep.subr.bf16.mxu0 %v3027
    %4165 = vmatpush1.bf16.msra.mxu0 %v3026
    %4166 = vmatprep.subr.bf16.mxu0 %v3019
    %4167 = vmatpush1.bf16.msra.mxu0 %v3018
    %4168 = vmatprep.subr.bf16.mxu0 %v3011
    %4169 = vmatpush1.bf16.msra.mxu0 %v3010
    %4170 = vmatprep.subr.bf16.mxu0 %v3003
    %4171 = vmatpush1.bf16.msra.mxu0 %v3002
    %4172 = vmatprep.subr.bf16.mxu0 %v2995
    %4173 = vmatpush1.bf16.msra.mxu0 %v2994
    %4174 = vmatprep.subr.bf16.mxu0 %v2987
    %4175 = vmatpush1.bf16.msra.mxu0 %v2986
    %4176 = vmatprep.subr.bf16.mxu0 %v3107
    %4177 = vmatpush2.bf16.msra.mxu0 %v3106
    %4178 = vmatprep.subr.bf16.mxu0 %v3099
    %4179 = vmatpush2.bf16.msra.mxu0 %v3098
    %4180 = vmatprep.subr.bf16.mxu0 %v3091
    %4181 = vmatpush2.bf16.msra.mxu0 %v3090
    %4182 = vmatprep.subr.bf16.mxu0 %v3083
    %4183 = vmatpush2.bf16.msra.mxu0 %v3082
    %4184 = vmatprep.subr.bf16.mxu0 %v3075
    %4185 = vmatpush2.bf16.msra.mxu0 %v3074
    %4186 = vmatprep.subr.bf16.mxu0 %v3067
    %4187 = vmatpush2.bf16.msra.mxu0 %v3066
    %4188 = vmatprep.subr.bf16.mxu0 %v3059
    %4189 = vmatpush2.bf16.msra.mxu0 %v3058
    %4190 = vmatprep.subr.bf16.mxu0 %v3051
    %4191 = vmatpush2.bf16.msra.mxu0 %v3050
    %4192 = vmatprep.mubr.bf16.mxu0 %v675
    %4193 = vmatmul.mubr.bf16.gmra.mxu0 %v674
    %v4194 = vpop.f32.mrf.mxu0
    %v4195 = vadd.f32 %v4154, %v4194
    %v4196 = vpop.f32.mrf.mxu0
    %v4197 = vadd.f32 %v4156, %v4196
    %v4198 = vpop.f32.mrf.mxu0
    %v4199 = vpop.f32.mrf.mxu0
    %4200 = vdwg.mxu0
    %4201 = vmatprep.subr.bf16.mxu0 %v3171
    %4202 = vmatpush1.bf16.msra.mxu0 %v3170
    %4203 = vmatprep.subr.bf16.mxu0 %v3163
    %4204 = vmatpush1.bf16.msra.mxu0 %v3162
    %4205 = vmatprep.subr.bf16.mxu0 %v3155
    %4206 = vmatpush1.bf16.msra.mxu0 %v3154
    %4207 = vmatprep.subr.bf16.mxu0 %v3147
    %4208 = vmatpush1.bf16.msra.mxu0 %v3146
    %4209 = vmatprep.subr.bf16.mxu0 %v3139
    %4210 = vmatpush1.bf16.msra.mxu0 %v3138
    %4211 = vmatprep.subr.bf16.mxu0 %v3131
    %4212 = vmatpush1.bf16.msra.mxu0 %v3130
    %4213 = vmatprep.subr.bf16.mxu0 %v3123
    %4214 = vmatpush1.bf16.msra.mxu0 %v3122
    %4215 = vmatprep.subr.bf16.mxu0 %v3115
    %4216 = vmatpush1.bf16.msra.mxu0 %v3114
    %4217 = vmatprep.subr.bf16.mxu0 %v3235
    %4218 = vmatpush2.bf16.msra.mxu0 %v3234
    %4219 = vmatprep.subr.bf16.mxu0 %v3227
    %4220 = vmatpush2.bf16.msra.mxu0 %v3226
    %4221 = vmatprep.subr.bf16.mxu0 %v3219
    %4222 = vmatpush2.bf16.msra.mxu0 %v3218
    %4223 = vmatprep.subr.bf16.mxu0 %v3211
    %4224 = vmatpush2.bf16.msra.mxu0 %v3210
    %4225 = vmatprep.subr.bf16.mxu0 %v3203
    %4226 = vmatpush2.bf16.msra.mxu0 %v3202
    %4227 = vmatprep.subr.bf16.mxu0 %v3195
    %4228 = vmatpush2.bf16.msra.mxu0 %v3194
    %4229 = vmatprep.subr.bf16.mxu0 %v3187
    %4230 = vmatpush2.bf16.msra.mxu0 %v3186
    %4231 = vmatprep.subr.bf16.mxu0 %v3179
    %4232 = vmatpush2.bf16.msra.mxu0 %v3178
    %4233 = vmatprep.mubr.bf16.mxu0 %v677
    %4234 = vmatmul.mubr.bf16.gmra.mxu0 %v676
    %v4235 = vpop.f32.mrf.mxu0
    %v4236 = vadd.f32 %v4195, %v4235
    %v4237 = vpop.f32.mrf.mxu0
    %v4238 = vadd.f32 %v4197, %v4237
    %v4239 = vpop.f32.mrf.mxu0
    %v4240 = vpop.f32.mrf.mxu0
    %4241 = vdwg.mxu0
    %4242 = vmatprep.subr.bf16.mxu0 %v2789
    %4243 = vmatpush1.bf16.msra.mxu0 %v2788
    %4244 = vmatprep.subr.bf16.mxu0 %v2781
    %4245 = vmatpush1.bf16.msra.mxu0 %v2780
    %4246 = vmatprep.subr.bf16.mxu0 %v2773
    %4247 = vmatpush1.bf16.msra.mxu0 %v2772
    %4248 = vmatprep.subr.bf16.mxu0 %v2765
    %4249 = vmatpush1.bf16.msra.mxu0 %v2764
    %4250 = vmatprep.subr.bf16.mxu0 %v2757
    %4251 = vmatpush1.bf16.msra.mxu0 %v2756
    %4252 = vmatprep.subr.bf16.mxu0 %v2749
    %4253 = vmatpush1.bf16.msra.mxu0 %v2748
    %4254 = vmatprep.subr.bf16.mxu0 %v2741
    %4255 = vmatpush1.bf16.msra.mxu0 %v2740
    %4256 = vmatprep.subr.bf16.mxu0 %v2733
    %4257 = vmatpush1.bf16.msra.mxu0 %v2732
    %4258 = vmatprep.subr.bf16.mxu0 %v2853
    %4259 = vmatpush2.bf16.msra.mxu0 %v2852
    %4260 = vmatprep.subr.bf16.mxu0 %v2845
    %4261 = vmatpush2.bf16.msra.mxu0 %v2844
    %4262 = vmatprep.subr.bf16.mxu0 %v2837
    %4263 = vmatpush2.bf16.msra.mxu0 %v2836
    %4264 = vmatprep.subr.bf16.mxu0 %v2829
    %4265 = vmatpush2.bf16.msra.mxu0 %v2828
    %4266 = vmatprep.subr.bf16.mxu0 %v2821
    %4267 = vmatpush2.bf16.msra.mxu0 %v2820
    %4268 = vmatprep.subr.bf16.mxu0 %v2813
    %4269 = vmatpush2.bf16.msra.mxu0 %v2812
    %4270 = vmatprep.subr.bf16.mxu0 %v2805
    %4271 = vmatpush2.bf16.msra.mxu0 %v2804
    %4272 = vmatprep.subr.bf16.mxu0 %v2797
    %4273 = vmatpush2.bf16.msra.mxu0 %v2796
    %4274 = vmatprep.mubr.bf16.mxu0 %v671
    %4275 = vmatmul.mubr.bf16.gmra.mxu0 %v670
    %v4276 = vpop.f32.mrf.mxu0
    %v4277 = vadd.f32 0.0, %v4276
    %v4278 = vpop.f32.mrf.mxu0
    %v4279 = vadd.f32 0.0, %v4278
    %v4280 = vpop.f32.mrf.mxu0
    %v4281 = vpop.f32.mrf.mxu0
    %4282 = vdwg.mxu0
    %4283 = vmatprep.subr.bf16.mxu0 %v2917
    %4284 = vmatpush1.bf16.msra.mxu0 %v2916
    %4285 = vmatprep.subr.bf16.mxu0 %v2909
    %4286 = vmatpush1.bf16.msra.mxu0 %v2908
    %4287 = vmatprep.subr.bf16.mxu0 %v2901
    %4288 = vmatpush1.bf16.msra.mxu0 %v2900
    %4289 = vmatprep.subr.bf16.mxu0 %v2893
    %4290 = vmatpush1.bf16.msra.mxu0 %v2892
    %4291 = vmatprep.subr.bf16.mxu0 %v2885
    %4292 = vmatpush1.bf16.msra.mxu0 %v2884
    %4293 = vmatprep.subr.bf16.mxu0 %v2877
    %4294 = vmatpush1.bf16.msra.mxu0 %v2876
    %4295 = vmatprep.subr.bf16.mxu0 %v2869
    %4296 = vmatpush1.bf16.msra.mxu0 %v2868
    %4297 = vmatprep.subr.bf16.mxu0 %v2861
    %4298 = vmatpush1.bf16.msra.mxu0 %v2860
    %4299 = vmatprep.subr.bf16.mxu0 %v2981
    %4300 = vmatpush2.bf16.msra.mxu0 %v2980
    %4301 = vmatprep.subr.bf16.mxu0 %v2973
    %4302 = vmatpush2.bf16.msra.mxu0 %v2972
    %4303 = vmatprep.subr.bf16.mxu0 %v2965
    %4304 = vmatpush2.bf16.msra.mxu0 %v2964
    %4305 = vmatprep.subr.bf16.mxu0 %v2957
    %4306 = vmatpush2.bf16.msra.mxu0 %v2956
    %4307 = vmatprep.subr.bf16.mxu0 %v2949
    %4308 = vmatpush2.bf16.msra.mxu0 %v2948
    %4309 = vmatprep.subr.bf16.mxu0 %v2941
    %4310 = vmatpush2.bf16.msra.mxu0 %v2940
    %4311 = vmatprep.subr.bf16.mxu0 %v2933
    %4312 = vmatpush2.bf16.msra.mxu0 %v2932
    %4313 = vmatprep.subr.bf16.mxu0 %v2925
    %4314 = vmatpush2.bf16.msra.mxu0 %v2924
    %4315 = vmatprep.mubr.bf16.mxu0 %v673
    %4316 = vmatmul.mubr.bf16.gmra.mxu0 %v672
    %v4317 = vpop.f32.mrf.mxu0
    %v4318 = vadd.f32 %v4277, %v4317
    %v4319 = vpop.f32.mrf.mxu0
    %v4320 = vadd.f32 %v4279, %v4319
    %v4321 = vpop.f32.mrf.mxu0
    %v4322 = vpop.f32.mrf.mxu0
    %4323 = vdwg.mxu0
    %4324 = vmatprep.subr.bf16.mxu0 %v3045
    %4325 = vmatpush1.bf16.msra.mxu0 %v3044
    %4326 = vmatprep.subr.bf16.mxu0 %v3037
    %4327 = vmatpush1.bf16.msra.mxu0 %v3036
    %4328 = vmatprep.subr.bf16.mxu0 %v3029
    %4329 = vmatpush1.bf16.msra.mxu0 %v3028
    %4330 = vmatprep.subr.bf16.mxu0 %v3021
    %4331 = vmatpush1.bf16.msra.mxu0 %v3020
    %4332 = vmatprep.subr.bf16.mxu0 %v3013
    %4333 = vmatpush1.bf16.msra.mxu0 %v3012
    %4334 = vmatprep.subr.bf16.mxu0 %v3005
    %4335 = vmatpush1.bf16.msra.mxu0 %v3004
    %4336 = vmatprep.subr.bf16.mxu0 %v2997
    %4337 = vmatpush1.bf16.msra.mxu0 %v2996
    %4338 = vmatprep.subr.bf16.mxu0 %v2989
    %4339 = vmatpush1.bf16.msra.mxu0 %v2988
    %4340 = vmatprep.subr.bf16.mxu0 %v3109
    %4341 = vmatpush2.bf16.msra.mxu0 %v3108
    %4342 = vmatprep.subr.bf16.mxu0 %v3101
    %4343 = vmatpush2.bf16.msra.mxu0 %v3100
    %4344 = vmatprep.subr.bf16.mxu0 %v3093
    %4345 = vmatpush2.bf16.msra.mxu0 %v3092
    %4346 = vmatprep.subr.bf16.mxu0 %v3085
    %4347 = vmatpush2.bf16.msra.mxu0 %v3084
    %4348 = vmatprep.subr.bf16.mxu0 %v3077
    %4349 = vmatpush2.bf16.msra.mxu0 %v3076
    %4350 = vmatprep.subr.bf16.mxu0 %v3069
    %4351 = vmatpush2.bf16.msra.mxu0 %v3068
    %4352 = vmatprep.subr.bf16.mxu0 %v3061
    %4353 = vmatpush2.bf16.msra.mxu0 %v3060
    %4354 = vmatprep.subr.bf16.mxu0 %v3053
    %4355 = vmatpush2.bf16.msra.mxu0 %v3052
    %4356 = vmatprep.mubr.bf16.mxu0 %v675
    %4357 = vmatmul.mubr.bf16.gmra.mxu0 %v674
    %v4358 = vpop.f32.mrf.mxu0
    %v4359 = vadd.f32 %v4318, %v4358
    %v4360 = vpop.f32.mrf.mxu0
    %v4361 = vadd.f32 %v4320, %v4360
    %v4362 = vpop.f32.mrf.mxu0
    %v4363 = vpop.f32.mrf.mxu0
    %4364 = vdwg.mxu0
    %4365 = vmatprep.subr.bf16.mxu0 %v3173
    %4366 = vmatpush1.bf16.msra.mxu0 %v3172
    %4367 = vmatprep.subr.bf16.mxu0 %v3165
    %4368 = vmatpush1.bf16.msra.mxu0 %v3164
    %4369 = vmatprep.subr.bf16.mxu0 %v3157
    %4370 = vmatpush1.bf16.msra.mxu0 %v3156
    %4371 = vmatprep.subr.bf16.mxu0 %v3149
    %4372 = vmatpush1.bf16.msra.mxu0 %v3148
    %4373 = vmatprep.subr.bf16.mxu0 %v3141
    %4374 = vmatpush1.bf16.msra.mxu0 %v3140
    %4375 = vmatprep.subr.bf16.mxu0 %v3133
    %4376 = vmatpush1.bf16.msra.mxu0 %v3132
    %4377 = vmatprep.subr.bf16.mxu0 %v3125
    %4378 = vmatpush1.bf16.msra.mxu0 %v3124
    %4379 = vmatprep.subr.bf16.mxu0 %v3117
    %4380 = vmatpush1.bf16.msra.mxu0 %v3116
    %4381 = vmatprep.subr.bf16.mxu0 %v3237
    %4382 = vmatpush2.bf16.msra.mxu0 %v3236
    %4383 = vmatprep.subr.bf16.mxu0 %v3229
    %4384 = vmatpush2.bf16.msra.mxu0 %v3228
    %4385 = vmatprep.subr.bf16.mxu0 %v3221
    %4386 = vmatpush2.bf16.msra.mxu0 %v3220
    %4387 = vmatprep.subr.bf16.mxu0 %v3213
    %4388 = vmatpush2.bf16.msra.mxu0 %v3212
    %4389 = vmatprep.subr.bf16.mxu0 %v3205
    %4390 = vmatpush2.bf16.msra.mxu0 %v3204
    %4391 = vmatprep.subr.bf16.mxu0 %v3197
    %4392 = vmatpush2.bf16.msra.mxu0 %v3196
    %4393 = vmatprep.subr.bf16.mxu0 %v3189
    %4394 = vmatpush2.bf16.msra.mxu0 %v3188
    %4395 = vmatprep.subr.bf16.mxu0 %v3181
    %4396 = vmatpush2.bf16.msra.mxu0 %v3180
    %4397 = vmatprep.mubr.bf16.mxu0 %v677
    %4398 = vmatmul.mubr.bf16.gmra.mxu0 %v676
    %v4399 = vpop.f32.mrf.mxu0
    %v4400 = vadd.f32 %v4359, %v4399
    %v4401 = vpop.f32.mrf.mxu0
    %v4402 = vadd.f32 %v4361, %v4401
    %v4403 = vpop.f32.mrf.mxu0
    %v4404 = vpop.f32.mrf.mxu0
    %4405 = vdwg.mxu0
    %s4406 = scalar_lea.vmem [#allocation9], 2
    %v4407 = vld [vmem:[%s4406] ss:$8 sm:$0xf]
    %v4408 = vld [vmem:[%s4406] ss:$8 sm:$0xf0]
    %v4409 = vor.u32 %v4407, %v4408
    %s4410 = scalar_lea.vmem [#allocation9], 3
    %v4411 = vld [vmem:[%s4410] ss:$8 sm:$0xf]
    %v4412 = vld [vmem:[%s4410] ss:$8 sm:$0xf0]
    %v4413 = vor.u32 %v4411, %v4412
    %v4414 = vrot.slane %v3908, 4
    %v4415 = vadd.f32 %v3908, %v4414
    %v4416 = vrot.slane %v4415, 2
    %v4417 = vadd.f32 %v4415, %v4416
    %v4418 = vrot.slane %v4417, 1
    %v4419 = vadd.f32 %v4417, %v4418
    %v4420 = vrot.slane %v3910, 4
    %v4421 = vadd.f32 %v3910, %v4420
    %v4422 = vrot.slane %v4421, 2
    %v4423 = vadd.f32 %v4421, %v4422
    %v4424 = vrot.slane %v4423, 1
    %v4425 = vadd.f32 %v4423, %v4424
    %v4426 = vrot.slane %v4072, 4
    %v4427 = vadd.f32 %v4072, %v4426
    %v4428 = vrot.slane %v4427, 2
    %v4429 = vadd.f32 %v4427, %v4428
    %v4430 = vrot.slane %v4429, 1
    %v4431 = vadd.f32 %v4429, %v4430
    %v4432 = vrot.slane %v4074, 4
    %v4433 = vadd.f32 %v4074, %v4432
    %v4434 = vrot.slane %v4433, 2
    %v4435 = vadd.f32 %v4433, %v4434
    %v4436 = vrot.slane %v4435, 1
    %v4437 = vadd.f32 %v4435, %v4436
    %v4438 = vrot.slane %v4236, 4
    %v4439 = vadd.f32 %v4236, %v4438
    %v4440 = vrot.slane %v4439, 2
    %v4441 = vadd.f32 %v4439, %v4440
    %v4442 = vrot.slane %v4441, 1
    %v4443 = vadd.f32 %v4441, %v4442
    %v4444 = vrot.slane %v4238, 4
    %v4445 = vadd.f32 %v4238, %v4444
    %v4446 = vrot.slane %v4445, 2
    %v4447 = vadd.f32 %v4445, %v4446
    %v4448 = vrot.slane %v4447, 1
    %v4449 = vadd.f32 %v4447, %v4448
    %v4450 = vrot.slane %v4400, 4
    %v4451 = vadd.f32 %v4400, %v4450
    %v4452 = vrot.slane %v4451, 2
    %v4453 = vadd.f32 %v4451, %v4452
    %v4454 = vrot.slane %v4453, 1
    %v4455 = vadd.f32 %v4453, %v4454
    %v4456 = vrot.slane %v4402, 4
    %v4457 = vadd.f32 %v4402, %v4456
    %v4458 = vrot.slane %v4457, 2
    %v4459 = vadd.f32 %v4457, %v4458
    %v4460 = vrot.slane %v4459, 1
    %v4461 = vadd.f32 %v4459, %v4460
    %v4462 = vmul.f32 %v4419, %v408
    %v4463 = vmul.f32 %v4425, %v408
    %v4464 = vmul.f32 %v4431, %v408
    %v4465 = vmul.f32 %v4437, %v408
    %v4466 = vmul.f32 %v4443, %v408
    %v4467 = vmul.f32 %v4449, %v408
    %v4468 = vmul.f32 %v4455, %v408
    %v4469 = vmul.f32 %v4461, %v408
    %v4470 = vsub.f32 %v3908, %v4462
    %v4471 = vsub.f32 %v3910, %v4463
    %v4472 = vsub.f32 %v4072, %v4464
    %v4473 = vsub.f32 %v4074, %v4465
    %v4474 = vsub.f32 %v4236, %v4466
    %v4475 = vsub.f32 %v4238, %v4467
    %v4476 = vsub.f32 %v4400, %v4468
    %v4477 = vsub.f32 %v4402, %v4469
    %v4478 = vmul.f32 %v4470, %v4470
    %v4479 = vmul.f32 %v4471, %v4471
    %v4480 = vmul.f32 %v4472, %v4472
    %v4481 = vmul.f32 %v4473, %v4473
    %v4482 = vmul.f32 %v4474, %v4474
    %v4483 = vmul.f32 %v4475, %v4475
    %v4484 = vmul.f32 %v4476, %v4476
    %v4485 = vmul.f32 %v4477, %v4477
    %v4486 = vrot.slane %v4478, 4
    %v4487 = vadd.f32 %v4478, %v4486
    %v4488 = vrot.slane %v4487, 2
    %v4489 = vadd.f32 %v4487, %v4488
    %v4490 = vrot.slane %v4489, 1
    %v4491 = vadd.f32 %v4489, %v4490
    %v4492 = vrot.slane %v4479, 4
    %v4493 = vadd.f32 %v4479, %v4492
    %v4494 = vrot.slane %v4493, 2
    %v4495 = vadd.f32 %v4493, %v4494
    %v4496 = vrot.slane %v4495, 1
    %v4497 = vadd.f32 %v4495, %v4496
    %v4498 = vrot.slane %v4480, 4
    %v4499 = vadd.f32 %v4480, %v4498
    %v4500 = vrot.slane %v4499, 2
    %v4501 = vadd.f32 %v4499, %v4500
    %v4502 = vrot.slane %v4501, 1
    %v4503 = vadd.f32 %v4501, %v4502
    %v4504 = vrot.slane %v4481, 4
    %v4505 = vadd.f32 %v4481, %v4504
    %v4506 = vrot.slane %v4505, 2
    %v4507 = vadd.f32 %v4505, %v4506
    %v4508 = vrot.slane %v4507, 1
    %v4509 = vadd.f32 %v4507, %v4508
    %v4510 = vrot.slane %v4482, 4
    %v4511 = vadd.f32 %v4482, %v4510
    %v4512 = vrot.slane %v4511, 2
    %v4513 = vadd.f32 %v4511, %v4512
    %v4514 = vrot.slane %v4513, 1
    %v4515 = vadd.f32 %v4513, %v4514
    %v4516 = vrot.slane %v4483, 4
    %v4517 = vadd.f32 %v4483, %v4516
    %v4518 = vrot.slane %v4517, 2
    %v4519 = vadd.f32 %v4517, %v4518
    %v4520 = vrot.slane %v4519, 1
    %v4521 = vadd.f32 %v4519, %v4520
    %v4522 = vrot.slane %v4484, 4
    %v4523 = vadd.f32 %v4484, %v4522
    %v4524 = vrot.slane %v4523, 2
    %v4525 = vadd.f32 %v4523, %v4524
    %v4526 = vrot.slane %v4525, 1
    %v4527 = vadd.f32 %v4525, %v4526
    %v4528 = vrot.slane %v4485, 4
    %v4529 = vadd.f32 %v4485, %v4528
    %v4530 = vrot.slane %v4529, 2
    %v4531 = vadd.f32 %v4529, %v4530
    %v4532 = vrot.slane %v4531, 1
    %v4533 = vadd.f32 %v4531, %v4532
    %v4534 = vmul.f32 %v4491, %v408
    %v4535 = vmul.f32 %v4497, %v408
    %v4536 = vmul.f32 %v4503, %v408
    %v4537 = vmul.f32 %v4509, %v408
    %v4538 = vmul.f32 %v4515, %v408
    %v4539 = vmul.f32 %v4521, %v408
    %v4540 = vmul.f32 %v4527, %v408
    %v4541 = vmul.f32 %v4533, %v408
    %v4542 = vadd.f32 %v4534, 1e-05
    %v4543 = vadd.f32 %v4535, 1e-05
    %v4544 = vadd.f32 %v4536, 1e-05
    %v4545 = vadd.f32 %v4537, 1e-05
    %v4546 = vadd.f32 %v4538, 1e-05
    %v4547 = vadd.f32 %v4539, 1e-05
    %v4548 = vadd.f32 %v4540, 1e-05
    %v4549 = vadd.f32 %v4541, 1e-05
    %v4550 = vrsqrt.pop %v4542
    %v4551 = vrsqrt.pop %v4543
    %v4552 = vrsqrt.pop %v4544
    %v4553 = vrsqrt.pop %v4545
    %v4554 = vrsqrt.pop %v4546
    %v4555 = vrsqrt.pop %v4547
    %v4556 = vrsqrt.pop %v4548
    %v4557 = vrsqrt.pop %v4549
    %v4566 = vcombine.low %v4550, %v4551
    %v4567 = vcombine.low %v4552, %v4553
    %v4568 = vcombine.low %v4554, %v4555
    %v4569 = vcombine.low %v4556, %v4557
    %v4571 = vunpack.c.l.s4 1966171168
    %v4572 = vunpack.c.0.s8 %v4571
    %v4573 = vlaneseq
    %v4574 = vshrl.u32 %v4573, 7
    %v4575 = vsub.s32 %v4572, %v4574
    %v4576 = vrot.slane %v4566, %v4575
    %v4578 = vunpack.c.l.s4 1966171168
    %v4579 = vunpack.c.0.s8 %v4578
    %v4580 = vlaneseq
    %v4581 = vshrl.u32 %v4580, 7
    %v4582 = vsub.s32 %v4579, %v4581
    %v4583 = vrot.slane %v4567, %v4582
    %v4585 = vunpack.c.l.s4 1966171168
    %v4586 = vunpack.c.0.s8 %v4585
    %v4587 = vlaneseq
    %v4588 = vshrl.u32 %v4587, 7
    %v4589 = vsub.s32 %v4586, %v4588
    %v4590 = vrot.slane %v4568, %v4589
    %v4592 = vunpack.c.l.s4 1966171168
    %v4593 = vunpack.c.0.s8 %v4592
    %v4594 = vlaneseq
    %v4595 = vshrl.u32 %v4594, 7
    %v4596 = vsub.s32 %v4593, %v4595
    %v4597 = vrot.slane %v4569, %v4596
    %v4598 = vcombine.low %v4576, %v4583
    %v4599 = vcombine.low %v4590, %v4597
    %v4601 = vunpack.c.l.s4 1966171168
    %v4602 = vunpack.c.0.s8 %v4601
    %v4603 = vlaneseq
    %v4604 = vshrl.u32 %v4603, 7
    %v4605 = vsub.s32 %v4602, %v4604
    %v4606 = vrot.slane %v4598, %v4605
    %v4608 = vunpack.c.l.s4 1966171168
    %v4609 = vunpack.c.0.s8 %v4608
    %v4610 = vlaneseq
    %v4611 = vshrl.u32 %v4610, 7
    %v4612 = vsub.s32 %v4609, %v4611
    %v4613 = vrot.slane %v4599, %v4612
    %v4614 = vcombine.low %v4606, %v4613
    %v4616 = vmul.f32 %v4409, %v4614
    %v4618 = vlaneseq
    %v4619 = vshrl.u32 %v4618, 7
    %v4620 = vsub.s32 0, %v4619
    %v4621 = vrot.slane %v4616, %v4620
    %v4622 = vlaneseq
    %v4623 = vshrl.u32 %v4622, 7
    %v4624 = vsub.s32 1, %v4623
    %v4625 = vrot.slane %v4616, %v4624
    %v4626 = vlaneseq
    %v4627 = vshrl.u32 %v4626, 7
    %v4628 = vsub.s32 2, %v4627
    %v4629 = vrot.slane %v4616, %v4628
    %v4630 = vlaneseq
    %v4631 = vshrl.u32 %v4630, 7
    %v4632 = vsub.s32 3, %v4631
    %v4633 = vrot.slane %v4616, %v4632
    %v4634 = vlaneseq
    %v4635 = vshrl.u32 %v4634, 7
    %v4636 = vsub.s32 4, %v4635
    %v4637 = vrot.slane %v4616, %v4636
    %v4638 = vlaneseq
    %v4639 = vshrl.u32 %v4638, 7
    %v4640 = vsub.s32 5, %v4639
    %v4641 = vrot.slane %v4616, %v4640
    %v4642 = vlaneseq
    %v4643 = vshrl.u32 %v4642, 7
    %v4644 = vsub.s32 6, %v4643
    %v4645 = vrot.slane %v4616, %v4644
    %v4646 = vlaneseq
    %v4647 = vshrl.u32 %v4646, 7
    %v4648 = vsub.s32 7, %v4647
    %v4649 = vrot.slane %v4616, %v4648
    %v4658 = vmul.f32 %v4470, %v4621
    %v4659 = vmul.f32 %v4471, %v4625
    %v4660 = vmul.f32 %v4472, %v4629
    %v4661 = vmul.f32 %v4473, %v4633
    %v4662 = vmul.f32 %v4474, %v4637
    %v4663 = vmul.f32 %v4475, %v4641
    %v4664 = vmul.f32 %v4476, %v4645
    %v4665 = vmul.f32 %v4477, %v4649
    %v4667 = vlaneseq
    %v4668 = vshrl.u32 %v4667, 7
    %v4669 = vsub.s32 0, %v4668
    %v4670 = vrot.slane %v4413, %v4669
    %v4671 = vlaneseq
    %v4672 = vshrl.u32 %v4671, 7
    %v4673 = vsub.s32 1, %v4672
    %v4674 = vrot.slane %v4413, %v4673
    %v4675 = vlaneseq
    %v4676 = vshrl.u32 %v4675, 7
    %v4677 = vsub.s32 2, %v4676
    %v4678 = vrot.slane %v4413, %v4677
    %v4679 = vlaneseq
    %v4680 = vshrl.u32 %v4679, 7
    %v4681 = vsub.s32 3, %v4680
    %v4682 = vrot.slane %v4413, %v4681
    %v4683 = vlaneseq
    %v4684 = vshrl.u32 %v4683, 7
    %v4685 = vsub.s32 4, %v4684
    %v4686 = vrot.slane %v4413, %v4685
    %v4687 = vlaneseq
    %v4688 = vshrl.u32 %v4687, 7
    %v4689 = vsub.s32 5, %v4688
    %v4690 = vrot.slane %v4413, %v4689
    %v4691 = vlaneseq
    %v4692 = vshrl.u32 %v4691, 7
    %v4693 = vsub.s32 6, %v4692
    %v4694 = vrot.slane %v4413, %v4693
    %v4695 = vlaneseq
    %v4696 = vshrl.u32 %v4695, 7
    %v4697 = vsub.s32 7, %v4696
    %v4698 = vrot.slane %v4413, %v4697
    %v4707 = vadd.f32 %v4658, %v4670
    %v4708 = vadd.f32 %v4659, %v4674
    %v4709 = vadd.f32 %v4660, %v4678
    %v4710 = vadd.f32 %v4661, %v4682
    %v4711 = vadd.f32 %v4662, %v4686
    %v4712 = vadd.f32 %v4663, %v4690
    %v4713 = vadd.f32 %v4664, %v4694
    %v4714 = vadd.f32 %v4665, %v4698
    %v4715 = vmax.f32 %v4707, 0.0
    %v4716 = vmax.f32 %v4708, 0.0
    %v4717 = vmax.f32 %v4709, 0.0
    %v4718 = vmax.f32 %v4710, 0.0
    %v4719 = vmax.f32 %v4711, 0.0
    %v4720 = vmax.f32 %v4712, 0.0
    %v4721 = vmax.f32 %v4713, 0.0
    %v4722 = vmax.f32 %v4714, 0.0
    %v4723 = vpack.c.bf16 %v4715, %v4715
    %v4724 = vpack.c.bf16 %v4716, %v4716
    %v4725 = vpack.c.bf16 %v4717, %v4717
    %v4726 = vpack.c.bf16 %v4718, %v4718
    %v4727 = vpack.c.bf16 %v4719, %v4719
    %v4728 = vpack.c.bf16 %v4720, %v4720
    %v4729 = vpack.c.bf16 %v4721, %v4721
    %v4730 = vpack.c.bf16 %v4722, %v4722
    %v4731 = vld [vmem:[#allocation6 + $0x20] sm:$0xff]
    %v4732 = vld [vmem:[#allocation6 + $0x28] sm:$0xff]
    %v4733 = vld [vmem:[#allocation6 + $0x30] sm:$0xff]
    %v4734 = vld [vmem:[#allocation6 + $0x38] sm:$0xff]
    %v4735 = vld [vmem:[#allocation6 + $0x60] sm:$0xff]
    %v4736 = vld [vmem:[#allocation6 + $0x68] sm:$0xff]
    %v4737 = vld [vmem:[#allocation6 + $0x70] sm:$0xff]
    %v4738 = vld [vmem:[#allocation6 + $0x78] sm:$0xff]
    %v4739 = vld [vmem:[#allocation6 + $0xa0] sm:$0xff]
    %v4740 = vld [vmem:[#allocation6 + $0xa8] sm:$0xff]
    %v4741 = vld [vmem:[#allocation6 + $0xb0] sm:$0xff]
    %v4742 = vld [vmem:[#allocation6 + $0xb8] sm:$0xff]
    %v4743 = vld [vmem:[#allocation6 + $0xe0] sm:$0xff]
    %v4744 = vld [vmem:[#allocation6 + $0xe8] sm:$0xff]
    %v4745 = vld [vmem:[#allocation6 + $0xf0] sm:$0xff]
    %v4746 = vld [vmem:[#allocation6 + $0xf8] sm:$0xff]
    %v4747 = vld [vmem:[#allocation6 + $0x120] sm:$0xff]
    %v4748 = vld [vmem:[#allocation6 + $0x128] sm:$0xff]
    %v4749 = vld [vmem:[#allocation6 + $0x130] sm:$0xff]
    %v4750 = vld [vmem:[#allocation6 + $0x138] sm:$0xff]
    %v4751 = vld [vmem:[#allocation6 + $0x160] sm:$0xff]
    %v4752 = vld [vmem:[#allocation6 + $0x168] sm:$0xff]
    %v4753 = vld [vmem:[#allocation6 + $0x170] sm:$0xff]
    %v4754 = vld [vmem:[#allocation6 + $0x178] sm:$0xff]
    %v4755 = vld [vmem:[#allocation6 + $0x1a0] sm:$0xff]
    %v4756 = vld [vmem:[#allocation6 + $0x1a8] sm:$0xff]
    %v4757 = vld [vmem:[#allocation6 + $0x1b0] sm:$0xff]
    %v4758 = vld [vmem:[#allocation6 + $0x1b8] sm:$0xff]
    %v4759 = vld [vmem:[#allocation6 + $0x1e0] sm:$0xff]
    %v4760 = vld [vmem:[#allocation6 + $0x1e8] sm:$0xff]
    %v4761 = vld [vmem:[#allocation6 + $0x1f0] sm:$0xff]
    %v4762 = vld [vmem:[#allocation6 + $0x1f8] sm:$0xff]
    %v4763 = vld [vmem:[#allocation6 + $0x220] sm:$0xff]
    %v4764 = vld [vmem:[#allocation6 + $0x228] sm:$0xff]
    %v4765 = vld [vmem:[#allocation6 + $0x230] sm:$0xff]
    %v4766 = vld [vmem:[#allocation6 + $0x238] sm:$0xff]
    %v4767 = vld [vmem:[#allocation6 + $0x260] sm:$0xff]
    %v4768 = vld [vmem:[#allocation6 + $0x268] sm:$0xff]
    %v4769 = vld [vmem:[#allocation6 + $0x270] sm:$0xff]
    %v4770 = vld [vmem:[#allocation6 + $0x278] sm:$0xff]
    %v4771 = vld [vmem:[#allocation6 + $0x2a0] sm:$0xff]
    %v4772 = vld [vmem:[#allocation6 + $0x2a8] sm:$0xff]
    %v4773 = vld [vmem:[#allocation6 + $0x2b0] sm:$0xff]
    %v4774 = vld [vmem:[#allocation6 + $0x2b8] sm:$0xff]
    %v4775 = vld [vmem:[#allocation6 + $0x2e0] sm:$0xff]
    %v4776 = vld [vmem:[#allocation6 + $0x2e8] sm:$0xff]
    %v4777 = vld [vmem:[#allocation6 + $0x2f0] sm:$0xff]
    %v4778 = vld [vmem:[#allocation6 + $0x2f8] sm:$0xff]
    %v4779 = vld [vmem:[#allocation6 + $0x320] sm:$0xff]
    %v4780 = vld [vmem:[#allocation6 + $0x328] sm:$0xff]
    %v4781 = vld [vmem:[#allocation6 + $0x330] sm:$0xff]
    %v4782 = vld [vmem:[#allocation6 + $0x338] sm:$0xff]
    %v4783 = vld [vmem:[#allocation6 + $0x360] sm:$0xff]
    %v4784 = vld [vmem:[#allocation6 + $0x368] sm:$0xff]
    %v4785 = vld [vmem:[#allocation6 + $0x370] sm:$0xff]
    %v4786 = vld [vmem:[#allocation6 + $0x378] sm:$0xff]
    %v4787 = vld [vmem:[#allocation6 + $0x3a0] sm:$0xff]
    %v4788 = vld [vmem:[#allocation6 + $0x3a8] sm:$0xff]
    %v4789 = vld [vmem:[#allocation6 + $0x3b0] sm:$0xff]
    %v4790 = vld [vmem:[#allocation6 + $0x3b8] sm:$0xff]
    %v4791 = vld [vmem:[#allocation6 + $0x3e0] sm:$0xff]
    %v4792 = vld [vmem:[#allocation6 + $0x3e8] sm:$0xff]
    %v4793 = vld [vmem:[#allocation6 + $0x3f0] sm:$0xff]
    %v4794 = vld [vmem:[#allocation6 + $0x3f8] sm:$0xff]
    %v4795 = vld [vmem:[#allocation6 + $0x420] sm:$0xff]
    %v4796 = vld [vmem:[#allocation6 + $0x428] sm:$0xff]
    %v4797 = vld [vmem:[#allocation6 + $0x430] sm:$0xff]
    %v4798 = vld [vmem:[#allocation6 + $0x438] sm:$0xff]
    %v4799 = vld [vmem:[#allocation6 + $0x460] sm:$0xff]
    %v4800 = vld [vmem:[#allocation6 + $0x468] sm:$0xff]
    %v4801 = vld [vmem:[#allocation6 + $0x470] sm:$0xff]
    %v4802 = vld [vmem:[#allocation6 + $0x478] sm:$0xff]
    %v4803 = vld [vmem:[#allocation6 + $0x4a0] sm:$0xff]
    %v4804 = vld [vmem:[#allocation6 + $0x4a8] sm:$0xff]
    %v4805 = vld [vmem:[#allocation6 + $0x4b0] sm:$0xff]
    %v4806 = vld [vmem:[#allocation6 + $0x4b8] sm:$0xff]
    %v4807 = vld [vmem:[#allocation6 + $0x4e0] sm:$0xff]
    %v4808 = vld [vmem:[#allocation6 + $0x4e8] sm:$0xff]
    %v4809 = vld [vmem:[#allocation6 + $0x4f0] sm:$0xff]
    %v4810 = vld [vmem:[#allocation6 + $0x4f8] sm:$0xff]
    %v4811 = vld [vmem:[#allocation6 + $0x520] sm:$0xff]
    %v4812 = vld [vmem:[#allocation6 + $0x528] sm:$0xff]
    %v4813 = vld [vmem:[#allocation6 + $0x530] sm:$0xff]
    %v4814 = vld [vmem:[#allocation6 + $0x538] sm:$0xff]
    %v4815 = vld [vmem:[#allocation6 + $0x560] sm:$0xff]
    %v4816 = vld [vmem:[#allocation6 + $0x568] sm:$0xff]
    %v4817 = vld [vmem:[#allocation6 + $0x570] sm:$0xff]
    %v4818 = vld [vmem:[#allocation6 + $0x578] sm:$0xff]
    %v4819 = vld [vmem:[#allocation6 + $0x5a0] sm:$0xff]
    %v4820 = vld [vmem:[#allocation6 + $0x5a8] sm:$0xff]
    %v4821 = vld [vmem:[#allocation6 + $0x5b0] sm:$0xff]
    %v4822 = vld [vmem:[#allocation6 + $0x5b8] sm:$0xff]
    %v4823 = vld [vmem:[#allocation6 + $0x5e0] sm:$0xff]
    %v4824 = vld [vmem:[#allocation6 + $0x5e8] sm:$0xff]
    %v4825 = vld [vmem:[#allocation6 + $0x5f0] sm:$0xff]
    %v4826 = vld [vmem:[#allocation6 + $0x5f8] sm:$0xff]
    %v4827 = vld [vmem:[#allocation6 + $0x620] sm:$0xff]
    %v4828 = vld [vmem:[#allocation6 + $0x628] sm:$0xff]
    %v4829 = vld [vmem:[#allocation6 + $0x630] sm:$0xff]
    %v4830 = vld [vmem:[#allocation6 + $0x638] sm:$0xff]
    %v4831 = vld [vmem:[#allocation6 + $0x660] sm:$0xff]
    %v4832 = vld [vmem:[#allocation6 + $0x668] sm:$0xff]
    %v4833 = vld [vmem:[#allocation6 + $0x670] sm:$0xff]
    %v4834 = vld [vmem:[#allocation6 + $0x678] sm:$0xff]
    %v4835 = vld [vmem:[#allocation6 + $0x6a0] sm:$0xff]
    %v4836 = vld [vmem:[#allocation6 + $0x6a8] sm:$0xff]
    %v4837 = vld [vmem:[#allocation6 + $0x6b0] sm:$0xff]
    %v4838 = vld [vmem:[#allocation6 + $0x6b8] sm:$0xff]
    %v4839 = vld [vmem:[#allocation6 + $0x6e0] sm:$0xff]
    %v4840 = vld [vmem:[#allocation6 + $0x6e8] sm:$0xff]
    %v4841 = vld [vmem:[#allocation6 + $0x6f0] sm:$0xff]
    %v4842 = vld [vmem:[#allocation6 + $0x6f8] sm:$0xff]
    %v4843 = vld [vmem:[#allocation6 + $0x720] sm:$0xff]
    %v4844 = vld [vmem:[#allocation6 + $0x728] sm:$0xff]
    %v4845 = vld [vmem:[#allocation6 + $0x730] sm:$0xff]
    %v4846 = vld [vmem:[#allocation6 + $0x738] sm:$0xff]
    %v4847 = vld [vmem:[#allocation6 + $0x760] sm:$0xff]
    %v4848 = vld [vmem:[#allocation6 + $0x768] sm:$0xff]
    %v4849 = vld [vmem:[#allocation6 + $0x770] sm:$0xff]
    %v4850 = vld [vmem:[#allocation6 + $0x778] sm:$0xff]
    %v4851 = vld [vmem:[#allocation6 + $0x7a0] sm:$0xff]
    %v4852 = vld [vmem:[#allocation6 + $0x7a8] sm:$0xff]
    %v4853 = vld [vmem:[#allocation6 + $0x7b0] sm:$0xff]
    %v4854 = vld [vmem:[#allocation6 + $0x7b8] sm:$0xff]
    %v4855 = vld [vmem:[#allocation6 + $0x7e0] sm:$0xff]
    %v4856 = vld [vmem:[#allocation6 + $0x7e8] sm:$0xff]
    %v4857 = vld [vmem:[#allocation6 + $0x7f0] sm:$0xff]
    %v4858 = vld [vmem:[#allocation6 + $0x7f8] sm:$0xff]
    %v4859 = vld [vmem:[#allocation6 + $0x820] sm:$0xff]
    %v4860 = vld [vmem:[#allocation6 + $0x828] sm:$0xff]
    %v4861 = vld [vmem:[#allocation6 + $0x830] sm:$0xff]
    %v4862 = vld [vmem:[#allocation6 + $0x838] sm:$0xff]
    %v4863 = vld [vmem:[#allocation6 + $0x860] sm:$0xff]
    %v4864 = vld [vmem:[#allocation6 + $0x868] sm:$0xff]
    %v4865 = vld [vmem:[#allocation6 + $0x870] sm:$0xff]
    %v4866 = vld [vmem:[#allocation6 + $0x878] sm:$0xff]
    %v4867 = vld [vmem:[#allocation6 + $0x8a0] sm:$0xff]
    %v4868 = vld [vmem:[#allocation6 + $0x8a8] sm:$0xff]
    %v4869 = vld [vmem:[#allocation6 + $0x8b0] sm:$0xff]
    %v4870 = vld [vmem:[#allocation6 + $0x8b8] sm:$0xff]
    %v4871 = vld [vmem:[#allocation6 + $0x8e0] sm:$0xff]
    %v4872 = vld [vmem:[#allocation6 + $0x8e8] sm:$0xff]
    %v4873 = vld [vmem:[#allocation6 + $0x8f0] sm:$0xff]
    %v4874 = vld [vmem:[#allocation6 + $0x8f8] sm:$0xff]
    %v4875 = vld [vmem:[#allocation6 + $0x920] sm:$0xff]
    %v4876 = vld [vmem:[#allocation6 + $0x928] sm:$0xff]
    %v4877 = vld [vmem:[#allocation6 + $0x930] sm:$0xff]
    %v4878 = vld [vmem:[#allocation6 + $0x938] sm:$0xff]
    %v4879 = vld [vmem:[#allocation6 + $0x960] sm:$0xff]
    %v4880 = vld [vmem:[#allocation6 + $0x968] sm:$0xff]
    %v4881 = vld [vmem:[#allocation6 + $0x970] sm:$0xff]
    %v4882 = vld [vmem:[#allocation6 + $0x978] sm:$0xff]
    %v4883 = vld [vmem:[#allocation6 + $0x9a0] sm:$0xff]
    %v4884 = vld [vmem:[#allocation6 + $0x9a8] sm:$0xff]
    %v4885 = vld [vmem:[#allocation6 + $0x9b0] sm:$0xff]
    %v4886 = vld [vmem:[#allocation6 + $0x9b8] sm:$0xff]
    %v4887 = vld [vmem:[#allocation6 + $0x9e0] sm:$0xff]
    %v4888 = vld [vmem:[#allocation6 + $0x9e8] sm:$0xff]
    %v4889 = vld [vmem:[#allocation6 + $0x9f0] sm:$0xff]
    %v4890 = vld [vmem:[#allocation6 + $0x9f8] sm:$0xff]
    %v4891 = vld [vmem:[#allocation6 + $0xa20] sm:$0xff]
    %v4892 = vld [vmem:[#allocation6 + $0xa28] sm:$0xff]
    %v4893 = vld [vmem:[#allocation6 + $0xa30] sm:$0xff]
    %v4894 = vld [vmem:[#allocation6 + $0xa38] sm:$0xff]
    %v4895 = vld [vmem:[#allocation6 + $0xa60] sm:$0xff]
    %v4896 = vld [vmem:[#allocation6 + $0xa68] sm:$0xff]
    %v4897 = vld [vmem:[#allocation6 + $0xa70] sm:$0xff]
    %v4898 = vld [vmem:[#allocation6 + $0xa78] sm:$0xff]
    %v4899 = vld [vmem:[#allocation6 + $0xaa0] sm:$0xff]
    %v4900 = vld [vmem:[#allocation6 + $0xaa8] sm:$0xff]
    %v4901 = vld [vmem:[#allocation6 + $0xab0] sm:$0xff]
    %v4902 = vld [vmem:[#allocation6 + $0xab8] sm:$0xff]
    %v4903 = vld [vmem:[#allocation6 + $0xae0] sm:$0xff]
    %v4904 = vld [vmem:[#allocation6 + $0xae8] sm:$0xff]
    %v4905 = vld [vmem:[#allocation6 + $0xaf0] sm:$0xff]
    %v4906 = vld [vmem:[#allocation6 + $0xaf8] sm:$0xff]
    %v4907 = vld [vmem:[#allocation6 + $0xb20] sm:$0xff]
    %v4908 = vld [vmem:[#allocation6 + $0xb28] sm:$0xff]
    %v4909 = vld [vmem:[#allocation6 + $0xb30] sm:$0xff]
    %v4910 = vld [vmem:[#allocation6 + $0xb38] sm:$0xff]
    %v4911 = vld [vmem:[#allocation6 + $0xb60] sm:$0xff]
    %v4912 = vld [vmem:[#allocation6 + $0xb68] sm:$0xff]
    %v4913 = vld [vmem:[#allocation6 + $0xb70] sm:$0xff]
    %v4914 = vld [vmem:[#allocation6 + $0xb78] sm:$0xff]
    %v4915 = vld [vmem:[#allocation6 + $0xba0] sm:$0xff]
    %v4916 = vld [vmem:[#allocation6 + $0xba8] sm:$0xff]
    %v4917 = vld [vmem:[#allocation6 + $0xbb0] sm:$0xff]
    %v4918 = vld [vmem:[#allocation6 + $0xbb8] sm:$0xff]
    %v4919 = vld [vmem:[#allocation6 + $0xbe0] sm:$0xff]
    %v4920 = vld [vmem:[#allocation6 + $0xbe8] sm:$0xff]
    %v4921 = vld [vmem:[#allocation6 + $0xbf0] sm:$0xff]
    %v4922 = vld [vmem:[#allocation6 + $0xbf8] sm:$0xff]
    %v4923 = vld [vmem:[#allocation6 + $0xc20] sm:$0xff]
    %v4924 = vld [vmem:[#allocation6 + $0xc28] sm:$0xff]
    %v4925 = vld [vmem:[#allocation6 + $0xc30] sm:$0xff]
    %v4926 = vld [vmem:[#allocation6 + $0xc38] sm:$0xff]
    %v4927 = vld [vmem:[#allocation6 + $0xc60] sm:$0xff]
    %v4928 = vld [vmem:[#allocation6 + $0xc68] sm:$0xff]
    %v4929 = vld [vmem:[#allocation6 + $0xc70] sm:$0xff]
    %v4930 = vld [vmem:[#allocation6 + $0xc78] sm:$0xff]
    %v4931 = vld [vmem:[#allocation6 + $0xca0] sm:$0xff]
    %v4932 = vld [vmem:[#allocation6 + $0xca8] sm:$0xff]
    %v4933 = vld [vmem:[#allocation6 + $0xcb0] sm:$0xff]
    %v4934 = vld [vmem:[#allocation6 + $0xcb8] sm:$0xff]
    %v4935 = vld [vmem:[#allocation6 + $0xce0] sm:$0xff]
    %v4936 = vld [vmem:[#allocation6 + $0xce8] sm:$0xff]
    %v4937 = vld [vmem:[#allocation6 + $0xcf0] sm:$0xff]
    %v4938 = vld [vmem:[#allocation6 + $0xcf8] sm:$0xff]
    %v4939 = vld [vmem:[#allocation6 + $0xd20] sm:$0xff]
    %v4940 = vld [vmem:[#allocation6 + $0xd28] sm:$0xff]
    %v4941 = vld [vmem:[#allocation6 + $0xd30] sm:$0xff]
    %v4942 = vld [vmem:[#allocation6 + $0xd38] sm:$0xff]
    %v4943 = vld [vmem:[#allocation6 + $0xd60] sm:$0xff]
    %v4944 = vld [vmem:[#allocation6 + $0xd68] sm:$0xff]
    %v4945 = vld [vmem:[#allocation6 + $0xd70] sm:$0xff]
    %v4946 = vld [vmem:[#allocation6 + $0xd78] sm:$0xff]
    %v4947 = vld [vmem:[#allocation6 + $0xda0] sm:$0xff]
    %v4948 = vld [vmem:[#allocation6 + $0xda8] sm:$0xff]
    %v4949 = vld [vmem:[#allocation6 + $0xdb0] sm:$0xff]
    %v4950 = vld [vmem:[#allocation6 + $0xdb8] sm:$0xff]
    %v4951 = vld [vmem:[#allocation6 + $0xde0] sm:$0xff]
    %v4952 = vld [vmem:[#allocation6 + $0xde8] sm:$0xff]
    %v4953 = vld [vmem:[#allocation6 + $0xdf0] sm:$0xff]
    %v4954 = vld [vmem:[#allocation6 + $0xdf8] sm:$0xff]
    %v4955 = vld [vmem:[#allocation6 + $0xe20] sm:$0xff]
    %v4956 = vld [vmem:[#allocation6 + $0xe28] sm:$0xff]
    %v4957 = vld [vmem:[#allocation6 + $0xe30] sm:$0xff]
    %v4958 = vld [vmem:[#allocation6 + $0xe38] sm:$0xff]
    %v4959 = vld [vmem:[#allocation6 + $0xe60] sm:$0xff]
    %v4960 = vld [vmem:[#allocation6 + $0xe68] sm:$0xff]
    %v4961 = vld [vmem:[#allocation6 + $0xe70] sm:$0xff]
    %v4962 = vld [vmem:[#allocation6 + $0xe78] sm:$0xff]
    %v4963 = vld [vmem:[#allocation6 + $0xea0] sm:$0xff]
    %v4964 = vld [vmem:[#allocation6 + $0xea8] sm:$0xff]
    %v4965 = vld [vmem:[#allocation6 + $0xeb0] sm:$0xff]
    %v4966 = vld [vmem:[#allocation6 + $0xeb8] sm:$0xff]
    %v4967 = vld [vmem:[#allocation6 + $0xee0] sm:$0xff]
    %v4968 = vld [vmem:[#allocation6 + $0xee8] sm:$0xff]
    %v4969 = vld [vmem:[#allocation6 + $0xef0] sm:$0xff]
    %v4970 = vld [vmem:[#allocation6 + $0xef8] sm:$0xff]
    %v4971 = vld [vmem:[#allocation6 + $0xf20] sm:$0xff]
    %v4972 = vld [vmem:[#allocation6 + $0xf28] sm:$0xff]
    %v4973 = vld [vmem:[#allocation6 + $0xf30] sm:$0xff]
    %v4974 = vld [vmem:[#allocation6 + $0xf38] sm:$0xff]
    %v4975 = vld [vmem:[#allocation6 + $0xf60] sm:$0xff]
    %v4976 = vld [vmem:[#allocation6 + $0xf68] sm:$0xff]
    %v4977 = vld [vmem:[#allocation6 + $0xf70] sm:$0xff]
    %v4978 = vld [vmem:[#allocation6 + $0xf78] sm:$0xff]
    %v4979 = vld [vmem:[#allocation6 + $0xfa0] sm:$0xff]
    %v4980 = vld [vmem:[#allocation6 + $0xfa8] sm:$0xff]
    %v4981 = vld [vmem:[#allocation6 + $0xfb0] sm:$0xff]
    %v4982 = vld [vmem:[#allocation6 + $0xfb8] sm:$0xff]
    %v4983 = vld [vmem:[#allocation6 + $0xfe0] sm:$0xff]
    %v4984 = vld [vmem:[#allocation6 + $0xfe8] sm:$0xff]
    %v4985 = vld [vmem:[#allocation6 + $0xff0] sm:$0xff]
    %v4986 = vld [vmem:[#allocation6 + $0xff8] sm:$0xff]
    %v4987 = vld [vmem:[#allocation6 + $0x1020] sm:$0xff]
    %v4988 = vld [vmem:[#allocation6 + $0x1028] sm:$0xff]
    %v4989 = vld [vmem:[#allocation6 + $0x1030] sm:$0xff]
    %v4990 = vld [vmem:[#allocation6 + $0x1038] sm:$0xff]
    %v4991 = vld [vmem:[#allocation6 + $0x1060] sm:$0xff]
    %v4992 = vld [vmem:[#allocation6 + $0x1068] sm:$0xff]
    %v4993 = vld [vmem:[#allocation6 + $0x1070] sm:$0xff]
    %v4994 = vld [vmem:[#allocation6 + $0x1078] sm:$0xff]
    %v4995 = vld [vmem:[#allocation6 + $0x10a0] sm:$0xff]
    %v4996 = vld [vmem:[#allocation6 + $0x10a8] sm:$0xff]
    %v4997 = vld [vmem:[#allocation6 + $0x10b0] sm:$0xff]
    %v4998 = vld [vmem:[#allocation6 + $0x10b8] sm:$0xff]
    %v4999 = vld [vmem:[#allocation6 + $0x10e0] sm:$0xff]
    %v5000 = vld [vmem:[#allocation6 + $0x10e8] sm:$0xff]
    %v5001 = vld [vmem:[#allocation6 + $0x10f0] sm:$0xff]
    %v5002 = vld [vmem:[#allocation6 + $0x10f8] sm:$0xff]
    %v5003 = vld [vmem:[#allocation6 + $0x1120] sm:$0xff]
    %v5004 = vld [vmem:[#allocation6 + $0x1128] sm:$0xff]
    %v5005 = vld [vmem:[#allocation6 + $0x1130] sm:$0xff]
    %v5006 = vld [vmem:[#allocation6 + $0x1138] sm:$0xff]
    %v5007 = vld [vmem:[#allocation6 + $0x1160] sm:$0xff]
    %v5008 = vld [vmem:[#allocation6 + $0x1168] sm:$0xff]
    %v5009 = vld [vmem:[#allocation6 + $0x1170] sm:$0xff]
    %v5010 = vld [vmem:[#allocation6 + $0x1178] sm:$0xff]
    %v5011 = vld [vmem:[#allocation6 + $0x11a0] sm:$0xff]
    %v5012 = vld [vmem:[#allocation6 + $0x11a8] sm:$0xff]
    %v5013 = vld [vmem:[#allocation6 + $0x11b0] sm:$0xff]
    %v5014 = vld [vmem:[#allocation6 + $0x11b8] sm:$0xff]
    %v5015 = vld [vmem:[#allocation6 + $0x11e0] sm:$0xff]
    %v5016 = vld [vmem:[#allocation6 + $0x11e8] sm:$0xff]
    %v5017 = vld [vmem:[#allocation6 + $0x11f0] sm:$0xff]
    %v5018 = vld [vmem:[#allocation6 + $0x11f8] sm:$0xff]
    %v5019 = vld [vmem:[#allocation6 + $0x1220] sm:$0xff]
    %v5020 = vld [vmem:[#allocation6 + $0x1228] sm:$0xff]
    %v5021 = vld [vmem:[#allocation6 + $0x1230] sm:$0xff]
    %v5022 = vld [vmem:[#allocation6 + $0x1238] sm:$0xff]
    %v5023 = vld [vmem:[#allocation6 + $0x1260] sm:$0xff]
    %v5024 = vld [vmem:[#allocation6 + $0x1268] sm:$0xff]
    %v5025 = vld [vmem:[#allocation6 + $0x1270] sm:$0xff]
    %v5026 = vld [vmem:[#allocation6 + $0x1278] sm:$0xff]
    %v5027 = vld [vmem:[#allocation6 + $0x12a0] sm:$0xff]
    %v5028 = vld [vmem:[#allocation6 + $0x12a8] sm:$0xff]
    %v5029 = vld [vmem:[#allocation6 + $0x12b0] sm:$0xff]
    %v5030 = vld [vmem:[#allocation6 + $0x12b8] sm:$0xff]
    %v5031 = vld [vmem:[#allocation6 + $0x12e0] sm:$0xff]
    %v5032 = vld [vmem:[#allocation6 + $0x12e8] sm:$0xff]
    %v5033 = vld [vmem:[#allocation6 + $0x12f0] sm:$0xff]
    %v5034 = vld [vmem:[#allocation6 + $0x12f8] sm:$0xff]
    %v5035 = vld [vmem:[#allocation6 + $0x1320] sm:$0xff]
    %v5036 = vld [vmem:[#allocation6 + $0x1328] sm:$0xff]
    %v5037 = vld [vmem:[#allocation6 + $0x1330] sm:$0xff]
    %v5038 = vld [vmem:[#allocation6 + $0x1338] sm:$0xff]
    %v5039 = vld [vmem:[#allocation6 + $0x1360] sm:$0xff]
    %v5040 = vld [vmem:[#allocation6 + $0x1368] sm:$0xff]
    %v5041 = vld [vmem:[#allocation6 + $0x1370] sm:$0xff]
    %v5042 = vld [vmem:[#allocation6 + $0x1378] sm:$0xff]
    %v5043 = vld [vmem:[#allocation6 + $0x13a0] sm:$0xff]
    %v5044 = vld [vmem:[#allocation6 + $0x13a8] sm:$0xff]
    %v5045 = vld [vmem:[#allocation6 + $0x13b0] sm:$0xff]
    %v5046 = vld [vmem:[#allocation6 + $0x13b8] sm:$0xff]
    %v5047 = vld [vmem:[#allocation6 + $0x13e0] sm:$0xff]
    %v5048 = vld [vmem:[#allocation6 + $0x13e8] sm:$0xff]
    %v5049 = vld [vmem:[#allocation6 + $0x13f0] sm:$0xff]
    %v5050 = vld [vmem:[#allocation6 + $0x13f8] sm:$0xff]
    %v5051 = vld [vmem:[#allocation6 + $0x1420] sm:$0xff]
    %v5052 = vld [vmem:[#allocation6 + $0x1428] sm:$0xff]
    %v5053 = vld [vmem:[#allocation6 + $0x1430] sm:$0xff]
    %v5054 = vld [vmem:[#allocation6 + $0x1438] sm:$0xff]
    %v5055 = vld [vmem:[#allocation6 + $0x1460] sm:$0xff]
    %v5056 = vld [vmem:[#allocation6 + $0x1468] sm:$0xff]
    %v5057 = vld [vmem:[#allocation6 + $0x1470] sm:$0xff]
    %v5058 = vld [vmem:[#allocation6 + $0x1478] sm:$0xff]
    %v5059 = vld [vmem:[#allocation6 + $0x14a0] sm:$0xff]
    %v5060 = vld [vmem:[#allocation6 + $0x14a8] sm:$0xff]
    %v5061 = vld [vmem:[#allocation6 + $0x14b0] sm:$0xff]
    %v5062 = vld [vmem:[#allocation6 + $0x14b8] sm:$0xff]
    %v5063 = vld [vmem:[#allocation6 + $0x14e0] sm:$0xff]
    %v5064 = vld [vmem:[#allocation6 + $0x14e8] sm:$0xff]
    %v5065 = vld [vmem:[#allocation6 + $0x14f0] sm:$0xff]
    %v5066 = vld [vmem:[#allocation6 + $0x14f8] sm:$0xff]
    %v5067 = vld [vmem:[#allocation6 + $0x1520] sm:$0xff]
    %v5068 = vld [vmem:[#allocation6 + $0x1528] sm:$0xff]
    %v5069 = vld [vmem:[#allocation6 + $0x1530] sm:$0xff]
    %v5070 = vld [vmem:[#allocation6 + $0x1538] sm:$0xff]
    %v5071 = vld [vmem:[#allocation6 + $0x1560] sm:$0xff]
    %v5072 = vld [vmem:[#allocation6 + $0x1568] sm:$0xff]
    %v5073 = vld [vmem:[#allocation6 + $0x1570] sm:$0xff]
    %v5074 = vld [vmem:[#allocation6 + $0x1578] sm:$0xff]
    %v5075 = vld [vmem:[#allocation6 + $0x15a0] sm:$0xff]
    %v5076 = vld [vmem:[#allocation6 + $0x15a8] sm:$0xff]
    %v5077 = vld [vmem:[#allocation6 + $0x15b0] sm:$0xff]
    %v5078 = vld [vmem:[#allocation6 + $0x15b8] sm:$0xff]
    %v5079 = vld [vmem:[#allocation6 + $0x15e0] sm:$0xff]
    %v5080 = vld [vmem:[#allocation6 + $0x15e8] sm:$0xff]
    %v5081 = vld [vmem:[#allocation6 + $0x15f0] sm:$0xff]
    %v5082 = vld [vmem:[#allocation6 + $0x15f8] sm:$0xff]
    %v5083 = vld [vmem:[#allocation6 + $0x1620] sm:$0xff]
    %v5084 = vld [vmem:[#allocation6 + $0x1628] sm:$0xff]
    %v5085 = vld [vmem:[#allocation6 + $0x1630] sm:$0xff]
    %v5086 = vld [vmem:[#allocation6 + $0x1638] sm:$0xff]
    %v5087 = vld [vmem:[#allocation6 + $0x1660] sm:$0xff]
    %v5088 = vld [vmem:[#allocation6 + $0x1668] sm:$0xff]
    %v5089 = vld [vmem:[#allocation6 + $0x1670] sm:$0xff]
    %v5090 = vld [vmem:[#allocation6 + $0x1678] sm:$0xff]
    %v5091 = vld [vmem:[#allocation6 + $0x16a0] sm:$0xff]
    %v5092 = vld [vmem:[#allocation6 + $0x16a8] sm:$0xff]
    %v5093 = vld [vmem:[#allocation6 + $0x16b0] sm:$0xff]
    %v5094 = vld [vmem:[#allocation6 + $0x16b8] sm:$0xff]
    %v5095 = vld [vmem:[#allocation6 + $0x16e0] sm:$0xff]
    %v5096 = vld [vmem:[#allocation6 + $0x16e8] sm:$0xff]
    %v5097 = vld [vmem:[#allocation6 + $0x16f0] sm:$0xff]
    %v5098 = vld [vmem:[#allocation6 + $0x16f8] sm:$0xff]
    %v5099 = vld [vmem:[#allocation6 + $0x1720] sm:$0xff]
    %v5100 = vld [vmem:[#allocation6 + $0x1728] sm:$0xff]
    %v5101 = vld [vmem:[#allocation6 + $0x1730] sm:$0xff]
    %v5102 = vld [vmem:[#allocation6 + $0x1738] sm:$0xff]
    %v5103 = vld [vmem:[#allocation6 + $0x1760] sm:$0xff]
    %v5104 = vld [vmem:[#allocation6 + $0x1768] sm:$0xff]
    %v5105 = vld [vmem:[#allocation6 + $0x1770] sm:$0xff]
    %v5106 = vld [vmem:[#allocation6 + $0x1778] sm:$0xff]
    %v5107 = vld [vmem:[#allocation6 + $0x17a0] sm:$0xff]
    %v5108 = vld [vmem:[#allocation6 + $0x17a8] sm:$0xff]
    %v5109 = vld [vmem:[#allocation6 + $0x17b0] sm:$0xff]
    %v5110 = vld [vmem:[#allocation6 + $0x17b8] sm:$0xff]
    %v5111 = vld [vmem:[#allocation6 + $0x17e0] sm:$0xff]
    %v5112 = vld [vmem:[#allocation6 + $0x17e8] sm:$0xff]
    %v5113 = vld [vmem:[#allocation6 + $0x17f0] sm:$0xff]
    %v5114 = vld [vmem:[#allocation6 + $0x17f8] sm:$0xff]
    %v5115 = vld [vmem:[#allocation6 + $0x1820] sm:$0xff]
    %v5116 = vld [vmem:[#allocation6 + $0x1828] sm:$0xff]
    %v5117 = vld [vmem:[#allocation6 + $0x1830] sm:$0xff]
    %v5118 = vld [vmem:[#allocation6 + $0x1838] sm:$0xff]
    %v5119 = vld [vmem:[#allocation6 + $0x1860] sm:$0xff]
    %v5120 = vld [vmem:[#allocation6 + $0x1868] sm:$0xff]
    %v5121 = vld [vmem:[#allocation6 + $0x1870] sm:$0xff]
    %v5122 = vld [vmem:[#allocation6 + $0x1878] sm:$0xff]
    %v5123 = vld [vmem:[#allocation6 + $0x18a0] sm:$0xff]
    %v5124 = vld [vmem:[#allocation6 + $0x18a8] sm:$0xff]
    %v5125 = vld [vmem:[#allocation6 + $0x18b0] sm:$0xff]
    %v5126 = vld [vmem:[#allocation6 + $0x18b8] sm:$0xff]
    %v5127 = vld [vmem:[#allocation6 + $0x18e0] sm:$0xff]
    %v5128 = vld [vmem:[#allocation6 + $0x18e8] sm:$0xff]
    %v5129 = vld [vmem:[#allocation6 + $0x18f0] sm:$0xff]
    %v5130 = vld [vmem:[#allocation6 + $0x18f8] sm:$0xff]
    %v5131 = vld [vmem:[#allocation6 + $0x1920] sm:$0xff]
    %v5132 = vld [vmem:[#allocation6 + $0x1928] sm:$0xff]
    %v5133 = vld [vmem:[#allocation6 + $0x1930] sm:$0xff]
    %v5134 = vld [vmem:[#allocation6 + $0x1938] sm:$0xff]
    %v5135 = vld [vmem:[#allocation6 + $0x1960] sm:$0xff]
    %v5136 = vld [vmem:[#allocation6 + $0x1968] sm:$0xff]
    %v5137 = vld [vmem:[#allocation6 + $0x1970] sm:$0xff]
    %v5138 = vld [vmem:[#allocation6 + $0x1978] sm:$0xff]
    %v5139 = vld [vmem:[#allocation6 + $0x19a0] sm:$0xff]
    %v5140 = vld [vmem:[#allocation6 + $0x19a8] sm:$0xff]
    %v5141 = vld [vmem:[#allocation6 + $0x19b0] sm:$0xff]
    %v5142 = vld [vmem:[#allocation6 + $0x19b8] sm:$0xff]
    %v5143 = vld [vmem:[#allocation6 + $0x19e0] sm:$0xff]
    %v5144 = vld [vmem:[#allocation6 + $0x19e8] sm:$0xff]
    %v5145 = vld [vmem:[#allocation6 + $0x19f0] sm:$0xff]
    %v5146 = vld [vmem:[#allocation6 + $0x19f8] sm:$0xff]
    %v5147 = vld [vmem:[#allocation6 + $0x1a20] sm:$0xff]
    %v5148 = vld [vmem:[#allocation6 + $0x1a28] sm:$0xff]
    %v5149 = vld [vmem:[#allocation6 + $0x1a30] sm:$0xff]
    %v5150 = vld [vmem:[#allocation6 + $0x1a38] sm:$0xff]
    %v5151 = vld [vmem:[#allocation6 + $0x1a60] sm:$0xff]
    %v5152 = vld [vmem:[#allocation6 + $0x1a68] sm:$0xff]
    %v5153 = vld [vmem:[#allocation6 + $0x1a70] sm:$0xff]
    %v5154 = vld [vmem:[#allocation6 + $0x1a78] sm:$0xff]
    %v5155 = vld [vmem:[#allocation6 + $0x1aa0] sm:$0xff]
    %v5156 = vld [vmem:[#allocation6 + $0x1aa8] sm:$0xff]
    %v5157 = vld [vmem:[#allocation6 + $0x1ab0] sm:$0xff]
    %v5158 = vld [vmem:[#allocation6 + $0x1ab8] sm:$0xff]
    %v5159 = vld [vmem:[#allocation6 + $0x1ae0] sm:$0xff]
    %v5160 = vld [vmem:[#allocation6 + $0x1ae8] sm:$0xff]
    %v5161 = vld [vmem:[#allocation6 + $0x1af0] sm:$0xff]
    %v5162 = vld [vmem:[#allocation6 + $0x1af8] sm:$0xff]
    %v5163 = vld [vmem:[#allocation6 + $0x1b20] sm:$0xff]
    %v5164 = vld [vmem:[#allocation6 + $0x1b28] sm:$0xff]
    %v5165 = vld [vmem:[#allocation6 + $0x1b30] sm:$0xff]
    %v5166 = vld [vmem:[#allocation6 + $0x1b38] sm:$0xff]
    %v5167 = vld [vmem:[#allocation6 + $0x1b60] sm:$0xff]
    %v5168 = vld [vmem:[#allocation6 + $0x1b68] sm:$0xff]
    %v5169 = vld [vmem:[#allocation6 + $0x1b70] sm:$0xff]
    %v5170 = vld [vmem:[#allocation6 + $0x1b78] sm:$0xff]
    %v5171 = vld [vmem:[#allocation6 + $0x1ba0] sm:$0xff]
    %v5172 = vld [vmem:[#allocation6 + $0x1ba8] sm:$0xff]
    %v5173 = vld [vmem:[#allocation6 + $0x1bb0] sm:$0xff]
    %v5174 = vld [vmem:[#allocation6 + $0x1bb8] sm:$0xff]
    %v5175 = vld [vmem:[#allocation6 + $0x1be0] sm:$0xff]
    %v5176 = vld [vmem:[#allocation6 + $0x1be8] sm:$0xff]
    %v5177 = vld [vmem:[#allocation6 + $0x1bf0] sm:$0xff]
    %v5178 = vld [vmem:[#allocation6 + $0x1bf8] sm:$0xff]
    %v5179 = vld [vmem:[#allocation6 + $0x1c20] sm:$0xff]
    %v5180 = vld [vmem:[#allocation6 + $0x1c28] sm:$0xff]
    %v5181 = vld [vmem:[#allocation6 + $0x1c30] sm:$0xff]
    %v5182 = vld [vmem:[#allocation6 + $0x1c38] sm:$0xff]
    %v5183 = vld [vmem:[#allocation6 + $0x1c60] sm:$0xff]
    %v5184 = vld [vmem:[#allocation6 + $0x1c68] sm:$0xff]
    %v5185 = vld [vmem:[#allocation6 + $0x1c70] sm:$0xff]
    %v5186 = vld [vmem:[#allocation6 + $0x1c78] sm:$0xff]
    %v5187 = vld [vmem:[#allocation6 + $0x1ca0] sm:$0xff]
    %v5188 = vld [vmem:[#allocation6 + $0x1ca8] sm:$0xff]
    %v5189 = vld [vmem:[#allocation6 + $0x1cb0] sm:$0xff]
    %v5190 = vld [vmem:[#allocation6 + $0x1cb8] sm:$0xff]
    %v5191 = vld [vmem:[#allocation6 + $0x1ce0] sm:$0xff]
    %v5192 = vld [vmem:[#allocation6 + $0x1ce8] sm:$0xff]
    %v5193 = vld [vmem:[#allocation6 + $0x1cf0] sm:$0xff]
    %v5194 = vld [vmem:[#allocation6 + $0x1cf8] sm:$0xff]
    %v5195 = vld [vmem:[#allocation6 + $0x1d20] sm:$0xff]
    %v5196 = vld [vmem:[#allocation6 + $0x1d28] sm:$0xff]
    %v5197 = vld [vmem:[#allocation6 + $0x1d30] sm:$0xff]
    %v5198 = vld [vmem:[#allocation6 + $0x1d38] sm:$0xff]
    %v5199 = vld [vmem:[#allocation6 + $0x1d60] sm:$0xff]
    %v5200 = vld [vmem:[#allocation6 + $0x1d68] sm:$0xff]
    %v5201 = vld [vmem:[#allocation6 + $0x1d70] sm:$0xff]
    %v5202 = vld [vmem:[#allocation6 + $0x1d78] sm:$0xff]
    %v5203 = vld [vmem:[#allocation6 + $0x1da0] sm:$0xff]
    %v5204 = vld [vmem:[#allocation6 + $0x1da8] sm:$0xff]
    %v5205 = vld [vmem:[#allocation6 + $0x1db0] sm:$0xff]
    %v5206 = vld [vmem:[#allocation6 + $0x1db8] sm:$0xff]
    %v5207 = vld [vmem:[#allocation6 + $0x1de0] sm:$0xff]
    %v5208 = vld [vmem:[#allocation6 + $0x1de8] sm:$0xff]
    %v5209 = vld [vmem:[#allocation6 + $0x1df0] sm:$0xff]
    %v5210 = vld [vmem:[#allocation6 + $0x1df8] sm:$0xff]
    %v5211 = vld [vmem:[#allocation6 + $0x1e20] sm:$0xff]
    %v5212 = vld [vmem:[#allocation6 + $0x1e28] sm:$0xff]
    %v5213 = vld [vmem:[#allocation6 + $0x1e30] sm:$0xff]
    %v5214 = vld [vmem:[#allocation6 + $0x1e38] sm:$0xff]
    %v5215 = vld [vmem:[#allocation6 + $0x1e60] sm:$0xff]
    %v5216 = vld [vmem:[#allocation6 + $0x1e68] sm:$0xff]
    %v5217 = vld [vmem:[#allocation6 + $0x1e70] sm:$0xff]
    %v5218 = vld [vmem:[#allocation6 + $0x1e78] sm:$0xff]
    %v5219 = vld [vmem:[#allocation6 + $0x1ea0] sm:$0xff]
    %v5220 = vld [vmem:[#allocation6 + $0x1ea8] sm:$0xff]
    %v5221 = vld [vmem:[#allocation6 + $0x1eb0] sm:$0xff]
    %v5222 = vld [vmem:[#allocation6 + $0x1eb8] sm:$0xff]
    %v5223 = vld [vmem:[#allocation6 + $0x1ee0] sm:$0xff]
    %v5224 = vld [vmem:[#allocation6 + $0x1ee8] sm:$0xff]
    %v5225 = vld [vmem:[#allocation6 + $0x1ef0] sm:$0xff]
    %v5226 = vld [vmem:[#allocation6 + $0x1ef8] sm:$0xff]
    %v5227 = vld [vmem:[#allocation6 + $0x1f20] sm:$0xff]
    %v5228 = vld [vmem:[#allocation6 + $0x1f28] sm:$0xff]
    %v5229 = vld [vmem:[#allocation6 + $0x1f30] sm:$0xff]
    %v5230 = vld [vmem:[#allocation6 + $0x1f38] sm:$0xff]
    %v5231 = vld [vmem:[#allocation6 + $0x1f60] sm:$0xff]
    %v5232 = vld [vmem:[#allocation6 + $0x1f68] sm:$0xff]
    %v5233 = vld [vmem:[#allocation6 + $0x1f70] sm:$0xff]
    %v5234 = vld [vmem:[#allocation6 + $0x1f78] sm:$0xff]
    %v5235 = vld [vmem:[#allocation6 + $0x1fa0] sm:$0xff]
    %v5236 = vld [vmem:[#allocation6 + $0x1fa8] sm:$0xff]
    %v5237 = vld [vmem:[#allocation6 + $0x1fb0] sm:$0xff]
    %v5238 = vld [vmem:[#allocation6 + $0x1fb8] sm:$0xff]
    %v5239 = vld [vmem:[#allocation6 + $0x1fe0] sm:$0xff]
    %v5240 = vld [vmem:[#allocation6 + $0x1fe8] sm:$0xff]
    %v5241 = vld [vmem:[#allocation6 + $0x1ff0] sm:$0xff]
    %v5242 = vld [vmem:[#allocation6 + $0x1ff8] sm:$0xff]
    %v5755 = vunpack.c.l.b16 %v4731
    %v5756 = vunpack.c.h.b16 %v4731
    %v5757 = vunpack.c.l.b16 %v4732
    %v5758 = vunpack.c.h.b16 %v4732
    %v5759 = vunpack.c.l.b16 %v4733
    %v5760 = vunpack.c.h.b16 %v4733
    %v5761 = vunpack.c.l.b16 %v4734
    %v5762 = vunpack.c.h.b16 %v4734
    %v5763 = vunpack.c.l.b16 %v4735
    %v5764 = vunpack.c.h.b16 %v4735
    %v5765 = vunpack.c.l.b16 %v4736
    %v5766 = vunpack.c.h.b16 %v4736
    %v5767 = vunpack.c.l.b16 %v4737
    %v5768 = vunpack.c.h.b16 %v4737
    %v5769 = vunpack.c.l.b16 %v4738
    %v5770 = vunpack.c.h.b16 %v4738
    %v5771 = vunpack.c.l.b16 %v4739
    %v5772 = vunpack.c.h.b16 %v4739
    %v5773 = vunpack.c.l.b16 %v4740
    %v5774 = vunpack.c.h.b16 %v4740
    %v5775 = vunpack.c.l.b16 %v4741
    %v5776 = vunpack.c.h.b16 %v4741
    %v5777 = vunpack.c.l.b16 %v4742
    %v5778 = vunpack.c.h.b16 %v4742
    %v5779 = vunpack.c.l.b16 %v4743
    %v5780 = vunpack.c.h.b16 %v4743
    %v5781 = vunpack.c.l.b16 %v4744
    %v5782 = vunpack.c.h.b16 %v4744
    %v5783 = vunpack.c.l.b16 %v4745
    %v5784 = vunpack.c.h.b16 %v4745
    %v5785 = vunpack.c.l.b16 %v4746
    %v5786 = vunpack.c.h.b16 %v4746
    %v5787 = vunpack.c.l.b16 %v4747
    %v5788 = vunpack.c.h.b16 %v4747
    %v5789 = vunpack.c.l.b16 %v4748
    %v5790 = vunpack.c.h.b16 %v4748
    %v5791 = vunpack.c.l.b16 %v4749
    %v5792 = vunpack.c.h.b16 %v4749
    %v5793 = vunpack.c.l.b16 %v4750
    %v5794 = vunpack.c.h.b16 %v4750
    %v5795 = vunpack.c.l.b16 %v4751
    %v5796 = vunpack.c.h.b16 %v4751
    %v5797 = vunpack.c.l.b16 %v4752
    %v5798 = vunpack.c.h.b16 %v4752
    %v5799 = vunpack.c.l.b16 %v4753
    %v5800 = vunpack.c.h.b16 %v4753
    %v5801 = vunpack.c.l.b16 %v4754
    %v5802 = vunpack.c.h.b16 %v4754
    %v5803 = vunpack.c.l.b16 %v4755
    %v5804 = vunpack.c.h.b16 %v4755
    %v5805 = vunpack.c.l.b16 %v4756
    %v5806 = vunpack.c.h.b16 %v4756
    %v5807 = vunpack.c.l.b16 %v4757
    %v5808 = vunpack.c.h.b16 %v4757
    %v5809 = vunpack.c.l.b16 %v4758
    %v5810 = vunpack.c.h.b16 %v4758
    %v5811 = vunpack.c.l.b16 %v4759
    %v5812 = vunpack.c.h.b16 %v4759
    %v5813 = vunpack.c.l.b16 %v4760
    %v5814 = vunpack.c.h.b16 %v4760
    %v5815 = vunpack.c.l.b16 %v4761
    %v5816 = vunpack.c.h.b16 %v4761
    %v5817 = vunpack.c.l.b16 %v4762
    %v5818 = vunpack.c.h.b16 %v4762
    %v5819 = vunpack.c.l.b16 %v4763
    %v5820 = vunpack.c.h.b16 %v4763
    %v5821 = vunpack.c.l.b16 %v4764
    %v5822 = vunpack.c.h.b16 %v4764
    %v5823 = vunpack.c.l.b16 %v4765
    %v5824 = vunpack.c.h.b16 %v4765
    %v5825 = vunpack.c.l.b16 %v4766
    %v5826 = vunpack.c.h.b16 %v4766
    %v5827 = vunpack.c.l.b16 %v4767
    %v5828 = vunpack.c.h.b16 %v4767
    %v5829 = vunpack.c.l.b16 %v4768
    %v5830 = vunpack.c.h.b16 %v4768
    %v5831 = vunpack.c.l.b16 %v4769
    %v5832 = vunpack.c.h.b16 %v4769
    %v5833 = vunpack.c.l.b16 %v4770
    %v5834 = vunpack.c.h.b16 %v4770
    %v5835 = vunpack.c.l.b16 %v4771
    %v5836 = vunpack.c.h.b16 %v4771
    %v5837 = vunpack.c.l.b16 %v4772
    %v5838 = vunpack.c.h.b16 %v4772
    %v5839 = vunpack.c.l.b16 %v4773
    %v5840 = vunpack.c.h.b16 %v4773
    %v5841 = vunpack.c.l.b16 %v4774
    %v5842 = vunpack.c.h.b16 %v4774
    %v5843 = vunpack.c.l.b16 %v4775
    %v5844 = vunpack.c.h.b16 %v4775
    %v5845 = vunpack.c.l.b16 %v4776
    %v5846 = vunpack.c.h.b16 %v4776
    %v5847 = vunpack.c.l.b16 %v4777
    %v5848 = vunpack.c.h.b16 %v4777
    %v5849 = vunpack.c.l.b16 %v4778
    %v5850 = vunpack.c.h.b16 %v4778
    %v5851 = vunpack.c.l.b16 %v4779
    %v5852 = vunpack.c.h.b16 %v4779
    %v5853 = vunpack.c.l.b16 %v4780
    %v5854 = vunpack.c.h.b16 %v4780
    %v5855 = vunpack.c.l.b16 %v4781
    %v5856 = vunpack.c.h.b16 %v4781
    %v5857 = vunpack.c.l.b16 %v4782
    %v5858 = vunpack.c.h.b16 %v4782
    %v5859 = vunpack.c.l.b16 %v4783
    %v5860 = vunpack.c.h.b16 %v4783
    %v5861 = vunpack.c.l.b16 %v4784
    %v5862 = vunpack.c.h.b16 %v4784
    %v5863 = vunpack.c.l.b16 %v4785
    %v5864 = vunpack.c.h.b16 %v4785
    %v5865 = vunpack.c.l.b16 %v4786
    %v5866 = vunpack.c.h.b16 %v4786
    %v5867 = vunpack.c.l.b16 %v4787
    %v5868 = vunpack.c.h.b16 %v4787
    %v5869 = vunpack.c.l.b16 %v4788
    %v5870 = vunpack.c.h.b16 %v4788
    %v5871 = vunpack.c.l.b16 %v4789
    %v5872 = vunpack.c.h.b16 %v4789
    %v5873 = vunpack.c.l.b16 %v4790
    %v5874 = vunpack.c.h.b16 %v4790
    %v5875 = vunpack.c.l.b16 %v4791
    %v5876 = vunpack.c.h.b16 %v4791
    %v5877 = vunpack.c.l.b16 %v4792
    %v5878 = vunpack.c.h.b16 %v4792
    %v5879 = vunpack.c.l.b16 %v4793
    %v5880 = vunpack.c.h.b16 %v4793
    %v5881 = vunpack.c.l.b16 %v4794
    %v5882 = vunpack.c.h.b16 %v4794
    %v5883 = vunpack.c.l.b16 %v4795
    %v5884 = vunpack.c.h.b16 %v4795
    %v5885 = vunpack.c.l.b16 %v4796
    %v5886 = vunpack.c.h.b16 %v4796
    %v5887 = vunpack.c.l.b16 %v4797
    %v5888 = vunpack.c.h.b16 %v4797
    %v5889 = vunpack.c.l.b16 %v4798
    %v5890 = vunpack.c.h.b16 %v4798
    %v5891 = vunpack.c.l.b16 %v4799
    %v5892 = vunpack.c.h.b16 %v4799
    %v5893 = vunpack.c.l.b16 %v4800
    %v5894 = vunpack.c.h.b16 %v4800
    %v5895 = vunpack.c.l.b16 %v4801
    %v5896 = vunpack.c.h.b16 %v4801
    %v5897 = vunpack.c.l.b16 %v4802
    %v5898 = vunpack.c.h.b16 %v4802
    %v5899 = vunpack.c.l.b16 %v4803
    %v5900 = vunpack.c.h.b16 %v4803
    %v5901 = vunpack.c.l.b16 %v4804
    %v5902 = vunpack.c.h.b16 %v4804
    %v5903 = vunpack.c.l.b16 %v4805
    %v5904 = vunpack.c.h.b16 %v4805
    %v5905 = vunpack.c.l.b16 %v4806
    %v5906 = vunpack.c.h.b16 %v4806
    %v5907 = vunpack.c.l.b16 %v4807
    %v5908 = vunpack.c.h.b16 %v4807
    %v5909 = vunpack.c.l.b16 %v4808
    %v5910 = vunpack.c.h.b16 %v4808
    %v5911 = vunpack.c.l.b16 %v4809
    %v5912 = vunpack.c.h.b16 %v4809
    %v5913 = vunpack.c.l.b16 %v4810
    %v5914 = vunpack.c.h.b16 %v4810
    %v5915 = vunpack.c.l.b16 %v4811
    %v5916 = vunpack.c.h.b16 %v4811
    %v5917 = vunpack.c.l.b16 %v4812
    %v5918 = vunpack.c.h.b16 %v4812
    %v5919 = vunpack.c.l.b16 %v4813
    %v5920 = vunpack.c.h.b16 %v4813
    %v5921 = vunpack.c.l.b16 %v4814
    %v5922 = vunpack.c.h.b16 %v4814
    %v5923 = vunpack.c.l.b16 %v4815
    %v5924 = vunpack.c.h.b16 %v4815
    %v5925 = vunpack.c.l.b16 %v4816
    %v5926 = vunpack.c.h.b16 %v4816
    %v5927 = vunpack.c.l.b16 %v4817
    %v5928 = vunpack.c.h.b16 %v4817
    %v5929 = vunpack.c.l.b16 %v4818
    %v5930 = vunpack.c.h.b16 %v4818
    %v5931 = vunpack.c.l.b16 %v4819
    %v5932 = vunpack.c.h.b16 %v4819
    %v5933 = vunpack.c.l.b16 %v4820
    %v5934 = vunpack.c.h.b16 %v4820
    %v5935 = vunpack.c.l.b16 %v4821
    %v5936 = vunpack.c.h.b16 %v4821
    %v5937 = vunpack.c.l.b16 %v4822
    %v5938 = vunpack.c.h.b16 %v4822
    %v5939 = vunpack.c.l.b16 %v4823
    %v5940 = vunpack.c.h.b16 %v4823
    %v5941 = vunpack.c.l.b16 %v4824
    %v5942 = vunpack.c.h.b16 %v4824
    %v5943 = vunpack.c.l.b16 %v4825
    %v5944 = vunpack.c.h.b16 %v4825
    %v5945 = vunpack.c.l.b16 %v4826
    %v5946 = vunpack.c.h.b16 %v4826
    %v5947 = vunpack.c.l.b16 %v4827
    %v5948 = vunpack.c.h.b16 %v4827
    %v5949 = vunpack.c.l.b16 %v4828
    %v5950 = vunpack.c.h.b16 %v4828
    %v5951 = vunpack.c.l.b16 %v4829
    %v5952 = vunpack.c.h.b16 %v4829
    %v5953 = vunpack.c.l.b16 %v4830
    %v5954 = vunpack.c.h.b16 %v4830
    %v5955 = vunpack.c.l.b16 %v4831
    %v5956 = vunpack.c.h.b16 %v4831
    %v5957 = vunpack.c.l.b16 %v4832
    %v5958 = vunpack.c.h.b16 %v4832
    %v5959 = vunpack.c.l.b16 %v4833
    %v5960 = vunpack.c.h.b16 %v4833
    %v5961 = vunpack.c.l.b16 %v4834
    %v5962 = vunpack.c.h.b16 %v4834
    %v5963 = vunpack.c.l.b16 %v4835
    %v5964 = vunpack.c.h.b16 %v4835
    %v5965 = vunpack.c.l.b16 %v4836
    %v5966 = vunpack.c.h.b16 %v4836
    %v5967 = vunpack.c.l.b16 %v4837
    %v5968 = vunpack.c.h.b16 %v4837
    %v5969 = vunpack.c.l.b16 %v4838
    %v5970 = vunpack.c.h.b16 %v4838
    %v5971 = vunpack.c.l.b16 %v4839
    %v5972 = vunpack.c.h.b16 %v4839
    %v5973 = vunpack.c.l.b16 %v4840
    %v5974 = vunpack.c.h.b16 %v4840
    %v5975 = vunpack.c.l.b16 %v4841
    %v5976 = vunpack.c.h.b16 %v4841
    %v5977 = vunpack.c.l.b16 %v4842
    %v5978 = vunpack.c.h.b16 %v4842
    %v5979 = vunpack.c.l.b16 %v4843
    %v5980 = vunpack.c.h.b16 %v4843
    %v5981 = vunpack.c.l.b16 %v4844
    %v5982 = vunpack.c.h.b16 %v4844
    %v5983 = vunpack.c.l.b16 %v4845
    %v5984 = vunpack.c.h.b16 %v4845
    %v5985 = vunpack.c.l.b16 %v4846
    %v5986 = vunpack.c.h.b16 %v4846
    %v5987 = vunpack.c.l.b16 %v4847
    %v5988 = vunpack.c.h.b16 %v4847
    %v5989 = vunpack.c.l.b16 %v4848
    %v5990 = vunpack.c.h.b16 %v4848
    %v5991 = vunpack.c.l.b16 %v4849
    %v5992 = vunpack.c.h.b16 %v4849
    %v5993 = vunpack.c.l.b16 %v4850
    %v5994 = vunpack.c.h.b16 %v4850
    %v5995 = vunpack.c.l.b16 %v4851
    %v5996 = vunpack.c.h.b16 %v4851
    %v5997 = vunpack.c.l.b16 %v4852
    %v5998 = vunpack.c.h.b16 %v4852
    %v5999 = vunpack.c.l.b16 %v4853
    %v6000 = vunpack.c.h.b16 %v4853
    %v6001 = vunpack.c.l.b16 %v4854
    %v6002 = vunpack.c.h.b16 %v4854
    %v6003 = vunpack.c.l.b16 %v4855
    %v6004 = vunpack.c.h.b16 %v4855
    %v6005 = vunpack.c.l.b16 %v4856
    %v6006 = vunpack.c.h.b16 %v4856
    %v6007 = vunpack.c.l.b16 %v4857
    %v6008 = vunpack.c.h.b16 %v4857
    %v6009 = vunpack.c.l.b16 %v4858
    %v6010 = vunpack.c.h.b16 %v4858
    %v6011 = vunpack.c.l.b16 %v4859
    %v6012 = vunpack.c.h.b16 %v4859
    %v6013 = vunpack.c.l.b16 %v4860
    %v6014 = vunpack.c.h.b16 %v4860
    %v6015 = vunpack.c.l.b16 %v4861
    %v6016 = vunpack.c.h.b16 %v4861
    %v6017 = vunpack.c.l.b16 %v4862
    %v6018 = vunpack.c.h.b16 %v4862
    %v6019 = vunpack.c.l.b16 %v4863
    %v6020 = vunpack.c.h.b16 %v4863
    %v6021 = vunpack.c.l.b16 %v4864
    %v6022 = vunpack.c.h.b16 %v4864
    %v6023 = vunpack.c.l.b16 %v4865
    %v6024 = vunpack.c.h.b16 %v4865
    %v6025 = vunpack.c.l.b16 %v4866
    %v6026 = vunpack.c.h.b16 %v4866
    %v6027 = vunpack.c.l.b16 %v4867
    %v6028 = vunpack.c.h.b16 %v4867
    %v6029 = vunpack.c.l.b16 %v4868
    %v6030 = vunpack.c.h.b16 %v4868
    %v6031 = vunpack.c.l.b16 %v4869
    %v6032 = vunpack.c.h.b16 %v4869
    %v6033 = vunpack.c.l.b16 %v4870
    %v6034 = vunpack.c.h.b16 %v4870
    %v6035 = vunpack.c.l.b16 %v4871
    %v6036 = vunpack.c.h.b16 %v4871
    %v6037 = vunpack.c.l.b16 %v4872
    %v6038 = vunpack.c.h.b16 %v4872
    %v6039 = vunpack.c.l.b16 %v4873
    %v6040 = vunpack.c.h.b16 %v4873
    %v6041 = vunpack.c.l.b16 %v4874
    %v6042 = vunpack.c.h.b16 %v4874
    %v6043 = vunpack.c.l.b16 %v4875
    %v6044 = vunpack.c.h.b16 %v4875
    %v6045 = vunpack.c.l.b16 %v4876
    %v6046 = vunpack.c.h.b16 %v4876
    %v6047 = vunpack.c.l.b16 %v4877
    %v6048 = vunpack.c.h.b16 %v4877
    %v6049 = vunpack.c.l.b16 %v4878
    %v6050 = vunpack.c.h.b16 %v4878
    %v6051 = vunpack.c.l.b16 %v4879
    %v6052 = vunpack.c.h.b16 %v4879
    %v6053 = vunpack.c.l.b16 %v4880
    %v6054 = vunpack.c.h.b16 %v4880
    %v6055 = vunpack.c.l.b16 %v4881
    %v6056 = vunpack.c.h.b16 %v4881
    %v6057 = vunpack.c.l.b16 %v4882
    %v6058 = vunpack.c.h.b16 %v4882
    %v6059 = vunpack.c.l.b16 %v4883
    %v6060 = vunpack.c.h.b16 %v4883
    %v6061 = vunpack.c.l.b16 %v4884
    %v6062 = vunpack.c.h.b16 %v4884
    %v6063 = vunpack.c.l.b16 %v4885
    %v6064 = vunpack.c.h.b16 %v4885
    %v6065 = vunpack.c.l.b16 %v4886
    %v6066 = vunpack.c.h.b16 %v4886
    %v6067 = vunpack.c.l.b16 %v4887
    %v6068 = vunpack.c.h.b16 %v4887
    %v6069 = vunpack.c.l.b16 %v4888
    %v6070 = vunpack.c.h.b16 %v4888
    %v6071 = vunpack.c.l.b16 %v4889
    %v6072 = vunpack.c.h.b16 %v4889
    %v6073 = vunpack.c.l.b16 %v4890
    %v6074 = vunpack.c.h.b16 %v4890
    %v6075 = vunpack.c.l.b16 %v4891
    %v6076 = vunpack.c.h.b16 %v4891
    %v6077 = vunpack.c.l.b16 %v4892
    %v6078 = vunpack.c.h.b16 %v4892
    %v6079 = vunpack.c.l.b16 %v4893
    %v6080 = vunpack.c.h.b16 %v4893
    %v6081 = vunpack.c.l.b16 %v4894
    %v6082 = vunpack.c.h.b16 %v4894
    %v6083 = vunpack.c.l.b16 %v4895
    %v6084 = vunpack.c.h.b16 %v4895
    %v6085 = vunpack.c.l.b16 %v4896
    %v6086 = vunpack.c.h.b16 %v4896
    %v6087 = vunpack.c.l.b16 %v4897
    %v6088 = vunpack.c.h.b16 %v4897
    %v6089 = vunpack.c.l.b16 %v4898
    %v6090 = vunpack.c.h.b16 %v4898
    %v6091 = vunpack.c.l.b16 %v4899
    %v6092 = vunpack.c.h.b16 %v4899
    %v6093 = vunpack.c.l.b16 %v4900
    %v6094 = vunpack.c.h.b16 %v4900
    %v6095 = vunpack.c.l.b16 %v4901
    %v6096 = vunpack.c.h.b16 %v4901
    %v6097 = vunpack.c.l.b16 %v4902
    %v6098 = vunpack.c.h.b16 %v4902
    %v6099 = vunpack.c.l.b16 %v4903
    %v6100 = vunpack.c.h.b16 %v4903
    %v6101 = vunpack.c.l.b16 %v4904
    %v6102 = vunpack.c.h.b16 %v4904
    %v6103 = vunpack.c.l.b16 %v4905
    %v6104 = vunpack.c.h.b16 %v4905
    %v6105 = vunpack.c.l.b16 %v4906
    %v6106 = vunpack.c.h.b16 %v4906
    %v6107 = vunpack.c.l.b16 %v4907
    %v6108 = vunpack.c.h.b16 %v4907
    %v6109 = vunpack.c.l.b16 %v4908
    %v6110 = vunpack.c.h.b16 %v4908
    %v6111 = vunpack.c.l.b16 %v4909
    %v6112 = vunpack.c.h.b16 %v4909
    %v6113 = vunpack.c.l.b16 %v4910
    %v6114 = vunpack.c.h.b16 %v4910
    %v6115 = vunpack.c.l.b16 %v4911
    %v6116 = vunpack.c.h.b16 %v4911
    %v6117 = vunpack.c.l.b16 %v4912
    %v6118 = vunpack.c.h.b16 %v4912
    %v6119 = vunpack.c.l.b16 %v4913
    %v6120 = vunpack.c.h.b16 %v4913
    %v6121 = vunpack.c.l.b16 %v4914
    %v6122 = vunpack.c.h.b16 %v4914
    %v6123 = vunpack.c.l.b16 %v4915
    %v6124 = vunpack.c.h.b16 %v4915
    %v6125 = vunpack.c.l.b16 %v4916
    %v6126 = vunpack.c.h.b16 %v4916
    %v6127 = vunpack.c.l.b16 %v4917
    %v6128 = vunpack.c.h.b16 %v4917
    %v6129 = vunpack.c.l.b16 %v4918
    %v6130 = vunpack.c.h.b16 %v4918
    %v6131 = vunpack.c.l.b16 %v4919
    %v6132 = vunpack.c.h.b16 %v4919
    %v6133 = vunpack.c.l.b16 %v4920
    %v6134 = vunpack.c.h.b16 %v4920
    %v6135 = vunpack.c.l.b16 %v4921
    %v6136 = vunpack.c.h.b16 %v4921
    %v6137 = vunpack.c.l.b16 %v4922
    %v6138 = vunpack.c.h.b16 %v4922
    %v6139 = vunpack.c.l.b16 %v4923
    %v6140 = vunpack.c.h.b16 %v4923
    %v6141 = vunpack.c.l.b16 %v4924
    %v6142 = vunpack.c.h.b16 %v4924
    %v6143 = vunpack.c.l.b16 %v4925
    %v6144 = vunpack.c.h.b16 %v4925
    %v6145 = vunpack.c.l.b16 %v4926
    %v6146 = vunpack.c.h.b16 %v4926
    %v6147 = vunpack.c.l.b16 %v4927
    %v6148 = vunpack.c.h.b16 %v4927
    %v6149 = vunpack.c.l.b16 %v4928
    %v6150 = vunpack.c.h.b16 %v4928
    %v6151 = vunpack.c.l.b16 %v4929
    %v6152 = vunpack.c.h.b16 %v4929
    %v6153 = vunpack.c.l.b16 %v4930
    %v6154 = vunpack.c.h.b16 %v4930
    %v6155 = vunpack.c.l.b16 %v4931
    %v6156 = vunpack.c.h.b16 %v4931
    %v6157 = vunpack.c.l.b16 %v4932
    %v6158 = vunpack.c.h.b16 %v4932
    %v6159 = vunpack.c.l.b16 %v4933
    %v6160 = vunpack.c.h.b16 %v4933
    %v6161 = vunpack.c.l.b16 %v4934
    %v6162 = vunpack.c.h.b16 %v4934
    %v6163 = vunpack.c.l.b16 %v4935
    %v6164 = vunpack.c.h.b16 %v4935
    %v6165 = vunpack.c.l.b16 %v4936
    %v6166 = vunpack.c.h.b16 %v4936
    %v6167 = vunpack.c.l.b16 %v4937
    %v6168 = vunpack.c.h.b16 %v4937
    %v6169 = vunpack.c.l.b16 %v4938
    %v6170 = vunpack.c.h.b16 %v4938
    %v6171 = vunpack.c.l.b16 %v4939
    %v6172 = vunpack.c.h.b16 %v4939
    %v6173 = vunpack.c.l.b16 %v4940
    %v6174 = vunpack.c.h.b16 %v4940
    %v6175 = vunpack.c.l.b16 %v4941
    %v6176 = vunpack.c.h.b16 %v4941
    %v6177 = vunpack.c.l.b16 %v4942
    %v6178 = vunpack.c.h.b16 %v4942
    %v6179 = vunpack.c.l.b16 %v4943
    %v6180 = vunpack.c.h.b16 %v4943
    %v6181 = vunpack.c.l.b16 %v4944
    %v6182 = vunpack.c.h.b16 %v4944
    %v6183 = vunpack.c.l.b16 %v4945
    %v6184 = vunpack.c.h.b16 %v4945
    %v6185 = vunpack.c.l.b16 %v4946
    %v6186 = vunpack.c.h.b16 %v4946
    %v6187 = vunpack.c.l.b16 %v4947
    %v6188 = vunpack.c.h.b16 %v4947
    %v6189 = vunpack.c.l.b16 %v4948
    %v6190 = vunpack.c.h.b16 %v4948
    %v6191 = vunpack.c.l.b16 %v4949
    %v6192 = vunpack.c.h.b16 %v4949
    %v6193 = vunpack.c.l.b16 %v4950
    %v6194 = vunpack.c.h.b16 %v4950
    %v6195 = vunpack.c.l.b16 %v4951
    %v6196 = vunpack.c.h.b16 %v4951
    %v6197 = vunpack.c.l.b16 %v4952
    %v6198 = vunpack.c.h.b16 %v4952
    %v6199 = vunpack.c.l.b16 %v4953
    %v6200 = vunpack.c.h.b16 %v4953
    %v6201 = vunpack.c.l.b16 %v4954
    %v6202 = vunpack.c.h.b16 %v4954
    %v6203 = vunpack.c.l.b16 %v4955
    %v6204 = vunpack.c.h.b16 %v4955
    %v6205 = vunpack.c.l.b16 %v4956
    %v6206 = vunpack.c.h.b16 %v4956
    %v6207 = vunpack.c.l.b16 %v4957
    %v6208 = vunpack.c.h.b16 %v4957
    %v6209 = vunpack.c.l.b16 %v4958
    %v6210 = vunpack.c.h.b16 %v4958
    %v6211 = vunpack.c.l.b16 %v4959
    %v6212 = vunpack.c.h.b16 %v4959
    %v6213 = vunpack.c.l.b16 %v4960
    %v6214 = vunpack.c.h.b16 %v4960
    %v6215 = vunpack.c.l.b16 %v4961
    %v6216 = vunpack.c.h.b16 %v4961
    %v6217 = vunpack.c.l.b16 %v4962
    %v6218 = vunpack.c.h.b16 %v4962
    %v6219 = vunpack.c.l.b16 %v4963
    %v6220 = vunpack.c.h.b16 %v4963
    %v6221 = vunpack.c.l.b16 %v4964
    %v6222 = vunpack.c.h.b16 %v4964
    %v6223 = vunpack.c.l.b16 %v4965
    %v6224 = vunpack.c.h.b16 %v4965
    %v6225 = vunpack.c.l.b16 %v4966
    %v6226 = vunpack.c.h.b16 %v4966
    %v6227 = vunpack.c.l.b16 %v4967
    %v6228 = vunpack.c.h.b16 %v4967
    %v6229 = vunpack.c.l.b16 %v4968
    %v6230 = vunpack.c.h.b16 %v4968
    %v6231 = vunpack.c.l.b16 %v4969
    %v6232 = vunpack.c.h.b16 %v4969
    %v6233 = vunpack.c.l.b16 %v4970
    %v6234 = vunpack.c.h.b16 %v4970
    %v6235 = vunpack.c.l.b16 %v4971
    %v6236 = vunpack.c.h.b16 %v4971
    %v6237 = vunpack.c.l.b16 %v4972
    %v6238 = vunpack.c.h.b16 %v4972
    %v6239 = vunpack.c.l.b16 %v4973
    %v6240 = vunpack.c.h.b16 %v4973
    %v6241 = vunpack.c.l.b16 %v4974
    %v6242 = vunpack.c.h.b16 %v4974
    %v6243 = vunpack.c.l.b16 %v4975
    %v6244 = vunpack.c.h.b16 %v4975
    %v6245 = vunpack.c.l.b16 %v4976
    %v6246 = vunpack.c.h.b16 %v4976
    %v6247 = vunpack.c.l.b16 %v4977
    %v6248 = vunpack.c.h.b16 %v4977
    %v6249 = vunpack.c.l.b16 %v4978
    %v6250 = vunpack.c.h.b16 %v4978
    %v6251 = vunpack.c.l.b16 %v4979
    %v6252 = vunpack.c.h.b16 %v4979
    %v6253 = vunpack.c.l.b16 %v4980
    %v6254 = vunpack.c.h.b16 %v4980
    %v6255 = vunpack.c.l.b16 %v4981
    %v6256 = vunpack.c.h.b16 %v4981
    %v6257 = vunpack.c.l.b16 %v4982
    %v6258 = vunpack.c.h.b16 %v4982
    %v6259 = vunpack.c.l.b16 %v4983
    %v6260 = vunpack.c.h.b16 %v4983
    %v6261 = vunpack.c.l.b16 %v4984
    %v6262 = vunpack.c.h.b16 %v4984
    %v6263 = vunpack.c.l.b16 %v4985
    %v6264 = vunpack.c.h.b16 %v4985
    %v6265 = vunpack.c.l.b16 %v4986
    %v6266 = vunpack.c.h.b16 %v4986
    %v6267 = vunpack.c.l.b16 %v4987
    %v6268 = vunpack.c.h.b16 %v4987
    %v6269 = vunpack.c.l.b16 %v4988
    %v6270 = vunpack.c.h.b16 %v4988
    %v6271 = vunpack.c.l.b16 %v4989
    %v6272 = vunpack.c.h.b16 %v4989
    %v6273 = vunpack.c.l.b16 %v4990
    %v6274 = vunpack.c.h.b16 %v4990
    %v6275 = vunpack.c.l.b16 %v4991
    %v6276 = vunpack.c.h.b16 %v4991
    %v6277 = vunpack.c.l.b16 %v4992
    %v6278 = vunpack.c.h.b16 %v4992
    %v6279 = vunpack.c.l.b16 %v4993
    %v6280 = vunpack.c.h.b16 %v4993
    %v6281 = vunpack.c.l.b16 %v4994
    %v6282 = vunpack.c.h.b16 %v4994
    %v6283 = vunpack.c.l.b16 %v4995
    %v6284 = vunpack.c.h.b16 %v4995
    %v6285 = vunpack.c.l.b16 %v4996
    %v6286 = vunpack.c.h.b16 %v4996
    %v6287 = vunpack.c.l.b16 %v4997
    %v6288 = vunpack.c.h.b16 %v4997
    %v6289 = vunpack.c.l.b16 %v4998
    %v6290 = vunpack.c.h.b16 %v4998
    %v6291 = vunpack.c.l.b16 %v4999
    %v6292 = vunpack.c.h.b16 %v4999
    %v6293 = vunpack.c.l.b16 %v5000
    %v6294 = vunpack.c.h.b16 %v5000
    %v6295 = vunpack.c.l.b16 %v5001
    %v6296 = vunpack.c.h.b16 %v5001
    %v6297 = vunpack.c.l.b16 %v5002
    %v6298 = vunpack.c.h.b16 %v5002
    %v6299 = vunpack.c.l.b16 %v5003
    %v6300 = vunpack.c.h.b16 %v5003
    %v6301 = vunpack.c.l.b16 %v5004
    %v6302 = vunpack.c.h.b16 %v5004
    %v6303 = vunpack.c.l.b16 %v5005
    %v6304 = vunpack.c.h.b16 %v5005
    %v6305 = vunpack.c.l.b16 %v5006
    %v6306 = vunpack.c.h.b16 %v5006
    %v6307 = vunpack.c.l.b16 %v5007
    %v6308 = vunpack.c.h.b16 %v5007
    %v6309 = vunpack.c.l.b16 %v5008
    %v6310 = vunpack.c.h.b16 %v5008
    %v6311 = vunpack.c.l.b16 %v5009
    %v6312 = vunpack.c.h.b16 %v5009
    %v6313 = vunpack.c.l.b16 %v5010
    %v6314 = vunpack.c.h.b16 %v5010
    %v6315 = vunpack.c.l.b16 %v5011
    %v6316 = vunpack.c.h.b16 %v5011
    %v6317 = vunpack.c.l.b16 %v5012
    %v6318 = vunpack.c.h.b16 %v5012
    %v6319 = vunpack.c.l.b16 %v5013
    %v6320 = vunpack.c.h.b16 %v5013
    %v6321 = vunpack.c.l.b16 %v5014
    %v6322 = vunpack.c.h.b16 %v5014
    %v6323 = vunpack.c.l.b16 %v5015
    %v6324 = vunpack.c.h.b16 %v5015
    %v6325 = vunpack.c.l.b16 %v5016
    %v6326 = vunpack.c.h.b16 %v5016
    %v6327 = vunpack.c.l.b16 %v5017
    %v6328 = vunpack.c.h.b16 %v5017
    %v6329 = vunpack.c.l.b16 %v5018
    %v6330 = vunpack.c.h.b16 %v5018
    %v6331 = vunpack.c.l.b16 %v5019
    %v6332 = vunpack.c.h.b16 %v5019
    %v6333 = vunpack.c.l.b16 %v5020
    %v6334 = vunpack.c.h.b16 %v5020
    %v6335 = vunpack.c.l.b16 %v5021
    %v6336 = vunpack.c.h.b16 %v5021
    %v6337 = vunpack.c.l.b16 %v5022
    %v6338 = vunpack.c.h.b16 %v5022
    %v6339 = vunpack.c.l.b16 %v5023
    %v6340 = vunpack.c.h.b16 %v5023
    %v6341 = vunpack.c.l.b16 %v5024
    %v6342 = vunpack.c.h.b16 %v5024
    %v6343 = vunpack.c.l.b16 %v5025
    %v6344 = vunpack.c.h.b16 %v5025
    %v6345 = vunpack.c.l.b16 %v5026
    %v6346 = vunpack.c.h.b16 %v5026
    %v6347 = vunpack.c.l.b16 %v5027
    %v6348 = vunpack.c.h.b16 %v5027
    %v6349 = vunpack.c.l.b16 %v5028
    %v6350 = vunpack.c.h.b16 %v5028
    %v6351 = vunpack.c.l.b16 %v5029
    %v6352 = vunpack.c.h.b16 %v5029
    %v6353 = vunpack.c.l.b16 %v5030
    %v6354 = vunpack.c.h.b16 %v5030
    %v6355 = vunpack.c.l.b16 %v5031
    %v6356 = vunpack.c.h.b16 %v5031
    %v6357 = vunpack.c.l.b16 %v5032
    %v6358 = vunpack.c.h.b16 %v5032
    %v6359 = vunpack.c.l.b16 %v5033
    %v6360 = vunpack.c.h.b16 %v5033
    %v6361 = vunpack.c.l.b16 %v5034
    %v6362 = vunpack.c.h.b16 %v5034
    %v6363 = vunpack.c.l.b16 %v5035
    %v6364 = vunpack.c.h.b16 %v5035
    %v6365 = vunpack.c.l.b16 %v5036
    %v6366 = vunpack.c.h.b16 %v5036
    %v6367 = vunpack.c.l.b16 %v5037
    %v6368 = vunpack.c.h.b16 %v5037
    %v6369 = vunpack.c.l.b16 %v5038
    %v6370 = vunpack.c.h.b16 %v5038
    %v6371 = vunpack.c.l.b16 %v5039
    %v6372 = vunpack.c.h.b16 %v5039
    %v6373 = vunpack.c.l.b16 %v5040
    %v6374 = vunpack.c.h.b16 %v5040
    %v6375 = vunpack.c.l.b16 %v5041
    %v6376 = vunpack.c.h.b16 %v5041
    %v6377 = vunpack.c.l.b16 %v5042
    %v6378 = vunpack.c.h.b16 %v5042
    %v6379 = vunpack.c.l.b16 %v5043
    %v6380 = vunpack.c.h.b16 %v5043
    %v6381 = vunpack.c.l.b16 %v5044
    %v6382 = vunpack.c.h.b16 %v5044
    %v6383 = vunpack.c.l.b16 %v5045
    %v6384 = vunpack.c.h.b16 %v5045
    %v6385 = vunpack.c.l.b16 %v5046
    %v6386 = vunpack.c.h.b16 %v5046
    %v6387 = vunpack.c.l.b16 %v5047
    %v6388 = vunpack.c.h.b16 %v5047
    %v6389 = vunpack.c.l.b16 %v5048
    %v6390 = vunpack.c.h.b16 %v5048
    %v6391 = vunpack.c.l.b16 %v5049
    %v6392 = vunpack.c.h.b16 %v5049
    %v6393 = vunpack.c.l.b16 %v5050
    %v6394 = vunpack.c.h.b16 %v5050
    %v6395 = vunpack.c.l.b16 %v5051
    %v6396 = vunpack.c.h.b16 %v5051
    %v6397 = vunpack.c.l.b16 %v5052
    %v6398 = vunpack.c.h.b16 %v5052
    %v6399 = vunpack.c.l.b16 %v5053
    %v6400 = vunpack.c.h.b16 %v5053
    %v6401 = vunpack.c.l.b16 %v5054
    %v6402 = vunpack.c.h.b16 %v5054
    %v6403 = vunpack.c.l.b16 %v5055
    %v6404 = vunpack.c.h.b16 %v5055
    %v6405 = vunpack.c.l.b16 %v5056
    %v6406 = vunpack.c.h.b16 %v5056
    %v6407 = vunpack.c.l.b16 %v5057
    %v6408 = vunpack.c.h.b16 %v5057
    %v6409 = vunpack.c.l.b16 %v5058
    %v6410 = vunpack.c.h.b16 %v5058
    %v6411 = vunpack.c.l.b16 %v5059
    %v6412 = vunpack.c.h.b16 %v5059
    %v6413 = vunpack.c.l.b16 %v5060
    %v6414 = vunpack.c.h.b16 %v5060
    %v6415 = vunpack.c.l.b16 %v5061
    %v6416 = vunpack.c.h.b16 %v5061
    %v6417 = vunpack.c.l.b16 %v5062
    %v6418 = vunpack.c.h.b16 %v5062
    %v6419 = vunpack.c.l.b16 %v5063
    %v6420 = vunpack.c.h.b16 %v5063
    %v6421 = vunpack.c.l.b16 %v5064
    %v6422 = vunpack.c.h.b16 %v5064
    %v6423 = vunpack.c.l.b16 %v5065
    %v6424 = vunpack.c.h.b16 %v5065
    %v6425 = vunpack.c.l.b16 %v5066
    %v6426 = vunpack.c.h.b16 %v5066
    %v6427 = vunpack.c.l.b16 %v5067
    %v6428 = vunpack.c.h.b16 %v5067
    %v6429 = vunpack.c.l.b16 %v5068
    %v6430 = vunpack.c.h.b16 %v5068
    %v6431 = vunpack.c.l.b16 %v5069
    %v6432 = vunpack.c.h.b16 %v5069
    %v6433 = vunpack.c.l.b16 %v5070
    %v6434 = vunpack.c.h.b16 %v5070
    %v6435 = vunpack.c.l.b16 %v5071
    %v6436 = vunpack.c.h.b16 %v5071
    %v6437 = vunpack.c.l.b16 %v5072
    %v6438 = vunpack.c.h.b16 %v5072
    %v6439 = vunpack.c.l.b16 %v5073
    %v6440 = vunpack.c.h.b16 %v5073
    %v6441 = vunpack.c.l.b16 %v5074
    %v6442 = vunpack.c.h.b16 %v5074
    %v6443 = vunpack.c.l.b16 %v5075
    %v6444 = vunpack.c.h.b16 %v5075
    %v6445 = vunpack.c.l.b16 %v5076
    %v6446 = vunpack.c.h.b16 %v5076
    %v6447 = vunpack.c.l.b16 %v5077
    %v6448 = vunpack.c.h.b16 %v5077
    %v6449 = vunpack.c.l.b16 %v5078
    %v6450 = vunpack.c.h.b16 %v5078
    %v6451 = vunpack.c.l.b16 %v5079
    %v6452 = vunpack.c.h.b16 %v5079
    %v6453 = vunpack.c.l.b16 %v5080
    %v6454 = vunpack.c.h.b16 %v5080
    %v6455 = vunpack.c.l.b16 %v5081
    %v6456 = vunpack.c.h.b16 %v5081
    %v6457 = vunpack.c.l.b16 %v5082
    %v6458 = vunpack.c.h.b16 %v5082
    %v6459 = vunpack.c.l.b16 %v5083
    %v6460 = vunpack.c.h.b16 %v5083
    %v6461 = vunpack.c.l.b16 %v5084
    %v6462 = vunpack.c.h.b16 %v5084
    %v6463 = vunpack.c.l.b16 %v5085
    %v6464 = vunpack.c.h.b16 %v5085
    %v6465 = vunpack.c.l.b16 %v5086
    %v6466 = vunpack.c.h.b16 %v5086
    %v6467 = vunpack.c.l.b16 %v5087
    %v6468 = vunpack.c.h.b16 %v5087
    %v6469 = vunpack.c.l.b16 %v5088
    %v6470 = vunpack.c.h.b16 %v5088
    %v6471 = vunpack.c.l.b16 %v5089
    %v6472 = vunpack.c.h.b16 %v5089
    %v6473 = vunpack.c.l.b16 %v5090
    %v6474 = vunpack.c.h.b16 %v5090
    %v6475 = vunpack.c.l.b16 %v5091
    %v6476 = vunpack.c.h.b16 %v5091
    %v6477 = vunpack.c.l.b16 %v5092
    %v6478 = vunpack.c.h.b16 %v5092
    %v6479 = vunpack.c.l.b16 %v5093
    %v6480 = vunpack.c.h.b16 %v5093
    %v6481 = vunpack.c.l.b16 %v5094
    %v6482 = vunpack.c.h.b16 %v5094
    %v6483 = vunpack.c.l.b16 %v5095
    %v6484 = vunpack.c.h.b16 %v5095
    %v6485 = vunpack.c.l.b16 %v5096
    %v6486 = vunpack.c.h.b16 %v5096
    %v6487 = vunpack.c.l.b16 %v5097
    %v6488 = vunpack.c.h.b16 %v5097
    %v6489 = vunpack.c.l.b16 %v5098
    %v6490 = vunpack.c.h.b16 %v5098
    %v6491 = vunpack.c.l.b16 %v5099
    %v6492 = vunpack.c.h.b16 %v5099
    %v6493 = vunpack.c.l.b16 %v5100
    %v6494 = vunpack.c.h.b16 %v5100
    %v6495 = vunpack.c.l.b16 %v5101
    %v6496 = vunpack.c.h.b16 %v5101
    %v6497 = vunpack.c.l.b16 %v5102
    %v6498 = vunpack.c.h.b16 %v5102
    %v6499 = vunpack.c.l.b16 %v5103
    %v6500 = vunpack.c.h.b16 %v5103
    %v6501 = vunpack.c.l.b16 %v5104
    %v6502 = vunpack.c.h.b16 %v5104
    %v6503 = vunpack.c.l.b16 %v5105
    %v6504 = vunpack.c.h.b16 %v5105
    %v6505 = vunpack.c.l.b16 %v5106
    %v6506 = vunpack.c.h.b16 %v5106
    %v6507 = vunpack.c.l.b16 %v5107
    %v6508 = vunpack.c.h.b16 %v5107
    %v6509 = vunpack.c.l.b16 %v5108
    %v6510 = vunpack.c.h.b16 %v5108
    %v6511 = vunpack.c.l.b16 %v5109
    %v6512 = vunpack.c.h.b16 %v5109
    %v6513 = vunpack.c.l.b16 %v5110
    %v6514 = vunpack.c.h.b16 %v5110
    %v6515 = vunpack.c.l.b16 %v5111
    %v6516 = vunpack.c.h.b16 %v5111
    %v6517 = vunpack.c.l.b16 %v5112
    %v6518 = vunpack.c.h.b16 %v5112
    %v6519 = vunpack.c.l.b16 %v5113
    %v6520 = vunpack.c.h.b16 %v5113
    %v6521 = vunpack.c.l.b16 %v5114
    %v6522 = vunpack.c.h.b16 %v5114
    %v6523 = vunpack.c.l.b16 %v5115
    %v6524 = vunpack.c.h.b16 %v5115
    %v6525 = vunpack.c.l.b16 %v5116
    %v6526 = vunpack.c.h.b16 %v5116
    %v6527 = vunpack.c.l.b16 %v5117
    %v6528 = vunpack.c.h.b16 %v5117
    %v6529 = vunpack.c.l.b16 %v5118
    %v6530 = vunpack.c.h.b16 %v5118
    %v6531 = vunpack.c.l.b16 %v5119
    %v6532 = vunpack.c.h.b16 %v5119
    %v6533 = vunpack.c.l.b16 %v5120
    %v6534 = vunpack.c.h.b16 %v5120
    %v6535 = vunpack.c.l.b16 %v5121
    %v6536 = vunpack.c.h.b16 %v5121
    %v6537 = vunpack.c.l.b16 %v5122
    %v6538 = vunpack.c.h.b16 %v5122
    %v6539 = vunpack.c.l.b16 %v5123
    %v6540 = vunpack.c.h.b16 %v5123
    %v6541 = vunpack.c.l.b16 %v5124
    %v6542 = vunpack.c.h.b16 %v5124
    %v6543 = vunpack.c.l.b16 %v5125
    %v6544 = vunpack.c.h.b16 %v5125
    %v6545 = vunpack.c.l.b16 %v5126
    %v6546 = vunpack.c.h.b16 %v5126
    %v6547 = vunpack.c.l.b16 %v5127
    %v6548 = vunpack.c.h.b16 %v5127
    %v6549 = vunpack.c.l.b16 %v5128
    %v6550 = vunpack.c.h.b16 %v5128
    %v6551 = vunpack.c.l.b16 %v5129
    %v6552 = vunpack.c.h.b16 %v5129
    %v6553 = vunpack.c.l.b16 %v5130
    %v6554 = vunpack.c.h.b16 %v5130
    %v6555 = vunpack.c.l.b16 %v5131
    %v6556 = vunpack.c.h.b16 %v5131
    %v6557 = vunpack.c.l.b16 %v5132
    %v6558 = vunpack.c.h.b16 %v5132
    %v6559 = vunpack.c.l.b16 %v5133
    %v6560 = vunpack.c.h.b16 %v5133
    %v6561 = vunpack.c.l.b16 %v5134
    %v6562 = vunpack.c.h.b16 %v5134
    %v6563 = vunpack.c.l.b16 %v5135
    %v6564 = vunpack.c.h.b16 %v5135
    %v6565 = vunpack.c.l.b16 %v5136
    %v6566 = vunpack.c.h.b16 %v5136
    %v6567 = vunpack.c.l.b16 %v5137
    %v6568 = vunpack.c.h.b16 %v5137
    %v6569 = vunpack.c.l.b16 %v5138
    %v6570 = vunpack.c.h.b16 %v5138
    %v6571 = vunpack.c.l.b16 %v5139
    %v6572 = vunpack.c.h.b16 %v5139
    %v6573 = vunpack.c.l.b16 %v5140
    %v6574 = vunpack.c.h.b16 %v5140
    %v6575 = vunpack.c.l.b16 %v5141
    %v6576 = vunpack.c.h.b16 %v5141
    %v6577 = vunpack.c.l.b16 %v5142
    %v6578 = vunpack.c.h.b16 %v5142
    %v6579 = vunpack.c.l.b16 %v5143
    %v6580 = vunpack.c.h.b16 %v5143
    %v6581 = vunpack.c.l.b16 %v5144
    %v6582 = vunpack.c.h.b16 %v5144
    %v6583 = vunpack.c.l.b16 %v5145
    %v6584 = vunpack.c.h.b16 %v5145
    %v6585 = vunpack.c.l.b16 %v5146
    %v6586 = vunpack.c.h.b16 %v5146
    %v6587 = vunpack.c.l.b16 %v5147
    %v6588 = vunpack.c.h.b16 %v5147
    %v6589 = vunpack.c.l.b16 %v5148
    %v6590 = vunpack.c.h.b16 %v5148
    %v6591 = vunpack.c.l.b16 %v5149
    %v6592 = vunpack.c.h.b16 %v5149
    %v6593 = vunpack.c.l.b16 %v5150
    %v6594 = vunpack.c.h.b16 %v5150
    %v6595 = vunpack.c.l.b16 %v5151
    %v6596 = vunpack.c.h.b16 %v5151
    %v6597 = vunpack.c.l.b16 %v5152
    %v6598 = vunpack.c.h.b16 %v5152
    %v6599 = vunpack.c.l.b16 %v5153
    %v6600 = vunpack.c.h.b16 %v5153
    %v6601 = vunpack.c.l.b16 %v5154
    %v6602 = vunpack.c.h.b16 %v5154
    %v6603 = vunpack.c.l.b16 %v5155
    %v6604 = vunpack.c.h.b16 %v5155
    %v6605 = vunpack.c.l.b16 %v5156
    %v6606 = vunpack.c.h.b16 %v5156
    %v6607 = vunpack.c.l.b16 %v5157
    %v6608 = vunpack.c.h.b16 %v5157
    %v6609 = vunpack.c.l.b16 %v5158
    %v6610 = vunpack.c.h.b16 %v5158
    %v6611 = vunpack.c.l.b16 %v5159
    %v6612 = vunpack.c.h.b16 %v5159
    %v6613 = vunpack.c.l.b16 %v5160
    %v6614 = vunpack.c.h.b16 %v5160
    %v6615 = vunpack.c.l.b16 %v5161
    %v6616 = vunpack.c.h.b16 %v5161
    %v6617 = vunpack.c.l.b16 %v5162
    %v6618 = vunpack.c.h.b16 %v5162
    %v6619 = vunpack.c.l.b16 %v5163
    %v6620 = vunpack.c.h.b16 %v5163
    %v6621 = vunpack.c.l.b16 %v5164
    %v6622 = vunpack.c.h.b16 %v5164
    %v6623 = vunpack.c.l.b16 %v5165
    %v6624 = vunpack.c.h.b16 %v5165
    %v6625 = vunpack.c.l.b16 %v5166
    %v6626 = vunpack.c.h.b16 %v5166
    %v6627 = vunpack.c.l.b16 %v5167
    %v6628 = vunpack.c.h.b16 %v5167
    %v6629 = vunpack.c.l.b16 %v5168
    %v6630 = vunpack.c.h.b16 %v5168
    %v6631 = vunpack.c.l.b16 %v5169
    %v6632 = vunpack.c.h.b16 %v5169
    %v6633 = vunpack.c.l.b16 %v5170
    %v6634 = vunpack.c.h.b16 %v5170
    %v6635 = vunpack.c.l.b16 %v5171
    %v6636 = vunpack.c.h.b16 %v5171
    %v6637 = vunpack.c.l.b16 %v5172
    %v6638 = vunpack.c.h.b16 %v5172
    %v6639 = vunpack.c.l.b16 %v5173
    %v6640 = vunpack.c.h.b16 %v5173
    %v6641 = vunpack.c.l.b16 %v5174
    %v6642 = vunpack.c.h.b16 %v5174
    %v6643 = vunpack.c.l.b16 %v5175
    %v6644 = vunpack.c.h.b16 %v5175
    %v6645 = vunpack.c.l.b16 %v5176
    %v6646 = vunpack.c.h.b16 %v5176
    %v6647 = vunpack.c.l.b16 %v5177
    %v6648 = vunpack.c.h.b16 %v5177
    %v6649 = vunpack.c.l.b16 %v5178
    %v6650 = vunpack.c.h.b16 %v5178
    %v6651 = vunpack.c.l.b16 %v5179
    %v6652 = vunpack.c.h.b16 %v5179
    %v6653 = vunpack.c.l.b16 %v5180
    %v6654 = vunpack.c.h.b16 %v5180
    %v6655 = vunpack.c.l.b16 %v5181
    %v6656 = vunpack.c.h.b16 %v5181
    %v6657 = vunpack.c.l.b16 %v5182
    %v6658 = vunpack.c.h.b16 %v5182
    %v6659 = vunpack.c.l.b16 %v5183
    %v6660 = vunpack.c.h.b16 %v5183
    %v6661 = vunpack.c.l.b16 %v5184
    %v6662 = vunpack.c.h.b16 %v5184
    %v6663 = vunpack.c.l.b16 %v5185
    %v6664 = vunpack.c.h.b16 %v5185
    %v6665 = vunpack.c.l.b16 %v5186
    %v6666 = vunpack.c.h.b16 %v5186
    %v6667 = vunpack.c.l.b16 %v5187
    %v6668 = vunpack.c.h.b16 %v5187
    %v6669 = vunpack.c.l.b16 %v5188
    %v6670 = vunpack.c.h.b16 %v5188
    %v6671 = vunpack.c.l.b16 %v5189
    %v6672 = vunpack.c.h.b16 %v5189
    %v6673 = vunpack.c.l.b16 %v5190
    %v6674 = vunpack.c.h.b16 %v5190
    %v6675 = vunpack.c.l.b16 %v5191
    %v6676 = vunpack.c.h.b16 %v5191
    %v6677 = vunpack.c.l.b16 %v5192
    %v6678 = vunpack.c.h.b16 %v5192
    %v6679 = vunpack.c.l.b16 %v5193
    %v6680 = vunpack.c.h.b16 %v5193
    %v6681 = vunpack.c.l.b16 %v5194
    %v6682 = vunpack.c.h.b16 %v5194
    %v6683 = vunpack.c.l.b16 %v5195
    %v6684 = vunpack.c.h.b16 %v5195
    %v6685 = vunpack.c.l.b16 %v5196
    %v6686 = vunpack.c.h.b16 %v5196
    %v6687 = vunpack.c.l.b16 %v5197
    %v6688 = vunpack.c.h.b16 %v5197
    %v6689 = vunpack.c.l.b16 %v5198
    %v6690 = vunpack.c.h.b16 %v5198
    %v6691 = vunpack.c.l.b16 %v5199
    %v6692 = vunpack.c.h.b16 %v5199
    %v6693 = vunpack.c.l.b16 %v5200
    %v6694 = vunpack.c.h.b16 %v5200
    %v6695 = vunpack.c.l.b16 %v5201
    %v6696 = vunpack.c.h.b16 %v5201
    %v6697 = vunpack.c.l.b16 %v5202
    %v6698 = vunpack.c.h.b16 %v5202
    %v6699 = vunpack.c.l.b16 %v5203
    %v6700 = vunpack.c.h.b16 %v5203
    %v6701 = vunpack.c.l.b16 %v5204
    %v6702 = vunpack.c.h.b16 %v5204
    %v6703 = vunpack.c.l.b16 %v5205
    %v6704 = vunpack.c.h.b16 %v5205
    %v6705 = vunpack.c.l.b16 %v5206
    %v6706 = vunpack.c.h.b16 %v5206
    %v6707 = vunpack.c.l.b16 %v5207
    %v6708 = vunpack.c.h.b16 %v5207
    %v6709 = vunpack.c.l.b16 %v5208
    %v6710 = vunpack.c.h.b16 %v5208
    %v6711 = vunpack.c.l.b16 %v5209
    %v6712 = vunpack.c.h.b16 %v5209
    %v6713 = vunpack.c.l.b16 %v5210
    %v6714 = vunpack.c.h.b16 %v5210
    %v6715 = vunpack.c.l.b16 %v5211
    %v6716 = vunpack.c.h.b16 %v5211
    %v6717 = vunpack.c.l.b16 %v5212
    %v6718 = vunpack.c.h.b16 %v5212
    %v6719 = vunpack.c.l.b16 %v5213
    %v6720 = vunpack.c.h.b16 %v5213
    %v6721 = vunpack.c.l.b16 %v5214
    %v6722 = vunpack.c.h.b16 %v5214
    %v6723 = vunpack.c.l.b16 %v5215
    %v6724 = vunpack.c.h.b16 %v5215
    %v6725 = vunpack.c.l.b16 %v5216
    %v6726 = vunpack.c.h.b16 %v5216
    %v6727 = vunpack.c.l.b16 %v5217
    %v6728 = vunpack.c.h.b16 %v5217
    %v6729 = vunpack.c.l.b16 %v5218
    %v6730 = vunpack.c.h.b16 %v5218
    %v6731 = vunpack.c.l.b16 %v5219
    %v6732 = vunpack.c.h.b16 %v5219
    %v6733 = vunpack.c.l.b16 %v5220
    %v6734 = vunpack.c.h.b16 %v5220
    %v6735 = vunpack.c.l.b16 %v5221
    %v6736 = vunpack.c.h.b16 %v5221
    %v6737 = vunpack.c.l.b16 %v5222
    %v6738 = vunpack.c.h.b16 %v5222
    %v6739 = vunpack.c.l.b16 %v5223
    %v6740 = vunpack.c.h.b16 %v5223
    %v6741 = vunpack.c.l.b16 %v5224
    %v6742 = vunpack.c.h.b16 %v5224
    %v6743 = vunpack.c.l.b16 %v5225
    %v6744 = vunpack.c.h.b16 %v5225
    %v6745 = vunpack.c.l.b16 %v5226
    %v6746 = vunpack.c.h.b16 %v5226
    %v6747 = vunpack.c.l.b16 %v5227
    %v6748 = vunpack.c.h.b16 %v5227
    %v6749 = vunpack.c.l.b16 %v5228
    %v6750 = vunpack.c.h.b16 %v5228
    %v6751 = vunpack.c.l.b16 %v5229
    %v6752 = vunpack.c.h.b16 %v5229
    %v6753 = vunpack.c.l.b16 %v5230
    %v6754 = vunpack.c.h.b16 %v5230
    %v6755 = vunpack.c.l.b16 %v5231
    %v6756 = vunpack.c.h.b16 %v5231
    %v6757 = vunpack.c.l.b16 %v5232
    %v6758 = vunpack.c.h.b16 %v5232
    %v6759 = vunpack.c.l.b16 %v5233
    %v6760 = vunpack.c.h.b16 %v5233
    %v6761 = vunpack.c.l.b16 %v5234
    %v6762 = vunpack.c.h.b16 %v5234
    %v6763 = vunpack.c.l.b16 %v5235
    %v6764 = vunpack.c.h.b16 %v5235
    %v6765 = vunpack.c.l.b16 %v5236
    %v6766 = vunpack.c.h.b16 %v5236
    %v6767 = vunpack.c.l.b16 %v5237
    %v6768 = vunpack.c.h.b16 %v5237
    %v6769 = vunpack.c.l.b16 %v5238
    %v6770 = vunpack.c.h.b16 %v5238
    %v6771 = vunpack.c.l.b16 %v5239
    %v6772 = vunpack.c.h.b16 %v5239
    %v6773 = vunpack.c.l.b16 %v5240
    %v6774 = vunpack.c.h.b16 %v5240
    %v6775 = vunpack.c.l.b16 %v5241
    %v6776 = vunpack.c.h.b16 %v5241
    %v6777 = vunpack.c.l.b16 %v5242
    %v6778 = vunpack.c.h.b16 %v5242
    %v6779 = vpack.c.b16 %v5763, %v5755
    %v6780 = vpack.c.b16 %v5764, %v5756
    %v6781 = vpack.c.b16 %v5765, %v5757
    %v6782 = vpack.c.b16 %v5766, %v5758
    %v6783 = vpack.c.b16 %v5767, %v5759
    %v6784 = vpack.c.b16 %v5768, %v5760
    %v6785 = vpack.c.b16 %v5769, %v5761
    %v6786 = vpack.c.b16 %v5770, %v5762
    %v6787 = vpack.c.b16 %v5779, %v5771
    %v6788 = vpack.c.b16 %v5780, %v5772
    %v6789 = vpack.c.b16 %v5781, %v5773
    %v6790 = vpack.c.b16 %v5782, %v5774
    %v6791 = vpack.c.b16 %v5783, %v5775
    %v6792 = vpack.c.b16 %v5784, %v5776
    %v6793 = vpack.c.b16 %v5785, %v5777
    %v6794 = vpack.c.b16 %v5786, %v5778
    %v6795 = vpack.c.b16 %v5795, %v5787
    %v6796 = vpack.c.b16 %v5796, %v5788
    %v6797 = vpack.c.b16 %v5797, %v5789
    %v6798 = vpack.c.b16 %v5798, %v5790
    %v6799 = vpack.c.b16 %v5799, %v5791
    %v6800 = vpack.c.b16 %v5800, %v5792
    %v6801 = vpack.c.b16 %v5801, %v5793
    %v6802 = vpack.c.b16 %v5802, %v5794
    %v6803 = vpack.c.b16 %v5811, %v5803
    %v6804 = vpack.c.b16 %v5812, %v5804
    %v6805 = vpack.c.b16 %v5813, %v5805
    %v6806 = vpack.c.b16 %v5814, %v5806
    %v6807 = vpack.c.b16 %v5815, %v5807
    %v6808 = vpack.c.b16 %v5816, %v5808
    %v6809 = vpack.c.b16 %v5817, %v5809
    %v6810 = vpack.c.b16 %v5818, %v5810
    %v6811 = vpack.c.b16 %v5827, %v5819
    %v6812 = vpack.c.b16 %v5828, %v5820
    %v6813 = vpack.c.b16 %v5829, %v5821
    %v6814 = vpack.c.b16 %v5830, %v5822
    %v6815 = vpack.c.b16 %v5831, %v5823
    %v6816 = vpack.c.b16 %v5832, %v5824
    %v6817 = vpack.c.b16 %v5833, %v5825
    %v6818 = vpack.c.b16 %v5834, %v5826
    %v6819 = vpack.c.b16 %v5843, %v5835
    %v6820 = vpack.c.b16 %v5844, %v5836
    %v6821 = vpack.c.b16 %v5845, %v5837
    %v6822 = vpack.c.b16 %v5846, %v5838
    %v6823 = vpack.c.b16 %v5847, %v5839
    %v6824 = vpack.c.b16 %v5848, %v5840
    %v6825 = vpack.c.b16 %v5849, %v5841
    %v6826 = vpack.c.b16 %v5850, %v5842
    %v6827 = vpack.c.b16 %v5859, %v5851
    %v6828 = vpack.c.b16 %v5860, %v5852
    %v6829 = vpack.c.b16 %v5861, %v5853
    %v6830 = vpack.c.b16 %v5862, %v5854
    %v6831 = vpack.c.b16 %v5863, %v5855
    %v6832 = vpack.c.b16 %v5864, %v5856
    %v6833 = vpack.c.b16 %v5865, %v5857
    %v6834 = vpack.c.b16 %v5866, %v5858
    %v6835 = vpack.c.b16 %v5875, %v5867
    %v6836 = vpack.c.b16 %v5876, %v5868
    %v6837 = vpack.c.b16 %v5877, %v5869
    %v6838 = vpack.c.b16 %v5878, %v5870
    %v6839 = vpack.c.b16 %v5879, %v5871
    %v6840 = vpack.c.b16 %v5880, %v5872
    %v6841 = vpack.c.b16 %v5881, %v5873
    %v6842 = vpack.c.b16 %v5882, %v5874
    %v6843 = vpack.c.b16 %v5891, %v5883
    %v6844 = vpack.c.b16 %v5892, %v5884
    %v6845 = vpack.c.b16 %v5893, %v5885
    %v6846 = vpack.c.b16 %v5894, %v5886
    %v6847 = vpack.c.b16 %v5895, %v5887
    %v6848 = vpack.c.b16 %v5896, %v5888
    %v6849 = vpack.c.b16 %v5897, %v5889
    %v6850 = vpack.c.b16 %v5898, %v5890
    %v6851 = vpack.c.b16 %v5907, %v5899
    %v6852 = vpack.c.b16 %v5908, %v5900
    %v6853 = vpack.c.b16 %v5909, %v5901
    %v6854 = vpack.c.b16 %v5910, %v5902
    %v6855 = vpack.c.b16 %v5911, %v5903
    %v6856 = vpack.c.b16 %v5912, %v5904
    %v6857 = vpack.c.b16 %v5913, %v5905
    %v6858 = vpack.c.b16 %v5914, %v5906
    %v6859 = vpack.c.b16 %v5923, %v5915
    %v6860 = vpack.c.b16 %v5924, %v5916
    %v6861 = vpack.c.b16 %v5925, %v5917
    %v6862 = vpack.c.b16 %v5926, %v5918
    %v6863 = vpack.c.b16 %v5927, %v5919
    %v6864 = vpack.c.b16 %v5928, %v5920
    %v6865 = vpack.c.b16 %v5929, %v5921
    %v6866 = vpack.c.b16 %v5930, %v5922
    %v6867 = vpack.c.b16 %v5939, %v5931
    %v6868 = vpack.c.b16 %v5940, %v5932
    %v6869 = vpack.c.b16 %v5941, %v5933
    %v6870 = vpack.c.b16 %v5942, %v5934
    %v6871 = vpack.c.b16 %v5943, %v5935
    %v6872 = vpack.c.b16 %v5944, %v5936
    %v6873 = vpack.c.b16 %v5945, %v5937
    %v6874 = vpack.c.b16 %v5946, %v5938
    %v6875 = vpack.c.b16 %v5955, %v5947
    %v6876 = vpack.c.b16 %v5956, %v5948
    %v6877 = vpack.c.b16 %v5957, %v5949
    %v6878 = vpack.c.b16 %v5958, %v5950
    %v6879 = vpack.c.b16 %v5959, %v5951
    %v6880 = vpack.c.b16 %v5960, %v5952
    %v6881 = vpack.c.b16 %v5961, %v5953
    %v6882 = vpack.c.b16 %v5962, %v5954
    %v6883 = vpack.c.b16 %v5971, %v5963
    %v6884 = vpack.c.b16 %v5972, %v5964
    %v6885 = vpack.c.b16 %v5973, %v5965
    %v6886 = vpack.c.b16 %v5974, %v5966
    %v6887 = vpack.c.b16 %v5975, %v5967
    %v6888 = vpack.c.b16 %v5976, %v5968
    %v6889 = vpack.c.b16 %v5977, %v5969
    %v6890 = vpack.c.b16 %v5978, %v5970
    %v6891 = vpack.c.b16 %v5987, %v5979
    %v6892 = vpack.c.b16 %v5988, %v5980
    %v6893 = vpack.c.b16 %v5989, %v5981
    %v6894 = vpack.c.b16 %v5990, %v5982
    %v6895 = vpack.c.b16 %v5991, %v5983
    %v6896 = vpack.c.b16 %v5992, %v5984
    %v6897 = vpack.c.b16 %v5993, %v5985
    %v6898 = vpack.c.b16 %v5994, %v5986
    %v6899 = vpack.c.b16 %v6003, %v5995
    %v6900 = vpack.c.b16 %v6004, %v5996
    %v6901 = vpack.c.b16 %v6005, %v5997
    %v6902 = vpack.c.b16 %v6006, %v5998
    %v6903 = vpack.c.b16 %v6007, %v5999
    %v6904 = vpack.c.b16 %v6008, %v6000
    %v6905 = vpack.c.b16 %v6009, %v6001
    %v6906 = vpack.c.b16 %v6010, %v6002
    %v6907 = vpack.c.b16 %v6019, %v6011
    %v6908 = vpack.c.b16 %v6020, %v6012
    %v6909 = vpack.c.b16 %v6021, %v6013
    %v6910 = vpack.c.b16 %v6022, %v6014
    %v6911 = vpack.c.b16 %v6023, %v6015
    %v6912 = vpack.c.b16 %v6024, %v6016
    %v6913 = vpack.c.b16 %v6025, %v6017
    %v6914 = vpack.c.b16 %v6026, %v6018
    %v6915 = vpack.c.b16 %v6035, %v6027
    %v6916 = vpack.c.b16 %v6036, %v6028
    %v6917 = vpack.c.b16 %v6037, %v6029
    %v6918 = vpack.c.b16 %v6038, %v6030
    %v6919 = vpack.c.b16 %v6039, %v6031
    %v6920 = vpack.c.b16 %v6040, %v6032
    %v6921 = vpack.c.b16 %v6041, %v6033
    %v6922 = vpack.c.b16 %v6042, %v6034
    %v6923 = vpack.c.b16 %v6051, %v6043
    %v6924 = vpack.c.b16 %v6052, %v6044
    %v6925 = vpack.c.b16 %v6053, %v6045
    %v6926 = vpack.c.b16 %v6054, %v6046
    %v6927 = vpack.c.b16 %v6055, %v6047
    %v6928 = vpack.c.b16 %v6056, %v6048
    %v6929 = vpack.c.b16 %v6057, %v6049
    %v6930 = vpack.c.b16 %v6058, %v6050
    %v6931 = vpack.c.b16 %v6067, %v6059
    %v6932 = vpack.c.b16 %v6068, %v6060
    %v6933 = vpack.c.b16 %v6069, %v6061
    %v6934 = vpack.c.b16 %v6070, %v6062
    %v6935 = vpack.c.b16 %v6071, %v6063
    %v6936 = vpack.c.b16 %v6072, %v6064
    %v6937 = vpack.c.b16 %v6073, %v6065
    %v6938 = vpack.c.b16 %v6074, %v6066
    %v6939 = vpack.c.b16 %v6083, %v6075
    %v6940 = vpack.c.b16 %v6084, %v6076
    %v6941 = vpack.c.b16 %v6085, %v6077
    %v6942 = vpack.c.b16 %v6086, %v6078
    %v6943 = vpack.c.b16 %v6087, %v6079
    %v6944 = vpack.c.b16 %v6088, %v6080
    %v6945 = vpack.c.b16 %v6089, %v6081
    %v6946 = vpack.c.b16 %v6090, %v6082
    %v6947 = vpack.c.b16 %v6099, %v6091
    %v6948 = vpack.c.b16 %v6100, %v6092
    %v6949 = vpack.c.b16 %v6101, %v6093
    %v6950 = vpack.c.b16 %v6102, %v6094
    %v6951 = vpack.c.b16 %v6103, %v6095
    %v6952 = vpack.c.b16 %v6104, %v6096
    %v6953 = vpack.c.b16 %v6105, %v6097
    %v6954 = vpack.c.b16 %v6106, %v6098
    %v6955 = vpack.c.b16 %v6115, %v6107
    %v6956 = vpack.c.b16 %v6116, %v6108
    %v6957 = vpack.c.b16 %v6117, %v6109
    %v6958 = vpack.c.b16 %v6118, %v6110
    %v6959 = vpack.c.b16 %v6119, %v6111
    %v6960 = vpack.c.b16 %v6120, %v6112
    %v6961 = vpack.c.b16 %v6121, %v6113
    %v6962 = vpack.c.b16 %v6122, %v6114
    %v6963 = vpack.c.b16 %v6131, %v6123
    %v6964 = vpack.c.b16 %v6132, %v6124
    %v6965 = vpack.c.b16 %v6133, %v6125
    %v6966 = vpack.c.b16 %v6134, %v6126
    %v6967 = vpack.c.b16 %v6135, %v6127
    %v6968 = vpack.c.b16 %v6136, %v6128
    %v6969 = vpack.c.b16 %v6137, %v6129
    %v6970 = vpack.c.b16 %v6138, %v6130
    %v6971 = vpack.c.b16 %v6147, %v6139
    %v6972 = vpack.c.b16 %v6148, %v6140
    %v6973 = vpack.c.b16 %v6149, %v6141
    %v6974 = vpack.c.b16 %v6150, %v6142
    %v6975 = vpack.c.b16 %v6151, %v6143
    %v6976 = vpack.c.b16 %v6152, %v6144
    %v6977 = vpack.c.b16 %v6153, %v6145
    %v6978 = vpack.c.b16 %v6154, %v6146
    %v6979 = vpack.c.b16 %v6163, %v6155
    %v6980 = vpack.c.b16 %v6164, %v6156
    %v6981 = vpack.c.b16 %v6165, %v6157
    %v6982 = vpack.c.b16 %v6166, %v6158
    %v6983 = vpack.c.b16 %v6167, %v6159
    %v6984 = vpack.c.b16 %v6168, %v6160
    %v6985 = vpack.c.b16 %v6169, %v6161
    %v6986 = vpack.c.b16 %v6170, %v6162
    %v6987 = vpack.c.b16 %v6179, %v6171
    %v6988 = vpack.c.b16 %v6180, %v6172
    %v6989 = vpack.c.b16 %v6181, %v6173
    %v6990 = vpack.c.b16 %v6182, %v6174
    %v6991 = vpack.c.b16 %v6183, %v6175
    %v6992 = vpack.c.b16 %v6184, %v6176
    %v6993 = vpack.c.b16 %v6185, %v6177
    %v6994 = vpack.c.b16 %v6186, %v6178
    %v6995 = vpack.c.b16 %v6195, %v6187
    %v6996 = vpack.c.b16 %v6196, %v6188
    %v6997 = vpack.c.b16 %v6197, %v6189
    %v6998 = vpack.c.b16 %v6198, %v6190
    %v6999 = vpack.c.b16 %v6199, %v6191
    %v7000 = vpack.c.b16 %v6200, %v6192
    %v7001 = vpack.c.b16 %v6201, %v6193
    %v7002 = vpack.c.b16 %v6202, %v6194
    %v7003 = vpack.c.b16 %v6211, %v6203
    %v7004 = vpack.c.b16 %v6212, %v6204
    %v7005 = vpack.c.b16 %v6213, %v6205
    %v7006 = vpack.c.b16 %v6214, %v6206
    %v7007 = vpack.c.b16 %v6215, %v6207
    %v7008 = vpack.c.b16 %v6216, %v6208
    %v7009 = vpack.c.b16 %v6217, %v6209
    %v7010 = vpack.c.b16 %v6218, %v6210
    %v7011 = vpack.c.b16 %v6227, %v6219
    %v7012 = vpack.c.b16 %v6228, %v6220
    %v7013 = vpack.c.b16 %v6229, %v6221
    %v7014 = vpack.c.b16 %v6230, %v6222
    %v7015 = vpack.c.b16 %v6231, %v6223
    %v7016 = vpack.c.b16 %v6232, %v6224
    %v7017 = vpack.c.b16 %v6233, %v6225
    %v7018 = vpack.c.b16 %v6234, %v6226
    %v7019 = vpack.c.b16 %v6243, %v6235
    %v7020 = vpack.c.b16 %v6244, %v6236
    %v7021 = vpack.c.b16 %v6245, %v6237
    %v7022 = vpack.c.b16 %v6246, %v6238
    %v7023 = vpack.c.b16 %v6247, %v6239
    %v7024 = vpack.c.b16 %v6248, %v6240
    %v7025 = vpack.c.b16 %v6249, %v6241
    %v7026 = vpack.c.b16 %v6250, %v6242
    %v7027 = vpack.c.b16 %v6259, %v6251
    %v7028 = vpack.c.b16 %v6260, %v6252
    %v7029 = vpack.c.b16 %v6261, %v6253
    %v7030 = vpack.c.b16 %v6262, %v6254
    %v7031 = vpack.c.b16 %v6263, %v6255
    %v7032 = vpack.c.b16 %v6264, %v6256
    %v7033 = vpack.c.b16 %v6265, %v6257
    %v7034 = vpack.c.b16 %v6266, %v6258
    %v7035 = vpack.c.b16 %v6275, %v6267
    %v7036 = vpack.c.b16 %v6276, %v6268
    %v7037 = vpack.c.b16 %v6277, %v6269
    %v7038 = vpack.c.b16 %v6278, %v6270
    %v7039 = vpack.c.b16 %v6279, %v6271
    %v7040 = vpack.c.b16 %v6280, %v6272
    %v7041 = vpack.c.b16 %v6281, %v6273
    %v7042 = vpack.c.b16 %v6282, %v6274
    %v7043 = vpack.c.b16 %v6291, %v6283
    %v7044 = vpack.c.b16 %v6292, %v6284
    %v7045 = vpack.c.b16 %v6293, %v6285
    %v7046 = vpack.c.b16 %v6294, %v6286
    %v7047 = vpack.c.b16 %v6295, %v6287
    %v7048 = vpack.c.b16 %v6296, %v6288
    %v7049 = vpack.c.b16 %v6297, %v6289
    %v7050 = vpack.c.b16 %v6298, %v6290
    %v7051 = vpack.c.b16 %v6307, %v6299
    %v7052 = vpack.c.b16 %v6308, %v6300
    %v7053 = vpack.c.b16 %v6309, %v6301
    %v7054 = vpack.c.b16 %v6310, %v6302
    %v7055 = vpack.c.b16 %v6311, %v6303
    %v7056 = vpack.c.b16 %v6312, %v6304
    %v7057 = vpack.c.b16 %v6313, %v6305
    %v7058 = vpack.c.b16 %v6314, %v6306
    %v7059 = vpack.c.b16 %v6323, %v6315
    %v7060 = vpack.c.b16 %v6324, %v6316
    %v7061 = vpack.c.b16 %v6325, %v6317
    %v7062 = vpack.c.b16 %v6326, %v6318
    %v7063 = vpack.c.b16 %v6327, %v6319
    %v7064 = vpack.c.b16 %v6328, %v6320
    %v7065 = vpack.c.b16 %v6329, %v6321
    %v7066 = vpack.c.b16 %v6330, %v6322
    %v7067 = vpack.c.b16 %v6339, %v6331
    %v7068 = vpack.c.b16 %v6340, %v6332
    %v7069 = vpack.c.b16 %v6341, %v6333
    %v7070 = vpack.c.b16 %v6342, %v6334
    %v7071 = vpack.c.b16 %v6343, %v6335
    %v7072 = vpack.c.b16 %v6344, %v6336
    %v7073 = vpack.c.b16 %v6345, %v6337
    %v7074 = vpack.c.b16 %v6346, %v6338
    %v7075 = vpack.c.b16 %v6355, %v6347
    %v7076 = vpack.c.b16 %v6356, %v6348
    %v7077 = vpack.c.b16 %v6357, %v6349
    %v7078 = vpack.c.b16 %v6358, %v6350
    %v7079 = vpack.c.b16 %v6359, %v6351
    %v7080 = vpack.c.b16 %v6360, %v6352
    %v7081 = vpack.c.b16 %v6361, %v6353
    %v7082 = vpack.c.b16 %v6362, %v6354
    %v7083 = vpack.c.b16 %v6371, %v6363
    %v7084 = vpack.c.b16 %v6372, %v6364
    %v7085 = vpack.c.b16 %v6373, %v6365
    %v7086 = vpack.c.b16 %v6374, %v6366
    %v7087 = vpack.c.b16 %v6375, %v6367
    %v7088 = vpack.c.b16 %v6376, %v6368
    %v7089 = vpack.c.b16 %v6377, %v6369
    %v7090 = vpack.c.b16 %v6378, %v6370
    %v7091 = vpack.c.b16 %v6387, %v6379
    %v7092 = vpack.c.b16 %v6388, %v6380
    %v7093 = vpack.c.b16 %v6389, %v6381
    %v7094 = vpack.c.b16 %v6390, %v6382
    %v7095 = vpack.c.b16 %v6391, %v6383
    %v7096 = vpack.c.b16 %v6392, %v6384
    %v7097 = vpack.c.b16 %v6393, %v6385
    %v7098 = vpack.c.b16 %v6394, %v6386
    %v7099 = vpack.c.b16 %v6403, %v6395
    %v7100 = vpack.c.b16 %v6404, %v6396
    %v7101 = vpack.c.b16 %v6405, %v6397
    %v7102 = vpack.c.b16 %v6406, %v6398
    %v7103 = vpack.c.b16 %v6407, %v6399
    %v7104 = vpack.c.b16 %v6408, %v6400
    %v7105 = vpack.c.b16 %v6409, %v6401
    %v7106 = vpack.c.b16 %v6410, %v6402
    %v7107 = vpack.c.b16 %v6419, %v6411
    %v7108 = vpack.c.b16 %v6420, %v6412
    %v7109 = vpack.c.b16 %v6421, %v6413
    %v7110 = vpack.c.b16 %v6422, %v6414
    %v7111 = vpack.c.b16 %v6423, %v6415
    %v7112 = vpack.c.b16 %v6424, %v6416
    %v7113 = vpack.c.b16 %v6425, %v6417
    %v7114 = vpack.c.b16 %v6426, %v6418
    %v7115 = vpack.c.b16 %v6435, %v6427
    %v7116 = vpack.c.b16 %v6436, %v6428
    %v7117 = vpack.c.b16 %v6437, %v6429
    %v7118 = vpack.c.b16 %v6438, %v6430
    %v7119 = vpack.c.b16 %v6439, %v6431
    %v7120 = vpack.c.b16 %v6440, %v6432
    %v7121 = vpack.c.b16 %v6441, %v6433
    %v7122 = vpack.c.b16 %v6442, %v6434
    %v7123 = vpack.c.b16 %v6451, %v6443
    %v7124 = vpack.c.b16 %v6452, %v6444
    %v7125 = vpack.c.b16 %v6453, %v6445
    %v7126 = vpack.c.b16 %v6454, %v6446
    %v7127 = vpack.c.b16 %v6455, %v6447
    %v7128 = vpack.c.b16 %v6456, %v6448
    %v7129 = vpack.c.b16 %v6457, %v6449
    %v7130 = vpack.c.b16 %v6458, %v6450
    %v7131 = vpack.c.b16 %v6467, %v6459
    %v7132 = vpack.c.b16 %v6468, %v6460
    %v7133 = vpack.c.b16 %v6469, %v6461
    %v7134 = vpack.c.b16 %v6470, %v6462
    %v7135 = vpack.c.b16 %v6471, %v6463
    %v7136 = vpack.c.b16 %v6472, %v6464
    %v7137 = vpack.c.b16 %v6473, %v6465
    %v7138 = vpack.c.b16 %v6474, %v6466
    %v7139 = vpack.c.b16 %v6483, %v6475
    %v7140 = vpack.c.b16 %v6484, %v6476
    %v7141 = vpack.c.b16 %v6485, %v6477
    %v7142 = vpack.c.b16 %v6486, %v6478
    %v7143 = vpack.c.b16 %v6487, %v6479
    %v7144 = vpack.c.b16 %v6488, %v6480
    %v7145 = vpack.c.b16 %v6489, %v6481
    %v7146 = vpack.c.b16 %v6490, %v6482
    %v7147 = vpack.c.b16 %v6499, %v6491
    %v7148 = vpack.c.b16 %v6500, %v6492
    %v7149 = vpack.c.b16 %v6501, %v6493
    %v7150 = vpack.c.b16 %v6502, %v6494
    %v7151 = vpack.c.b16 %v6503, %v6495
    %v7152 = vpack.c.b16 %v6504, %v6496
    %v7153 = vpack.c.b16 %v6505, %v6497
    %v7154 = vpack.c.b16 %v6506, %v6498
    %v7155 = vpack.c.b16 %v6515, %v6507
    %v7156 = vpack.c.b16 %v6516, %v6508
    %v7157 = vpack.c.b16 %v6517, %v6509
    %v7158 = vpack.c.b16 %v6518, %v6510
    %v7159 = vpack.c.b16 %v6519, %v6511
    %v7160 = vpack.c.b16 %v6520, %v6512
    %v7161 = vpack.c.b16 %v6521, %v6513
    %v7162 = vpack.c.b16 %v6522, %v6514
    %v7163 = vpack.c.b16 %v6531, %v6523
    %v7164 = vpack.c.b16 %v6532, %v6524
    %v7165 = vpack.c.b16 %v6533, %v6525
    %v7166 = vpack.c.b16 %v6534, %v6526
    %v7167 = vpack.c.b16 %v6535, %v6527
    %v7168 = vpack.c.b16 %v6536, %v6528
    %v7169 = vpack.c.b16 %v6537, %v6529
    %v7170 = vpack.c.b16 %v6538, %v6530
    %v7171 = vpack.c.b16 %v6547, %v6539
    %v7172 = vpack.c.b16 %v6548, %v6540
    %v7173 = vpack.c.b16 %v6549, %v6541
    %v7174 = vpack.c.b16 %v6550, %v6542
    %v7175 = vpack.c.b16 %v6551, %v6543
    %v7176 = vpack.c.b16 %v6552, %v6544
    %v7177 = vpack.c.b16 %v6553, %v6545
    %v7178 = vpack.c.b16 %v6554, %v6546
    %v7179 = vpack.c.b16 %v6563, %v6555
    %v7180 = vpack.c.b16 %v6564, %v6556
    %v7181 = vpack.c.b16 %v6565, %v6557
    %v7182 = vpack.c.b16 %v6566, %v6558
    %v7183 = vpack.c.b16 %v6567, %v6559
    %v7184 = vpack.c.b16 %v6568, %v6560
    %v7185 = vpack.c.b16 %v6569, %v6561
    %v7186 = vpack.c.b16 %v6570, %v6562
    %v7187 = vpack.c.b16 %v6579, %v6571
    %v7188 = vpack.c.b16 %v6580, %v6572
    %v7189 = vpack.c.b16 %v6581, %v6573
    %v7190 = vpack.c.b16 %v6582, %v6574
    %v7191 = vpack.c.b16 %v6583, %v6575
    %v7192 = vpack.c.b16 %v6584, %v6576
    %v7193 = vpack.c.b16 %v6585, %v6577
    %v7194 = vpack.c.b16 %v6586, %v6578
    %v7195 = vpack.c.b16 %v6595, %v6587
    %v7196 = vpack.c.b16 %v6596, %v6588
    %v7197 = vpack.c.b16 %v6597, %v6589
    %v7198 = vpack.c.b16 %v6598, %v6590
    %v7199 = vpack.c.b16 %v6599, %v6591
    %v7200 = vpack.c.b16 %v6600, %v6592
    %v7201 = vpack.c.b16 %v6601, %v6593
    %v7202 = vpack.c.b16 %v6602, %v6594
    %v7203 = vpack.c.b16 %v6611, %v6603
    %v7204 = vpack.c.b16 %v6612, %v6604
    %v7205 = vpack.c.b16 %v6613, %v6605
    %v7206 = vpack.c.b16 %v6614, %v6606
    %v7207 = vpack.c.b16 %v6615, %v6607
    %v7208 = vpack.c.b16 %v6616, %v6608
    %v7209 = vpack.c.b16 %v6617, %v6609
    %v7210 = vpack.c.b16 %v6618, %v6610
    %v7211 = vpack.c.b16 %v6627, %v6619
    %v7212 = vpack.c.b16 %v6628, %v6620
    %v7213 = vpack.c.b16 %v6629, %v6621
    %v7214 = vpack.c.b16 %v6630, %v6622
    %v7215 = vpack.c.b16 %v6631, %v6623
    %v7216 = vpack.c.b16 %v6632, %v6624
    %v7217 = vpack.c.b16 %v6633, %v6625
    %v7218 = vpack.c.b16 %v6634, %v6626
    %v7219 = vpack.c.b16 %v6643, %v6635
    %v7220 = vpack.c.b16 %v6644, %v6636
    %v7221 = vpack.c.b16 %v6645, %v6637
    %v7222 = vpack.c.b16 %v6646, %v6638
    %v7223 = vpack.c.b16 %v6647, %v6639
    %v7224 = vpack.c.b16 %v6648, %v6640
    %v7225 = vpack.c.b16 %v6649, %v6641
    %v7226 = vpack.c.b16 %v6650, %v6642
    %v7227 = vpack.c.b16 %v6659, %v6651
    %v7228 = vpack.c.b16 %v6660, %v6652
    %v7229 = vpack.c.b16 %v6661, %v6653
    %v7230 = vpack.c.b16 %v6662, %v6654
    %v7231 = vpack.c.b16 %v6663, %v6655
    %v7232 = vpack.c.b16 %v6664, %v6656
    %v7233 = vpack.c.b16 %v6665, %v6657
    %v7234 = vpack.c.b16 %v6666, %v6658
    %v7235 = vpack.c.b16 %v6675, %v6667
    %v7236 = vpack.c.b16 %v6676, %v6668
    %v7237 = vpack.c.b16 %v6677, %v6669
    %v7238 = vpack.c.b16 %v6678, %v6670
    %v7239 = vpack.c.b16 %v6679, %v6671
    %v7240 = vpack.c.b16 %v6680, %v6672
    %v7241 = vpack.c.b16 %v6681, %v6673
    %v7242 = vpack.c.b16 %v6682, %v6674
    %v7243 = vpack.c.b16 %v6691, %v6683
    %v7244 = vpack.c.b16 %v6692, %v6684
    %v7245 = vpack.c.b16 %v6693, %v6685
    %v7246 = vpack.c.b16 %v6694, %v6686
    %v7247 = vpack.c.b16 %v6695, %v6687
    %v7248 = vpack.c.b16 %v6696, %v6688
    %v7249 = vpack.c.b16 %v6697, %v6689
    %v7250 = vpack.c.b16 %v6698, %v6690
    %v7251 = vpack.c.b16 %v6707, %v6699
    %v7252 = vpack.c.b16 %v6708, %v6700
    %v7253 = vpack.c.b16 %v6709, %v6701
    %v7254 = vpack.c.b16 %v6710, %v6702
    %v7255 = vpack.c.b16 %v6711, %v6703
    %v7256 = vpack.c.b16 %v6712, %v6704
    %v7257 = vpack.c.b16 %v6713, %v6705
    %v7258 = vpack.c.b16 %v6714, %v6706
    %v7259 = vpack.c.b16 %v6723, %v6715
    %v7260 = vpack.c.b16 %v6724, %v6716
    %v7261 = vpack.c.b16 %v6725, %v6717
    %v7262 = vpack.c.b16 %v6726, %v6718
    %v7263 = vpack.c.b16 %v6727, %v6719
    %v7264 = vpack.c.b16 %v6728, %v6720
    %v7265 = vpack.c.b16 %v6729, %v6721
    %v7266 = vpack.c.b16 %v6730, %v6722
    %v7267 = vpack.c.b16 %v6739, %v6731
    %v7268 = vpack.c.b16 %v6740, %v6732
    %v7269 = vpack.c.b16 %v6741, %v6733
    %v7270 = vpack.c.b16 %v6742, %v6734
    %v7271 = vpack.c.b16 %v6743, %v6735
    %v7272 = vpack.c.b16 %v6744, %v6736
    %v7273 = vpack.c.b16 %v6745, %v6737
    %v7274 = vpack.c.b16 %v6746, %v6738
    %v7275 = vpack.c.b16 %v6755, %v6747
    %v7276 = vpack.c.b16 %v6756, %v6748
    %v7277 = vpack.c.b16 %v6757, %v6749
    %v7278 = vpack.c.b16 %v6758, %v6750
    %v7279 = vpack.c.b16 %v6759, %v6751
    %v7280 = vpack.c.b16 %v6760, %v6752
    %v7281 = vpack.c.b16 %v6761, %v6753
    %v7282 = vpack.c.b16 %v6762, %v6754
    %v7283 = vpack.c.b16 %v6771, %v6763
    %v7284 = vpack.c.b16 %v6772, %v6764
    %v7285 = vpack.c.b16 %v6773, %v6765
    %v7286 = vpack.c.b16 %v6774, %v6766
    %v7287 = vpack.c.b16 %v6775, %v6767
    %v7288 = vpack.c.b16 %v6776, %v6768
    %v7289 = vpack.c.b16 %v6777, %v6769
    %v7290 = vpack.c.b16 %v6778, %v6770
    %7803 = vmatprep.subr.bf16.mxu0 %v6836
    %7804 = vmatpush1.bf16.msra.mxu0 %v6835
    %7805 = vmatprep.subr.bf16.mxu0 %v6828
    %7806 = vmatpush1.bf16.msra.mxu0 %v6827
    %7807 = vmatprep.subr.bf16.mxu0 %v6820
    %7808 = vmatpush1.bf16.msra.mxu0 %v6819
    %7809 = vmatprep.subr.bf16.mxu0 %v6812
    %7810 = vmatpush1.bf16.msra.mxu0 %v6811
    %7811 = vmatprep.subr.bf16.mxu0 %v6804
    %7812 = vmatpush1.bf16.msra.mxu0 %v6803
    %7813 = vmatprep.subr.bf16.mxu0 %v6796
    %7814 = vmatpush1.bf16.msra.mxu0 %v6795
    %7815 = vmatprep.subr.bf16.mxu0 %v6788
    %7816 = vmatpush1.bf16.msra.mxu0 %v6787
    %7817 = vmatprep.subr.bf16.mxu0 %v6780
    %7818 = vmatpush1.bf16.msra.mxu0 %v6779
    %7819 = vmatprep.subr.bf16.mxu0 %v6900
    %7820 = vmatpush2.bf16.msra.mxu0 %v6899
    %7821 = vmatprep.subr.bf16.mxu0 %v6892
    %7822 = vmatpush2.bf16.msra.mxu0 %v6891
    %7823 = vmatprep.subr.bf16.mxu0 %v6884
    %7824 = vmatpush2.bf16.msra.mxu0 %v6883
    %7825 = vmatprep.subr.bf16.mxu0 %v6876
    %7826 = vmatpush2.bf16.msra.mxu0 %v6875
    %7827 = vmatprep.subr.bf16.mxu0 %v6868
    %7828 = vmatpush2.bf16.msra.mxu0 %v6867
    %7829 = vmatprep.subr.bf16.mxu0 %v6860
    %7830 = vmatpush2.bf16.msra.mxu0 %v6859
    %7831 = vmatprep.subr.bf16.mxu0 %v6852
    %7832 = vmatpush2.bf16.msra.mxu0 %v6851
    %7833 = vmatprep.subr.bf16.mxu0 %v6844
    %7834 = vmatpush2.bf16.msra.mxu0 %v6843
    %7835 = vmatprep.mubr.bf16.mxu0 %v4724
    %7836 = vmatmul.mubr.bf16.gmra.mxu0 %v4723
    %v7837 = vpop.f32.mrf.mxu0
    %v7838 = vadd.f32 0.0, %v7837
    %v7839 = vpop.f32.mrf.mxu0
    %v7840 = vadd.f32 0.0, %v7839
    %v7841 = vpop.f32.mrf.mxu0
    %v7842 = vpop.f32.mrf.mxu0
    %7843 = vdwg.mxu0
    %7844 = vmatprep.subr.bf16.mxu0 %v6964
    %7845 = vmatpush1.bf16.msra.mxu0 %v6963
    %7846 = vmatprep.subr.bf16.mxu0 %v6956
    %7847 = vmatpush1.bf16.msra.mxu0 %v6955
    %7848 = vmatprep.subr.bf16.mxu0 %v6948
    %7849 = vmatpush1.bf16.msra.mxu0 %v6947
    %7850 = vmatprep.subr.bf16.mxu0 %v6940
    %7851 = vmatpush1.bf16.msra.mxu0 %v6939
    %7852 = vmatprep.subr.bf16.mxu0 %v6932
    %7853 = vmatpush1.bf16.msra.mxu0 %v6931
    %7854 = vmatprep.subr.bf16.mxu0 %v6924
    %7855 = vmatpush1.bf16.msra.mxu0 %v6923
    %7856 = vmatprep.subr.bf16.mxu0 %v6916
    %7857 = vmatpush1.bf16.msra.mxu0 %v6915
    %7858 = vmatprep.subr.bf16.mxu0 %v6908
    %7859 = vmatpush1.bf16.msra.mxu0 %v6907
    %7860 = vmatprep.subr.bf16.mxu0 %v7028
    %7861 = vmatpush2.bf16.msra.mxu0 %v7027
    %7862 = vmatprep.subr.bf16.mxu0 %v7020
    %7863 = vmatpush2.bf16.msra.mxu0 %v7019
    %7864 = vmatprep.subr.bf16.mxu0 %v7012
    %7865 = vmatpush2.bf16.msra.mxu0 %v7011
    %7866 = vmatprep.subr.bf16.mxu0 %v7004
    %7867 = vmatpush2.bf16.msra.mxu0 %v7003
    %7868 = vmatprep.subr.bf16.mxu0 %v6996
    %7869 = vmatpush2.bf16.msra.mxu0 %v6995
    %7870 = vmatprep.subr.bf16.mxu0 %v6988
    %7871 = vmatpush2.bf16.msra.mxu0 %v6987
    %7872 = vmatprep.subr.bf16.mxu0 %v6980
    %7873 = vmatpush2.bf16.msra.mxu0 %v6979
    %7874 = vmatprep.subr.bf16.mxu0 %v6972
    %7875 = vmatpush2.bf16.msra.mxu0 %v6971
    %7876 = vmatprep.mubr.bf16.mxu0 %v4726
    %7877 = vmatmul.mubr.bf16.gmra.mxu0 %v4725
    %v7878 = vpop.f32.mrf.mxu0
    %v7879 = vadd.f32 %v7838, %v7878
    %v7880 = vpop.f32.mrf.mxu0
    %v7881 = vadd.f32 %v7840, %v7880
    %v7882 = vpop.f32.mrf.mxu0
    %v7883 = vpop.f32.mrf.mxu0
    %7884 = vdwg.mxu0
    %7885 = vmatprep.subr.bf16.mxu0 %v7092
    %7886 = vmatpush1.bf16.msra.mxu0 %v7091
    %7887 = vmatprep.subr.bf16.mxu0 %v7084
    %7888 = vmatpush1.bf16.msra.mxu0 %v7083
    %7889 = vmatprep.subr.bf16.mxu0 %v7076
    %7890 = vmatpush1.bf16.msra.mxu0 %v7075
    %7891 = vmatprep.subr.bf16.mxu0 %v7068
    %7892 = vmatpush1.bf16.msra.mxu0 %v7067
    %7893 = vmatprep.subr.bf16.mxu0 %v7060
    %7894 = vmatpush1.bf16.msra.mxu0 %v7059
    %7895 = vmatprep.subr.bf16.mxu0 %v7052
    %7896 = vmatpush1.bf16.msra.mxu0 %v7051
    %7897 = vmatprep.subr.bf16.mxu0 %v7044
    %7898 = vmatpush1.bf16.msra.mxu0 %v7043
    %7899 = vmatprep.subr.bf16.mxu0 %v7036
    %7900 = vmatpush1.bf16.msra.mxu0 %v7035
    %7901 = vmatprep.subr.bf16.mxu0 %v7156
    %7902 = vmatpush2.bf16.msra.mxu0 %v7155
    %7903 = vmatprep.subr.bf16.mxu0 %v7148
    %7904 = vmatpush2.bf16.msra.mxu0 %v7147
    %7905 = vmatprep.subr.bf16.mxu0 %v7140
    %7906 = vmatpush2.bf16.msra.mxu0 %v7139
    %7907 = vmatprep.subr.bf16.mxu0 %v7132
    %7908 = vmatpush2.bf16.msra.mxu0 %v7131
    %7909 = vmatprep.subr.bf16.mxu0 %v7124
    %7910 = vmatpush2.bf16.msra.mxu0 %v7123
    %7911 = vmatprep.subr.bf16.mxu0 %v7116
    %7912 = vmatpush2.bf16.msra.mxu0 %v7115
    %7913 = vmatprep.subr.bf16.mxu0 %v7108
    %7914 = vmatpush2.bf16.msra.mxu0 %v7107
    %7915 = vmatprep.subr.bf16.mxu0 %v7100
    %7916 = vmatpush2.bf16.msra.mxu0 %v7099
    %7917 = vmatprep.mubr.bf16.mxu0 %v4728
    %7918 = vmatmul.mubr.bf16.gmra.mxu0 %v4727
    %v7919 = vpop.f32.mrf.mxu0
    %v7920 = vadd.f32 %v7879, %v7919
    %v7921 = vpop.f32.mrf.mxu0
    %v7922 = vadd.f32 %v7881, %v7921
    %v7923 = vpop.f32.mrf.mxu0
    %v7924 = vpop.f32.mrf.mxu0
    %7925 = vdwg.mxu0
    %7926 = vmatprep.subr.bf16.mxu0 %v7220
    %7927 = vmatpush1.bf16.msra.mxu0 %v7219
    %7928 = vmatprep.subr.bf16.mxu0 %v7212
    %7929 = vmatpush1.bf16.msra.mxu0 %v7211
    %7930 = vmatprep.subr.bf16.mxu0 %v7204
    %7931 = vmatpush1.bf16.msra.mxu0 %v7203
    %7932 = vmatprep.subr.bf16.mxu0 %v7196
    %7933 = vmatpush1.bf16.msra.mxu0 %v7195
    %7934 = vmatprep.subr.bf16.mxu0 %v7188
    %7935 = vmatpush1.bf16.msra.mxu0 %v7187
    %7936 = vmatprep.subr.bf16.mxu0 %v7180
    %7937 = vmatpush1.bf16.msra.mxu0 %v7179
    %7938 = vmatprep.subr.bf16.mxu0 %v7172
    %7939 = vmatpush1.bf16.msra.mxu0 %v7171
    %7940 = vmatprep.subr.bf16.mxu0 %v7164
    %7941 = vmatpush1.bf16.msra.mxu0 %v7163
    %7942 = vmatprep.subr.bf16.mxu0 %v7284
    %7943 = vmatpush2.bf16.msra.mxu0 %v7283
    %7944 = vmatprep.subr.bf16.mxu0 %v7276
    %7945 = vmatpush2.bf16.msra.mxu0 %v7275
    %7946 = vmatprep.subr.bf16.mxu0 %v7268
    %7947 = vmatpush2.bf16.msra.mxu0 %v7267
    %7948 = vmatprep.subr.bf16.mxu0 %v7260
    %7949 = vmatpush2.bf16.msra.mxu0 %v7259
    %7950 = vmatprep.subr.bf16.mxu0 %v7252
    %7951 = vmatpush2.bf16.msra.mxu0 %v7251
    %7952 = vmatprep.subr.bf16.mxu0 %v7244
    %7953 = vmatpush2.bf16.msra.mxu0 %v7243
    %7954 = vmatprep.subr.bf16.mxu0 %v7236
    %7955 = vmatpush2.bf16.msra.mxu0 %v7235
    %7956 = vmatprep.subr.bf16.mxu0 %v7228
    %7957 = vmatpush2.bf16.msra.mxu0 %v7227
    %7958 = vmatprep.mubr.bf16.mxu0 %v4730
    %7959 = vmatmul.mubr.bf16.gmra.mxu0 %v4729
    %v7960 = vpop.f32.mrf.mxu0
    %v7961 = vadd.f32 %v7920, %v7960
    %v7962 = vpop.f32.mrf.mxu0
    %v7963 = vadd.f32 %v7922, %v7962
    %v7964 = vpop.f32.mrf.mxu0
    %v7965 = vpop.f32.mrf.mxu0
    %7966 = vdwg.mxu0
    %7967 = vmatprep.subr.bf16.mxu0 %v6838
    %7968 = vmatpush1.bf16.msra.mxu0 %v6837
    %7969 = vmatprep.subr.bf16.mxu0 %v6830
    %7970 = vmatpush1.bf16.msra.mxu0 %v6829
    %7971 = vmatprep.subr.bf16.mxu0 %v6822
    %7972 = vmatpush1.bf16.msra.mxu0 %v6821
    %7973 = vmatprep.subr.bf16.mxu0 %v6814
    %7974 = vmatpush1.bf16.msra.mxu0 %v6813
    %7975 = vmatprep.subr.bf16.mxu0 %v6806
    %7976 = vmatpush1.bf16.msra.mxu0 %v6805
    %7977 = vmatprep.subr.bf16.mxu0 %v6798
    %7978 = vmatpush1.bf16.msra.mxu0 %v6797
    %7979 = vmatprep.subr.bf16.mxu0 %v6790
    %7980 = vmatpush1.bf16.msra.mxu0 %v6789
    %7981 = vmatprep.subr.bf16.mxu0 %v6782
    %7982 = vmatpush1.bf16.msra.mxu0 %v6781
    %7983 = vmatprep.subr.bf16.mxu0 %v6902
    %7984 = vmatpush2.bf16.msra.mxu0 %v6901
    %7985 = vmatprep.subr.bf16.mxu0 %v6894
    %7986 = vmatpush2.bf16.msra.mxu0 %v6893
    %7987 = vmatprep.subr.bf16.mxu0 %v6886
    %7988 = vmatpush2.bf16.msra.mxu0 %v6885
    %7989 = vmatprep.subr.bf16.mxu0 %v6878
    %7990 = vmatpush2.bf16.msra.mxu0 %v6877
    %7991 = vmatprep.subr.bf16.mxu0 %v6870
    %7992 = vmatpush2.bf16.msra.mxu0 %v6869
    %7993 = vmatprep.subr.bf16.mxu0 %v6862
    %7994 = vmatpush2.bf16.msra.mxu0 %v6861
    %7995 = vmatprep.subr.bf16.mxu0 %v6854
    %7996 = vmatpush2.bf16.msra.mxu0 %v6853
    %7997 = vmatprep.subr.bf16.mxu0 %v6846
    %7998 = vmatpush2.bf16.msra.mxu0 %v6845
    %7999 = vmatprep.mubr.bf16.mxu0 %v4724
    %8000 = vmatmul.mubr.bf16.gmra.mxu0 %v4723
    %v8001 = vpop.f32.mrf.mxu0
    %v8002 = vadd.f32 0.0, %v8001
    %v8003 = vpop.f32.mrf.mxu0
    %v8004 = vadd.f32 0.0, %v8003
    %v8005 = vpop.f32.mrf.mxu0
    %v8006 = vpop.f32.mrf.mxu0
    %8007 = vdwg.mxu0
    %8008 = vmatprep.subr.bf16.mxu0 %v6966
    %8009 = vmatpush1.bf16.msra.mxu0 %v6965
    %8010 = vmatprep.subr.bf16.mxu0 %v6958
    %8011 = vmatpush1.bf16.msra.mxu0 %v6957
    %8012 = vmatprep.subr.bf16.mxu0 %v6950
    %8013 = vmatpush1.bf16.msra.mxu0 %v6949
    %8014 = vmatprep.subr.bf16.mxu0 %v6942
    %8015 = vmatpush1.bf16.msra.mxu0 %v6941
    %8016 = vmatprep.subr.bf16.mxu0 %v6934
    %8017 = vmatpush1.bf16.msra.mxu0 %v6933
    %8018 = vmatprep.subr.bf16.mxu0 %v6926
    %8019 = vmatpush1.bf16.msra.mxu0 %v6925
    %8020 = vmatprep.subr.bf16.mxu0 %v6918
    %8021 = vmatpush1.bf16.msra.mxu0 %v6917
    %8022 = vmatprep.subr.bf16.mxu0 %v6910
    %8023 = vmatpush1.bf16.msra.mxu0 %v6909
    %8024 = vmatprep.subr.bf16.mxu0 %v7030
    %8025 = vmatpush2.bf16.msra.mxu0 %v7029
    %8026 = vmatprep.subr.bf16.mxu0 %v7022
    %8027 = vmatpush2.bf16.msra.mxu0 %v7021
    %8028 = vmatprep.subr.bf16.mxu0 %v7014
    %8029 = vmatpush2.bf16.msra.mxu0 %v7013
    %8030 = vmatprep.subr.bf16.mxu0 %v7006
    %8031 = vmatpush2.bf16.msra.mxu0 %v7005
    %8032 = vmatprep.subr.bf16.mxu0 %v6998
    %8033 = vmatpush2.bf16.msra.mxu0 %v6997
    %8034 = vmatprep.subr.bf16.mxu0 %v6990
    %8035 = vmatpush2.bf16.msra.mxu0 %v6989
    %8036 = vmatprep.subr.bf16.mxu0 %v6982
    %8037 = vmatpush2.bf16.msra.mxu0 %v6981
    %8038 = vmatprep.subr.bf16.mxu0 %v6974
    %8039 = vmatpush2.bf16.msra.mxu0 %v6973
    %8040 = vmatprep.mubr.bf16.mxu0 %v4726
    %8041 = vmatmul.mubr.bf16.gmra.mxu0 %v4725
    %v8042 = vpop.f32.mrf.mxu0
    %v8043 = vadd.f32 %v8002, %v8042
    %v8044 = vpop.f32.mrf.mxu0
    %v8045 = vadd.f32 %v8004, %v8044
    %v8046 = vpop.f32.mrf.mxu0
    %v8047 = vpop.f32.mrf.mxu0
    %8048 = vdwg.mxu0
    %8049 = vmatprep.subr.bf16.mxu0 %v7094
    %8050 = vmatpush1.bf16.msra.mxu0 %v7093
    %8051 = vmatprep.subr.bf16.mxu0 %v7086
    %8052 = vmatpush1.bf16.msra.mxu0 %v7085
    %8053 = vmatprep.subr.bf16.mxu0 %v7078
    %8054 = vmatpush1.bf16.msra.mxu0 %v7077
    %8055 = vmatprep.subr.bf16.mxu0 %v7070
    %8056 = vmatpush1.bf16.msra.mxu0 %v7069
    %8057 = vmatprep.subr.bf16.mxu0 %v7062
    %8058 = vmatpush1.bf16.msra.mxu0 %v7061
    %8059 = vmatprep.subr.bf16.mxu0 %v7054
    %8060 = vmatpush1.bf16.msra.mxu0 %v7053
    %8061 = vmatprep.subr.bf16.mxu0 %v7046
    %8062 = vmatpush1.bf16.msra.mxu0 %v7045
    %8063 = vmatprep.subr.bf16.mxu0 %v7038
    %8064 = vmatpush1.bf16.msra.mxu0 %v7037
    %8065 = vmatprep.subr.bf16.mxu0 %v7158
    %8066 = vmatpush2.bf16.msra.mxu0 %v7157
    %8067 = vmatprep.subr.bf16.mxu0 %v7150
    %8068 = vmatpush2.bf16.msra.mxu0 %v7149
    %8069 = vmatprep.subr.bf16.mxu0 %v7142
    %8070 = vmatpush2.bf16.msra.mxu0 %v7141
    %8071 = vmatprep.subr.bf16.mxu0 %v7134
    %8072 = vmatpush2.bf16.msra.mxu0 %v7133
    %8073 = vmatprep.subr.bf16.mxu0 %v7126
    %8074 = vmatpush2.bf16.msra.mxu0 %v7125
    %8075 = vmatprep.subr.bf16.mxu0 %v7118
    %8076 = vmatpush2.bf16.msra.mxu0 %v7117
    %8077 = vmatprep.subr.bf16.mxu0 %v7110
    %8078 = vmatpush2.bf16.msra.mxu0 %v7109
    %8079 = vmatprep.subr.bf16.mxu0 %v7102
    %8080 = vmatpush2.bf16.msra.mxu0 %v7101
    %8081 = vmatprep.mubr.bf16.mxu0 %v4728
    %8082 = vmatmul.mubr.bf16.gmra.mxu0 %v4727
    %v8083 = vpop.f32.mrf.mxu0
    %v8084 = vadd.f32 %v8043, %v8083
    %v8085 = vpop.f32.mrf.mxu0
    %v8086 = vadd.f32 %v8045, %v8085
    %v8087 = vpop.f32.mrf.mxu0
    %v8088 = vpop.f32.mrf.mxu0
    %8089 = vdwg.mxu0
    %8090 = vmatprep.subr.bf16.mxu0 %v7222
    %8091 = vmatpush1.bf16.msra.mxu0 %v7221
    %8092 = vmatprep.subr.bf16.mxu0 %v7214
    %8093 = vmatpush1.bf16.msra.mxu0 %v7213
    %8094 = vmatprep.subr.bf16.mxu0 %v7206
    %8095 = vmatpush1.bf16.msra.mxu0 %v7205
    %8096 = vmatprep.subr.bf16.mxu0 %v7198
    %8097 = vmatpush1.bf16.msra.mxu0 %v7197
    %8098 = vmatprep.subr.bf16.mxu0 %v7190
    %8099 = vmatpush1.bf16.msra.mxu0 %v7189
    %8100 = vmatprep.subr.bf16.mxu0 %v7182
    %8101 = vmatpush1.bf16.msra.mxu0 %v7181
    %8102 = vmatprep.subr.bf16.mxu0 %v7174
    %8103 = vmatpush1.bf16.msra.mxu0 %v7173
    %8104 = vmatprep.subr.bf16.mxu0 %v7166
    %8105 = vmatpush1.bf16.msra.mxu0 %v7165
    %8106 = vmatprep.subr.bf16.mxu0 %v7286
    %8107 = vmatpush2.bf16.msra.mxu0 %v7285
    %8108 = vmatprep.subr.bf16.mxu0 %v7278
    %8109 = vmatpush2.bf16.msra.mxu0 %v7277
    %8110 = vmatprep.subr.bf16.mxu0 %v7270
    %8111 = vmatpush2.bf16.msra.mxu0 %v7269
    %8112 = vmatprep.subr.bf16.mxu0 %v7262
    %8113 = vmatpush2.bf16.msra.mxu0 %v7261
    %8114 = vmatprep.subr.bf16.mxu0 %v7254
    %8115 = vmatpush2.bf16.msra.mxu0 %v7253
    %8116 = vmatprep.subr.bf16.mxu0 %v7246
    %8117 = vmatpush2.bf16.msra.mxu0 %v7245
    %8118 = vmatprep.subr.bf16.mxu0 %v7238
    %8119 = vmatpush2.bf16.msra.mxu0 %v7237
    %8120 = vmatprep.subr.bf16.mxu0 %v7230
    %8121 = vmatpush2.bf16.msra.mxu0 %v7229
    %8122 = vmatprep.mubr.bf16.mxu0 %v4730
    %8123 = vmatmul.mubr.bf16.gmra.mxu0 %v4729
    %v8124 = vpop.f32.mrf.mxu0
    %v8125 = vadd.f32 %v8084, %v8124
    %v8126 = vpop.f32.mrf.mxu0
    %v8127 = vadd.f32 %v8086, %v8126
    %v8128 = vpop.f32.mrf.mxu0
    %v8129 = vpop.f32.mrf.mxu0
    %8130 = vdwg.mxu0
    %8131 = vmatprep.subr.bf16.mxu0 %v6840
    %8132 = vmatpush1.bf16.msra.mxu0 %v6839
    %8133 = vmatprep.subr.bf16.mxu0 %v6832
    %8134 = vmatpush1.bf16.msra.mxu0 %v6831
    %8135 = vmatprep.subr.bf16.mxu0 %v6824
    %8136 = vmatpush1.bf16.msra.mxu0 %v6823
    %8137 = vmatprep.subr.bf16.mxu0 %v6816
    %8138 = vmatpush1.bf16.msra.mxu0 %v6815
    %8139 = vmatprep.subr.bf16.mxu0 %v6808
    %8140 = vmatpush1.bf16.msra.mxu0 %v6807
    %8141 = vmatprep.subr.bf16.mxu0 %v6800
    %8142 = vmatpush1.bf16.msra.mxu0 %v6799
    %8143 = vmatprep.subr.bf16.mxu0 %v6792
    %8144 = vmatpush1.bf16.msra.mxu0 %v6791
    %8145 = vmatprep.subr.bf16.mxu0 %v6784
    %8146 = vmatpush1.bf16.msra.mxu0 %v6783
    %8147 = vmatprep.subr.bf16.mxu0 %v6904
    %8148 = vmatpush2.bf16.msra.mxu0 %v6903
    %8149 = vmatprep.subr.bf16.mxu0 %v6896
    %8150 = vmatpush2.bf16.msra.mxu0 %v6895
    %8151 = vmatprep.subr.bf16.mxu0 %v6888
    %8152 = vmatpush2.bf16.msra.mxu0 %v6887
    %8153 = vmatprep.subr.bf16.mxu0 %v6880
    %8154 = vmatpush2.bf16.msra.mxu0 %v6879
    %8155 = vmatprep.subr.bf16.mxu0 %v6872
    %8156 = vmatpush2.bf16.msra.mxu0 %v6871
    %8157 = vmatprep.subr.bf16.mxu0 %v6864
    %8158 = vmatpush2.bf16.msra.mxu0 %v6863
    %8159 = vmatprep.subr.bf16.mxu0 %v6856
    %8160 = vmatpush2.bf16.msra.mxu0 %v6855
    %8161 = vmatprep.subr.bf16.mxu0 %v6848
    %8162 = vmatpush2.bf16.msra.mxu0 %v6847
    %8163 = vmatprep.mubr.bf16.mxu0 %v4724
    %8164 = vmatmul.mubr.bf16.gmra.mxu0 %v4723
    %v8165 = vpop.f32.mrf.mxu0
    %v8166 = vadd.f32 0.0, %v8165
    %v8167 = vpop.f32.mrf.mxu0
    %v8168 = vadd.f32 0.0, %v8167
    %v8169 = vpop.f32.mrf.mxu0
    %v8170 = vpop.f32.mrf.mxu0
    %8171 = vdwg.mxu0
    %8172 = vmatprep.subr.bf16.mxu0 %v6968
    %8173 = vmatpush1.bf16.msra.mxu0 %v6967
    %8174 = vmatprep.subr.bf16.mxu0 %v6960
    %8175 = vmatpush1.bf16.msra.mxu0 %v6959
    %8176 = vmatprep.subr.bf16.mxu0 %v6952
    %8177 = vmatpush1.bf16.msra.mxu0 %v6951
    %8178 = vmatprep.subr.bf16.mxu0 %v6944
    %8179 = vmatpush1.bf16.msra.mxu0 %v6943
    %8180 = vmatprep.subr.bf16.mxu0 %v6936
    %8181 = vmatpush1.bf16.msra.mxu0 %v6935
    %8182 = vmatprep.subr.bf16.mxu0 %v6928
    %8183 = vmatpush1.bf16.msra.mxu0 %v6927
    %8184 = vmatprep.subr.bf16.mxu0 %v6920
    %8185 = vmatpush1.bf16.msra.mxu0 %v6919
    %8186 = vmatprep.subr.bf16.mxu0 %v6912
    %8187 = vmatpush1.bf16.msra.mxu0 %v6911
    %8188 = vmatprep.subr.bf16.mxu0 %v7032
    %8189 = vmatpush2.bf16.msra.mxu0 %v7031
    %8190 = vmatprep.subr.bf16.mxu0 %v7024
    %8191 = vmatpush2.bf16.msra.mxu0 %v7023
    %8192 = vmatprep.subr.bf16.mxu0 %v7016
    %8193 = vmatpush2.bf16.msra.mxu0 %v7015
    %8194 = vmatprep.subr.bf16.mxu0 %v7008
    %8195 = vmatpush2.bf16.msra.mxu0 %v7007
    %8196 = vmatprep.subr.bf16.mxu0 %v7000
    %8197 = vmatpush2.bf16.msra.mxu0 %v6999
    %8198 = vmatprep.subr.bf16.mxu0 %v6992
    %8199 = vmatpush2.bf16.msra.mxu0 %v6991
    %8200 = vmatprep.subr.bf16.mxu0 %v6984
    %8201 = vmatpush2.bf16.msra.mxu0 %v6983
    %8202 = vmatprep.subr.bf16.mxu0 %v6976
    %8203 = vmatpush2.bf16.msra.mxu0 %v6975
    %8204 = vmatprep.mubr.bf16.mxu0 %v4726
    %8205 = vmatmul.mubr.bf16.gmra.mxu0 %v4725
    %v8206 = vpop.f32.mrf.mxu0
    %v8207 = vadd.f32 %v8166, %v8206
    %v8208 = vpop.f32.mrf.mxu0
    %v8209 = vadd.f32 %v8168, %v8208
    %v8210 = vpop.f32.mrf.mxu0
    %v8211 = vpop.f32.mrf.mxu0
    %8212 = vdwg.mxu0
    %8213 = vmatprep.subr.bf16.mxu0 %v7096
    %8214 = vmatpush1.bf16.msra.mxu0 %v7095
    %8215 = vmatprep.subr.bf16.mxu0 %v7088
    %8216 = vmatpush1.bf16.msra.mxu0 %v7087
    %8217 = vmatprep.subr.bf16.mxu0 %v7080
    %8218 = vmatpush1.bf16.msra.mxu0 %v7079
    %8219 = vmatprep.subr.bf16.mxu0 %v7072
    %8220 = vmatpush1.bf16.msra.mxu0 %v7071
    %8221 = vmatprep.subr.bf16.mxu0 %v7064
    %8222 = vmatpush1.bf16.msra.mxu0 %v7063
    %8223 = vmatprep.subr.bf16.mxu0 %v7056
    %8224 = vmatpush1.bf16.msra.mxu0 %v7055
    %8225 = vmatprep.subr.bf16.mxu0 %v7048
    %8226 = vmatpush1.bf16.msra.mxu0 %v7047
    %8227 = vmatprep.subr.bf16.mxu0 %v7040
    %8228 = vmatpush1.bf16.msra.mxu0 %v7039
    %8229 = vmatprep.subr.bf16.mxu0 %v7160
    %8230 = vmatpush2.bf16.msra.mxu0 %v7159
    %8231 = vmatprep.subr.bf16.mxu0 %v7152
    %8232 = vmatpush2.bf16.msra.mxu0 %v7151
    %8233 = vmatprep.subr.bf16.mxu0 %v7144
    %8234 = vmatpush2.bf16.msra.mxu0 %v7143
    %8235 = vmatprep.subr.bf16.mxu0 %v7136
    %8236 = vmatpush2.bf16.msra.mxu0 %v7135
    %8237 = vmatprep.subr.bf16.mxu0 %v7128
    %8238 = vmatpush2.bf16.msra.mxu0 %v7127
    %8239 = vmatprep.subr.bf16.mxu0 %v7120
    %8240 = vmatpush2.bf16.msra.mxu0 %v7119
    %8241 = vmatprep.subr.bf16.mxu0 %v7112
    %8242 = vmatpush2.bf16.msra.mxu0 %v7111
    %8243 = vmatprep.subr.bf16.mxu0 %v7104
    %8244 = vmatpush2.bf16.msra.mxu0 %v7103
    %8245 = vmatprep.mubr.bf16.mxu0 %v4728
    %8246 = vmatmul.mubr.bf16.gmra.mxu0 %v4727
    %v8247 = vpop.f32.mrf.mxu0
    %v8248 = vadd.f32 %v8207, %v8247
    %v8249 = vpop.f32.mrf.mxu0
    %v8250 = vadd.f32 %v8209, %v8249
    %v8251 = vpop.f32.mrf.mxu0
    %v8252 = vpop.f32.mrf.mxu0
    %8253 = vdwg.mxu0
    %8254 = vmatprep.subr.bf16.mxu0 %v7224
    %8255 = vmatpush1.bf16.msra.mxu0 %v7223
    %8256 = vmatprep.subr.bf16.mxu0 %v7216
    %8257 = vmatpush1.bf16.msra.mxu0 %v7215
    %8258 = vmatprep.subr.bf16.mxu0 %v7208
    %8259 = vmatpush1.bf16.msra.mxu0 %v7207
    %8260 = vmatprep.subr.bf16.mxu0 %v7200
    %8261 = vmatpush1.bf16.msra.mxu0 %v7199
    %8262 = vmatprep.subr.bf16.mxu0 %v7192
    %8263 = vmatpush1.bf16.msra.mxu0 %v7191
    %8264 = vmatprep.subr.bf16.mxu0 %v7184
    %8265 = vmatpush1.bf16.msra.mxu0 %v7183
    %8266 = vmatprep.subr.bf16.mxu0 %v7176
    %8267 = vmatpush1.bf16.msra.mxu0 %v7175
    %8268 = vmatprep.subr.bf16.mxu0 %v7168
    %8269 = vmatpush1.bf16.msra.mxu0 %v7167
    %8270 = vmatprep.subr.bf16.mxu0 %v7288
    %8271 = vmatpush2.bf16.msra.mxu0 %v7287
    %8272 = vmatprep.subr.bf16.mxu0 %v7280
    %8273 = vmatpush2.bf16.msra.mxu0 %v7279
    %8274 = vmatprep.subr.bf16.mxu0 %v7272
    %8275 = vmatpush2.bf16.msra.mxu0 %v7271
    %8276 = vmatprep.subr.bf16.mxu0 %v7264
    %8277 = vmatpush2.bf16.msra.mxu0 %v7263
    %8278 = vmatprep.subr.bf16.mxu0 %v7256
    %8279 = vmatpush2.bf16.msra.mxu0 %v7255
    %8280 = vmatprep.subr.bf16.mxu0 %v7248
    %8281 = vmatpush2.bf16.msra.mxu0 %v7247
    %8282 = vmatprep.subr.bf16.mxu0 %v7240
    %8283 = vmatpush2.bf16.msra.mxu0 %v7239
    %8284 = vmatprep.subr.bf16.mxu0 %v7232
    %8285 = vmatpush2.bf16.msra.mxu0 %v7231
    %8286 = vmatprep.mubr.bf16.mxu0 %v4730
    %8287 = vmatmul.mubr.bf16.gmra.mxu0 %v4729
    %v8288 = vpop.f32.mrf.mxu0
    %v8289 = vadd.f32 %v8248, %v8288
    %v8290 = vpop.f32.mrf.mxu0
    %v8291 = vadd.f32 %v8250, %v8290
    %v8292 = vpop.f32.mrf.mxu0
    %v8293 = vpop.f32.mrf.mxu0
    %8294 = vdwg.mxu0
    %8295 = vmatprep.subr.bf16.mxu0 %v6842
    %8296 = vmatpush1.bf16.msra.mxu0 %v6841
    %8297 = vmatprep.subr.bf16.mxu0 %v6834
    %8298 = vmatpush1.bf16.msra.mxu0 %v6833
    %8299 = vmatprep.subr.bf16.mxu0 %v6826
    %8300 = vmatpush1.bf16.msra.mxu0 %v6825
    %8301 = vmatprep.subr.bf16.mxu0 %v6818
    %8302 = vmatpush1.bf16.msra.mxu0 %v6817
    %8303 = vmatprep.subr.bf16.mxu0 %v6810
    %8304 = vmatpush1.bf16.msra.mxu0 %v6809
    %8305 = vmatprep.subr.bf16.mxu0 %v6802
    %8306 = vmatpush1.bf16.msra.mxu0 %v6801
    %8307 = vmatprep.subr.bf16.mxu0 %v6794
    %8308 = vmatpush1.bf16.msra.mxu0 %v6793
    %8309 = vmatprep.subr.bf16.mxu0 %v6786
    %8310 = vmatpush1.bf16.msra.mxu0 %v6785
    %8311 = vmatprep.subr.bf16.mxu0 %v6906
    %8312 = vmatpush2.bf16.msra.mxu0 %v6905
    %8313 = vmatprep.subr.bf16.mxu0 %v6898
    %8314 = vmatpush2.bf16.msra.mxu0 %v6897
    %8315 = vmatprep.subr.bf16.mxu0 %v6890
    %8316 = vmatpush2.bf16.msra.mxu0 %v6889
    %8317 = vmatprep.subr.bf16.mxu0 %v6882
    %8318 = vmatpush2.bf16.msra.mxu0 %v6881
    %8319 = vmatprep.subr.bf16.mxu0 %v6874
    %8320 = vmatpush2.bf16.msra.mxu0 %v6873
    %8321 = vmatprep.subr.bf16.mxu0 %v6866
    %8322 = vmatpush2.bf16.msra.mxu0 %v6865
    %8323 = vmatprep.subr.bf16.mxu0 %v6858
    %8324 = vmatpush2.bf16.msra.mxu0 %v6857
    %8325 = vmatprep.subr.bf16.mxu0 %v6850
    %8326 = vmatpush2.bf16.msra.mxu0 %v6849
    %8327 = vmatprep.mubr.bf16.mxu0 %v4724
    %8328 = vmatmul.mubr.bf16.gmra.mxu0 %v4723
    %v8329 = vpop.f32.mrf.mxu0
    %v8330 = vadd.f32 0.0, %v8329
    %v8331 = vpop.f32.mrf.mxu0
    %v8332 = vadd.f32 0.0, %v8331
    %v8333 = vpop.f32.mrf.mxu0
    %v8334 = vpop.f32.mrf.mxu0
    %8335 = vdwg.mxu0
    %8336 = vmatprep.subr.bf16.mxu0 %v6970
    %8337 = vmatpush1.bf16.msra.mxu0 %v6969
    %8338 = vmatprep.subr.bf16.mxu0 %v6962
    %8339 = vmatpush1.bf16.msra.mxu0 %v6961
    %8340 = vmatprep.subr.bf16.mxu0 %v6954
    %8341 = vmatpush1.bf16.msra.mxu0 %v6953
    %8342 = vmatprep.subr.bf16.mxu0 %v6946
    %8343 = vmatpush1.bf16.msra.mxu0 %v6945
    %8344 = vmatprep.subr.bf16.mxu0 %v6938
    %8345 = vmatpush1.bf16.msra.mxu0 %v6937
    %8346 = vmatprep.subr.bf16.mxu0 %v6930
    %8347 = vmatpush1.bf16.msra.mxu0 %v6929
    %8348 = vmatprep.subr.bf16.mxu0 %v6922
    %8349 = vmatpush1.bf16.msra.mxu0 %v6921
    %8350 = vmatprep.subr.bf16.mxu0 %v6914
    %8351 = vmatpush1.bf16.msra.mxu0 %v6913
    %8352 = vmatprep.subr.bf16.mxu0 %v7034
    %8353 = vmatpush2.bf16.msra.mxu0 %v7033
    %8354 = vmatprep.subr.bf16.mxu0 %v7026
    %8355 = vmatpush2.bf16.msra.mxu0 %v7025
    %8356 = vmatprep.subr.bf16.mxu0 %v7018
    %8357 = vmatpush2.bf16.msra.mxu0 %v7017
    %8358 = vmatprep.subr.bf16.mxu0 %v7010
    %8359 = vmatpush2.bf16.msra.mxu0 %v7009
    %8360 = vmatprep.subr.bf16.mxu0 %v7002
    %8361 = vmatpush2.bf16.msra.mxu0 %v7001
    %8362 = vmatprep.subr.bf16.mxu0 %v6994
    %8363 = vmatpush2.bf16.msra.mxu0 %v6993
    %8364 = vmatprep.subr.bf16.mxu0 %v6986
    %8365 = vmatpush2.bf16.msra.mxu0 %v6985
    %8366 = vmatprep.subr.bf16.mxu0 %v6978
    %8367 = vmatpush2.bf16.msra.mxu0 %v6977
    %8368 = vmatprep.mubr.bf16.mxu0 %v4726
    %8369 = vmatmul.mubr.bf16.gmra.mxu0 %v4725
    %v8370 = vpop.f32.mrf.mxu0
    %v8371 = vadd.f32 %v8330, %v8370
    %v8372 = vpop.f32.mrf.mxu0
    %v8373 = vadd.f32 %v8332, %v8372
    %v8374 = vpop.f32.mrf.mxu0
    %v8375 = vpop.f32.mrf.mxu0
    %8376 = vdwg.mxu0
    %8377 = vmatprep.subr.bf16.mxu0 %v7098
    %8378 = vmatpush1.bf16.msra.mxu0 %v7097
    %8379 = vmatprep.subr.bf16.mxu0 %v7090
    %8380 = vmatpush1.bf16.msra.mxu0 %v7089
    %8381 = vmatprep.subr.bf16.mxu0 %v7082
    %8382 = vmatpush1.bf16.msra.mxu0 %v7081
    %8383 = vmatprep.subr.bf16.mxu0 %v7074
    %8384 = vmatpush1.bf16.msra.mxu0 %v7073
    %8385 = vmatprep.subr.bf16.mxu0 %v7066
    %8386 = vmatpush1.bf16.msra.mxu0 %v7065
    %8387 = vmatprep.subr.bf16.mxu0 %v7058
    %8388 = vmatpush1.bf16.msra.mxu0 %v7057
    %8389 = vmatprep.subr.bf16.mxu0 %v7050
    %8390 = vmatpush1.bf16.msra.mxu0 %v7049
    %8391 = vmatprep.subr.bf16.mxu0 %v7042
    %8392 = vmatpush1.bf16.msra.mxu0 %v7041
    %8393 = vmatprep.subr.bf16.mxu0 %v7162
    %8394 = vmatpush2.bf16.msra.mxu0 %v7161
    %8395 = vmatprep.subr.bf16.mxu0 %v7154
    %8396 = vmatpush2.bf16.msra.mxu0 %v7153
    %8397 = vmatprep.subr.bf16.mxu0 %v7146
    %8398 = vmatpush2.bf16.msra.mxu0 %v7145
    %8399 = vmatprep.subr.bf16.mxu0 %v7138
    %8400 = vmatpush2.bf16.msra.mxu0 %v7137
    %8401 = vmatprep.subr.bf16.mxu0 %v7130
    %8402 = vmatpush2.bf16.msra.mxu0 %v7129
    %8403 = vmatprep.subr.bf16.mxu0 %v7122
    %8404 = vmatpush2.bf16.msra.mxu0 %v7121
    %8405 = vmatprep.subr.bf16.mxu0 %v7114
    %8406 = vmatpush2.bf16.msra.mxu0 %v7113
    %8407 = vmatprep.subr.bf16.mxu0 %v7106
    %8408 = vmatpush2.bf16.msra.mxu0 %v7105
    %8409 = vmatprep.mubr.bf16.mxu0 %v4728
    %8410 = vmatmul.mubr.bf16.gmra.mxu0 %v4727
    %v8411 = vpop.f32.mrf.mxu0
    %v8412 = vadd.f32 %v8371, %v8411
    %v8413 = vpop.f32.mrf.mxu0
    %v8414 = vadd.f32 %v8373, %v8413
    %v8415 = vpop.f32.mrf.mxu0
    %v8416 = vpop.f32.mrf.mxu0
    %8417 = vdwg.mxu0
    %8418 = vmatprep.subr.bf16.mxu0 %v7226
    %8419 = vmatpush1.bf16.msra.mxu0 %v7225
    %8420 = vmatprep.subr.bf16.mxu0 %v7218
    %8421 = vmatpush1.bf16.msra.mxu0 %v7217
    %8422 = vmatprep.subr.bf16.mxu0 %v7210
    %8423 = vmatpush1.bf16.msra.mxu0 %v7209
    %8424 = vmatprep.subr.bf16.mxu0 %v7202
    %8425 = vmatpush1.bf16.msra.mxu0 %v7201
    %8426 = vmatprep.subr.bf16.mxu0 %v7194
    %8427 = vmatpush1.bf16.msra.mxu0 %v7193
    %8428 = vmatprep.subr.bf16.mxu0 %v7186
    %8429 = vmatpush1.bf16.msra.mxu0 %v7185
    %8430 = vmatprep.subr.bf16.mxu0 %v7178
    %8431 = vmatpush1.bf16.msra.mxu0 %v7177
    %8432 = vmatprep.subr.bf16.mxu0 %v7170
    %8433 = vmatpush1.bf16.msra.mxu0 %v7169
    %8434 = vmatprep.subr.bf16.mxu0 %v7290
    %8435 = vmatpush2.bf16.msra.mxu0 %v7289
    %8436 = vmatprep.subr.bf16.mxu0 %v7282
    %8437 = vmatpush2.bf16.msra.mxu0 %v7281
    %8438 = vmatprep.subr.bf16.mxu0 %v7274
    %8439 = vmatpush2.bf16.msra.mxu0 %v7273
    %8440 = vmatprep.subr.bf16.mxu0 %v7266
    %8441 = vmatpush2.bf16.msra.mxu0 %v7265
    %8442 = vmatprep.subr.bf16.mxu0 %v7258
    %8443 = vmatpush2.bf16.msra.mxu0 %v7257
    %8444 = vmatprep.subr.bf16.mxu0 %v7250
    %8445 = vmatpush2.bf16.msra.mxu0 %v7249
    %8446 = vmatprep.subr.bf16.mxu0 %v7242
    %8447 = vmatpush2.bf16.msra.mxu0 %v7241
    %8448 = vmatprep.subr.bf16.mxu0 %v7234
    %8449 = vmatpush2.bf16.msra.mxu0 %v7233
    %8450 = vmatprep.mubr.bf16.mxu0 %v4730
    %8451 = vmatmul.mubr.bf16.gmra.mxu0 %v4729
    %v8452 = vpop.f32.mrf.mxu0
    %v8453 = vadd.f32 %v8412, %v8452
    %v8454 = vpop.f32.mrf.mxu0
    %v8455 = vadd.f32 %v8414, %v8454
    %v8456 = vpop.f32.mrf.mxu0
    %v8457 = vpop.f32.mrf.mxu0
    %8458 = vdwg.mxu0
    %s8459 = scalar_lea.vmem [#allocation9], 4
    %v8460 = vld [vmem:[%s8459] ss:$8 sm:$0xf]
    %v8461 = vld [vmem:[%s8459] ss:$8 sm:$0xf0]
    %v8462 = vor.u32 %v8460, %v8461
    %s8463 = scalar_lea.vmem [#allocation9], 5
    %v8464 = vld [vmem:[%s8463] ss:$8 sm:$0xf]
    %v8465 = vld [vmem:[%s8463] ss:$8 sm:$0xf0]
    %v8466 = vor.u32 %v8464, %v8465
    %v8467 = vrot.slane %v7961, 4
    %v8468 = vadd.f32 %v7961, %v8467
    %v8469 = vrot.slane %v8468, 2
    %v8470 = vadd.f32 %v8468, %v8469
    %v8471 = vrot.slane %v8470, 1
    %v8472 = vadd.f32 %v8470, %v8471
    %v8473 = vrot.slane %v7963, 4
    %v8474 = vadd.f32 %v7963, %v8473
    %v8475 = vrot.slane %v8474, 2
    %v8476 = vadd.f32 %v8474, %v8475
    %v8477 = vrot.slane %v8476, 1
    %v8478 = vadd.f32 %v8476, %v8477
    %v8479 = vrot.slane %v8125, 4
    %v8480 = vadd.f32 %v8125, %v8479
    %v8481 = vrot.slane %v8480, 2
    %v8482 = vadd.f32 %v8480, %v8481
    %v8483 = vrot.slane %v8482, 1
    %v8484 = vadd.f32 %v8482, %v8483
    %v8485 = vrot.slane %v8127, 4
    %v8486 = vadd.f32 %v8127, %v8485
    %v8487 = vrot.slane %v8486, 2
    %v8488 = vadd.f32 %v8486, %v8487
    %v8489 = vrot.slane %v8488, 1
    %v8490 = vadd.f32 %v8488, %v8489
    %v8491 = vrot.slane %v8289, 4
    %v8492 = vadd.f32 %v8289, %v8491
    %v8493 = vrot.slane %v8492, 2
    %v8494 = vadd.f32 %v8492, %v8493
    %v8495 = vrot.slane %v8494, 1
    %v8496 = vadd.f32 %v8494, %v8495
    %v8497 = vrot.slane %v8291, 4
    %v8498 = vadd.f32 %v8291, %v8497
    %v8499 = vrot.slane %v8498, 2
    %v8500 = vadd.f32 %v8498, %v8499
    %v8501 = vrot.slane %v8500, 1
    %v8502 = vadd.f32 %v8500, %v8501
    %v8503 = vrot.slane %v8453, 4
    %v8504 = vadd.f32 %v8453, %v8503
    %v8505 = vrot.slane %v8504, 2
    %v8506 = vadd.f32 %v8504, %v8505
    %v8507 = vrot.slane %v8506, 1
    %v8508 = vadd.f32 %v8506, %v8507
    %v8509 = vrot.slane %v8455, 4
    %v8510 = vadd.f32 %v8455, %v8509
    %v8511 = vrot.slane %v8510, 2
    %v8512 = vadd.f32 %v8510, %v8511
    %v8513 = vrot.slane %v8512, 1
    %v8514 = vadd.f32 %v8512, %v8513
    %v8515 = vmul.f32 %v8472, %v408
    %v8516 = vmul.f32 %v8478, %v408
    %v8517 = vmul.f32 %v8484, %v408
    %v8518 = vmul.f32 %v8490, %v408
    %v8519 = vmul.f32 %v8496, %v408
    %v8520 = vmul.f32 %v8502, %v408
    %v8521 = vmul.f32 %v8508, %v408
    %v8522 = vmul.f32 %v8514, %v408
    %v8523 = vsub.f32 %v7961, %v8515
    %v8524 = vsub.f32 %v7963, %v8516
    %v8525 = vsub.f32 %v8125, %v8517
    %v8526 = vsub.f32 %v8127, %v8518
    %v8527 = vsub.f32 %v8289, %v8519
    %v8528 = vsub.f32 %v8291, %v8520
    %v8529 = vsub.f32 %v8453, %v8521
    %v8530 = vsub.f32 %v8455, %v8522
    %v8531 = vmul.f32 %v8523, %v8523
    %v8532 = vmul.f32 %v8524, %v8524
    %v8533 = vmul.f32 %v8525, %v8525
    %v8534 = vmul.f32 %v8526, %v8526
    %v8535 = vmul.f32 %v8527, %v8527
    %v8536 = vmul.f32 %v8528, %v8528
    %v8537 = vmul.f32 %v8529, %v8529
    %v8538 = vmul.f32 %v8530, %v8530
    %v8539 = vrot.slane %v8531, 4
    %v8540 = vadd.f32 %v8531, %v8539
    %v8541 = vrot.slane %v8540, 2
    %v8542 = vadd.f32 %v8540, %v8541
    %v8543 = vrot.slane %v8542, 1
    %v8544 = vadd.f32 %v8542, %v8543
    %v8545 = vrot.slane %v8532, 4
    %v8546 = vadd.f32 %v8532, %v8545
    %v8547 = vrot.slane %v8546, 2
    %v8548 = vadd.f32 %v8546, %v8547
    %v8549 = vrot.slane %v8548, 1
    %v8550 = vadd.f32 %v8548, %v8549
    %v8551 = vrot.slane %v8533, 4
    %v8552 = vadd.f32 %v8533, %v8551
    %v8553 = vrot.slane %v8552, 2
    %v8554 = vadd.f32 %v8552, %v8553
    %v8555 = vrot.slane %v8554, 1
    %v8556 = vadd.f32 %v8554, %v8555
    %v8557 = vrot.slane %v8534, 4
    %v8558 = vadd.f32 %v8534, %v8557
    %v8559 = vrot.slane %v8558, 2
    %v8560 = vadd.f32 %v8558, %v8559
    %v8561 = vrot.slane %v8560, 1
    %v8562 = vadd.f32 %v8560, %v8561
    %v8563 = vrot.slane %v8535, 4
    %v8564 = vadd.f32 %v8535, %v8563
    %v8565 = vrot.slane %v8564, 2
    %v8566 = vadd.f32 %v8564, %v8565
    %v8567 = vrot.slane %v8566, 1
    %v8568 = vadd.f32 %v8566, %v8567
    %v8569 = vrot.slane %v8536, 4
    %v8570 = vadd.f32 %v8536, %v8569
    %v8571 = vrot.slane %v8570, 2
    %v8572 = vadd.f32 %v8570, %v8571
    %v8573 = vrot.slane %v8572, 1
    %v8574 = vadd.f32 %v8572, %v8573
    %v8575 = vrot.slane %v8537, 4
    %v8576 = vadd.f32 %v8537, %v8575
    %v8577 = vrot.slane %v8576, 2
    %v8578 = vadd.f32 %v8576, %v8577
    %v8579 = vrot.slane %v8578, 1
    %v8580 = vadd.f32 %v8578, %v8579
    %v8581 = vrot.slane %v8538, 4
    %v8582 = vadd.f32 %v8538, %v8581
    %v8583 = vrot.slane %v8582, 2
    %v8584 = vadd.f32 %v8582, %v8583
    %v8585 = vrot.slane %v8584, 1
    %v8586 = vadd.f32 %v8584, %v8585
    %v8587 = vmul.f32 %v8544, %v408
    %v8588 = vmul.f32 %v8550, %v408
    %v8589 = vmul.f32 %v8556, %v408
    %v8590 = vmul.f32 %v8562, %v408
    %v8591 = vmul.f32 %v8568, %v408
    %v8592 = vmul.f32 %v8574, %v408
    %v8593 = vmul.f32 %v8580, %v408
    %v8594 = vmul.f32 %v8586, %v408
    %v8595 = vadd.f32 %v8587, 1e-05
    %v8596 = vadd.f32 %v8588, 1e-05
    %v8597 = vadd.f32 %v8589, 1e-05
    %v8598 = vadd.f32 %v8590, 1e-05
    %v8599 = vadd.f32 %v8591, 1e-05
    %v8600 = vadd.f32 %v8592, 1e-05
    %v8601 = vadd.f32 %v8593, 1e-05
    %v8602 = vadd.f32 %v8594, 1e-05
    %v8603 = vrsqrt.pop %v8595
    %v8604 = vrsqrt.pop %v8596
    %v8605 = vrsqrt.pop %v8597
    %v8606 = vrsqrt.pop %v8598
    %v8607 = vrsqrt.pop %v8599
    %v8608 = vrsqrt.pop %v8600
    %v8609 = vrsqrt.pop %v8601
    %v8610 = vrsqrt.pop %v8602
    %v8619 = vcombine.low %v8603, %v8604
    %v8620 = vcombine.low %v8605, %v8606
    %v8621 = vcombine.low %v8607, %v8608
    %v8622 = vcombine.low %v8609, %v8610
    %v8624 = vunpack.c.l.s4 1966171168
    %v8625 = vunpack.c.0.s8 %v8624
    %v8626 = vlaneseq
    %v8627 = vshrl.u32 %v8626, 7
    %v8628 = vsub.s32 %v8625, %v8627
    %v8629 = vrot.slane %v8619, %v8628
    %v8631 = vunpack.c.l.s4 1966171168
    %v8632 = vunpack.c.0.s8 %v8631
    %v8633 = vlaneseq
    %v8634 = vshrl.u32 %v8633, 7
    %v8635 = vsub.s32 %v8632, %v8634
    %v8636 = vrot.slane %v8620, %v8635
    %v8638 = vunpack.c.l.s4 1966171168
    %v8639 = vunpack.c.0.s8 %v8638
    %v8640 = vlaneseq
    %v8641 = vshrl.u32 %v8640, 7
    %v8642 = vsub.s32 %v8639, %v8641
    %v8643 = vrot.slane %v8621, %v8642
    %v8645 = vunpack.c.l.s4 1966171168
    %v8646 = vunpack.c.0.s8 %v8645
    %v8647 = vlaneseq
    %v8648 = vshrl.u32 %v8647, 7
    %v8649 = vsub.s32 %v8646, %v8648
    %v8650 = vrot.slane %v8622, %v8649
    %v8651 = vcombine.low %v8629, %v8636
    %v8652 = vcombine.low %v8643, %v8650
    %v8654 = vunpack.c.l.s4 1966171168
    %v8655 = vunpack.c.0.s8 %v8654
    %v8656 = vlaneseq
    %v8657 = vshrl.u32 %v8656, 7
    %v8658 = vsub.s32 %v8655, %v8657
    %v8659 = vrot.slane %v8651, %v8658
    %v8661 = vunpack.c.l.s4 1966171168
    %v8662 = vunpack.c.0.s8 %v8661
    %v8663 = vlaneseq
    %v8664 = vshrl.u32 %v8663, 7
    %v8665 = vsub.s32 %v8662, %v8664
    %v8666 = vrot.slane %v8652, %v8665
    %v8667 = vcombine.low %v8659, %v8666
    %v8669 = vmul.f32 %v8462, %v8667
    %v8671 = vlaneseq
    %v8672 = vshrl.u32 %v8671, 7
    %v8673 = vsub.s32 0, %v8672
    %v8674 = vrot.slane %v8669, %v8673
    %v8675 = vlaneseq
    %v8676 = vshrl.u32 %v8675, 7
    %v8677 = vsub.s32 1, %v8676
    %v8678 = vrot.slane %v8669, %v8677
    %v8679 = vlaneseq
    %v8680 = vshrl.u32 %v8679, 7
    %v8681 = vsub.s32 2, %v8680
    %v8682 = vrot.slane %v8669, %v8681
    %v8683 = vlaneseq
    %v8684 = vshrl.u32 %v8683, 7
    %v8685 = vsub.s32 3, %v8684
    %v8686 = vrot.slane %v8669, %v8685
    %v8687 = vlaneseq
    %v8688 = vshrl.u32 %v8687, 7
    %v8689 = vsub.s32 4, %v8688
    %v8690 = vrot.slane %v8669, %v8689
    %v8691 = vlaneseq
    %v8692 = vshrl.u32 %v8691, 7
    %v8693 = vsub.s32 5, %v8692
    %v8694 = vrot.slane %v8669, %v8693
    %v8695 = vlaneseq
    %v8696 = vshrl.u32 %v8695, 7
    %v8697 = vsub.s32 6, %v8696
    %v8698 = vrot.slane %v8669, %v8697
    %v8699 = vlaneseq
    %v8700 = vshrl.u32 %v8699, 7
    %v8701 = vsub.s32 7, %v8700
    %v8702 = vrot.slane %v8669, %v8701
    %v8711 = vmul.f32 %v8523, %v8674
    %v8712 = vmul.f32 %v8524, %v8678
    %v8713 = vmul.f32 %v8525, %v8682
    %v8714 = vmul.f32 %v8526, %v8686
    %v8715 = vmul.f32 %v8527, %v8690
    %v8716 = vmul.f32 %v8528, %v8694
    %v8717 = vmul.f32 %v8529, %v8698
    %v8718 = vmul.f32 %v8530, %v8702
    %v8720 = vlaneseq
    %v8721 = vshrl.u32 %v8720, 7
    %v8722 = vsub.s32 0, %v8721
    %v8723 = vrot.slane %v8466, %v8722
    %v8724 = vlaneseq
    %v8725 = vshrl.u32 %v8724, 7
    %v8726 = vsub.s32 1, %v8725
    %v8727 = vrot.slane %v8466, %v8726
    %v8728 = vlaneseq
    %v8729 = vshrl.u32 %v8728, 7
    %v8730 = vsub.s32 2, %v8729
    %v8731 = vrot.slane %v8466, %v8730
    %v8732 = vlaneseq
    %v8733 = vshrl.u32 %v8732, 7
    %v8734 = vsub.s32 3, %v8733
    %v8735 = vrot.slane %v8466, %v8734
    %v8736 = vlaneseq
    %v8737 = vshrl.u32 %v8736, 7
    %v8738 = vsub.s32 4, %v8737
    %v8739 = vrot.slane %v8466, %v8738
    %v8740 = vlaneseq
    %v8741 = vshrl.u32 %v8740, 7
    %v8742 = vsub.s32 5, %v8741
    %v8743 = vrot.slane %v8466, %v8742
    %v8744 = vlaneseq
    %v8745 = vshrl.u32 %v8744, 7
    %v8746 = vsub.s32 6, %v8745
    %v8747 = vrot.slane %v8466, %v8746
    %v8748 = vlaneseq
    %v8749 = vshrl.u32 %v8748, 7
    %v8750 = vsub.s32 7, %v8749
    %v8751 = vrot.slane %v8466, %v8750
    %v8760 = vadd.f32 %v8711, %v8723
    %v8761 = vadd.f32 %v8712, %v8727
    %v8762 = vadd.f32 %v8713, %v8731
    %v8763 = vadd.f32 %v8714, %v8735
    %v8764 = vadd.f32 %v8715, %v8739
    %v8765 = vadd.f32 %v8716, %v8743
    %v8766 = vadd.f32 %v8717, %v8747
    %v8767 = vadd.f32 %v8718, %v8751
    %v8768 = vmax.f32 %v8760, 0.0
    %v8769 = vmax.f32 %v8761, 0.0
    %v8770 = vmax.f32 %v8762, 0.0
    %v8771 = vmax.f32 %v8763, 0.0
    %v8772 = vmax.f32 %v8764, 0.0
    %v8773 = vmax.f32 %v8765, 0.0
    %v8774 = vmax.f32 %v8766, 0.0
    %v8775 = vmax.f32 %v8767, 0.0
    %v8776 = vpack.c.bf16 %v8768, %v8768
    %v8777 = vpack.c.bf16 %v8769, %v8769
    %v8778 = vpack.c.bf16 %v8770, %v8770
    %v8779 = vpack.c.bf16 %v8771, %v8771
    %v8780 = vpack.c.bf16 %v8772, %v8772
    %v8781 = vpack.c.bf16 %v8773, %v8773
    %v8782 = vpack.c.bf16 %v8774, %v8774
    %v8783 = vpack.c.bf16 %v8775, %v8775
    %v8784 = vld [vmem:[#allocation7] sm:$0xf]
    %v8785 = vld [vmem:[#allocation7 + $0x4] sm:$0xf]
    %v8786 = vld [vmem:[#allocation7 + $0x8] sm:$0xf]
    %v8787 = vld [vmem:[#allocation7 + $0xc] sm:$0xf]
    %v8788 = vld [vmem:[#allocation7 + $0x10] sm:$0xf]
    %v8789 = vld [vmem:[#allocation7 + $0x14] sm:$0xf]
    %v8790 = vld [vmem:[#allocation7 + $0x18] sm:$0xf]
    %v8791 = vld [vmem:[#allocation7 + $0x1c] sm:$0xf]
    %v8792 = vld [vmem:[#allocation7 + $0x20] sm:$0xf]
    %v8793 = vld [vmem:[#allocation7 + $0x24] sm:$0xf]
    %v8794 = vld [vmem:[#allocation7 + $0x28] sm:$0xf]
    %v8795 = vld [vmem:[#allocation7 + $0x2c] sm:$0xf]
    %v8796 = vld [vmem:[#allocation7 + $0x30] sm:$0xf]
    %v8797 = vld [vmem:[#allocation7 + $0x34] sm:$0xf]
    %v8798 = vld [vmem:[#allocation7 + $0x38] sm:$0xf]
    %v8799 = vld [vmem:[#allocation7 + $0x3c] sm:$0xf]
    %v8800 = vld [vmem:[#allocation7 + $0x40] sm:$0xf]
    %v8801 = vld [vmem:[#allocation7 + $0x44] sm:$0xf]
    %v8802 = vld [vmem:[#allocation7 + $0x48] sm:$0xf]
    %v8803 = vld [vmem:[#allocation7 + $0x4c] sm:$0xf]
    %v8804 = vld [vmem:[#allocation7 + $0x50] sm:$0xf]
    %v8805 = vld [vmem:[#allocation7 + $0x54] sm:$0xf]
    %v8806 = vld [vmem:[#allocation7 + $0x58] sm:$0xf]
    %v8807 = vld [vmem:[#allocation7 + $0x5c] sm:$0xf]
    %v8808 = vld [vmem:[#allocation7 + $0x60] sm:$0xf]
    %v8809 = vld [vmem:[#allocation7 + $0x64] sm:$0xf]
    %v8810 = vld [vmem:[#allocation7 + $0x68] sm:$0xf]
    %v8811 = vld [vmem:[#allocation7 + $0x6c] sm:$0xf]
    %v8812 = vld [vmem:[#allocation7 + $0x70] sm:$0xf]
    %v8813 = vld [vmem:[#allocation7 + $0x74] sm:$0xf]
    %v8814 = vld [vmem:[#allocation7 + $0x78] sm:$0xf]
    %v8815 = vld [vmem:[#allocation7 + $0x7c] sm:$0xf]
    %v8816 = vld [vmem:[#allocation7 + $0x80] sm:$0xf]
    %v8817 = vld [vmem:[#allocation7 + $0x84] sm:$0xf]
    %v8818 = vld [vmem:[#allocation7 + $0x88] sm:$0xf]
    %v8819 = vld [vmem:[#allocation7 + $0x8c] sm:$0xf]
    %v8820 = vld [vmem:[#allocation7 + $0x90] sm:$0xf]
    %v8821 = vld [vmem:[#allocation7 + $0x94] sm:$0xf]
    %v8822 = vld [vmem:[#allocation7 + $0x98] sm:$0xf]
    %v8823 = vld [vmem:[#allocation7 + $0x9c] sm:$0xf]
    %v8824 = vld [vmem:[#allocation7 + $0xa0] sm:$0xf]
    %v8825 = vld [vmem:[#allocation7 + $0xa4] sm:$0xf]
    %v8826 = vld [vmem:[#allocation7 + $0xa8] sm:$0xf]
    %v8827 = vld [vmem:[#allocation7 + $0xac] sm:$0xf]
    %v8828 = vld [vmem:[#allocation7 + $0xb0] sm:$0xf]
    %v8829 = vld [vmem:[#allocation7 + $0xb4] sm:$0xf]
    %v8830 = vld [vmem:[#allocation7 + $0xb8] sm:$0xf]
    %v8831 = vld [vmem:[#allocation7 + $0xbc] sm:$0xf]
    %v8832 = vld [vmem:[#allocation7 + $0xc0] sm:$0xf]
    %v8833 = vld [vmem:[#allocation7 + $0xc4] sm:$0xf]
    %v8834 = vld [vmem:[#allocation7 + $0xc8] sm:$0xf]
    %v8835 = vld [vmem:[#allocation7 + $0xcc] sm:$0xf]
    %v8836 = vld [vmem:[#allocation7 + $0xd0] sm:$0xf]
    %v8837 = vld [vmem:[#allocation7 + $0xd4] sm:$0xf]
    %v8838 = vld [vmem:[#allocation7 + $0xd8] sm:$0xf]
    %v8839 = vld [vmem:[#allocation7 + $0xdc] sm:$0xf]
    %v8840 = vld [vmem:[#allocation7 + $0xe0] sm:$0xf]
    %v8841 = vld [vmem:[#allocation7 + $0xe4] sm:$0xf]
    %v8842 = vld [vmem:[#allocation7 + $0xe8] sm:$0xf]
    %v8843 = vld [vmem:[#allocation7 + $0xec] sm:$0xf]
    %v8844 = vld [vmem:[#allocation7 + $0xf0] sm:$0xf]
    %v8845 = vld [vmem:[#allocation7 + $0xf4] sm:$0xf]
    %v8846 = vld [vmem:[#allocation7 + $0xf8] sm:$0xf]
    %v8847 = vld [vmem:[#allocation7 + $0xfc] sm:$0xf]
    %v8848 = vld [vmem:[#allocation7 + $0x100] sm:$0xf]
    %v8849 = vld [vmem:[#allocation7 + $0x104] sm:$0xf]
    %v8850 = vld [vmem:[#allocation7 + $0x108] sm:$0xf]
    %v8851 = vld [vmem:[#allocation7 + $0x10c] sm:$0xf]
    %v8852 = vld [vmem:[#allocation7 + $0x110] sm:$0xf]
    %v8853 = vld [vmem:[#allocation7 + $0x114] sm:$0xf]
    %v8854 = vld [vmem:[#allocation7 + $0x118] sm:$0xf]
    %v8855 = vld [vmem:[#allocation7 + $0x11c] sm:$0xf]
    %v8856 = vld [vmem:[#allocation7 + $0x120] sm:$0xf]
    %v8857 = vld [vmem:[#allocation7 + $0x124] sm:$0xf]
    %v8858 = vld [vmem:[#allocation7 + $0x128] sm:$0xf]
    %v8859 = vld [vmem:[#allocation7 + $0x12c] sm:$0xf]
    %v8860 = vld [vmem:[#allocation7 + $0x130] sm:$0xf]
    %v8861 = vld [vmem:[#allocation7 + $0x134] sm:$0xf]
    %v8862 = vld [vmem:[#allocation7 + $0x138] sm:$0xf]
    %v8863 = vld [vmem:[#allocation7 + $0x13c] sm:$0xf]
    %v8864 = vld [vmem:[#allocation7 + $0x140] sm:$0xf]
    %v8865 = vld [vmem:[#allocation7 + $0x144] sm:$0xf]
    %v8866 = vld [vmem:[#allocation7 + $0x148] sm:$0xf]
    %v8867 = vld [vmem:[#allocation7 + $0x14c] sm:$0xf]
    %v8868 = vld [vmem:[#allocation7 + $0x150] sm:$0xf]
    %v8869 = vld [vmem:[#allocation7 + $0x154] sm:$0xf]
    %v8870 = vld [vmem:[#allocation7 + $0x158] sm:$0xf]
    %v8871 = vld [vmem:[#allocation7 + $0x15c] sm:$0xf]
    %v8872 = vld [vmem:[#allocation7 + $0x160] sm:$0xf]
    %v8873 = vld [vmem:[#allocation7 + $0x164] sm:$0xf]
    %v8874 = vld [vmem:[#allocation7 + $0x168] sm:$0xf]
    %v8875 = vld [vmem:[#allocation7 + $0x16c] sm:$0xf]
    %v8876 = vld [vmem:[#allocation7 + $0x170] sm:$0xf]
    %v8877 = vld [vmem:[#allocation7 + $0x174] sm:$0xf]
    %v8878 = vld [vmem:[#allocation7 + $0x178] sm:$0xf]
    %v8879 = vld [vmem:[#allocation7 + $0x17c] sm:$0xf]
    %v8880 = vld [vmem:[#allocation7 + $0x180] sm:$0xf]
    %v8881 = vld [vmem:[#allocation7 + $0x184] sm:$0xf]
    %v8882 = vld [vmem:[#allocation7 + $0x188] sm:$0xf]
    %v8883 = vld [vmem:[#allocation7 + $0x18c] sm:$0xf]
    %v8884 = vld [vmem:[#allocation7 + $0x190] sm:$0xf]
    %v8885 = vld [vmem:[#allocation7 + $0x194] sm:$0xf]
    %v8886 = vld [vmem:[#allocation7 + $0x198] sm:$0xf]
    %v8887 = vld [vmem:[#allocation7 + $0x19c] sm:$0xf]
    %v8888 = vld [vmem:[#allocation7 + $0x1a0] sm:$0xf]
    %v8889 = vld [vmem:[#allocation7 + $0x1a4] sm:$0xf]
    %v8890 = vld [vmem:[#allocation7 + $0x1a8] sm:$0xf]
    %v8891 = vld [vmem:[#allocation7 + $0x1ac] sm:$0xf]
    %v8892 = vld [vmem:[#allocation7 + $0x1b0] sm:$0xf]
    %v8893 = vld [vmem:[#allocation7 + $0x1b4] sm:$0xf]
    %v8894 = vld [vmem:[#allocation7 + $0x1b8] sm:$0xf]
    %v8895 = vld [vmem:[#allocation7 + $0x1bc] sm:$0xf]
    %v8896 = vld [vmem:[#allocation7 + $0x1c0] sm:$0xf]
    %v8897 = vld [vmem:[#allocation7 + $0x1c4] sm:$0xf]
    %v8898 = vld [vmem:[#allocation7 + $0x1c8] sm:$0xf]
    %v8899 = vld [vmem:[#allocation7 + $0x1cc] sm:$0xf]
    %v8900 = vld [vmem:[#allocation7 + $0x1d0] sm:$0xf]
    %v8901 = vld [vmem:[#allocation7 + $0x1d4] sm:$0xf]
    %v8902 = vld [vmem:[#allocation7 + $0x1d8] sm:$0xf]
    %v8903 = vld [vmem:[#allocation7 + $0x1dc] sm:$0xf]
    %v8904 = vld [vmem:[#allocation7 + $0x1e0] sm:$0xf]
    %v8905 = vld [vmem:[#allocation7 + $0x1e4] sm:$0xf]
    %v8906 = vld [vmem:[#allocation7 + $0x1e8] sm:$0xf]
    %v8907 = vld [vmem:[#allocation7 + $0x1ec] sm:$0xf]
    %v8908 = vld [vmem:[#allocation7 + $0x1f0] sm:$0xf]
    %v8909 = vld [vmem:[#allocation7 + $0x1f4] sm:$0xf]
    %v8910 = vld [vmem:[#allocation7 + $0x1f8] sm:$0xf]
    %v8911 = vld [vmem:[#allocation7 + $0x1fc] sm:$0xf]
    %v9040 = vunpack.c.l.b16 %v8784
    %v9041 = vunpack.c.l.b16 %v8785
    %v9042 = vunpack.c.l.b16 %v8786
    %v9043 = vunpack.c.l.b16 %v8787
    %v9044 = vunpack.c.l.b16 %v8788
    %v9045 = vunpack.c.l.b16 %v8789
    %v9046 = vunpack.c.l.b16 %v8790
    %v9047 = vunpack.c.l.b16 %v8791
    %v9048 = vunpack.c.l.b16 %v8792
    %v9049 = vunpack.c.l.b16 %v8793
    %v9050 = vunpack.c.l.b16 %v8794
    %v9051 = vunpack.c.l.b16 %v8795
    %v9052 = vunpack.c.l.b16 %v8796
    %v9053 = vunpack.c.l.b16 %v8797
    %v9054 = vunpack.c.l.b16 %v8798
    %v9055 = vunpack.c.l.b16 %v8799
    %v9056 = vunpack.c.l.b16 %v8800
    %v9057 = vunpack.c.l.b16 %v8801
    %v9058 = vunpack.c.l.b16 %v8802
    %v9059 = vunpack.c.l.b16 %v8803
    %v9060 = vunpack.c.l.b16 %v8804
    %v9061 = vunpack.c.l.b16 %v8805
    %v9062 = vunpack.c.l.b16 %v8806
    %v9063 = vunpack.c.l.b16 %v8807
    %v9064 = vunpack.c.l.b16 %v8808
    %v9065 = vunpack.c.l.b16 %v8809
    %v9066 = vunpack.c.l.b16 %v8810
    %v9067 = vunpack.c.l.b16 %v8811
    %v9068 = vunpack.c.l.b16 %v8812
    %v9069 = vunpack.c.l.b16 %v8813
    %v9070 = vunpack.c.l.b16 %v8814
    %v9071 = vunpack.c.l.b16 %v8815
    %v9072 = vunpack.c.l.b16 %v8816
    %v9073 = vunpack.c.l.b16 %v8817
    %v9074 = vunpack.c.l.b16 %v8818
    %v9075 = vunpack.c.l.b16 %v8819
    %v9076 = vunpack.c.l.b16 %v8820
    %v9077 = vunpack.c.l.b16 %v8821
    %v9078 = vunpack.c.l.b16 %v8822
    %v9079 = vunpack.c.l.b16 %v8823
    %v9080 = vunpack.c.l.b16 %v8824
    %v9081 = vunpack.c.l.b16 %v8825
    %v9082 = vunpack.c.l.b16 %v8826
    %v9083 = vunpack.c.l.b16 %v8827
    %v9084 = vunpack.c.l.b16 %v8828
    %v9085 = vunpack.c.l.b16 %v8829
    %v9086 = vunpack.c.l.b16 %v8830
    %v9087 = vunpack.c.l.b16 %v8831
    %v9088 = vunpack.c.l.b16 %v8832
    %v9089 = vunpack.c.l.b16 %v8833
    %v9090 = vunpack.c.l.b16 %v8834
    %v9091 = vunpack.c.l.b16 %v8835
    %v9092 = vunpack.c.l.b16 %v8836
    %v9093 = vunpack.c.l.b16 %v8837
    %v9094 = vunpack.c.l.b16 %v8838
    %v9095 = vunpack.c.l.b16 %v8839
    %v9096 = vunpack.c.l.b16 %v8840
    %v9097 = vunpack.c.l.b16 %v8841
    %v9098 = vunpack.c.l.b16 %v8842
    %v9099 = vunpack.c.l.b16 %v8843
    %v9100 = vunpack.c.l.b16 %v8844
    %v9101 = vunpack.c.l.b16 %v8845
    %v9102 = vunpack.c.l.b16 %v8846
    %v9103 = vunpack.c.l.b16 %v8847
    %v9104 = vunpack.c.l.b16 %v8848
    %v9105 = vunpack.c.l.b16 %v8849
    %v9106 = vunpack.c.l.b16 %v8850
    %v9107 = vunpack.c.l.b16 %v8851
    %v9108 = vunpack.c.l.b16 %v8852
    %v9109 = vunpack.c.l.b16 %v8853
    %v9110 = vunpack.c.l.b16 %v8854
    %v9111 = vunpack.c.l.b16 %v8855
    %v9112 = vunpack.c.l.b16 %v8856
    %v9113 = vunpack.c.l.b16 %v8857
    %v9114 = vunpack.c.l.b16 %v8858
    %v9115 = vunpack.c.l.b16 %v8859
    %v9116 = vunpack.c.l.b16 %v8860
    %v9117 = vunpack.c.l.b16 %v8861
    %v9118 = vunpack.c.l.b16 %v8862
    %v9119 = vunpack.c.l.b16 %v8863
    %v9120 = vunpack.c.l.b16 %v8864
    %v9121 = vunpack.c.l.b16 %v8865
    %v9122 = vunpack.c.l.b16 %v8866
    %v9123 = vunpack.c.l.b16 %v8867
    %v9124 = vunpack.c.l.b16 %v8868
    %v9125 = vunpack.c.l.b16 %v8869
    %v9126 = vunpack.c.l.b16 %v8870
    %v9127 = vunpack.c.l.b16 %v8871
    %v9128 = vunpack.c.l.b16 %v8872
    %v9129 = vunpack.c.l.b16 %v8873
    %v9130 = vunpack.c.l.b16 %v8874
    %v9131 = vunpack.c.l.b16 %v8875
    %v9132 = vunpack.c.l.b16 %v8876
    %v9133 = vunpack.c.l.b16 %v8877
    %v9134 = vunpack.c.l.b16 %v8878
    %v9135 = vunpack.c.l.b16 %v8879
    %v9136 = vunpack.c.l.b16 %v8880
    %v9137 = vunpack.c.l.b16 %v8881
    %v9138 = vunpack.c.l.b16 %v8882
    %v9139 = vunpack.c.l.b16 %v8883
    %v9140 = vunpack.c.l.b16 %v8884
    %v9141 = vunpack.c.l.b16 %v8885
    %v9142 = vunpack.c.l.b16 %v8886
    %v9143 = vunpack.c.l.b16 %v8887
    %v9144 = vunpack.c.l.b16 %v8888
    %v9145 = vunpack.c.l.b16 %v8889
    %v9146 = vunpack.c.l.b16 %v8890
    %v9147 = vunpack.c.l.b16 %v8891
    %v9148 = vunpack.c.l.b16 %v8892
    %v9149 = vunpack.c.l.b16 %v8893
    %v9150 = vunpack.c.l.b16 %v8894
    %v9151 = vunpack.c.l.b16 %v8895
    %v9152 = vunpack.c.l.b16 %v8896
    %v9153 = vunpack.c.l.b16 %v8897
    %v9154 = vunpack.c.l.b16 %v8898
    %v9155 = vunpack.c.l.b16 %v8899
    %v9156 = vunpack.c.l.b16 %v8900
    %v9157 = vunpack.c.l.b16 %v8901
    %v9158 = vunpack.c.l.b16 %v8902
    %v9159 = vunpack.c.l.b16 %v8903
    %v9160 = vunpack.c.l.b16 %v8904
    %v9161 = vunpack.c.l.b16 %v8905
    %v9162 = vunpack.c.l.b16 %v8906
    %v9163 = vunpack.c.l.b16 %v8907
    %v9164 = vunpack.c.l.b16 %v8908
    %v9165 = vunpack.c.l.b16 %v8909
    %v9166 = vunpack.c.l.b16 %v8910
    %v9167 = vunpack.c.l.b16 %v8911
    %v9168 = vpack.c.b16 %v9041, %v9040
    %v9169 = vpack.c.b16 %v9043, %v9042
    %v9170 = vpack.c.b16 %v9045, %v9044
    %v9171 = vpack.c.b16 %v9047, %v9046
    %v9172 = vpack.c.b16 %v9049, %v9048
    %v9173 = vpack.c.b16 %v9051, %v9050
    %v9174 = vpack.c.b16 %v9053, %v9052
    %v9175 = vpack.c.b16 %v9055, %v9054
    %v9176 = vpack.c.b16 %v9057, %v9056
    %v9177 = vpack.c.b16 %v9059, %v9058
    %v9178 = vpack.c.b16 %v9061, %v9060
    %v9179 = vpack.c.b16 %v9063, %v9062
    %v9180 = vpack.c.b16 %v9065, %v9064
    %v9181 = vpack.c.b16 %v9067, %v9066
    %v9182 = vpack.c.b16 %v9069, %v9068
    %v9183 = vpack.c.b16 %v9071, %v9070
    %v9184 = vpack.c.b16 %v9073, %v9072
    %v9185 = vpack.c.b16 %v9075, %v9074
    %v9186 = vpack.c.b16 %v9077, %v9076
    %v9187 = vpack.c.b16 %v9079, %v9078
    %v9188 = vpack.c.b16 %v9081, %v9080
    %v9189 = vpack.c.b16 %v9083, %v9082
    %v9190 = vpack.c.b16 %v9085, %v9084
    %v9191 = vpack.c.b16 %v9087, %v9086
    %v9192 = vpack.c.b16 %v9089, %v9088
    %v9193 = vpack.c.b16 %v9091, %v9090
    %v9194 = vpack.c.b16 %v9093, %v9092
    %v9195 = vpack.c.b16 %v9095, %v9094
    %v9196 = vpack.c.b16 %v9097, %v9096
    %v9197 = vpack.c.b16 %v9099, %v9098
    %v9198 = vpack.c.b16 %v9101, %v9100
    %v9199 = vpack.c.b16 %v9103, %v9102
    %v9200 = vpack.c.b16 %v9105, %v9104
    %v9201 = vpack.c.b16 %v9107, %v9106
    %v9202 = vpack.c.b16 %v9109, %v9108
    %v9203 = vpack.c.b16 %v9111, %v9110
    %v9204 = vpack.c.b16 %v9113, %v9112
    %v9205 = vpack.c.b16 %v9115, %v9114
    %v9206 = vpack.c.b16 %v9117, %v9116
    %v9207 = vpack.c.b16 %v9119, %v9118
    %v9208 = vpack.c.b16 %v9121, %v9120
    %v9209 = vpack.c.b16 %v9123, %v9122
    %v9210 = vpack.c.b16 %v9125, %v9124
    %v9211 = vpack.c.b16 %v9127, %v9126
    %v9212 = vpack.c.b16 %v9129, %v9128
    %v9213 = vpack.c.b16 %v9131, %v9130
    %v9214 = vpack.c.b16 %v9133, %v9132
    %v9215 = vpack.c.b16 %v9135, %v9134
    %v9216 = vpack.c.b16 %v9137, %v9136
    %v9217 = vpack.c.b16 %v9139, %v9138
    %v9218 = vpack.c.b16 %v9141, %v9140
    %v9219 = vpack.c.b16 %v9143, %v9142
    %v9220 = vpack.c.b16 %v9145, %v9144
    %v9221 = vpack.c.b16 %v9147, %v9146
    %v9222 = vpack.c.b16 %v9149, %v9148
    %v9223 = vpack.c.b16 %v9151, %v9150
    %v9224 = vpack.c.b16 %v9153, %v9152
    %v9225 = vpack.c.b16 %v9155, %v9154
    %v9226 = vpack.c.b16 %v9157, %v9156
    %v9227 = vpack.c.b16 %v9159, %v9158
    %v9228 = vpack.c.b16 %v9161, %v9160
    %v9229 = vpack.c.b16 %v9163, %v9162
    %v9230 = vpack.c.b16 %v9165, %v9164
    %v9231 = vpack.c.b16 %v9167, %v9166
    %9296 = vmatprep.subr.bf16.mxu0 0
    %9297 = vmatpush1.bf16.msra.mxu0 %v9175
    %9298 = vmatprep.subr.bf16.mxu0 0
    %9299 = vmatpush1.bf16.msra.mxu0 %v9174
    %9300 = vmatprep.subr.bf16.mxu0 0
    %9301 = vmatpush1.bf16.msra.mxu0 %v9173
    %9302 = vmatprep.subr.bf16.mxu0 0
    %9303 = vmatpush1.bf16.msra.mxu0 %v9172
    %9304 = vmatprep.subr.bf16.mxu0 0
    %9305 = vmatpush1.bf16.msra.mxu0 %v9171
    %9306 = vmatprep.subr.bf16.mxu0 0
    %9307 = vmatpush1.bf16.msra.mxu0 %v9170
    %9308 = vmatprep.subr.bf16.mxu0 0
    %9309 = vmatpush1.bf16.msra.mxu0 %v9169
    %9310 = vmatprep.subr.bf16.mxu0 0
    %9311 = vmatpush1.bf16.msra.mxu0 %v9168
    %9312 = vmatprep.subr.bf16.mxu0 0
    %9313 = vmatpush2.bf16.msra.mxu0 %v9183
    %9314 = vmatprep.subr.bf16.mxu0 0
    %9315 = vmatpush2.bf16.msra.mxu0 %v9182
    %9316 = vmatprep.subr.bf16.mxu0 0
    %9317 = vmatpush2.bf16.msra.mxu0 %v9181
    %9318 = vmatprep.subr.bf16.mxu0 0
    %9319 = vmatpush2.bf16.msra.mxu0 %v9180
    %9320 = vmatprep.subr.bf16.mxu0 0
    %9321 = vmatpush2.bf16.msra.mxu0 %v9179
    %9322 = vmatprep.subr.bf16.mxu0 0
    %9323 = vmatpush2.bf16.msra.mxu0 %v9178
    %9324 = vmatprep.subr.bf16.mxu0 0
    %9325 = vmatpush2.bf16.msra.mxu0 %v9177
    %9326 = vmatprep.subr.bf16.mxu0 0
    %9327 = vmatpush2.bf16.msra.mxu0 %v9176
    %9328 = vmatprep.mubr.bf16.mxu0 %v8777
    %9329 = vmatmul.mubr.bf16.gmra.mxu0 %v8776
    %v9330 = vpop.f32.mrf.mxu0
    %v9331 = vadd.f32 0.0, %v9330
    %v9332 = vpop.f32.mrf.mxu0
    %v9333 = vpop.f32.mrf.mxu0
    %v9334 = vpop.f32.mrf.mxu0
    %9335 = vdwg.mxu0
    %9336 = vmatprep.subr.bf16.mxu0 0
    %9337 = vmatpush1.bf16.msra.mxu0 %v9191
    %9338 = vmatprep.subr.bf16.mxu0 0
    %9339 = vmatpush1.bf16.msra.mxu0 %v9190
    %9340 = vmatprep.subr.bf16.mxu0 0
    %9341 = vmatpush1.bf16.msra.mxu0 %v9189
    %9342 = vmatprep.subr.bf16.mxu0 0
    %9343 = vmatpush1.bf16.msra.mxu0 %v9188
    %9344 = vmatprep.subr.bf16.mxu0 0
    %9345 = vmatpush1.bf16.msra.mxu0 %v9187
    %9346 = vmatprep.subr.bf16.mxu0 0
    %9347 = vmatpush1.bf16.msra.mxu0 %v9186
    %9348 = vmatprep.subr.bf16.mxu0 0
    %9349 = vmatpush1.bf16.msra.mxu0 %v9185
    %9350 = vmatprep.subr.bf16.mxu0 0
    %9351 = vmatpush1.bf16.msra.mxu0 %v9184
    %9352 = vmatprep.subr.bf16.mxu0 0
    %9353 = vmatpush2.bf16.msra.mxu0 %v9199
    %9354 = vmatprep.subr.bf16.mxu0 0
    %9355 = vmatpush2.bf16.msra.mxu0 %v9198
    %9356 = vmatprep.subr.bf16.mxu0 0
    %9357 = vmatpush2.bf16.msra.mxu0 %v9197
    %9358 = vmatprep.subr.bf16.mxu0 0
    %9359 = vmatpush2.bf16.msra.mxu0 %v9196
    %9360 = vmatprep.subr.bf16.mxu0 0
    %9361 = vmatpush2.bf16.msra.mxu0 %v9195
    %9362 = vmatprep.subr.bf16.mxu0 0
    %9363 = vmatpush2.bf16.msra.mxu0 %v9194
    %9364 = vmatprep.subr.bf16.mxu0 0
    %9365 = vmatpush2.bf16.msra.mxu0 %v9193
    %9366 = vmatprep.subr.bf16.mxu0 0
    %9367 = vmatpush2.bf16.msra.mxu0 %v9192
    %9368 = vmatprep.mubr.bf16.mxu0 %v8779
    %9369 = vmatmul.mubr.bf16.gmra.mxu0 %v8778
    %v9370 = vpop.f32.mrf.mxu0
    %v9371 = vadd.f32 %v9331, %v9370
    %v9372 = vpop.f32.mrf.mxu0
    %v9373 = vpop.f32.mrf.mxu0
    %v9374 = vpop.f32.mrf.mxu0
    %9375 = vdwg.mxu0
    %9376 = vmatprep.subr.bf16.mxu0 0
    %9377 = vmatpush1.bf16.msra.mxu0 %v9207
    %9378 = vmatprep.subr.bf16.mxu0 0
    %9379 = vmatpush1.bf16.msra.mxu0 %v9206
    %9380 = vmatprep.subr.bf16.mxu0 0
    %9381 = vmatpush1.bf16.msra.mxu0 %v9205
    %9382 = vmatprep.subr.bf16.mxu0 0
    %9383 = vmatpush1.bf16.msra.mxu0 %v9204
    %9384 = vmatprep.subr.bf16.mxu0 0
    %9385 = vmatpush1.bf16.msra.mxu0 %v9203
    %9386 = vmatprep.subr.bf16.mxu0 0
    %9387 = vmatpush1.bf16.msra.mxu0 %v9202
    %9388 = vmatprep.subr.bf16.mxu0 0
    %9389 = vmatpush1.bf16.msra.mxu0 %v9201
    %9390 = vmatprep.subr.bf16.mxu0 0
    %9391 = vmatpush1.bf16.msra.mxu0 %v9200
    %9392 = vmatprep.subr.bf16.mxu0 0
    %9393 = vmatpush2.bf16.msra.mxu0 %v9215
    %9394 = vmatprep.subr.bf16.mxu0 0
    %9395 = vmatpush2.bf16.msra.mxu0 %v9214
    %9396 = vmatprep.subr.bf16.mxu0 0
    %9397 = vmatpush2.bf16.msra.mxu0 %v9213
    %9398 = vmatprep.subr.bf16.mxu0 0
    %9399 = vmatpush2.bf16.msra.mxu0 %v9212
    %9400 = vmatprep.subr.bf16.mxu0 0
    %9401 = vmatpush2.bf16.msra.mxu0 %v9211
    %9402 = vmatprep.subr.bf16.mxu0 0
    %9403 = vmatpush2.bf16.msra.mxu0 %v9210
    %9404 = vmatprep.subr.bf16.mxu0 0
    %9405 = vmatpush2.bf16.msra.mxu0 %v9209
    %9406 = vmatprep.subr.bf16.mxu0 0
    %9407 = vmatpush2.bf16.msra.mxu0 %v9208
    %9408 = vmatprep.mubr.bf16.mxu0 %v8781
    %9409 = vmatmul.mubr.bf16.gmra.mxu0 %v8780
    %v9410 = vpop.f32.mrf.mxu0
    %v9411 = vadd.f32 %v9371, %v9410
    %v9412 = vpop.f32.mrf.mxu0
    %v9413 = vpop.f32.mrf.mxu0
    %v9414 = vpop.f32.mrf.mxu0
    %9415 = vdwg.mxu0
    %9416 = vmatprep.subr.bf16.mxu0 0
    %9417 = vmatpush1.bf16.msra.mxu0 %v9223
    %9418 = vmatprep.subr.bf16.mxu0 0
    %9419 = vmatpush1.bf16.msra.mxu0 %v9222
    %9420 = vmatprep.subr.bf16.mxu0 0
    %9421 = vmatpush1.bf16.msra.mxu0 %v9221
    %9422 = vmatprep.subr.bf16.mxu0 0
    %9423 = vmatpush1.bf16.msra.mxu0 %v9220
    %9424 = vmatprep.subr.bf16.mxu0 0
    %9425 = vmatpush1.bf16.msra.mxu0 %v9219
    %9426 = vmatprep.subr.bf16.mxu0 0
    %9427 = vmatpush1.bf16.msra.mxu0 %v9218
    %9428 = vmatprep.subr.bf16.mxu0 0
    %9429 = vmatpush1.bf16.msra.mxu0 %v9217
    %9430 = vmatprep.subr.bf16.mxu0 0
    %9431 = vmatpush1.bf16.msra.mxu0 %v9216
    %9432 = vmatprep.subr.bf16.mxu0 0
    %9433 = vmatpush2.bf16.msra.mxu0 %v9231
    %9434 = vmatprep.subr.bf16.mxu0 0
    %9435 = vmatpush2.bf16.msra.mxu0 %v9230
    %9436 = vmatprep.subr.bf16.mxu0 0
    %9437 = vmatpush2.bf16.msra.mxu0 %v9229
    %9438 = vmatprep.subr.bf16.mxu0 0
    %9439 = vmatpush2.bf16.msra.mxu0 %v9228
    %9440 = vmatprep.subr.bf16.mxu0 0
    %9441 = vmatpush2.bf16.msra.mxu0 %v9227
    %9442 = vmatprep.subr.bf16.mxu0 0
    %9443 = vmatpush2.bf16.msra.mxu0 %v9226
    %9444 = vmatprep.subr.bf16.mxu0 0
    %9445 = vmatpush2.bf16.msra.mxu0 %v9225
    %9446 = vmatprep.subr.bf16.mxu0 0
    %9447 = vmatpush2.bf16.msra.mxu0 %v9224
    %9448 = vmatprep.mubr.bf16.mxu0 %v8783
    %9449 = vmatmul.mubr.bf16.gmra.mxu0 %v8782
    %v9450 = vpop.f32.mrf.mxu0
    %v9451 = vadd.f32 %v9411, %v9450
    %v9452 = vpop.f32.mrf.mxu0
    %v9453 = vpop.f32.mrf.mxu0
    %v9454 = vpop.f32.mrf.mxu0
    %9455 = vdwg.mxu0
    %v9456 = vld [vmem:[#allocation9 + $0x6] ss:$0 sm:$0xff]
    %v9457 = vld [vmem:[#allocation9 + $0x7] ss:$0 sm:$0xff]
    %v9458 = vrot.slane %v9451, 4
    %v9459 = vadd.f32 %v9451, %v9458
    %v9460 = vrot.slane %v9459, 2
    %v9461 = vadd.f32 %v9459, %v9460
    %v9462 = vrot.slane %v9461, 1
    %v9463 = vadd.f32 %v9461, %v9462
    %v9464 = vmul.f32 %v9463, %v408
    %v9465 = vsub.f32 %v9451, %v9464
    %v9466 = vmul.f32 %v9465, %v9465
    %v9467 = vrot.slane %v9466, 4
    %v9468 = vadd.f32 %v9466, %v9467
    %v9469 = vrot.slane %v9468, 2
    %v9470 = vadd.f32 %v9468, %v9469
    %v9471 = vrot.slane %v9470, 1
    %v9472 = vadd.f32 %v9470, %v9471
    %v9473 = vmul.f32 %v9472, %v408
    %v9474 = vadd.f32 %v9473, 1e-05
    %v9475 = vrsqrt.pop %v9474
    %v9476 = vmul.f32 %v9456, %v9475
    %v9477 = vmul.f32 %v9465, %v9476
    %v9478 = vadd.f32 %v9477, %v9457
    %v9479 = vmax.f32 %v9478, 0.0
    %v9480 = vpack.c.bf16 %v9479, %v9479
    %v9481 = vld [vmem:[#allocation7 + $0x200] sm:$0xf]
    %v9482 = vld [vmem:[#allocation7 + $0x204] sm:$0xf]
    %v9483 = vld [vmem:[#allocation7 + $0x208] sm:$0xf]
    %v9484 = vld [vmem:[#allocation7 + $0x20c] sm:$0xf]
    %v9485 = vld [vmem:[#allocation7 + $0x210] sm:$0xf]
    %v9486 = vld [vmem:[#allocation7 + $0x214] sm:$0xf]
    %v9487 = vld [vmem:[#allocation7 + $0x218] sm:$0xf]
    %v9488 = vld [vmem:[#allocation7 + $0x21c] sm:$0xf]
    %v9489 = vld [vmem:[#allocation7 + $0x220] sm:$0xf]
    %v9490 = vld [vmem:[#allocation7 + $0x224] sm:$0xf]
    %v9491 = vld [vmem:[#allocation7 + $0x228] sm:$0xf]
    %v9492 = vld [vmem:[#allocation7 + $0x22c] sm:$0xf]
    %v9493 = vld [vmem:[#allocation7 + $0x230] sm:$0xf]
    %v9494 = vld [vmem:[#allocation7 + $0x234] sm:$0xf]
    %v9495 = vld [vmem:[#allocation7 + $0x238] sm:$0xf]
    %v9496 = vld [vmem:[#allocation7 + $0x23c] sm:$0xf]
    %v9497 = vld [vmem:[#allocation9 + $0x40] ss:$0 sm:$0xff]
    %v9514 = vunpack.c.l.b16 %v9481
    %v9515 = vunpack.c.l.b16 %v9482
    %v9516 = vunpack.c.l.b16 %v9483
    %v9517 = vunpack.c.l.b16 %v9484
    %v9518 = vunpack.c.l.b16 %v9485
    %v9519 = vunpack.c.l.b16 %v9486
    %v9520 = vunpack.c.l.b16 %v9487
    %v9521 = vunpack.c.l.b16 %v9488
    %v9522 = vunpack.c.l.b16 %v9489
    %v9523 = vunpack.c.l.b16 %v9490
    %v9524 = vunpack.c.l.b16 %v9491
    %v9525 = vunpack.c.l.b16 %v9492
    %v9526 = vunpack.c.l.b16 %v9493
    %v9527 = vunpack.c.l.b16 %v9494
    %v9528 = vunpack.c.l.b16 %v9495
    %v9529 = vunpack.c.l.b16 %v9496
    %v9530 = vpack.c.b16 %v9515, %v9514
    %v9531 = vpack.c.b16 %v9517, %v9516
    %v9532 = vpack.c.b16 %v9519, %v9518
    %v9533 = vpack.c.b16 %v9521, %v9520
    %v9534 = vpack.c.b16 %v9523, %v9522
    %v9535 = vpack.c.b16 %v9525, %v9524
    %v9536 = vpack.c.b16 %v9527, %v9526
    %v9537 = vpack.c.b16 %v9529, %v9528
    %9546 = vmatprep.subr.bf16.mxu0 0
    %9547 = vmatpush1.bf16.msra.mxu0 %v9537
    %9548 = vmatprep.subr.bf16.mxu0 0
    %9549 = vmatpush1.bf16.msra.mxu0 %v9536
    %9550 = vmatprep.subr.bf16.mxu0 0
    %9551 = vmatpush1.bf16.msra.mxu0 %v9535
    %9552 = vmatprep.subr.bf16.mxu0 0
    %9553 = vmatpush1.bf16.msra.mxu0 %v9534
    %9554 = vmatprep.subr.bf16.mxu0 0
    %9555 = vmatpush1.bf16.msra.mxu0 %v9533
    %9556 = vmatprep.subr.bf16.mxu0 0
    %9557 = vmatpush1.bf16.msra.mxu0 %v9532
    %9558 = vmatprep.subr.bf16.mxu0 0
    %9559 = vmatpush1.bf16.msra.mxu0 %v9531
    %9560 = vmatprep.subr.bf16.mxu0 0
    %9561 = vmatpush1.bf16.msra.mxu0 %v9530
    %9562 = vmatprep.subr.bf16.mxu0 0
    %9563 = vmatpush2.bf16.msra.mxu0 0
    %9564 = vmatprep.subr.bf16.mxu0 0
    %9565 = vmatpush2.bf16.msra.mxu0 0
    %9566 = vmatprep.subr.bf16.mxu0 0
    %9567 = vmatpush2.bf16.msra.mxu0 0
    %9568 = vmatprep.subr.bf16.mxu0 0
    %9569 = vmatpush2.bf16.msra.mxu0 0
    %9570 = vmatprep.subr.bf16.mxu0 0
    %9571 = vmatpush2.bf16.msra.mxu0 0
    %9572 = vmatprep.subr.bf16.mxu0 0
    %9573 = vmatpush2.bf16.msra.mxu0 0
    %9574 = vmatprep.subr.bf16.mxu0 0
    %9575 = vmatpush2.bf16.msra.mxu0 0
    %9576 = vmatprep.subr.bf16.mxu0 0
    %9577 = vmatpush2.bf16.msra.mxu0 0
    %9578 = vmatprep.mubr.bf16.mxu0 0
    %9579 = vmatmul.mubr.bf16.gmra.mxu0 %v9480
    %v9580 = vpop.f32.mrf.mxu0
    %v9581 = vadd.f32 %v9497, %v9580
    %v9582 = vpop.f32.mrf.mxu0
    %v9583 = vpop.f32.mrf.mxu0
    %v9584 = vpop.f32.mrf.mxu0
    %9585 = vdwg.mxu0
    %v9586 = vsub.f32 0.0, %v9581
    %v9587 = vmul.f32 %v9586, 1.442695
    %v9588 = vpow.pop %v9587
    %v9589 = vadd.f32 %v9588, 1.0
    %v9590 = vrcp.pop %v9589
    %9591 = vst [vmem:[%s5] sm:$0xff] %v9590
    // Predicated region
    $region42: #{mi_meta_classifier_large.1} parent=1 // pred_check
      _
    $region43: #{mi_meta_classifier_large.1} parent=1 // pred_check_branch
      %9593 = sbr.rel (0) target = $region45
    $region44: #{mi_meta_classifier_large.1} parent=1 // pred_region
      _
    $region45: #{mi_meta_classifier_large.1} parent=1 // pred_fallthru
      _
    // Predicated region
    $region46: #{mi_meta_classifier_large.1} parent=1 // pred_check
      _
    $region47: #{mi_meta_classifier_large.1} parent=1 // pred_check_branch
      %9595 = sbr.rel (0) target = $region49
    $region48: #{mi_meta_classifier_large.1} parent=1 // pred_region
      _
    $region49: #{mi_meta_classifier_large.1} parent=1 // pred_fallthru
      _
    %9596 = vsyncpa [#allocation3], 1
    %9597 = vsyncpa [#allocation5], 1
    %9598 = vsyncpa [#allocation8], 1

</llo_original>
